<compile_context>
chip_gen: v7x
topology: tpu7x:2x2x1
jax: 0.10.0
libtpu: 0.0.40
codegen_flags: <defaults>
</compile_context>

<pallas_src>
import jax
import jax.numpy as jnp
from jax import lax
from jax.experimental import pallas as pl
from jax.experimental.pallas import tpu as pltpu


def _downsample_conv_kernel(x_ee, x_eo, x_oe, x_oo, w_ref, b_ref, o_ref):
    """One batch element of Conv2d(C, C, 3, stride=2, pad=1), NHWC.

    x_??:  (1, Ho+1, Wo+1, C)  parity planes of the zero-padded input
           (first letter = row parity, second = col parity).
    w_ref: (3, 3, C, C)        w_ref[kh, kw, ci, co]
    b_ref: (1, C)
    o_ref: (1, Ho*Wo, C)       flattened spatial output (reshaped in wrapper)
    """
    _, hop1, wop1, c = x_ee.shape
    ho, wo = hop1 - 1, wop1 - 1

    planes = ((x_ee, x_eo), (x_oe, x_oo))

    acc = jnp.zeros((ho * wo, c), jnp.float32)
    # Static 3x3 tap loop -> 9 accumulated MXU matmuls, f32 accumulator.
    for kh in range(3):
        for kw in range(3):
            plane = planes[kh % 2][kw % 2]
            patch = plane[0,
                          kh // 2: kh // 2 + ho,
                          kw // 2: kw // 2 + wo, :]          # (Ho, Wo, C)
            acc = acc + jnp.dot(
                patch.reshape(ho * wo, c),
                w_ref[kh, kw],
                preferred_element_type=jnp.float32,
                precision=lax.Precision.HIGHEST,
            )

    acc = acc + b_ref[...]                                    # (1, C) broadcast
    o_ref[0] = acc.astype(o_ref.dtype)


def downsample(x: jax.Array, weight: jax.Array, bias: jax.Array) -> jax.Array:
    """Forward of Downsample: x (B,C,H,W), weight (C,C,3,3) OIHW, bias (C,)."""
    b, c, h, w = x.shape
    assert weight.shape == (c, c, 3, 3) and bias.shape == (c,)
    ho = (h + 2 - 3) // 2 + 1
    wo = (w + 2 - 3) // 2 + 1

    # Channels-last so C maps to the lane axis inside the kernel.
    x_nhwc = jnp.transpose(x, (0, 2, 3, 1)).astype(jnp.float32)

    # Zero-pad: 1 on top/left (conv padding) and enough on bottom/right so the
    # padded extent is exactly 2*(Ho+1) / 2*(Wo+1)  (extra rows are never read).
    pad_h = 2 * ho + 1 - h
    pad_w = 2 * wo + 1 - w
    x_pad = jnp.pad(x_nhwc, ((0, 0), (1, pad_h), (1, pad_w), (0, 0)))

    # Parity decomposition (hoisted out of the kernel): each of the 9 taps of a
    # stride-2 conv is a contiguous slice of one of these four planes.
    x_ee = x_pad[:, 0::2, 0::2, :]   # (B, Ho+1, Wo+1, C)
    x_eo = x_pad[:, 0::2, 1::2, :]
    x_oe = x_pad[:, 1::2, 0::2, :]
    x_oo = x_pad[:, 1::2, 1::2, :]

    # OIHW -> (kh, kw, C_in, C_out): each tap is a ready-to-use matmul RHS.
    w_t = jnp.transpose(weight, (2, 3, 1, 0)).astype(jnp.float32)
    b2d = bias.reshape(1, c).astype(jnp.float32)

    plane_spec = pl.BlockSpec((1, ho + 1, wo + 1, c), lambda i: (i, 0, 0, 0))

    out_flat = pl.pallas_call(
        _downsample_conv_kernel,
        out_shape=jax.ShapeDtypeStruct((b, ho * wo, c), jnp.float32),
        grid=(b,),
        in_specs=[
            plane_spec, plane_spec, plane_spec, plane_spec,
            pl.BlockSpec((3, 3, c, c), lambda i: (0, 0, 0, 0)),
            pl.BlockSpec((1, c), lambda i: (0, 0)),
        ],
        out_specs=pl.BlockSpec((1, ho * wo, c), lambda i: (i, 0, 0)),
        compiler_params=pltpu.CompilerParams(
            dimension_semantics=("parallel",)),
    )(x_ee, x_eo, x_oe, x_oo, w_t, b2d)

    out_nhwc = out_flat.reshape(b, ho, wo, c)
    return jnp.transpose(out_nhwc, (0, 3, 1, 2))   # back to NCHW


def _reference(x, weight, bias):
    out = lax.conv_general_dilated(
        x.astype(jnp.float32), weight.astype(jnp.float32),
        window_strides=(2, 2), padding=((1, 1), (1, 1)),
        dimension_numbers=("NCHW", "OIHW", "NCHW"),
        precision=lax.Precision.HIGHEST,
    )
    return out + bias.astype(jnp.float32)[None, :, None, None]


if __name__ == "__main__":
    key = jax.random.PRNGKey(0)
    k_x, k_w, k_b = jax.random.split(key, 3)

    B, C, H, W = 2, 4, 16, 16
    x = jax.random.normal(k_x, (B, C, H, W), dtype=jnp.float32)
    fan_in = C * 3 * 3
    weight = jax.random.normal(k_w, (C, C, 3, 3), dtype=jnp.float32) / jnp.sqrt(
        jnp.float32(fan_in))
    bias = 0.1 * jax.random.normal(k_b, (C,), dtype=jnp.float32)

    out = jax.block_until_ready(downsample(x, weight, bias))

    ref = _reference(x, weight, bias)
    assert out.shape == (B, C, H // 2, W // 2), out.shape
    assert jnp.allclose(out, ref, atol=1e-4, rtol=1e-4), float(
        jnp.max(jnp.abs(out - ref)))

    print("KERNEL_OK")
</pallas_src>

<mosaic_0001>
module attributes {stable_mosaic.version = 11 : i64} {
  func.func @_downsample_conv_kernel(%arg0: i32, %arg1: memref<1x9x9x4xf32, #tpu.memory_space<vmem>>, %arg2: memref<1x9x9x4xf32, #tpu.memory_space<vmem>>, %arg3: memref<1x9x9x4xf32, #tpu.memory_space<vmem>>, %arg4: memref<1x9x9x4xf32, #tpu.memory_space<vmem>>, %arg5: memref<3x3x4x4xf32, #tpu.memory_space<vmem>>, %arg6: memref<1x4xf32, #tpu.memory_space<vmem>>, %arg7: memref<1x64x4xf32, #tpu.memory_space<vmem>>) attributes {dimension_semantics = [#tpu.dimension_semantics<parallel>], iteration_bounds = array<i64: 2>, scalar_prefetch = 0 : i64, scratch_operands = 0 : i64, tpu.core_type = #tpu.core_type<tc>, window_params = [{transform_indices = @transform_0, window_bounds = array<i64: 1, 9, 9, 4>}, {transform_indices = @transform_1, window_bounds = array<i64: 1, 9, 9, 4>}, {transform_indices = @transform_2, window_bounds = array<i64: 1, 9, 9, 4>}, {transform_indices = @transform_3, window_bounds = array<i64: 1, 9, 9, 4>}, {pipeline_mode = #tpu.pipeline_mode<synchronous>, transform_indices = @transform_4, window_bounds = array<i64: 3, 3, 4, 4>}, {pipeline_mode = #tpu.pipeline_mode<synchronous>, transform_indices = @transform_5, window_bounds = array<i64: 1, 4>}, {transform_indices = @transform_6, window_bounds = array<i64: 1, 64, 4>}]} {
    %cst = arith.constant 0.000000e+00 : f32
    %0 = vector.broadcast %cst : f32 to vector<64x4xf32>
    %c0 = arith.constant 0 : index
    %c0_0 = arith.constant 0 : index
    %c0_1 = arith.constant 0 : index
    %c0_2 = arith.constant 0 : index
    %1 = vector.load %arg1[%c0, %c0_0, %c0_1, %c0_2] : memref<1x9x9x4xf32, #tpu.memory_space<vmem>>, vector<1x8x8x4xf32>
    %2 = vector.shape_cast %1 : vector<1x8x8x4xf32> to vector<8x8x4xf32>
    %3 = vector.shape_cast %2 : vector<8x8x4xf32> to vector<64x4xf32>
    %c0_3 = arith.constant 0 : index
    %c0_4 = arith.constant 0 : index
    %c0_5 = arith.constant 0 : index
    %c0_6 = arith.constant 0 : index
    %4 = vector.load %arg5[%c0_3, %c0_4, %c0_5, %c0_6] : memref<3x3x4x4xf32, #tpu.memory_space<vmem>>, vector<1x1x4x4xf32>
    %5 = vector.shape_cast %4 : vector<1x1x4x4xf32> to vector<4x4xf32>
    %cst_7 = arith.constant dense<0.000000e+00> : vector<64x4xf32>
    %6 = tpu.matmul %3, %5, %cst_7 {dimension_numbers = #tpu.dot_dimension_numbers<[1], [0], [0], [1], [0, 0, 1, 1], [], []>, precision = #tpu.contract_precision<fp32>} : vector<64x4xf32>, vector<4x4xf32>, vector<64x4xf32> -> vector<64x4xf32>
    %7 = arith.addf %0, %6 : vector<64x4xf32>
    %c0_8 = arith.constant 0 : index
    %c0_9 = arith.constant 0 : index
    %c0_10 = arith.constant 0 : index
    %c0_11 = arith.constant 0 : index
    %8 = vector.load %arg2[%c0_8, %c0_9, %c0_10, %c0_11] : memref<1x9x9x4xf32, #tpu.memory_space<vmem>>, vector<1x8x8x4xf32>
    %9 = vector.shape_cast %8 : vector<1x8x8x4xf32> to vector<8x8x4xf32>
    %10 = vector.shape_cast %9 : vector<8x8x4xf32> to vector<64x4xf32>
    %c0_12 = arith.constant 0 : index
    %c1 = arith.constant 1 : index
    %c0_13 = arith.constant 0 : index
    %c0_14 = arith.constant 0 : index
    %11 = vector.load %arg5[%c0_12, %c1, %c0_13, %c0_14] : memref<3x3x4x4xf32, #tpu.memory_space<vmem>>, vector<1x1x4x4xf32>
    %12 = vector.shape_cast %11 : vector<1x1x4x4xf32> to vector<4x4xf32>
    %cst_15 = arith.constant dense<0.000000e+00> : vector<64x4xf32>
    %13 = tpu.matmul %10, %12, %cst_15 {dimension_numbers = #tpu.dot_dimension_numbers<[1], [0], [0], [1], [0, 0, 1, 1], [], []>, precision = #tpu.contract_precision<fp32>} : vector<64x4xf32>, vector<4x4xf32>, vector<64x4xf32> -> vector<64x4xf32>
    %14 = arith.addf %7, %13 : vector<64x4xf32>
    %c0_16 = arith.constant 0 : index
    %c0_17 = arith.constant 0 : index
    %c1_18 = arith.constant 1 : index
    %c0_19 = arith.constant 0 : index
    %15 = vector.load %arg1[%c0_16, %c0_17, %c1_18, %c0_19] : memref<1x9x9x4xf32, #tpu.memory_space<vmem>>, vector<1x8x8x4xf32>
    %16 = vector.shape_cast %15 : vector<1x8x8x4xf32> to vector<8x8x4xf32>
    %17 = vector.shape_cast %16 : vector<8x8x4xf32> to vector<64x4xf32>
    %c0_20 = arith.constant 0 : index
    %c2 = arith.constant 2 : index
    %c0_21 = arith.constant 0 : index
    %c0_22 = arith.constant 0 : index
    %18 = vector.load %arg5[%c0_20, %c2, %c0_21, %c0_22] : memref<3x3x4x4xf32, #tpu.memory_space<vmem>>, vector<1x1x4x4xf32>
    %19 = vector.shape_cast %18 : vector<1x1x4x4xf32> to vector<4x4xf32>
    %cst_23 = arith.constant dense<0.000000e+00> : vector<64x4xf32>
    %20 = tpu.matmul %17, %19, %cst_23 {dimension_numbers = #tpu.dot_dimension_numbers<[1], [0], [0], [1], [0, 0, 1, 1], [], []>, precision = #tpu.contract_precision<fp32>} : vector<64x4xf32>, vector<4x4xf32>, vector<64x4xf32> -> vector<64x4xf32>
    %21 = arith.addf %14, %20 : vector<64x4xf32>
    %c0_24 = arith.constant 0 : index
    %c0_25 = arith.constant 0 : index
    %c0_26 = arith.constant 0 : index
    %c0_27 = arith.constant 0 : index
    %22 = vector.load %arg3[%c0_24, %c0_25, %c0_26, %c0_27] : memref<1x9x9x4xf32, #tpu.memory_space<vmem>>, vector<1x8x8x4xf32>
    %23 = vector.shape_cast %22 : vector<1x8x8x4xf32> to vector<8x8x4xf32>
    %24 = vector.shape_cast %23 : vector<8x8x4xf32> to vector<64x4xf32>
    %c1_28 = arith.constant 1 : index
    %c0_29 = arith.constant 0 : index
    %c0_30 = arith.constant 0 : index
    %c0_31 = arith.constant 0 : index
    %25 = vector.load %arg5[%c1_28, %c0_29, %c0_30, %c0_31] : memref<3x3x4x4xf32, #tpu.memory_space<vmem>>, vector<1x1x4x4xf32>
    %26 = vector.shape_cast %25 : vector<1x1x4x4xf32> to vector<4x4xf32>
    %cst_32 = arith.constant dense<0.000000e+00> : vector<64x4xf32>
    %27 = tpu.matmul %24, %26, %cst_32 {dimension_numbers = #tpu.dot_dimension_numbers<[1], [0], [0], [1], [0, 0, 1, 1], [], []>, precision = #tpu.contract_precision<fp32>} : vector<64x4xf32>, vector<4x4xf32>, vector<64x4xf32> -> vector<64x4xf32>
    %28 = arith.addf %21, %27 : vector<64x4xf32>
    %c0_33 = arith.constant 0 : index
    %c0_34 = arith.constant 0 : index
    %c0_35 = arith.constant 0 : index
    %c0_36 = arith.constant 0 : index
    %29 = vector.load %arg4[%c0_33, %c0_34, %c0_35, %c0_36] : memref<1x9x9x4xf32, #tpu.memory_space<vmem>>, vector<1x8x8x4xf32>
    %30 = vector.shape_cast %29 : vector<1x8x8x4xf32> to vector<8x8x4xf32>
    %31 = vector.shape_cast %30 : vector<8x8x4xf32> to vector<64x4xf32>
    %c1_37 = arith.constant 1 : index
    %c1_38 = arith.constant 1 : index
    %c0_39 = arith.constant 0 : index
    %c0_40 = arith.constant 0 : index
    %32 = vector.load %arg5[%c1_37, %c1_38, %c0_39, %c0_40] : memref<3x3x4x4xf32, #tpu.memory_space<vmem>>, vector<1x1x4x4xf32>
    %33 = vector.shape_cast %32 : vector<1x1x4x4xf32> to vector<4x4xf32>
    %cst_41 = arith.constant dense<0.000000e+00> : vector<64x4xf32>
    %34 = tpu.matmul %31, %33, %cst_41 {dimension_numbers = #tpu.dot_dimension_numbers<[1], [0], [0], [1], [0, 0, 1, 1], [], []>, precision = #tpu.contract_precision<fp32>} : vector<64x4xf32>, vector<4x4xf32>, vector<64x4xf32> -> vector<64x4xf32>
    %35 = arith.addf %28, %34 : vector<64x4xf32>
    %c0_42 = arith.constant 0 : index
    %c0_43 = arith.constant 0 : index
    %c1_44 = arith.constant 1 : index
    %c0_45 = arith.constant 0 : index
    %36 = vector.load %arg3[%c0_42, %c0_43, %c1_44, %c0_45] : memref<1x9x9x4xf32, #tpu.memory_space<vmem>>, vector<1x8x8x4xf32>
    %37 = vector.shape_cast %36 : vector<1x8x8x4xf32> to vector<8x8x4xf32>
    %38 = vector.shape_cast %37 : vector<8x8x4xf32> to vector<64x4xf32>
    %c1_46 = arith.constant 1 : index
    %c2_47 = arith.constant 2 : index
    %c0_48 = arith.constant 0 : index
    %c0_49 = arith.constant 0 : index
    %39 = vector.load %arg5[%c1_46, %c2_47, %c0_48, %c0_49] : memref<3x3x4x4xf32, #tpu.memory_space<vmem>>, vector<1x1x4x4xf32>
    %40 = vector.shape_cast %39 : vector<1x1x4x4xf32> to vector<4x4xf32>
    %cst_50 = arith.constant dense<0.000000e+00> : vector<64x4xf32>
    %41 = tpu.matmul %38, %40, %cst_50 {dimension_numbers = #tpu.dot_dimension_numbers<[1], [0], [0], [1], [0, 0, 1, 1], [], []>, precision = #tpu.contract_precision<fp32>} : vector<64x4xf32>, vector<4x4xf32>, vector<64x4xf32> -> vector<64x4xf32>
    %42 = arith.addf %35, %41 : vector<64x4xf32>
    %c0_51 = arith.constant 0 : index
    %c1_52 = arith.constant 1 : index
    %c0_53 = arith.constant 0 : index
    %c0_54 = arith.constant 0 : index
    %43 = vector.load %arg1[%c0_51, %c1_52, %c0_53, %c0_54] : memref<1x9x9x4xf32, #tpu.memory_space<vmem>>, vector<1x8x8x4xf32>
    %44 = vector.shape_cast %43 : vector<1x8x8x4xf32> to vector<8x8x4xf32>
    %45 = vector.shape_cast %44 : vector<8x8x4xf32> to vector<64x4xf32>
    %c2_55 = arith.constant 2 : index
    %c0_56 = arith.constant 0 : index
    %c0_57 = arith.constant 0 : index
    %c0_58 = arith.constant 0 : index
    %46 = vector.load %arg5[%c2_55, %c0_56, %c0_57, %c0_58] : memref<3x3x4x4xf32, #tpu.memory_space<vmem>>, vector<1x1x4x4xf32>
    %47 = vector.shape_cast %46 : vector<1x1x4x4xf32> to vector<4x4xf32>
    %cst_59 = arith.constant dense<0.000000e+00> : vector<64x4xf32>
    %48 = tpu.matmul %45, %47, %cst_59 {dimension_numbers = #tpu.dot_dimension_numbers<[1], [0], [0], [1], [0, 0, 1, 1], [], []>, precision = #tpu.contract_precision<fp32>} : vector<64x4xf32>, vector<4x4xf32>, vector<64x4xf32> -> vector<64x4xf32>
    %49 = arith.addf %42, %48 : vector<64x4xf32>
    %c0_60 = arith.constant 0 : index
    %c1_61 = arith.constant 1 : index
    %c0_62 = arith.constant 0 : index
    %c0_63 = arith.constant 0 : index
    %50 = vector.load %arg2[%c0_60, %c1_61, %c0_62, %c0_63] : memref<1x9x9x4xf32, #tpu.memory_space<vmem>>, vector<1x8x8x4xf32>
    %51 = vector.shape_cast %50 : vector<1x8x8x4xf32> to vector<8x8x4xf32>
    %52 = vector.shape_cast %51 : vector<8x8x4xf32> to vector<64x4xf32>
    %c2_64 = arith.constant 2 : index
    %c1_65 = arith.constant 1 : index
    %c0_66 = arith.constant 0 : index
    %c0_67 = arith.constant 0 : index
    %53 = vector.load %arg5[%c2_64, %c1_65, %c0_66, %c0_67] : memref<3x3x4x4xf32, #tpu.memory_space<vmem>>, vector<1x1x4x4xf32>
    %54 = vector.shape_cast %53 : vector<1x1x4x4xf32> to vector<4x4xf32>
    %cst_68 = arith.constant dense<0.000000e+00> : vector<64x4xf32>
    %55 = tpu.matmul %52, %54, %cst_68 {dimension_numbers = #tpu.dot_dimension_numbers<[1], [0], [0], [1], [0, 0, 1, 1], [], []>, precision = #tpu.contract_precision<fp32>} : vector<64x4xf32>, vector<4x4xf32>, vector<64x4xf32> -> vector<64x4xf32>
    %56 = arith.addf %49, %55 : vector<64x4xf32>
    %c0_69 = arith.constant 0 : index
    %c1_70 = arith.constant 1 : index
    %c1_71 = arith.constant 1 : index
    %c0_72 = arith.constant 0 : index
    %57 = vector.load %arg1[%c0_69, %c1_70, %c1_71, %c0_72] : memref<1x9x9x4xf32, #tpu.memory_space<vmem>>, vector<1x8x8x4xf32>
    %58 = vector.shape_cast %57 : vector<1x8x8x4xf32> to vector<8x8x4xf32>
    %59 = vector.shape_cast %58 : vector<8x8x4xf32> to vector<64x4xf32>
    %c2_73 = arith.constant 2 : index
    %c2_74 = arith.constant 2 : index
    %c0_75 = arith.constant 0 : index
    %c0_76 = arith.constant 0 : index
    %60 = vector.load %arg5[%c2_73, %c2_74, %c0_75, %c0_76] : memref<3x3x4x4xf32, #tpu.memory_space<vmem>>, vector<1x1x4x4xf32>
    %61 = vector.shape_cast %60 : vector<1x1x4x4xf32> to vector<4x4xf32>
    %cst_77 = arith.constant dense<0.000000e+00> : vector<64x4xf32>
    %62 = tpu.matmul %59, %61, %cst_77 {dimension_numbers = #tpu.dot_dimension_numbers<[1], [0], [0], [1], [0, 0, 1, 1], [], []>, precision = #tpu.contract_precision<fp32>} : vector<64x4xf32>, vector<4x4xf32>, vector<64x4xf32> -> vector<64x4xf32>
    %63 = arith.addf %56, %62 : vector<64x4xf32>
    %c0_78 = arith.constant 0 : index
    %c0_79 = arith.constant 0 : index
    %64 = vector.load %arg6[%c0_78, %c0_79] : memref<1x4xf32, #tpu.memory_space<vmem>>, vector<1x4xf32>
    %65 = vector.broadcast %64 : vector<1x4xf32> to vector<64x4xf32>
    %66 = arith.addf %63, %65 : vector<64x4xf32>
    %c0_80 = arith.constant 0 : index
    %c0_81 = arith.constant 0 : index
    %c0_82 = arith.constant 0 : index
    %67 = vector.load %arg7[%c0_80, %c0_81, %c0_82] : memref<1x64x4xf32, #tpu.memory_space<vmem>>, vector<1x64x4xf32>
    %68 = vector.shape_cast %67 : vector<1x64x4xf32> to vector<64x4xf32>
    %69 = vector.shape_cast %66 : vector<64x4xf32> to vector<1x64x4xf32>
    tpu.vector_store %arg7[%c0_80, %c0_81, %c0_82], %69 {strides = array<i32>} : memref<1x64x4xf32, #tpu.memory_space<vmem>>, vector<1x64x4xf32>,
    return
  }
  func.func @transform_0(%arg0: i32) -> (i32, i32, i32, i32) {
    %c0_i32 = arith.constant 0 : i32
    %c0_i32_0 = arith.constant 0 : i32
    %c0_i32_1 = arith.constant 0 : i32
    %c0_i32_2 = arith.constant 0 : i32
    return %arg0, %c0_i32, %c0_i32_0, %c0_i32_1 : i32, i32, i32, i32
  }
  func.func @transform_1(%arg0: i32) -> (i32, i32, i32, i32) {
    %c0_i32 = arith.constant 0 : i32
    %c0_i32_0 = arith.constant 0 : i32
    %c0_i32_1 = arith.constant 0 : i32
    %c0_i32_2 = arith.constant 0 : i32
    return %arg0, %c0_i32, %c0_i32_0, %c0_i32_1 : i32, i32, i32, i32
  }
  func.func @transform_2(%arg0: i32) -> (i32, i32, i32, i32) {
    %c0_i32 = arith.constant 0 : i32
    %c0_i32_0 = arith.constant 0 : i32
    %c0_i32_1 = arith.constant 0 : i32
    %c0_i32_2 = arith.constant 0 : i32
    return %arg0, %c0_i32, %c0_i32_0, %c0_i32_1 : i32, i32, i32, i32
  }
  func.func @transform_3(%arg0: i32) -> (i32, i32, i32, i32) {
    %c0_i32 = arith.constant 0 : i32
    %c0_i32_0 = arith.constant 0 : i32
    %c0_i32_1 = arith.constant 0 : i32
    %c0_i32_2 = arith.constant 0 : i32
    return %arg0, %c0_i32, %c0_i32_0, %c0_i32_1 : i32, i32, i32, i32
  }
  func.func @transform_4(%arg0: i32) -> (i32, i32, i32, i32) {
    %c0_i32 = arith.constant 0 : i32
    %c0_i32_0 = arith.constant 0 : i32
    %c0_i32_1 = arith.constant 0 : i32
    %c0_i32_2 = arith.constant 0 : i32
    %c0_i32_3 = arith.constant 0 : i32
    return %c0_i32, %c0_i32_0, %c0_i32_1, %c0_i32_2 : i32, i32, i32, i32
  }
  func.func @transform_5(%arg0: i32) -> (i32, i32) {
    %c0_i32 = arith.constant 0 : i32
    %c0_i32_0 = arith.constant 0 : i32
    %c0_i32_1 = arith.constant 0 : i32
    return %c0_i32, %c0_i32_0 : i32, i32
  }
  func.func @transform_6(%arg0: i32) -> (i32, i32, i32) {
    %c0_i32 = arith.constant 0 : i32
    %c0_i32_0 = arith.constant 0 : i32
    %c0_i32_1 = arith.constant 0 : i32
    return %arg0, %c0_i32, %c0_i32_0 : i32, i32, i32
  }
}

</mosaic_0001>

<llo_original>
// kernel: tpu_custom_call.1
$region0: #{tpu_custom_call.1}
  #allocation0 [shape = 'u32[]', space=smem, size = 0x4, offset = 0x4, fixed_abs, tag = 'smem constant byte address 0x4 - core index']
  #allocation1 [shape = 'u32[144,128]{1,0:T(1,128)}', space=vmem, size = 0x12000, scoped, tag = 'internal scratch']
  %s0 = inlined_call_operand.vmem [shape: f32[2,9,9,4], index: 0, kind: input, shape index: {}]
  %s1 = inlined_call_operand.vmem [shape: f32[2,9,9,4], index: 1, kind: input, shape index: {}]
  %s2 = inlined_call_operand.vmem [shape: f32[2,9,9,4], index: 2, kind: input, shape index: {}]
  %s3 = inlined_call_operand.vmem [shape: f32[2,9,9,4], index: 3, kind: input, shape index: {}]
  %s4 = inlined_call_operand.vmem [shape: f32[3,3,4,4], index: 4, kind: input, shape index: {}]
  %s5 = inlined_call_operand.vmem [shape: f32[1,4], index: 5, kind: input, shape index: {}]
  %s6 = inlined_call_operand.vmem [shape: f32[2,64,4], index: 6, kind: output, shape index: {}]
  %s7 = sld [smem:[#allocation0]]
  $region57: #{tpu_custom_call.1} parent=0
    _
  %s9 = ssub.s32 1, %s7
  %s10 = scalar_select 0, %s9, %s7
  loop: start=0, step=1, limit=4
  $region2: #{tpu_custom_call.1} parent=0 // loop_pre_header
    _
  $region3: #{tpu_custom_call.1} parent=0 // loop_header
    %s12 = sphi 0, %s16
    %p13 = scmp.ge.s32.totalorder %s12, 4
    %s22 = sphi 0, %s24
    %s25 = sphi 0, %s22
    %s26 = sphi 0, %s25
    %s42 = sphi 0, %s26
    %s48 = sphi 0, %s50
    %s51 = sphi 0, %s48
    %s52 = sphi 0, %s51
    %s68 = sphi 0, %s52
    %s74 = sphi 0, %s76
    %s77 = sphi 0, %s74
    %s78 = sphi 0, %s77
    %s94 = sphi 0, %s78
    %s100 = sphi 0, %s102
    %s103 = sphi 0, %s100
    %s104 = sphi 0, %s103
    %s120 = sphi 0, %s104
    %s124 = sphi 0, %s124
    %s126 = sphi 0, %s124
    %s127 = sphi 0, %s126
    %s141 = sphi 0, %s127
    %s145 = sphi 0, %s145
    %s147 = sphi 0, %s145
    %s148 = sphi 0, %s147
    %s162 = sphi 0, %s148
    %s168 = sphi 0, %s170
    %s171 = sphi 0, %s168
    %s172 = sphi 0, %s171
    %s188 = sphi 0, %s172
  $region4: #{tpu_custom_call.1} parent=0 // loop_header_branch
    %15 = sbr.rel (%p13) target = $region8
  $region5: #{tpu_custom_call.1} parent=0 // loop_body
    %s17 = ssub.s32 %s12, 1
    %s18 = ssub.s32 %s12, 2
    %s19 = sadd.s32 %s12, 1
    %s20 = ssub.s32 %s12, %s19
    %p21 = scmp.eq.s32.totalorder %s20, 0
    %s23 = sadd.s32 %s22, 1
    %s24 = scalar_select %p21, %s22, %s23
    %p27 = pneg %p21
    %p28 = scmp.eq.s32.totalorder %s12, 1
    %p29 = por %p27, %p28
    %p30 = scmp.ne.s32.totalorder %s22, %s25
    %p31 = scmp.eq.s32.totalorder %s12, 0
    %p32 = por %p30, %p31
    %p33 = scmp.ne.s32.totalorder %s22, %s25
    %p34 = scmp.eq.s32.totalorder %s17, 1
    %p35 = por %p33, %p34
    %p36 = scmp.ne.s32.totalorder %s25, %s26
    %p37 = scmp.eq.s32.totalorder %s17, 0
    %p38 = por %p36, %p37
    %p39 = scmp.ne.s32.totalorder %s25, %s26
    %p40 = scmp.eq.s32.totalorder %s18, 1
    %p41 = por %p39, %p40
    %p43 = scmp.ne.s32.totalorder %s26, %s42
    %p44 = scmp.eq.s32.totalorder %s18, 0
    %p45 = por %p43, %p44
    %s46 = ssub.s32 %s12, %s19
    %p47 = scmp.eq.s32.totalorder %s46, 0
    %s49 = sadd.s32 %s48, 1
    %s50 = scalar_select %p47, %s48, %s49
    %p53 = pneg %p47
    %p54 = scmp.eq.s32.totalorder %s12, 1
    %p55 = por %p53, %p54
    %p56 = scmp.ne.s32.totalorder %s48, %s51
    %p57 = scmp.eq.s32.totalorder %s12, 0
    %p58 = por %p56, %p57
    %p59 = scmp.ne.s32.totalorder %s48, %s51
    %p60 = scmp.eq.s32.totalorder %s17, 1
    %p61 = por %p59, %p60
    %p62 = scmp.ne.s32.totalorder %s51, %s52
    %p63 = scmp.eq.s32.totalorder %s17, 0
    %p64 = por %p62, %p63
    %p65 = scmp.ne.s32.totalorder %s51, %s52
    %p66 = scmp.eq.s32.totalorder %s18, 1
    %p67 = por %p65, %p66
    %p69 = scmp.ne.s32.totalorder %s52, %s68
    %p70 = scmp.eq.s32.totalorder %s18, 0
    %p71 = por %p69, %p70
    %s72 = ssub.s32 %s12, %s19
    %p73 = scmp.eq.s32.totalorder %s72, 0
    %s75 = sadd.s32 %s74, 1
    %s76 = scalar_select %p73, %s74, %s75
    %p79 = pneg %p73
    %p80 = scmp.eq.s32.totalorder %s12, 1
    %p81 = por %p79, %p80
    %p82 = scmp.ne.s32.totalorder %s74, %s77
    %p83 = scmp.eq.s32.totalorder %s12, 0
    %p84 = por %p82, %p83
    %p85 = scmp.ne.s32.totalorder %s74, %s77
    %p86 = scmp.eq.s32.totalorder %s17, 1
    %p87 = por %p85, %p86
    %p88 = scmp.ne.s32.totalorder %s77, %s78
    %p89 = scmp.eq.s32.totalorder %s17, 0
    %p90 = por %p88, %p89
    %p91 = scmp.ne.s32.totalorder %s77, %s78
    %p92 = scmp.eq.s32.totalorder %s18, 1
    %p93 = por %p91, %p92
    %p95 = scmp.ne.s32.totalorder %s78, %s94
    %p96 = scmp.eq.s32.totalorder %s18, 0
    %p97 = por %p95, %p96
    %s98 = ssub.s32 %s12, %s19
    %p99 = scmp.eq.s32.totalorder %s98, 0
    %s101 = sadd.s32 %s100, 1
    %s102 = scalar_select %p99, %s100, %s101
    %p105 = pneg %p99
    %p106 = scmp.eq.s32.totalorder %s12, 1
    %p107 = por %p105, %p106
    %p108 = scmp.ne.s32.totalorder %s100, %s103
    %p109 = scmp.eq.s32.totalorder %s12, 0
    %p110 = por %p108, %p109
    %p111 = scmp.ne.s32.totalorder %s100, %s103
    %p112 = scmp.eq.s32.totalorder %s17, 1
    %p113 = por %p111, %p112
    %p114 = scmp.ne.s32.totalorder %s103, %s104
    %p115 = scmp.eq.s32.totalorder %s17, 0
    %p116 = por %p114, %p115
    %p117 = scmp.ne.s32.totalorder %s103, %s104
    %p118 = scmp.eq.s32.totalorder %s18, 1
    %p119 = por %p117, %p118
    %p121 = scmp.ne.s32.totalorder %s104, %s120
    %p122 = scmp.eq.s32.totalorder %s18, 0
    %p123 = por %p121, %p122
    %s125 = sadd.s32 %s124, 1
    %p128 = scmp.eq.s32.totalorder %s12, 1
    %p129 = scmp.ne.s32.totalorder %s124, %s126
    %p130 = scmp.eq.s32.totalorder %s12, 0
    %p131 = por %p129, %p130
    %p132 = scmp.ne.s32.totalorder %s124, %s126
    %p133 = scmp.eq.s32.totalorder %s17, 1
    %p134 = por %p132, %p133
    %p135 = scmp.ne.s32.totalorder %s126, %s127
    %p136 = scmp.eq.s32.totalorder %s17, 0
    %p137 = por %p135, %p136
    %p138 = scmp.ne.s32.totalorder %s126, %s127
    %p139 = scmp.eq.s32.totalorder %s18, 1
    %p140 = por %p138, %p139
    %p142 = scmp.ne.s32.totalorder %s127, %s141
    %p143 = scmp.eq.s32.totalorder %s18, 0
    %p144 = por %p142, %p143
    %s146 = sadd.s32 %s145, 1
    %p149 = scmp.eq.s32.totalorder %s12, 1
    %p150 = scmp.ne.s32.totalorder %s145, %s147
    %p151 = scmp.eq.s32.totalorder %s12, 0
    %p152 = por %p150, %p151
    %p153 = scmp.ne.s32.totalorder %s145, %s147
    %p154 = scmp.eq.s32.totalorder %s17, 1
    %p155 = por %p153, %p154
    %p156 = scmp.ne.s32.totalorder %s147, %s148
    %p157 = scmp.eq.s32.totalorder %s17, 0
    %p158 = por %p156, %p157
    %p159 = scmp.ne.s32.totalorder %s147, %s148
    %p160 = scmp.eq.s32.totalorder %s18, 1
    %p161 = por %p159, %p160
    %p163 = scmp.ne.s32.totalorder %s148, %s162
    %p164 = scmp.eq.s32.totalorder %s18, 0
    %p165 = por %p163, %p164
    %s166 = ssub.s32 %s12, %s19
    %p167 = scmp.eq.s32.totalorder %s166, 0
    %s169 = sadd.s32 %s168, 1
    %s170 = scalar_select %p167, %s168, %s169
    %p173 = pneg %p167
    %p174 = scmp.eq.s32.totalorder %s12, 1
    %p175 = por %p173, %p174
    %p176 = scmp.ne.s32.totalorder %s168, %s171
    %p177 = scmp.eq.s32.totalorder %s12, 0
    %p178 = por %p176, %p177
    %p179 = scmp.ne.s32.totalorder %s168, %s171
    %p180 = scmp.eq.s32.totalorder %s17, 1
    %p181 = por %p179, %p180
    %p182 = scmp.ne.s32.totalorder %s171, %s172
    %p183 = scmp.eq.s32.totalorder %s17, 0
    %p184 = por %p182, %p183
    %p185 = scmp.ne.s32.totalorder %s171, %s172
    %p186 = scmp.eq.s32.totalorder %s18, 1
    %p187 = por %p185, %p186
    %p189 = scmp.ne.s32.totalorder %s172, %s188
    %p190 = scmp.eq.s32.totalorder %s18, 0
    %p191 = por %p189, %p190
    %p192 = scmp.le.s32.totalorder 1, %s12
    %p193 = scmp.lt.s32.totalorder %s12, 3
    %p194 = pnand %p192, %p193
    %p195 = pneg %p194
    // Predicated region
    $region9: #{tpu_custom_call.1} parent=5 // pred_check
      _
    $region10: #{tpu_custom_call.1} parent=5 // pred_check_branch
      %197 = sbr.rel (%p194) target = $region12
    $region11: #{tpu_custom_call.1} parent=5 // pred_region
      %s198 = ssub.s32 %s12, 1
      // Predicated region
      $region13: #{tpu_custom_call.1} parent=11 // pred_check
        %p199 = pneg %p137
      $region14: #{tpu_custom_call.1} parent=11 // pred_check_branch
        %201 = sbr.rel (%p199) target = $region16
      $region15: #{tpu_custom_call.1} parent=11 // pred_region
        _
      $region16: #{tpu_custom_call.1} parent=11 // pred_fallthru
        _
      // Predicated region
      $region17: #{tpu_custom_call.1} parent=11 // pred_check
        %p202 = pneg %p158
      $region18: #{tpu_custom_call.1} parent=11 // pred_check_branch
        %204 = sbr.rel (%p202) target = $region20
      $region19: #{tpu_custom_call.1} parent=11 // pred_region
        _
      $region20: #{tpu_custom_call.1} parent=11 // pred_fallthru
        _
    $region12: #{tpu_custom_call.1} parent=5 // pred_fallthru
      _
    %p205 = scmp.lt.s32.totalorder %s12, 2
    // Predicated region
    $region21: #{tpu_custom_call.1} parent=5 // pred_check
      %p206 = pneg %p205
    $region22: #{tpu_custom_call.1} parent=5 // pred_check_branch
      %208 = sbr.rel (%p206) target = $region24
    $region23: #{tpu_custom_call.1} parent=5 // pred_region
      // Predicated region
      $region25: #{tpu_custom_call.1} parent=23 // pred_check
        %p209 = pneg %p32
      $region26: #{tpu_custom_call.1} parent=23 // pred_check_branch
        %211 = sbr.rel (%p209) target = $region28
      $region27: #{tpu_custom_call.1} parent=23 // pred_region
        %p212 = scmp.lt.s32.totalorder %s12, 1
        %s213 = scalar_select %p212, %s12, 1
        %s214 = smul.addr %s213, 18
        %s215 = smul.addr %s214, 8
        %s216 = scalar_lea.vmem %s0, %s215
      $region28: #{tpu_custom_call.1} parent=23 // pred_fallthru
        _
      // Predicated region
      $region29: #{tpu_custom_call.1} parent=23 // pred_check
        %p217 = pneg %p58
      $region30: #{tpu_custom_call.1} parent=23 // pred_check_branch
        %219 = sbr.rel (%p217) target = $region32
      $region31: #{tpu_custom_call.1} parent=23 // pred_region
        %p220 = scmp.lt.s32.totalorder %s12, 1
        %s221 = scalar_select %p220, %s12, 1
        %s222 = smul.addr %s221, 18
        %s223 = smul.addr %s222, 8
        %s224 = scalar_lea.vmem %s1, %s223
      $region32: #{tpu_custom_call.1} parent=23 // pred_fallthru
        _
      // Predicated region
      $region33: #{tpu_custom_call.1} parent=23 // pred_check
        %p225 = pneg %p84
      $region34: #{tpu_custom_call.1} parent=23 // pred_check_branch
        %227 = sbr.rel (%p225) target = $region36
      $region35: #{tpu_custom_call.1} parent=23 // pred_region
        %p228 = scmp.lt.s32.totalorder %s12, 1
        %s229 = scalar_select %p228, %s12, 1
        %s230 = smul.addr %s229, 18
        %s231 = smul.addr %s230, 8
        %s232 = scalar_lea.vmem %s2, %s231
      $region36: #{tpu_custom_call.1} parent=23 // pred_fallthru
        _
      // Predicated region
      $region37: #{tpu_custom_call.1} parent=23 // pred_check
        %p233 = pneg %p110
      $region38: #{tpu_custom_call.1} parent=23 // pred_check_branch
        %235 = sbr.rel (%p233) target = $region40
      $region39: #{tpu_custom_call.1} parent=23 // pred_region
        %p236 = scmp.lt.s32.totalorder %s12, 1
        %s237 = scalar_select %p236, %s12, 1
        %s238 = smul.addr %s237, 18
        %s239 = smul.addr %s238, 8
        %s240 = scalar_lea.vmem %s3, %s239
      $region40: #{tpu_custom_call.1} parent=23 // pred_fallthru
        _
    $region24: #{tpu_custom_call.1} parent=5 // pred_fallthru
      _
    %p241 = scmp.le.s32.totalorder 1, %s12
    %p242 = scmp.lt.s32.totalorder %s12, 3
    %p243 = pnand %p241, %p242
    %p244 = pneg %p243
    // Predicated region
    $region41: #{tpu_custom_call.1} parent=5 // pred_check
      _
    $region42: #{tpu_custom_call.1} parent=5 // pred_check_branch
      %246 = sbr.rel (%p243) target = $region44
    $region43: #{tpu_custom_call.1} parent=5 // pred_region
      %s247 = ssub.s32 %s12, 1
      %p248 = scmp.lt.s32.totalorder %s17, 1
      %s249 = scalar_select %p248, %s17, 1
      %s250 = smul.addr %s249, 18
      %s251 = smul.addr %s250, 8
      %s252 = scalar_lea.vmem %s0, %s251
      %p253 = pneg %p38
      %p254 = pneg %p35
      %p255 = scmp.lt.s32.totalorder %s17, 1
      %s256 = scalar_select %p255, %s17, 1
      %s257 = smul.addr %s256, 18
      %s258 = smul.addr %s257, 8
      %s259 = scalar_lea.vmem %s1, %s258
      %p260 = pneg %p64
      %p261 = pneg %p61
      %p262 = scmp.lt.s32.totalorder %s17, 1
      %s263 = scalar_select %p262, %s17, 1
      %s264 = smul.addr %s263, 18
      %s265 = smul.addr %s264, 8
      %s266 = scalar_lea.vmem %s2, %s265
      %p267 = pneg %p90
      %p268 = pneg %p87
      %p269 = scmp.lt.s32.totalorder %s17, 1
      %s270 = scalar_select %p269, %s17, 1
      %s271 = smul.addr %s270, 18
      %s272 = smul.addr %s271, 8
      %s273 = scalar_lea.vmem %s3, %s272
      %p274 = pneg %p116
      %p275 = pneg %p113
      %p276 = pneg %p137
      %p277 = pneg %p134
      %p278 = pneg %p158
      %p279 = pneg %p155
      %p280 = pneg %p184
      %p281 = pneg %p181
      %p282 = scmp.lt.s32.totalorder %s17, 1
      %s283 = scalar_select %p282, %s17, 1
      %s284 = smul.addr %s283, 8
      %s285 = smul.addr %s284, 8
      %s286 = scalar_lea.vmem %s6, %s285
      %p287 = scmp.lt.s32.totalorder %s17, 1
      %s288 = scalar_select %p287, %s17, 1
      %s289 = smul.addr %s288, 18
      %s290 = smul.addr %s289, 8
      %s291 = scalar_lea.vmem %s0, %s290
      %p292 = scmp.lt.s32.totalorder %s17, 1
      %s293 = scalar_select %p292, %s17, 1
      %s294 = smul.addr %s293, 18
      %s295 = smul.addr %s294, 8
      %s296 = scalar_lea.vmem %s1, %s295
      %p297 = scmp.lt.s32.totalorder %s17, 1
      %s298 = scalar_select %p297, %s17, 1
      %s299 = smul.addr %s298, 18
      %s300 = smul.addr %s299, 8
      %s301 = scalar_lea.vmem %s2, %s300
      %p302 = scmp.lt.s32.totalorder %s17, 1
      %s303 = scalar_select %p302, %s17, 1
      %s304 = smul.addr %s303, 18
      %s305 = smul.addr %s304, 8
      %s306 = scalar_lea.vmem %s3, %s305
      %p307 = scmp.lt.s32.totalorder %s17, 1
      %s308 = scalar_select %p307, %s17, 1
      %s309 = smul.addr %s308, 8
      %s310 = smul.addr %s309, 8
      %s311 = scalar_lea.vmem %s6, %s310
      %v312 = vld [vmem:[%s291] sm:$0xff]
      %v313 = vld [vmem:[%s291 + $0x10] sm:$0xff]
      %v314 = vld [vmem:[%s291 + $0x20] sm:$0xff]
      %v315 = vld [vmem:[%s291 + $0x30] sm:$0xff]
      %v316 = vld [vmem:[%s291 + $0x40] sm:$0xff]
      %v317 = vld [vmem:[%s291 + $0x50] sm:$0xff]
      %v318 = vld [vmem:[%s291 + $0x60] sm:$0xff]
      %v319 = vld [vmem:[%s291 + $0x70] sm:$0xff]
      %v320 = vld [vmem:[%s4] sm:$0xf]
      %v321 = vld [vmem:[%s296] sm:$0xff]
      %v322 = vld [vmem:[%s296 + $0x10] sm:$0xff]
      %v323 = vld [vmem:[%s296 + $0x20] sm:$0xff]
      %v324 = vld [vmem:[%s296 + $0x30] sm:$0xff]
      %v325 = vld [vmem:[%s296 + $0x40] sm:$0xff]
      %v326 = vld [vmem:[%s296 + $0x50] sm:$0xff]
      %v327 = vld [vmem:[%s296 + $0x60] sm:$0xff]
      %v328 = vld [vmem:[%s296 + $0x70] sm:$0xff]
      %s329 = scalar_lea.vmem %s4, 4
      %v330 = vld [vmem:[%s329] sm:$0xf]
      %vm331 = vcmask 31744
      %v333 = vsel %vm331, %v321, 0
      %v336 = vsel %vm331, %v322, 0
      %v339 = vsel %vm331, %v323, 0
      %v342 = vsel %vm331, %v324, 0
      %v345 = vsel %vm331, %v325, 0
      %v348 = vsel %vm331, %v326, 0
      %v351 = vsel %vm331, %v327, 0
      %v354 = vsel %vm331, %v328, 0
      %vm356 = vcmask 1043456
      %v358 = vsel %vm356, %v330, 0
      %360 = vmatprep.subr.mxu0 0.0
      %v361 = vand.u32 %v358, 4294901760
      %362 = vmatpush1.msra.mxu0 %v361
      %363 = vmatprep.subr.mxu0 0.0
      %364 = vmatpush1.msra.mxu0 0.0
      %365 = vmatprep.subr.mxu0 0.0
      %366 = vmatpush1.msra.mxu0 0.0
      %367 = vmatprep.subr.mxu0 0.0
      %368 = vmatpush1.msra.mxu0 0.0
      %369 = vmatprep.subr.mxu0 0.0
      %370 = vmatpush1.msra.mxu0 0.0
      %371 = vmatprep.subr.mxu0 0.0
      %372 = vmatpush1.msra.mxu0 0.0
      %373 = vmatprep.subr.mxu0 0.0
      %374 = vmatpush1.msra.mxu0 0.0
      %375 = vmatprep.subr.mxu0 0.0
      %376 = vmatpush1.msra.mxu0 0.0
      %377 = vmatprep.subr.mxu0 0.0
      %378 = vmatpush1.msra.mxu0 0.0
      %379 = vmatprep.subr.mxu0 0.0
      %380 = vmatpush1.msra.mxu0 0.0
      %381 = vmatprep.subr.mxu0 0.0
      %382 = vmatpush1.msra.mxu0 0.0
      %383 = vmatprep.subr.mxu0 0.0
      %384 = vmatpush1.msra.mxu0 0.0
      %385 = vmatprep.subr.mxu0 0.0
      %386 = vmatpush1.msra.mxu0 0.0
      %387 = vmatprep.subr.mxu0 0.0
      %388 = vmatpush1.msra.mxu0 0.0
      %389 = vmatprep.subr.mxu0 0.0
      %390 = vmatpush1.msra.mxu0 0.0
      %391 = vmatprep.subr.mxu0 0.0
      %392 = vmatpush1.msra.mxu0 0.0
      %393 = vmatprep.subr.mxu0 0.0
      %394 = vmatpush1.msra.mxu0 0.0
      %395 = vmatprep.subr.mxu0 0.0
      %396 = vmatpush1.msra.mxu0 0.0
      %397 = vmatprep.subr.mxu0 0.0
      %398 = vmatpush1.msra.mxu0 0.0
      %399 = vmatprep.subr.mxu0 0.0
      %400 = vmatpush1.msra.mxu0 0.0
      %401 = vmatprep.subr.mxu0 0.0
      %402 = vmatpush1.msra.mxu0 0.0
      %403 = vmatprep.subr.mxu0 0.0
      %404 = vmatpush1.msra.mxu0 0.0
      %405 = vmatprep.subr.mxu0 0.0
      %406 = vmatpush1.msra.mxu0 0.0
      %407 = vmatprep.subr.mxu0 0.0
      %408 = vmatpush1.msra.mxu0 0.0
      %409 = vmatprep.subr.mxu0 0.0
      %410 = vmatpush1.msra.mxu0 0.0
      %411 = vmatprep.subr.mxu0 0.0
      %412 = vmatpush1.msra.mxu0 0.0
      %413 = vmatprep.subr.mxu0 0.0
      %414 = vmatpush1.msra.mxu0 0.0
      %415 = vmatprep.subr.mxu0 0.0
      %416 = vmatpush1.msra.mxu0 0.0
      %417 = vmatprep.subr.mxu0 0.0
      %418 = vmatpush1.msra.mxu0 0.0
      %419 = vmatprep.subr.mxu0 0.0
      %420 = vmatpush1.msra.mxu0 0.0
      %421 = vmatprep.subr.mxu0 0.0
      %422 = vmatpush1.msra.mxu0 0.0
      %423 = vmatprep.subr.mxu0 0.0
      %424 = vmatpush1.msra.mxu0 0.0
      %425 = vmatprep.mubr.f32.mxu0 0.0
      %v426 = vand.u32 %v333, 4294901760
      %v427 = vsub.f32 %v333, %v426
      %v428 = vand.u32 %v427, 4294901760
      %v429 = vsub.f32 %v427, %v428
      %v430 = vand.u32 %v429, 4294901760
      %431 = vmatmul.mubr.f32.gmra.mrb[0].mxu0 %v430
      %v432 = vpop.f32.mrb[0].mxu0
      %v433 = vadd.f32 0.0, %v432
      %v434 = vpop.f32.mrb[0].mxu0
      %435 = vmatprep.mubr.f32.mxu0 0.0
      %v436 = vand.u32 %v336, 4294901760
      %v437 = vsub.f32 %v336, %v436
      %v438 = vand.u32 %v437, 4294901760
      %v439 = vsub.f32 %v437, %v438
      %v440 = vand.u32 %v439, 4294901760
      %441 = vmatmul.mubr.f32.gmra.mrb[0].mxu0 %v440
      %v442 = vpop.f32.mrb[0].mxu0
      %v443 = vadd.f32 0.0, %v442
      %v444 = vpop.f32.mrb[0].mxu0
      %445 = vmatprep.mubr.f32.mxu0 0.0
      %v446 = vand.u32 %v339, 4294901760
      %v447 = vsub.f32 %v339, %v446
      %v448 = vand.u32 %v447, 4294901760
      %v449 = vsub.f32 %v447, %v448
      %v450 = vand.u32 %v449, 4294901760
      %451 = vmatmul.mubr.f32.gmra.mrb[0].mxu0 %v450
      %v452 = vpop.f32.mrb[0].mxu0
      %v453 = vadd.f32 0.0, %v452
      %v454 = vpop.f32.mrb[0].mxu0
      %455 = vmatprep.mubr.f32.mxu0 0.0
      %v456 = vand.u32 %v342, 4294901760
      %v457 = vsub.f32 %v342, %v456
      %v458 = vand.u32 %v457, 4294901760
      %v459 = vsub.f32 %v457, %v458
      %v460 = vand.u32 %v459, 4294901760
      %461 = vmatmul.mubr.f32.gmra.mrb[0].mxu0 %v460
      %v462 = vpop.f32.mrb[0].mxu0
      %v463 = vadd.f32 0.0, %v462
      %v464 = vpop.f32.mrb[0].mxu0
      %465 = vmatprep.mubr.f32.mxu0 0.0
      %v466 = vand.u32 %v345, 4294901760
      %v467 = vsub.f32 %v345, %v466
      %v468 = vand.u32 %v467, 4294901760
      %v469 = vsub.f32 %v467, %v468
      %v470 = vand.u32 %v469, 4294901760
      %471 = vmatmul.mubr.f32.gmra.mrb[0].mxu0 %v470
      %v472 = vpop.f32.mrb[0].mxu0
      %v473 = vadd.f32 0.0, %v472
      %v474 = vpop.f32.mrb[0].mxu0
      %475 = vmatprep.mubr.f32.mxu0 0.0
      %v476 = vand.u32 %v348, 4294901760
      %v477 = vsub.f32 %v348, %v476
      %v478 = vand.u32 %v477, 4294901760
      %v479 = vsub.f32 %v477, %v478
      %v480 = vand.u32 %v479, 4294901760
      %481 = vmatmul.mubr.f32.gmra.mrb[0].mxu0 %v480
      %v482 = vpop.f32.mrb[0].mxu0
      %v483 = vadd.f32 0.0, %v482
      %v484 = vpop.f32.mrb[0].mxu0
      %485 = vmatprep.mubr.f32.mxu0 0.0
      %v486 = vand.u32 %v351, 4294901760
      %v487 = vsub.f32 %v351, %v486
      %v488 = vand.u32 %v487, 4294901760
      %v489 = vsub.f32 %v487, %v488
      %v490 = vand.u32 %v489, 4294901760
      %491 = vmatmul.mubr.f32.gmra.mrb[0].mxu0 %v490
      %v492 = vpop.f32.mrb[0].mxu0
      %v493 = vadd.f32 0.0, %v492
      %v494 = vpop.f32.mrb[0].mxu0
      %495 = vmatprep.mubr.f32.mxu0 0.0
      %v496 = vand.u32 %v354, 4294901760
      %v497 = vsub.f32 %v354, %v496
      %v498 = vand.u32 %v497, 4294901760
      %v499 = vsub.f32 %v497, %v498
      %v500 = vand.u32 %v499, 4294901760
      %501 = vmatmul.mubr.f32.gmra.mrb[0].mxu0 %v500
      %v502 = vpop.f32.mrb[0].mxu0
      %v503 = vadd.f32 0.0, %v502
      %v504 = vpop.f32.mrb[0].mxu0
      %505 = vdwg.mxu0
      %506 = vmatprep.subr.mxu0 0.0
      %v507 = vand.u32 %v358, 4294901760
      %v508 = vsub.f32 %v358, %v507
      %v509 = vand.u32 %v508, 4294901760
      %v510 = vsub.f32 %v508, %v509
      %v511 = vand.u32 %v510, 4294901760
      %512 = vmatpush1.msra.mxu0 %v511
      %513 = vmatprep.subr.mxu0 0.0
      %514 = vmatpush1.msra.mxu0 0.0
      %515 = vmatprep.subr.mxu0 0.0
      %516 = vmatpush1.msra.mxu0 0.0
      %517 = vmatprep.subr.mxu0 0.0
      %518 = vmatpush1.msra.mxu0 0.0
      %519 = vmatprep.subr.mxu0 0.0
      %520 = vmatpush1.msra.mxu0 0.0
      %521 = vmatprep.subr.mxu0 0.0
      %522 = vmatpush1.msra.mxu0 0.0
      %523 = vmatprep.subr.mxu0 0.0
      %524 = vmatpush1.msra.mxu0 0.0
      %525 = vmatprep.subr.mxu0 0.0
      %526 = vmatpush1.msra.mxu0 0.0
      %527 = vmatprep.subr.mxu0 0.0
      %528 = vmatpush1.msra.mxu0 0.0
      %529 = vmatprep.subr.mxu0 0.0
      %530 = vmatpush1.msra.mxu0 0.0
      %531 = vmatprep.subr.mxu0 0.0
      %532 = vmatpush1.msra.mxu0 0.0
      %533 = vmatprep.subr.mxu0 0.0
      %534 = vmatpush1.msra.mxu0 0.0
      %535 = vmatprep.subr.mxu0 0.0
      %536 = vmatpush1.msra.mxu0 0.0
      %537 = vmatprep.subr.mxu0 0.0
      %538 = vmatpush1.msra.mxu0 0.0
      %539 = vmatprep.subr.mxu0 0.0
      %540 = vmatpush1.msra.mxu0 0.0
      %541 = vmatprep.subr.mxu0 0.0
      %542 = vmatpush1.msra.mxu0 0.0
      %543 = vmatprep.subr.mxu0 0.0
      %544 = vmatpush1.msra.mxu0 0.0
      %545 = vmatprep.subr.mxu0 0.0
      %546 = vmatpush1.msra.mxu0 0.0
      %547 = vmatprep.subr.mxu0 0.0
      %548 = vmatpush1.msra.mxu0 0.0
      %549 = vmatprep.subr.mxu0 0.0
      %550 = vmatpush1.msra.mxu0 0.0
      %551 = vmatprep.subr.mxu0 0.0
      %552 = vmatpush1.msra.mxu0 0.0
      %553 = vmatprep.subr.mxu0 0.0
      %554 = vmatpush1.msra.mxu0 0.0
      %555 = vmatprep.subr.mxu0 0.0
      %556 = vmatpush1.msra.mxu0 0.0
      %557 = vmatprep.subr.mxu0 0.0
      %558 = vmatpush1.msra.mxu0 0.0
      %559 = vmatprep.subr.mxu0 0.0
      %560 = vmatpush1.msra.mxu0 0.0
      %561 = vmatprep.subr.mxu0 0.0
      %562 = vmatpush1.msra.mxu0 0.0
      %563 = vmatprep.subr.mxu0 0.0
      %564 = vmatpush1.msra.mxu0 0.0
      %565 = vmatprep.subr.mxu0 0.0
      %566 = vmatpush1.msra.mxu0 0.0
      %567 = vmatprep.subr.mxu0 0.0
      %568 = vmatpush1.msra.mxu0 0.0
      %569 = vmatprep.subr.mxu0 0.0
      %570 = vmatpush1.msra.mxu0 0.0
      %571 = vmatprep.subr.mxu0 0.0
      %572 = vmatpush1.msra.mxu0 0.0
      %573 = vmatprep.subr.mxu0 0.0
      %574 = vmatpush1.msra.mxu0 0.0
      %575 = vmatprep.mubr.f32.mxu0 0.0
      %v576 = vand.u32 %v333, 4294901760
      %577 = vmatmul.mubr.f32.gmra.mrb[0].mxu0 %v576
      %v578 = vpop.f32.mrb[0].mxu0
      %v579 = vadd.f32 %v433, %v578
      %v580 = vpop.f32.mrb[0].mxu0
      %581 = vmatprep.mubr.f32.mxu0 0.0
      %v582 = vand.u32 %v336, 4294901760
      %583 = vmatmul.mubr.f32.gmra.mrb[0].mxu0 %v582
      %v584 = vpop.f32.mrb[0].mxu0
      %v585 = vadd.f32 %v443, %v584
      %v586 = vpop.f32.mrb[0].mxu0
      %587 = vmatprep.mubr.f32.mxu0 0.0
      %v588 = vand.u32 %v339, 4294901760
      %589 = vmatmul.mubr.f32.gmra.mrb[0].mxu0 %v588
      %v590 = vpop.f32.mrb[0].mxu0
      %v591 = vadd.f32 %v453, %v590
      %v592 = vpop.f32.mrb[0].mxu0
      %593 = vmatprep.mubr.f32.mxu0 0.0
      %v594 = vand.u32 %v342, 4294901760
      %595 = vmatmul.mubr.f32.gmra.mrb[0].mxu0 %v594
      %v596 = vpop.f32.mrb[0].mxu0
      %v597 = vadd.f32 %v463, %v596
      %v598 = vpop.f32.mrb[0].mxu0
      %599 = vmatprep.mubr.f32.mxu0 0.0
      %v600 = vand.u32 %v345, 4294901760
      %601 = vmatmul.mubr.f32.gmra.mrb[0].mxu0 %v600
      %v602 = vpop.f32.mrb[0].mxu0
      %v603 = vadd.f32 %v473, %v602
      %v604 = vpop.f32.mrb[0].mxu0
      %605 = vmatprep.mubr.f32.mxu0 0.0
      %v606 = vand.u32 %v348, 4294901760
      %607 = vmatmul.mubr.f32.gmra.mrb[0].mxu0 %v606
      %v608 = vpop.f32.mrb[0].mxu0
      %v609 = vadd.f32 %v483, %v608
      %v610 = vpop.f32.mrb[0].mxu0
      %611 = vmatprep.mubr.f32.mxu0 0.0
      %v612 = vand.u32 %v351, 4294901760
      %613 = vmatmul.mubr.f32.gmra.mrb[0].mxu0 %v612
      %v614 = vpop.f32.mrb[0].mxu0
      %v615 = vadd.f32 %v493, %v614
      %v616 = vpop.f32.mrb[0].mxu0
      %617 = vmatprep.mubr.f32.mxu0 0.0
      %v618 = vand.u32 %v354, 4294901760
      %619 = vmatmul.mubr.f32.gmra.mrb[0].mxu0 %v618
      %v620 = vpop.f32.mrb[0].mxu0
      %v621 = vadd.f32 %v503, %v620
      %v622 = vpop.f32.mrb[0].mxu0
      %623 = vdwg.mxu0
      %624 = vmatprep.subr.mxu0 0.0
      %v625 = vand.u32 %v358, 4294901760
      %v626 = vsub.f32 %v358, %v625
      %627 = vmatpush1.msra.mxu0 %v626
      %628 = vmatprep.subr.mxu0 0.0
      %629 = vmatpush1.msra.mxu0 0.0
      %630 = vmatprep.subr.mxu0 0.0
      %631 = vmatpush1.msra.mxu0 0.0
      %632 = vmatprep.subr.mxu0 0.0
      %633 = vmatpush1.msra.mxu0 0.0
      %634 = vmatprep.subr.mxu0 0.0
      %635 = vmatpush1.msra.mxu0 0.0
      %636 = vmatprep.subr.mxu0 0.0
      %637 = vmatpush1.msra.mxu0 0.0
      %638 = vmatprep.subr.mxu0 0.0
      %639 = vmatpush1.msra.mxu0 0.0
      %640 = vmatprep.subr.mxu0 0.0
      %641 = vmatpush1.msra.mxu0 0.0
      %642 = vmatprep.subr.mxu0 0.0
      %643 = vmatpush1.msra.mxu0 0.0
      %644 = vmatprep.subr.mxu0 0.0
      %645 = vmatpush1.msra.mxu0 0.0
      %646 = vmatprep.subr.mxu0 0.0
      %647 = vmatpush1.msra.mxu0 0.0
      %648 = vmatprep.subr.mxu0 0.0
      %649 = vmatpush1.msra.mxu0 0.0
      %650 = vmatprep.subr.mxu0 0.0
      %651 = vmatpush1.msra.mxu0 0.0
      %652 = vmatprep.subr.mxu0 0.0
      %653 = vmatpush1.msra.mxu0 0.0
      %654 = vmatprep.subr.mxu0 0.0
      %655 = vmatpush1.msra.mxu0 0.0
      %656 = vmatprep.subr.mxu0 0.0
      %657 = vmatpush1.msra.mxu0 0.0
      %658 = vmatprep.subr.mxu0 0.0
      %659 = vmatpush1.msra.mxu0 0.0
      %660 = vmatprep.subr.mxu0 0.0
      %661 = vmatpush1.msra.mxu0 0.0
      %662 = vmatprep.subr.mxu0 0.0
      %663 = vmatpush1.msra.mxu0 0.0
      %664 = vmatprep.subr.mxu0 0.0
      %665 = vmatpush1.msra.mxu0 0.0
      %666 = vmatprep.subr.mxu0 0.0
      %667 = vmatpush1.msra.mxu0 0.0
      %668 = vmatprep.subr.mxu0 0.0
      %669 = vmatpush1.msra.mxu0 0.0
      %670 = vmatprep.subr.mxu0 0.0
      %671 = vmatpush1.msra.mxu0 0.0
      %672 = vmatprep.subr.mxu0 0.0
      %673 = vmatpush1.msra.mxu0 0.0
      %674 = vmatprep.subr.mxu0 0.0
      %675 = vmatpush1.msra.mxu0 0.0
      %676 = vmatprep.subr.mxu0 0.0
      %677 = vmatpush1.msra.mxu0 0.0
      %678 = vmatprep.subr.mxu0 0.0
      %679 = vmatpush1.msra.mxu0 0.0
      %680 = vmatprep.subr.mxu0 0.0
      %681 = vmatpush1.msra.mxu0 0.0
      %682 = vmatprep.subr.mxu0 0.0
      %683 = vmatpush1.msra.mxu0 0.0
      %684 = vmatprep.subr.mxu0 0.0
      %685 = vmatpush1.msra.mxu0 0.0
      %686 = vmatprep.subr.mxu0 0.0
      %687 = vmatpush1.msra.mxu0 0.0
      %688 = vmatprep.subr.mxu0 0.0
      %689 = vmatpush1.msra.mxu0 0.0
      %690 = vmatprep.mubr.f32.mxu0 0.0
      %v691 = vand.u32 %v333, 4294901760
      %v692 = vsub.f32 %v333, %v691
      %693 = vmatmul.mubr.f32.gmra.mrb[0].mxu0 %v692
      %v694 = vpop.f32.mrb[0].mxu0
      %v695 = vadd.f32 %v579, %v694
      %v696 = vpop.f32.mrb[0].mxu0
      %697 = vmatprep.mubr.f32.mxu0 0.0
      %v698 = vand.u32 %v336, 4294901760
      %v699 = vsub.f32 %v336, %v698
      %700 = vmatmul.mubr.f32.gmra.mrb[0].mxu0 %v699
      %v701 = vpop.f32.mrb[0].mxu0
      %v702 = vadd.f32 %v585, %v701
      %v703 = vpop.f32.mrb[0].mxu0
      %704 = vmatprep.mubr.f32.mxu0 0.0
      %v705 = vand.u32 %v339, 4294901760
      %v706 = vsub.f32 %v339, %v705
      %707 = vmatmul.mubr.f32.gmra.mrb[0].mxu0 %v706
      %v708 = vpop.f32.mrb[0].mxu0
      %v709 = vadd.f32 %v591, %v708
      %v710 = vpop.f32.mrb[0].mxu0
      %711 = vmatprep.mubr.f32.mxu0 0.0
      %v712 = vand.u32 %v342, 4294901760
      %v713 = vsub.f32 %v342, %v712
      %714 = vmatmul.mubr.f32.gmra.mrb[0].mxu0 %v713
      %v715 = vpop.f32.mrb[0].mxu0
      %v716 = vadd.f32 %v597, %v715
      %v717 = vpop.f32.mrb[0].mxu0
      %718 = vmatprep.mubr.f32.mxu0 0.0
      %v719 = vand.u32 %v345, 4294901760
      %v720 = vsub.f32 %v345, %v719
      %721 = vmatmul.mubr.f32.gmra.mrb[0].mxu0 %v720
      %v722 = vpop.f32.mrb[0].mxu0
      %v723 = vadd.f32 %v603, %v722
      %v724 = vpop.f32.mrb[0].mxu0
      %725 = vmatprep.mubr.f32.mxu0 0.0
      %v726 = vand.u32 %v348, 4294901760
      %v727 = vsub.f32 %v348, %v726
      %728 = vmatmul.mubr.f32.gmra.mrb[0].mxu0 %v727
      %v729 = vpop.f32.mrb[0].mxu0
      %v730 = vadd.f32 %v609, %v729
      %v731 = vpop.f32.mrb[0].mxu0
      %732 = vmatprep.mubr.f32.mxu0 0.0
      %v733 = vand.u32 %v351, 4294901760
      %v734 = vsub.f32 %v351, %v733
      %735 = vmatmul.mubr.f32.gmra.mrb[0].mxu0 %v734
      %v736 = vpop.f32.mrb[0].mxu0
      %v737 = vadd.f32 %v615, %v736
      %v738 = vpop.f32.mrb[0].mxu0
      %739 = vmatprep.mubr.f32.mxu0 0.0
      %v740 = vand.u32 %v354, 4294901760
      %v741 = vsub.f32 %v354, %v740
      %742 = vmatmul.mubr.f32.gmra.mrb[0].mxu0 %v741
      %v743 = vpop.f32.mrb[0].mxu0
      %v744 = vadd.f32 %v621, %v743
      %v745 = vpop.f32.mrb[0].mxu0
      %746 = vdwg.mxu0
      %747 = vmatprep.subr.mxu0 0.0
      %v748 = vand.u32 %v358, 4294901760
      %749 = vmatpush1.msra.mxu0 %v748
      %750 = vmatprep.subr.mxu0 0.0
      %751 = vmatpush1.msra.mxu0 0.0
      %752 = vmatprep.subr.mxu0 0.0
      %753 = vmatpush1.msra.mxu0 0.0
      %754 = vmatprep.subr.mxu0 0.0
      %755 = vmatpush1.msra.mxu0 0.0
      %756 = vmatprep.subr.mxu0 0.0
      %757 = vmatpush1.msra.mxu0 0.0
      %758 = vmatprep.subr.mxu0 0.0
      %759 = vmatpush1.msra.mxu0 0.0
      %760 = vmatprep.subr.mxu0 0.0
      %761 = vmatpush1.msra.mxu0 0.0
      %762 = vmatprep.subr.mxu0 0.0
      %763 = vmatpush1.msra.mxu0 0.0
      %764 = vmatprep.subr.mxu0 0.0
      %765 = vmatpush1.msra.mxu0 0.0
      %766 = vmatprep.subr.mxu0 0.0
      %767 = vmatpush1.msra.mxu0 0.0
      %768 = vmatprep.subr.mxu0 0.0
      %769 = vmatpush1.msra.mxu0 0.0
      %770 = vmatprep.subr.mxu0 0.0
      %771 = vmatpush1.msra.mxu0 0.0
      %772 = vmatprep.subr.mxu0 0.0
      %773 = vmatpush1.msra.mxu0 0.0
      %774 = vmatprep.subr.mxu0 0.0
      %775 = vmatpush1.msra.mxu0 0.0
      %776 = vmatprep.subr.mxu0 0.0
      %777 = vmatpush1.msra.mxu0 0.0
      %778 = vmatprep.subr.mxu0 0.0
      %779 = vmatpush1.msra.mxu0 0.0
      %780 = vmatprep.subr.mxu0 0.0
      %781 = vmatpush1.msra.mxu0 0.0
      %782 = vmatprep.subr.mxu0 0.0
      %783 = vmatpush1.msra.mxu0 0.0
      %784 = vmatprep.subr.mxu0 0.0
      %785 = vmatpush1.msra.mxu0 0.0
      %786 = vmatprep.subr.mxu0 0.0
      %787 = vmatpush1.msra.mxu0 0.0
      %788 = vmatprep.subr.mxu0 0.0
      %789 = vmatpush1.msra.mxu0 0.0
      %790 = vmatprep.subr.mxu0 0.0
      %791 = vmatpush1.msra.mxu0 0.0
      %792 = vmatprep.subr.mxu0 0.0
      %793 = vmatpush1.msra.mxu0 0.0
      %794 = vmatprep.subr.mxu0 0.0
      %795 = vmatpush1.msra.mxu0 0.0
      %796 = vmatprep.subr.mxu0 0.0
      %797 = vmatpush1.msra.mxu0 0.0
      %798 = vmatprep.subr.mxu0 0.0
      %799 = vmatpush1.msra.mxu0 0.0
      %800 = vmatprep.subr.mxu0 0.0
      %801 = vmatpush1.msra.mxu0 0.0
      %802 = vmatprep.subr.mxu0 0.0
      %803 = vmatpush1.msra.mxu0 0.0
      %804 = vmatprep.subr.mxu0 0.0
      %805 = vmatpush1.msra.mxu0 0.0
      %806 = vmatprep.subr.mxu0 0.0
      %807 = vmatpush1.msra.mxu0 0.0
      %808 = vmatprep.subr.mxu0 0.0
      %809 = vmatpush1.msra.mxu0 0.0
      %810 = vmatprep.subr.mxu0 0.0
      %811 = vmatpush1.msra.mxu0 0.0
      %812 = vmatprep.mubr.f32.mxu0 0.0
      %v813 = vand.u32 %v333, 4294901760
      %v814 = vsub.f32 %v333, %v813
      %v815 = vand.u32 %v814, 4294901760
      %816 = vmatmul.mubr.f32.gmra.mrb[0].mxu0 %v815
      %v817 = vpop.f32.mrb[0].mxu0
      %v818 = vadd.f32 %v695, %v817
      %v819 = vpop.f32.mrb[0].mxu0
      %820 = vmatprep.mubr.f32.mxu0 0.0
      %v821 = vand.u32 %v336, 4294901760
      %v822 = vsub.f32 %v336, %v821
      %v823 = vand.u32 %v822, 4294901760
      %824 = vmatmul.mubr.f32.gmra.mrb[0].mxu0 %v823
      %v825 = vpop.f32.mrb[0].mxu0
      %v826 = vadd.f32 %v702, %v825
      %v827 = vpop.f32.mrb[0].mxu0
      %828 = vmatprep.mubr.f32.mxu0 0.0
      %v829 = vand.u32 %v339, 4294901760
      %v830 = vsub.f32 %v339, %v829
      %v831 = vand.u32 %v830, 4294901760
      %832 = vmatmul.mubr.f32.gmra.mrb[0].mxu0 %v831
      %v833 = vpop.f32.mrb[0].mxu0
      %v834 = vadd.f32 %v709, %v833
      %v835 = vpop.f32.mrb[0].mxu0
      %836 = vmatprep.mubr.f32.mxu0 0.0
      %v837 = vand.u32 %v342, 4294901760
      %v838 = vsub.f32 %v342, %v837
      %v839 = vand.u32 %v838, 4294901760
      %840 = vmatmul.mubr.f32.gmra.mrb[0].mxu0 %v839
      %v841 = vpop.f32.mrb[0].mxu0
      %v842 = vadd.f32 %v716, %v841
      %v843 = vpop.f32.mrb[0].mxu0
      %844 = vmatprep.mubr.f32.mxu0 0.0
      %v845 = vand.u32 %v345, 4294901760
      %v846 = vsub.f32 %v345, %v845
      %v847 = vand.u32 %v846, 4294901760
      %848 = vmatmul.mubr.f32.gmra.mrb[0].mxu0 %v847
      %v849 = vpop.f32.mrb[0].mxu0
      %v850 = vadd.f32 %v723, %v849
      %v851 = vpop.f32.mrb[0].mxu0
      %852 = vmatprep.mubr.f32.mxu0 0.0
      %v853 = vand.u32 %v348, 4294901760
      %v854 = vsub.f32 %v348, %v853
      %v855 = vand.u32 %v854, 4294901760
      %856 = vmatmul.mubr.f32.gmra.mrb[0].mxu0 %v855
      %v857 = vpop.f32.mrb[0].mxu0
      %v858 = vadd.f32 %v730, %v857
      %v859 = vpop.f32.mrb[0].mxu0
      %860 = vmatprep.mubr.f32.mxu0 0.0
      %v861 = vand.u32 %v351, 4294901760
      %v862 = vsub.f32 %v351, %v861
      %v863 = vand.u32 %v862, 4294901760
      %864 = vmatmul.mubr.f32.gmra.mrb[0].mxu0 %v863
      %v865 = vpop.f32.mrb[0].mxu0
      %v866 = vadd.f32 %v737, %v865
      %v867 = vpop.f32.mrb[0].mxu0
      %868 = vmatprep.mubr.f32.mxu0 0.0
      %v869 = vand.u32 %v354, 4294901760
      %v870 = vsub.f32 %v354, %v869
      %v871 = vand.u32 %v870, 4294901760
      %872 = vmatmul.mubr.f32.gmra.mrb[0].mxu0 %v871
      %v873 = vpop.f32.mrb[0].mxu0
      %v874 = vadd.f32 %v744, %v873
      %v875 = vpop.f32.mrb[0].mxu0
      %876 = vdwg.mxu0
      %877 = vmatprep.subr.mxu0 0.0
      %v878 = vand.u32 %v358, 4294901760
      %v879 = vsub.f32 %v358, %v878
      %v880 = vand.u32 %v879, 4294901760
      %881 = vmatpush1.msra.mxu0 %v880
      %882 = vmatprep.subr.mxu0 0.0
      %883 = vmatpush1.msra.mxu0 0.0
      %884 = vmatprep.subr.mxu0 0.0
      %885 = vmatpush1.msra.mxu0 0.0
      %886 = vmatprep.subr.mxu0 0.0
      %887 = vmatpush1.msra.mxu0 0.0
      %888 = vmatprep.subr.mxu0 0.0
      %889 = vmatpush1.msra.mxu0 0.0
      %890 = vmatprep.subr.mxu0 0.0
      %891 = vmatpush1.msra.mxu0 0.0
      %892 = vmatprep.subr.mxu0 0.0
      %893 = vmatpush1.msra.mxu0 0.0
      %894 = vmatprep.subr.mxu0 0.0
      %895 = vmatpush1.msra.mxu0 0.0
      %896 = vmatprep.subr.mxu0 0.0
      %897 = vmatpush1.msra.mxu0 0.0
      %898 = vmatprep.subr.mxu0 0.0
      %899 = vmatpush1.msra.mxu0 0.0
      %900 = vmatprep.subr.mxu0 0.0
      %901 = vmatpush1.msra.mxu0 0.0
      %902 = vmatprep.subr.mxu0 0.0
      %903 = vmatpush1.msra.mxu0 0.0
      %904 = vmatprep.subr.mxu0 0.0
      %905 = vmatpush1.msra.mxu0 0.0
      %906 = vmatprep.subr.mxu0 0.0
      %907 = vmatpush1.msra.mxu0 0.0
      %908 = vmatprep.subr.mxu0 0.0
      %909 = vmatpush1.msra.mxu0 0.0
      %910 = vmatprep.subr.mxu0 0.0
      %911 = vmatpush1.msra.mxu0 0.0
      %912 = vmatprep.subr.mxu0 0.0
      %913 = vmatpush1.msra.mxu0 0.0
      %914 = vmatprep.subr.mxu0 0.0
      %915 = vmatpush1.msra.mxu0 0.0
      %916 = vmatprep.subr.mxu0 0.0
      %917 = vmatpush1.msra.mxu0 0.0
      %918 = vmatprep.subr.mxu0 0.0
      %919 = vmatpush1.msra.mxu0 0.0
      %920 = vmatprep.subr.mxu0 0.0
      %921 = vmatpush1.msra.mxu0 0.0
      %922 = vmatprep.subr.mxu0 0.0
      %923 = vmatpush1.msra.mxu0 0.0
      %924 = vmatprep.subr.mxu0 0.0
      %925 = vmatpush1.msra.mxu0 0.0
      %926 = vmatprep.subr.mxu0 0.0
      %927 = vmatpush1.msra.mxu0 0.0
      %928 = vmatprep.subr.mxu0 0.0
      %929 = vmatpush1.msra.mxu0 0.0
      %930 = vmatprep.subr.mxu0 0.0
      %931 = vmatpush1.msra.mxu0 0.0
      %932 = vmatprep.subr.mxu0 0.0
      %933 = vmatpush1.msra.mxu0 0.0
      %934 = vmatprep.subr.mxu0 0.0
      %935 = vmatpush1.msra.mxu0 0.0
      %936 = vmatprep.subr.mxu0 0.0
      %937 = vmatpush1.msra.mxu0 0.0
      %938 = vmatprep.subr.mxu0 0.0
      %939 = vmatpush1.msra.mxu0 0.0
      %940 = vmatprep.subr.mxu0 0.0
      %941 = vmatpush1.msra.mxu0 0.0
      %942 = vmatprep.subr.mxu0 0.0
      %943 = vmatpush1.msra.mxu0 0.0
      %944 = vmatprep.mubr.f32.mxu0 0.0
      %v945 = vand.u32 %v333, 4294901760
      %946 = vmatmul.mubr.f32.gmra.mrb[0].mxu0 %v945
      %v947 = vpop.f32.mrb[0].mxu0
      %v948 = vadd.f32 %v818, %v947
      %v949 = vpop.f32.mrb[0].mxu0
      %950 = vmatprep.mubr.f32.mxu0 0.0
      %v951 = vand.u32 %v336, 4294901760
      %952 = vmatmul.mubr.f32.gmra.mrb[0].mxu0 %v951
      %v953 = vpop.f32.mrb[0].mxu0
      %v954 = vadd.f32 %v826, %v953
      %v955 = vpop.f32.mrb[0].mxu0
      %956 = vmatprep.mubr.f32.mxu0 0.0
      %v957 = vand.u32 %v339, 4294901760
      %958 = vmatmul.mubr.f32.gmra.mrb[0].mxu0 %v957
      %v959 = vpop.f32.mrb[0].mxu0
      %v960 = vadd.f32 %v834, %v959
      %v961 = vpop.f32.mrb[0].mxu0
      %962 = vmatprep.mubr.f32.mxu0 0.0
      %v963 = vand.u32 %v342, 4294901760
      %964 = vmatmul.mubr.f32.gmra.mrb[0].mxu0 %v963
      %v965 = vpop.f32.mrb[0].mxu0
      %v966 = vadd.f32 %v842, %v965
      %v967 = vpop.f32.mrb[0].mxu0
      %968 = vmatprep.mubr.f32.mxu0 0.0
      %v969 = vand.u32 %v345, 4294901760
      %970 = vmatmul.mubr.f32.gmra.mrb[0].mxu0 %v969
      %v971 = vpop.f32.mrb[0].mxu0
      %v972 = vadd.f32 %v850, %v971
      %v973 = vpop.f32.mrb[0].mxu0
      %974 = vmatprep.mubr.f32.mxu0 0.0
      %v975 = vand.u32 %v348, 4294901760
      %976 = vmatmul.mubr.f32.gmra.mrb[0].mxu0 %v975
      %v977 = vpop.f32.mrb[0].mxu0
      %v978 = vadd.f32 %v858, %v977
      %v979 = vpop.f32.mrb[0].mxu0
      %980 = vmatprep.mubr.f32.mxu0 0.0
      %v981 = vand.u32 %v351, 4294901760
      %982 = vmatmul.mubr.f32.gmra.mrb[0].mxu0 %v981
      %v983 = vpop.f32.mrb[0].mxu0
      %v984 = vadd.f32 %v866, %v983
      %v985 = vpop.f32.mrb[0].mxu0
      %986 = vmatprep.mubr.f32.mxu0 0.0
      %v987 = vand.u32 %v354, 4294901760
      %988 = vmatmul.mubr.f32.gmra.mrb[0].mxu0 %v987
      %v989 = vpop.f32.mrb[0].mxu0
      %v990 = vadd.f32 %v874, %v989
      %v991 = vpop.f32.mrb[0].mxu0
      %992 = vdwg.mxu0
      %993 = vmatprep.subr.mxu0 0.0
      %v994 = vand.u32 %v358, 4294901760
      %995 = vmatpush1.msra.mxu0 %v994
      %996 = vmatprep.subr.mxu0 0.0
      %997 = vmatpush1.msra.mxu0 0.0
      %998 = vmatprep.subr.mxu0 0.0
      %999 = vmatpush1.msra.mxu0 0.0
      %1000 = vmatprep.subr.mxu0 0.0
      %1001 = vmatpush1.msra.mxu0 0.0
      %1002 = vmatprep.subr.mxu0 0.0
      %1003 = vmatpush1.msra.mxu0 0.0
      %1004 = vmatprep.subr.mxu0 0.0
      %1005 = vmatpush1.msra.mxu0 0.0
      %1006 = vmatprep.subr.mxu0 0.0
      %1007 = vmatpush1.msra.mxu0 0.0
      %1008 = vmatprep.subr.mxu0 0.0
      %1009 = vmatpush1.msra.mxu0 0.0
      %1010 = vmatprep.subr.mxu0 0.0
      %1011 = vmatpush1.msra.mxu0 0.0
      %1012 = vmatprep.subr.mxu0 0.0
      %1013 = vmatpush1.msra.mxu0 0.0
      %1014 = vmatprep.subr.mxu0 0.0
      %1015 = vmatpush1.msra.mxu0 0.0
      %1016 = vmatprep.subr.mxu0 0.0
      %1017 = vmatpush1.msra.mxu0 0.0
      %1018 = vmatprep.subr.mxu0 0.0
      %1019 = vmatpush1.msra.mxu0 0.0
      %1020 = vmatprep.subr.mxu0 0.0
      %1021 = vmatpush1.msra.mxu0 0.0
      %1022 = vmatprep.subr.mxu0 0.0
      %1023 = vmatpush1.msra.mxu0 0.0
      %1024 = vmatprep.subr.mxu0 0.0
      %1025 = vmatpush1.msra.mxu0 0.0
      %1026 = vmatprep.subr.mxu0 0.0
      %1027 = vmatpush1.msra.mxu0 0.0
      %1028 = vmatprep.subr.mxu0 0.0
      %1029 = vmatpush1.msra.mxu0 0.0
      %1030 = vmatprep.subr.mxu0 0.0
      %1031 = vmatpush1.msra.mxu0 0.0
      %1032 = vmatprep.subr.mxu0 0.0
      %1033 = vmatpush1.msra.mxu0 0.0
      %1034 = vmatprep.subr.mxu0 0.0
      %1035 = vmatpush1.msra.mxu0 0.0
      %1036 = vmatprep.subr.mxu0 0.0
      %1037 = vmatpush1.msra.mxu0 0.0
      %1038 = vmatprep.subr.mxu0 0.0
      %1039 = vmatpush1.msra.mxu0 0.0
      %1040 = vmatprep.subr.mxu0 0.0
      %1041 = vmatpush1.msra.mxu0 0.0
      %1042 = vmatprep.subr.mxu0 0.0
      %1043 = vmatpush1.msra.mxu0 0.0
      %1044 = vmatprep.subr.mxu0 0.0
      %1045 = vmatpush1.msra.mxu0 0.0
      %1046 = vmatprep.subr.mxu0 0.0
      %1047 = vmatpush1.msra.mxu0 0.0
      %1048 = vmatprep.subr.mxu0 0.0
      %1049 = vmatpush1.msra.mxu0 0.0
      %1050 = vmatprep.subr.mxu0 0.0
      %1051 = vmatpush1.msra.mxu0 0.0
      %1052 = vmatprep.subr.mxu0 0.0
      %1053 = vmatpush1.msra.mxu0 0.0
      %1054 = vmatprep.subr.mxu0 0.0
      %1055 = vmatpush1.msra.mxu0 0.0
      %1056 = vmatprep.subr.mxu0 0.0
      %1057 = vmatpush1.msra.mxu0 0.0
      %1058 = vmatprep.mubr.f32.mxu0 0.0
      %v1059 = vand.u32 %v333, 4294901760
      %1060 = vmatmul.mubr.f32.gmra.mrb[0].mxu0 %v1059
      %v1061 = vpop.f32.mrb[0].mxu0
      %v1062 = vadd.f32 %v948, %v1061
      %v1063 = vpop.f32.mrb[0].mxu0
      %1064 = vmatprep.mubr.f32.mxu0 0.0
      %v1065 = vand.u32 %v336, 4294901760
      %1066 = vmatmul.mubr.f32.gmra.mrb[0].mxu0 %v1065
      %v1067 = vpop.f32.mrb[0].mxu0
      %v1068 = vadd.f32 %v954, %v1067
      %v1069 = vpop.f32.mrb[0].mxu0
      %1070 = vmatprep.mubr.f32.mxu0 0.0
      %v1071 = vand.u32 %v339, 4294901760
      %1072 = vmatmul.mubr.f32.gmra.mrb[0].mxu0 %v1071
      %v1073 = vpop.f32.mrb[0].mxu0
      %v1074 = vadd.f32 %v960, %v1073
      %v1075 = vpop.f32.mrb[0].mxu0
      %1076 = vmatprep.mubr.f32.mxu0 0.0
      %v1077 = vand.u32 %v342, 4294901760
      %1078 = vmatmul.mubr.f32.gmra.mrb[0].mxu0 %v1077
      %v1079 = vpop.f32.mrb[0].mxu0
      %v1080 = vadd.f32 %v966, %v1079
      %v1081 = vpop.f32.mrb[0].mxu0
      %1082 = vmatprep.mubr.f32.mxu0 0.0
      %v1083 = vand.u32 %v345, 4294901760
      %1084 = vmatmul.mubr.f32.gmra.mrb[0].mxu0 %v1083
      %v1085 = vpop.f32.mrb[0].mxu0
      %v1086 = vadd.f32 %v972, %v1085
      %v1087 = vpop.f32.mrb[0].mxu0
      %1088 = vmatprep.mubr.f32.mxu0 0.0
      %v1089 = vand.u32 %v348, 4294901760
      %1090 = vmatmul.mubr.f32.gmra.mrb[0].mxu0 %v1089
      %v1091 = vpop.f32.mrb[0].mxu0
      %v1092 = vadd.f32 %v978, %v1091
      %v1093 = vpop.f32.mrb[0].mxu0
      %1094 = vmatprep.mubr.f32.mxu0 0.0
      %v1095 = vand.u32 %v351, 4294901760
      %1096 = vmatmul.mubr.f32.gmra.mrb[0].mxu0 %v1095
      %v1097 = vpop.f32.mrb[0].mxu0
      %v1098 = vadd.f32 %v984, %v1097
      %v1099 = vpop.f32.mrb[0].mxu0
      %1100 = vmatprep.mubr.f32.mxu0 0.0
      %v1101 = vand.u32 %v354, 4294901760
      %1102 = vmatmul.mubr.f32.gmra.mrb[0].mxu0 %v1101
      %v1103 = vpop.f32.mrb[0].mxu0
      %v1104 = vadd.f32 %v990, %v1103
      %v1105 = vpop.f32.mrb[0].mxu0
      %1106 = vdwg.mxu0
      %v1108 = vsel %vm331, %v312, 0
      %v1111 = vsel %vm331, %v313, 0
      %v1114 = vsel %vm331, %v314, 0
      %v1117 = vsel %vm331, %v315, 0
      %v1120 = vsel %vm331, %v316, 0
      %v1123 = vsel %vm331, %v317, 0
      %v1126 = vsel %vm331, %v318, 0
      %v1129 = vsel %vm331, %v319, 0
      %v1132 = vsel %vm356, %v320, 0
      %1134 = vmatprep.subr.mxu0 0.0
      %v1135 = vand.u32 %v1132, 4294901760
      %1136 = vmatpush1.msra.mxu0 %v1135
      %1137 = vmatprep.subr.mxu0 0.0
      %1138 = vmatpush1.msra.mxu0 0.0
      %1139 = vmatprep.subr.mxu0 0.0
      %1140 = vmatpush1.msra.mxu0 0.0
      %1141 = vmatprep.subr.mxu0 0.0
      %1142 = vmatpush1.msra.mxu0 0.0
      %1143 = vmatprep.subr.mxu0 0.0
      %1144 = vmatpush1.msra.mxu0 0.0
      %1145 = vmatprep.subr.mxu0 0.0
      %1146 = vmatpush1.msra.mxu0 0.0
      %1147 = vmatprep.subr.mxu0 0.0
      %1148 = vmatpush1.msra.mxu0 0.0
      %1149 = vmatprep.subr.mxu0 0.0
      %1150 = vmatpush1.msra.mxu0 0.0
      %1151 = vmatprep.subr.mxu0 0.0
      %1152 = vmatpush1.msra.mxu0 0.0
      %1153 = vmatprep.subr.mxu0 0.0
      %1154 = vmatpush1.msra.mxu0 0.0
      %1155 = vmatprep.subr.mxu0 0.0
      %1156 = vmatpush1.msra.mxu0 0.0
      %1157 = vmatprep.subr.mxu0 0.0
      %1158 = vmatpush1.msra.mxu0 0.0
      %1159 = vmatprep.subr.mxu0 0.0
      %1160 = vmatpush1.msra.mxu0 0.0
      %1161 = vmatprep.subr.mxu0 0.0
      %1162 = vmatpush1.msra.mxu0 0.0
      %1163 = vmatprep.subr.mxu0 0.0
      %1164 = vmatpush1.msra.mxu0 0.0
      %1165 = vmatprep.subr.mxu0 0.0
      %1166 = vmatpush1.msra.mxu0 0.0
      %1167 = vmatprep.subr.mxu0 0.0
      %1168 = vmatpush1.msra.mxu0 0.0
      %1169 = vmatprep.subr.mxu0 0.0
      %1170 = vmatpush1.msra.mxu0 0.0
      %1171 = vmatprep.subr.mxu0 0.0
      %1172 = vmatpush1.msra.mxu0 0.0
      %1173 = vmatprep.subr.mxu0 0.0
      %1174 = vmatpush1.msra.mxu0 0.0
      %1175 = vmatprep.subr.mxu0 0.0
      %1176 = vmatpush1.msra.mxu0 0.0
      %1177 = vmatprep.subr.mxu0 0.0
      %1178 = vmatpush1.msra.mxu0 0.0
      %1179 = vmatprep.subr.mxu0 0.0
      %1180 = vmatpush1.msra.mxu0 0.0
      %1181 = vmatprep.subr.mxu0 0.0
      %1182 = vmatpush1.msra.mxu0 0.0
      %1183 = vmatprep.subr.mxu0 0.0
      %1184 = vmatpush1.msra.mxu0 0.0
      %1185 = vmatprep.subr.mxu0 0.0
      %1186 = vmatpush1.msra.mxu0 0.0
      %1187 = vmatprep.subr.mxu0 0.0
      %1188 = vmatpush1.msra.mxu0 0.0
      %1189 = vmatprep.subr.mxu0 0.0
      %1190 = vmatpush1.msra.mxu0 0.0
      %1191 = vmatprep.subr.mxu0 0.0
      %1192 = vmatpush1.msra.mxu0 0.0
      %1193 = vmatprep.subr.mxu0 0.0
      %1194 = vmatpush1.msra.mxu0 0.0
      %1195 = vmatprep.subr.mxu0 0.0
      %1196 = vmatpush1.msra.mxu0 0.0
      %1197 = vmatprep.subr.mxu0 0.0
      %1198 = vmatpush1.msra.mxu0 0.0
      %1199 = vmatprep.mubr.f32.mxu0 0.0
      %v1200 = vand.u32 %v1108, 4294901760
      %v1201 = vsub.f32 %v1108, %v1200
      %v1202 = vand.u32 %v1201, 4294901760
      %v1203 = vsub.f32 %v1201, %v1202
      %v1204 = vand.u32 %v1203, 4294901760
      %1205 = vmatmul.mubr.f32.gmra.mrb[0].mxu0 %v1204
      %v1206 = vpop.f32.mrb[0].mxu0
      %v1207 = vadd.f32 %v1062, %v1206
      %v1208 = vpop.f32.mrb[0].mxu0
      %1209 = vmatprep.mubr.f32.mxu0 0.0
      %v1210 = vand.u32 %v1111, 4294901760
      %v1211 = vsub.f32 %v1111, %v1210
      %v1212 = vand.u32 %v1211, 4294901760
      %v1213 = vsub.f32 %v1211, %v1212
      %v1214 = vand.u32 %v1213, 4294901760
      %1215 = vmatmul.mubr.f32.gmra.mrb[0].mxu0 %v1214
      %v1216 = vpop.f32.mrb[0].mxu0
      %v1217 = vadd.f32 %v1068, %v1216
      %v1218 = vpop.f32.mrb[0].mxu0
      %1219 = vmatprep.mubr.f32.mxu0 0.0
      %v1220 = vand.u32 %v1114, 4294901760
      %v1221 = vsub.f32 %v1114, %v1220
      %v1222 = vand.u32 %v1221, 4294901760
      %v1223 = vsub.f32 %v1221, %v1222
      %v1224 = vand.u32 %v1223, 4294901760
      %1225 = vmatmul.mubr.f32.gmra.mrb[0].mxu0 %v1224
      %v1226 = vpop.f32.mrb[0].mxu0
      %v1227 = vadd.f32 %v1074, %v1226
      %v1228 = vpop.f32.mrb[0].mxu0
      %1229 = vmatprep.mubr.f32.mxu0 0.0
      %v1230 = vand.u32 %v1117, 4294901760
      %v1231 = vsub.f32 %v1117, %v1230
      %v1232 = vand.u32 %v1231, 4294901760
      %v1233 = vsub.f32 %v1231, %v1232
      %v1234 = vand.u32 %v1233, 4294901760
      %1235 = vmatmul.mubr.f32.gmra.mrb[0].mxu0 %v1234
      %v1236 = vpop.f32.mrb[0].mxu0
      %v1237 = vadd.f32 %v1080, %v1236
      %v1238 = vpop.f32.mrb[0].mxu0
      %1239 = vmatprep.mubr.f32.mxu0 0.0
      %v1240 = vand.u32 %v1120, 4294901760
      %v1241 = vsub.f32 %v1120, %v1240
      %v1242 = vand.u32 %v1241, 4294901760
      %v1243 = vsub.f32 %v1241, %v1242
      %v1244 = vand.u32 %v1243, 4294901760
      %1245 = vmatmul.mubr.f32.gmra.mrb[0].mxu0 %v1244
      %v1246 = vpop.f32.mrb[0].mxu0
      %v1247 = vadd.f32 %v1086, %v1246
      %v1248 = vpop.f32.mrb[0].mxu0
      %1249 = vmatprep.mubr.f32.mxu0 0.0
      %v1250 = vand.u32 %v1123, 4294901760
      %v1251 = vsub.f32 %v1123, %v1250
      %v1252 = vand.u32 %v1251, 4294901760
      %v1253 = vsub.f32 %v1251, %v1252
      %v1254 = vand.u32 %v1253, 4294901760
      %1255 = vmatmul.mubr.f32.gmra.mrb[0].mxu0 %v1254
      %v1256 = vpop.f32.mrb[0].mxu0
      %v1257 = vadd.f32 %v1092, %v1256
      %v1258 = vpop.f32.mrb[0].mxu0
      %1259 = vmatprep.mubr.f32.mxu0 0.0
      %v1260 = vand.u32 %v1126, 4294901760
      %v1261 = vsub.f32 %v1126, %v1260
      %v1262 = vand.u32 %v1261, 4294901760
      %v1263 = vsub.f32 %v1261, %v1262
      %v1264 = vand.u32 %v1263, 4294901760
      %1265 = vmatmul.mubr.f32.gmra.mrb[0].mxu0 %v1264
      %v1266 = vpop.f32.mrb[0].mxu0
      %v1267 = vadd.f32 %v1098, %v1266
      %v1268 = vpop.f32.mrb[0].mxu0
      %1269 = vmatprep.mubr.f32.mxu0 0.0
      %v1270 = vand.u32 %v1129, 4294901760
      %v1271 = vsub.f32 %v1129, %v1270
      %v1272 = vand.u32 %v1271, 4294901760
      %v1273 = vsub.f32 %v1271, %v1272
      %v1274 = vand.u32 %v1273, 4294901760
      %1275 = vmatmul.mubr.f32.gmra.mrb[0].mxu0 %v1274
      %v1276 = vpop.f32.mrb[0].mxu0
      %v1277 = vadd.f32 %v1104, %v1276
      %v1278 = vpop.f32.mrb[0].mxu0
      %1279 = vdwg.mxu0
      %1280 = vmatprep.subr.mxu0 0.0
      %v1281 = vand.u32 %v1132, 4294901760
      %v1282 = vsub.f32 %v1132, %v1281
      %v1283 = vand.u32 %v1282, 4294901760
      %v1284 = vsub.f32 %v1282, %v1283
      %v1285 = vand.u32 %v1284, 4294901760
      %1286 = vmatpush1.msra.mxu0 %v1285
      %1287 = vmatprep.subr.mxu0 0.0
      %1288 = vmatpush1.msra.mxu0 0.0
      %1289 = vmatprep.subr.mxu0 0.0
      %1290 = vmatpush1.msra.mxu0 0.0
      %1291 = vmatprep.subr.mxu0 0.0
      %1292 = vmatpush1.msra.mxu0 0.0
      %1293 = vmatprep.subr.mxu0 0.0
      %1294 = vmatpush1.msra.mxu0 0.0
      %1295 = vmatprep.subr.mxu0 0.0
      %1296 = vmatpush1.msra.mxu0 0.0
      %1297 = vmatprep.subr.mxu0 0.0
      %1298 = vmatpush1.msra.mxu0 0.0
      %1299 = vmatprep.subr.mxu0 0.0
      %1300 = vmatpush1.msra.mxu0 0.0
      %1301 = vmatprep.subr.mxu0 0.0
      %1302 = vmatpush1.msra.mxu0 0.0
      %1303 = vmatprep.subr.mxu0 0.0
      %1304 = vmatpush1.msra.mxu0 0.0
      %1305 = vmatprep.subr.mxu0 0.0
      %1306 = vmatpush1.msra.mxu0 0.0
      %1307 = vmatprep.subr.mxu0 0.0
      %1308 = vmatpush1.msra.mxu0 0.0
      %1309 = vmatprep.subr.mxu0 0.0
      %1310 = vmatpush1.msra.mxu0 0.0
      %1311 = vmatprep.subr.mxu0 0.0
      %1312 = vmatpush1.msra.mxu0 0.0
      %1313 = vmatprep.subr.mxu0 0.0
      %1314 = vmatpush1.msra.mxu0 0.0
      %1315 = vmatprep.subr.mxu0 0.0
      %1316 = vmatpush1.msra.mxu0 0.0
      %1317 = vmatprep.subr.mxu0 0.0
      %1318 = vmatpush1.msra.mxu0 0.0
      %1319 = vmatprep.subr.mxu0 0.0
      %1320 = vmatpush1.msra.mxu0 0.0
      %1321 = vmatprep.subr.mxu0 0.0
      %1322 = vmatpush1.msra.mxu0 0.0
      %1323 = vmatprep.subr.mxu0 0.0
      %1324 = vmatpush1.msra.mxu0 0.0
      %1325 = vmatprep.subr.mxu0 0.0
      %1326 = vmatpush1.msra.mxu0 0.0
      %1327 = vmatprep.subr.mxu0 0.0
      %1328 = vmatpush1.msra.mxu0 0.0
      %1329 = vmatprep.subr.mxu0 0.0
      %1330 = vmatpush1.msra.mxu0 0.0
      %1331 = vmatprep.subr.mxu0 0.0
      %1332 = vmatpush1.msra.mxu0 0.0
      %1333 = vmatprep.subr.mxu0 0.0
      %1334 = vmatpush1.msra.mxu0 0.0
      %1335 = vmatprep.subr.mxu0 0.0
      %1336 = vmatpush1.msra.mxu0 0.0
      %1337 = vmatprep.subr.mxu0 0.0
      %1338 = vmatpush1.msra.mxu0 0.0
      %1339 = vmatprep.subr.mxu0 0.0
      %1340 = vmatpush1.msra.mxu0 0.0
      %1341 = vmatprep.subr.mxu0 0.0
      %1342 = vmatpush1.msra.mxu0 0.0
      %1343 = vmatprep.subr.mxu0 0.0
      %1344 = vmatpush1.msra.mxu0 0.0
      %1345 = vmatprep.subr.mxu0 0.0
      %1346 = vmatpush1.msra.mxu0 0.0
      %1347 = vmatprep.subr.mxu0 0.0
      %1348 = vmatpush1.msra.mxu0 0.0
      %1349 = vmatprep.mubr.f32.mxu0 0.0
      %v1350 = vand.u32 %v1108, 4294901760
      %1351 = vmatmul.mubr.f32.gmra.mrb[0].mxu0 %v1350
      %v1352 = vpop.f32.mrb[0].mxu0
      %v1353 = vadd.f32 %v1207, %v1352
      %v1354 = vpop.f32.mrb[0].mxu0
      %1355 = vmatprep.mubr.f32.mxu0 0.0
      %v1356 = vand.u32 %v1111, 4294901760
      %1357 = vmatmul.mubr.f32.gmra.mrb[0].mxu0 %v1356
      %v1358 = vpop.f32.mrb[0].mxu0
      %v1359 = vadd.f32 %v1217, %v1358
      %v1360 = vpop.f32.mrb[0].mxu0
      %1361 = vmatprep.mubr.f32.mxu0 0.0
      %v1362 = vand.u32 %v1114, 4294901760
      %1363 = vmatmul.mubr.f32.gmra.mrb[0].mxu0 %v1362
      %v1364 = vpop.f32.mrb[0].mxu0
      %v1365 = vadd.f32 %v1227, %v1364
      %v1366 = vpop.f32.mrb[0].mxu0
      %1367 = vmatprep.mubr.f32.mxu0 0.0
      %v1368 = vand.u32 %v1117, 4294901760
      %1369 = vmatmul.mubr.f32.gmra.mrb[0].mxu0 %v1368
      %v1370 = vpop.f32.mrb[0].mxu0
      %v1371 = vadd.f32 %v1237, %v1370
      %v1372 = vpop.f32.mrb[0].mxu0
      %1373 = vmatprep.mubr.f32.mxu0 0.0
      %v1374 = vand.u32 %v1120, 4294901760
      %1375 = vmatmul.mubr.f32.gmra.mrb[0].mxu0 %v1374
      %v1376 = vpop.f32.mrb[0].mxu0
      %v1377 = vadd.f32 %v1247, %v1376
      %v1378 = vpop.f32.mrb[0].mxu0
      %1379 = vmatprep.mubr.f32.mxu0 0.0
      %v1380 = vand.u32 %v1123, 4294901760
      %1381 = vmatmul.mubr.f32.gmra.mrb[0].mxu0 %v1380
      %v1382 = vpop.f32.mrb[0].mxu0
      %v1383 = vadd.f32 %v1257, %v1382
      %v1384 = vpop.f32.mrb[0].mxu0
      %1385 = vmatprep.mubr.f32.mxu0 0.0
      %v1386 = vand.u32 %v1126, 4294901760
      %1387 = vmatmul.mubr.f32.gmra.mrb[0].mxu0 %v1386
      %v1388 = vpop.f32.mrb[0].mxu0
      %v1389 = vadd.f32 %v1267, %v1388
      %v1390 = vpop.f32.mrb[0].mxu0
      %1391 = vmatprep.mubr.f32.mxu0 0.0
      %v1392 = vand.u32 %v1129, 4294901760
      %1393 = vmatmul.mubr.f32.gmra.mrb[0].mxu0 %v1392
      %v1394 = vpop.f32.mrb[0].mxu0
      %v1395 = vadd.f32 %v1277, %v1394
      %v1396 = vpop.f32.mrb[0].mxu0
      %1397 = vdwg.mxu0
      %1398 = vmatprep.subr.mxu0 0.0
      %v1399 = vand.u32 %v1132, 4294901760
      %v1400 = vsub.f32 %v1132, %v1399
      %1401 = vmatpush1.msra.mxu0 %v1400
      %1402 = vmatprep.subr.mxu0 0.0
      %1403 = vmatpush1.msra.mxu0 0.0
      %1404 = vmatprep.subr.mxu0 0.0
      %1405 = vmatpush1.msra.mxu0 0.0
      %1406 = vmatprep.subr.mxu0 0.0
      %1407 = vmatpush1.msra.mxu0 0.0
      %1408 = vmatprep.subr.mxu0 0.0
      %1409 = vmatpush1.msra.mxu0 0.0
      %1410 = vmatprep.subr.mxu0 0.0
      %1411 = vmatpush1.msra.mxu0 0.0
      %1412 = vmatprep.subr.mxu0 0.0
      %1413 = vmatpush1.msra.mxu0 0.0
      %1414 = vmatprep.subr.mxu0 0.0
      %1415 = vmatpush1.msra.mxu0 0.0
      %1416 = vmatprep.subr.mxu0 0.0
      %1417 = vmatpush1.msra.mxu0 0.0
      %1418 = vmatprep.subr.mxu0 0.0
      %1419 = vmatpush1.msra.mxu0 0.0
      %1420 = vmatprep.subr.mxu0 0.0
      %1421 = vmatpush1.msra.mxu0 0.0
      %1422 = vmatprep.subr.mxu0 0.0
      %1423 = vmatpush1.msra.mxu0 0.0
      %1424 = vmatprep.subr.mxu0 0.0
      %1425 = vmatpush1.msra.mxu0 0.0
      %1426 = vmatprep.subr.mxu0 0.0
      %1427 = vmatpush1.msra.mxu0 0.0
      %1428 = vmatprep.subr.mxu0 0.0
      %1429 = vmatpush1.msra.mxu0 0.0
      %1430 = vmatprep.subr.mxu0 0.0
      %1431 = vmatpush1.msra.mxu0 0.0
      %1432 = vmatprep.subr.mxu0 0.0
      %1433 = vmatpush1.msra.mxu0 0.0
      %1434 = vmatprep.subr.mxu0 0.0
      %1435 = vmatpush1.msra.mxu0 0.0
      %1436 = vmatprep.subr.mxu0 0.0
      %1437 = vmatpush1.msra.mxu0 0.0
      %1438 = vmatprep.subr.mxu0 0.0
      %1439 = vmatpush1.msra.mxu0 0.0
      %1440 = vmatprep.subr.mxu0 0.0
      %1441 = vmatpush1.msra.mxu0 0.0
      %1442 = vmatprep.subr.mxu0 0.0
      %1443 = vmatpush1.msra.mxu0 0.0
      %1444 = vmatprep.subr.mxu0 0.0
      %1445 = vmatpush1.msra.mxu0 0.0
      %1446 = vmatprep.subr.mxu0 0.0
      %1447 = vmatpush1.msra.mxu0 0.0
      %1448 = vmatprep.subr.mxu0 0.0
      %1449 = vmatpush1.msra.mxu0 0.0
      %1450 = vmatprep.subr.mxu0 0.0
      %1451 = vmatpush1.msra.mxu0 0.0
      %1452 = vmatprep.subr.mxu0 0.0
      %1453 = vmatpush1.msra.mxu0 0.0
      %1454 = vmatprep.subr.mxu0 0.0
      %1455 = vmatpush1.msra.mxu0 0.0
      %1456 = vmatprep.subr.mxu0 0.0
      %1457 = vmatpush1.msra.mxu0 0.0
      %1458 = vmatprep.subr.mxu0 0.0
      %1459 = vmatpush1.msra.mxu0 0.0
      %1460 = vmatprep.subr.mxu0 0.0
      %1461 = vmatpush1.msra.mxu0 0.0
      %1462 = vmatprep.subr.mxu0 0.0
      %1463 = vmatpush1.msra.mxu0 0.0
      %1464 = vmatprep.mubr.f32.mxu0 0.0
      %v1465 = vand.u32 %v1108, 4294901760
      %v1466 = vsub.f32 %v1108, %v1465
      %1467 = vmatmul.mubr.f32.gmra.mrb[0].mxu0 %v1466
      %v1468 = vpop.f32.mrb[0].mxu0
      %v1469 = vadd.f32 %v1353, %v1468
      %v1470 = vpop.f32.mrb[0].mxu0
      %1471 = vmatprep.mubr.f32.mxu0 0.0
      %v1472 = vand.u32 %v1111, 4294901760
      %v1473 = vsub.f32 %v1111, %v1472
      %1474 = vmatmul.mubr.f32.gmra.mrb[0].mxu0 %v1473
      %v1475 = vpop.f32.mrb[0].mxu0
      %v1476 = vadd.f32 %v1359, %v1475
      %v1477 = vpop.f32.mrb[0].mxu0
      %1478 = vmatprep.mubr.f32.mxu0 0.0
      %v1479 = vand.u32 %v1114, 4294901760
      %v1480 = vsub.f32 %v1114, %v1479
      %1481 = vmatmul.mubr.f32.gmra.mrb[0].mxu0 %v1480
      %v1482 = vpop.f32.mrb[0].mxu0
      %v1483 = vadd.f32 %v1365, %v1482
      %v1484 = vpop.f32.mrb[0].mxu0
      %1485 = vmatprep.mubr.f32.mxu0 0.0
      %v1486 = vand.u32 %v1117, 4294901760
      %v1487 = vsub.f32 %v1117, %v1486
      %1488 = vmatmul.mubr.f32.gmra.mrb[0].mxu0 %v1487
      %v1489 = vpop.f32.mrb[0].mxu0
      %v1490 = vadd.f32 %v1371, %v1489
      %v1491 = vpop.f32.mrb[0].mxu0
      %1492 = vmatprep.mubr.f32.mxu0 0.0
      %v1493 = vand.u32 %v1120, 4294901760
      %v1494 = vsub.f32 %v1120, %v1493
      %1495 = vmatmul.mubr.f32.gmra.mrb[0].mxu0 %v1494
      %v1496 = vpop.f32.mrb[0].mxu0
      %v1497 = vadd.f32 %v1377, %v1496
      %v1498 = vpop.f32.mrb[0].mxu0
      %1499 = vmatprep.mubr.f32.mxu0 0.0
      %v1500 = vand.u32 %v1123, 4294901760
      %v1501 = vsub.f32 %v1123, %v1500
      %1502 = vmatmul.mubr.f32.gmra.mrb[0].mxu0 %v1501
      %v1503 = vpop.f32.mrb[0].mxu0
      %v1504 = vadd.f32 %v1383, %v1503
      %v1505 = vpop.f32.mrb[0].mxu0
      %1506 = vmatprep.mubr.f32.mxu0 0.0
      %v1507 = vand.u32 %v1126, 4294901760
      %v1508 = vsub.f32 %v1126, %v1507
      %1509 = vmatmul.mubr.f32.gmra.mrb[0].mxu0 %v1508
      %v1510 = vpop.f32.mrb[0].mxu0
      %v1511 = vadd.f32 %v1389, %v1510
      %v1512 = vpop.f32.mrb[0].mxu0
      %1513 = vmatprep.mubr.f32.mxu0 0.0
      %v1514 = vand.u32 %v1129, 4294901760
      %v1515 = vsub.f32 %v1129, %v1514
      %1516 = vmatmul.mubr.f32.gmra.mrb[0].mxu0 %v1515
      %v1517 = vpop.f32.mrb[0].mxu0
      %v1518 = vadd.f32 %v1395, %v1517
      %v1519 = vpop.f32.mrb[0].mxu0
      %1520 = vdwg.mxu0
      %1521 = vmatprep.subr.mxu0 0.0
      %v1522 = vand.u32 %v1132, 4294901760
      %1523 = vmatpush1.msra.mxu0 %v1522
      %1524 = vmatprep.subr.mxu0 0.0
      %1525 = vmatpush1.msra.mxu0 0.0
      %1526 = vmatprep.subr.mxu0 0.0
      %1527 = vmatpush1.msra.mxu0 0.0
      %1528 = vmatprep.subr.mxu0 0.0
      %1529 = vmatpush1.msra.mxu0 0.0
      %1530 = vmatprep.subr.mxu0 0.0
      %1531 = vmatpush1.msra.mxu0 0.0
      %1532 = vmatprep.subr.mxu0 0.0
      %1533 = vmatpush1.msra.mxu0 0.0
      %1534 = vmatprep.subr.mxu0 0.0
      %1535 = vmatpush1.msra.mxu0 0.0
      %1536 = vmatprep.subr.mxu0 0.0
      %1537 = vmatpush1.msra.mxu0 0.0
      %1538 = vmatprep.subr.mxu0 0.0
      %1539 = vmatpush1.msra.mxu0 0.0
      %1540 = vmatprep.subr.mxu0 0.0
      %1541 = vmatpush1.msra.mxu0 0.0
      %1542 = vmatprep.subr.mxu0 0.0
      %1543 = vmatpush1.msra.mxu0 0.0
      %1544 = vmatprep.subr.mxu0 0.0
      %1545 = vmatpush1.msra.mxu0 0.0
      %1546 = vmatprep.subr.mxu0 0.0
      %1547 = vmatpush1.msra.mxu0 0.0
      %1548 = vmatprep.subr.mxu0 0.0
      %1549 = vmatpush1.msra.mxu0 0.0
      %1550 = vmatprep.subr.mxu0 0.0
      %1551 = vmatpush1.msra.mxu0 0.0
      %1552 = vmatprep.subr.mxu0 0.0
      %1553 = vmatpush1.msra.mxu0 0.0
      %1554 = vmatprep.subr.mxu0 0.0
      %1555 = vmatpush1.msra.mxu0 0.0
      %1556 = vmatprep.subr.mxu0 0.0
      %1557 = vmatpush1.msra.mxu0 0.0
      %1558 = vmatprep.subr.mxu0 0.0
      %1559 = vmatpush1.msra.mxu0 0.0
      %1560 = vmatprep.subr.mxu0 0.0
      %1561 = vmatpush1.msra.mxu0 0.0
      %1562 = vmatprep.subr.mxu0 0.0
      %1563 = vmatpush1.msra.mxu0 0.0
      %1564 = vmatprep.subr.mxu0 0.0
      %1565 = vmatpush1.msra.mxu0 0.0
      %1566 = vmatprep.subr.mxu0 0.0
      %1567 = vmatpush1.msra.mxu0 0.0
      %1568 = vmatprep.subr.mxu0 0.0
      %1569 = vmatpush1.msra.mxu0 0.0
      %1570 = vmatprep.subr.mxu0 0.0
      %1571 = vmatpush1.msra.mxu0 0.0
      %1572 = vmatprep.subr.mxu0 0.0
      %1573 = vmatpush1.msra.mxu0 0.0
      %1574 = vmatprep.subr.mxu0 0.0
      %1575 = vmatpush1.msra.mxu0 0.0
      %1576 = vmatprep.subr.mxu0 0.0
      %1577 = vmatpush1.msra.mxu0 0.0
      %1578 = vmatprep.subr.mxu0 0.0
      %1579 = vmatpush1.msra.mxu0 0.0
      %1580 = vmatprep.subr.mxu0 0.0
      %1581 = vmatpush1.msra.mxu0 0.0
      %1582 = vmatprep.subr.mxu0 0.0
      %1583 = vmatpush1.msra.mxu0 0.0
      %1584 = vmatprep.subr.mxu0 0.0
      %1585 = vmatpush1.msra.mxu0 0.0
      %1586 = vmatprep.mubr.f32.mxu0 0.0
      %v1587 = vand.u32 %v1108, 4294901760
      %v1588 = vsub.f32 %v1108, %v1587
      %v1589 = vand.u32 %v1588, 4294901760
      %1590 = vmatmul.mubr.f32.gmra.mrb[0].mxu0 %v1589
      %v1591 = vpop.f32.mrb[0].mxu0
      %v1592 = vadd.f32 %v1469, %v1591
      %v1593 = vpop.f32.mrb[0].mxu0
      %1594 = vmatprep.mubr.f32.mxu0 0.0
      %v1595 = vand.u32 %v1111, 4294901760
      %v1596 = vsub.f32 %v1111, %v1595
      %v1597 = vand.u32 %v1596, 4294901760
      %1598 = vmatmul.mubr.f32.gmra.mrb[0].mxu0 %v1597
      %v1599 = vpop.f32.mrb[0].mxu0
      %v1600 = vadd.f32 %v1476, %v1599
      %v1601 = vpop.f32.mrb[0].mxu0
      %1602 = vmatprep.mubr.f32.mxu0 0.0
      %v1603 = vand.u32 %v1114, 4294901760
      %v1604 = vsub.f32 %v1114, %v1603
      %v1605 = vand.u32 %v1604, 4294901760
      %1606 = vmatmul.mubr.f32.gmra.mrb[0].mxu0 %v1605
      %v1607 = vpop.f32.mrb[0].mxu0
      %v1608 = vadd.f32 %v1483, %v1607
      %v1609 = vpop.f32.mrb[0].mxu0
      %1610 = vmatprep.mubr.f32.mxu0 0.0
      %v1611 = vand.u32 %v1117, 4294901760
      %v1612 = vsub.f32 %v1117, %v1611
      %v1613 = vand.u32 %v1612, 4294901760
      %1614 = vmatmul.mubr.f32.gmra.mrb[0].mxu0 %v1613
      %v1615 = vpop.f32.mrb[0].mxu0
      %v1616 = vadd.f32 %v1490, %v1615
      %v1617 = vpop.f32.mrb[0].mxu0
      %1618 = vmatprep.mubr.f32.mxu0 0.0
      %v1619 = vand.u32 %v1120, 4294901760
      %v1620 = vsub.f32 %v1120, %v1619
      %v1621 = vand.u32 %v1620, 4294901760
      %1622 = vmatmul.mubr.f32.gmra.mrb[0].mxu0 %v1621
      %v1623 = vpop.f32.mrb[0].mxu0
      %v1624 = vadd.f32 %v1497, %v1623
      %v1625 = vpop.f32.mrb[0].mxu0
      %1626 = vmatprep.mubr.f32.mxu0 0.0
      %v1627 = vand.u32 %v1123, 4294901760
      %v1628 = vsub.f32 %v1123, %v1627
      %v1629 = vand.u32 %v1628, 4294901760
      %1630 = vmatmul.mubr.f32.gmra.mrb[0].mxu0 %v1629
      %v1631 = vpop.f32.mrb[0].mxu0
      %v1632 = vadd.f32 %v1504, %v1631
      %v1633 = vpop.f32.mrb[0].mxu0
      %1634 = vmatprep.mubr.f32.mxu0 0.0
      %v1635 = vand.u32 %v1126, 4294901760
      %v1636 = vsub.f32 %v1126, %v1635
      %v1637 = vand.u32 %v1636, 4294901760
      %1638 = vmatmul.mubr.f32.gmra.mrb[0].mxu0 %v1637
      %v1639 = vpop.f32.mrb[0].mxu0
      %v1640 = vadd.f32 %v1511, %v1639
      %v1641 = vpop.f32.mrb[0].mxu0
      %1642 = vmatprep.mubr.f32.mxu0 0.0
      %v1643 = vand.u32 %v1129, 4294901760
      %v1644 = vsub.f32 %v1129, %v1643
      %v1645 = vand.u32 %v1644, 4294901760
      %1646 = vmatmul.mubr.f32.gmra.mrb[0].mxu0 %v1645
      %v1647 = vpop.f32.mrb[0].mxu0
      %v1648 = vadd.f32 %v1518, %v1647
      %v1649 = vpop.f32.mrb[0].mxu0
      %1650 = vdwg.mxu0
      %1651 = vmatprep.subr.mxu0 0.0
      %v1652 = vand.u32 %v1132, 4294901760
      %v1653 = vsub.f32 %v1132, %v1652
      %v1654 = vand.u32 %v1653, 4294901760
      %1655 = vmatpush1.msra.mxu0 %v1654
      %1656 = vmatprep.subr.mxu0 0.0
      %1657 = vmatpush1.msra.mxu0 0.0
      %1658 = vmatprep.subr.mxu0 0.0
      %1659 = vmatpush1.msra.mxu0 0.0
      %1660 = vmatprep.subr.mxu0 0.0
      %1661 = vmatpush1.msra.mxu0 0.0
      %1662 = vmatprep.subr.mxu0 0.0
      %1663 = vmatpush1.msra.mxu0 0.0
      %1664 = vmatprep.subr.mxu0 0.0
      %1665 = vmatpush1.msra.mxu0 0.0
      %1666 = vmatprep.subr.mxu0 0.0
      %1667 = vmatpush1.msra.mxu0 0.0
      %1668 = vmatprep.subr.mxu0 0.0
      %1669 = vmatpush1.msra.mxu0 0.0
      %1670 = vmatprep.subr.mxu0 0.0
      %1671 = vmatpush1.msra.mxu0 0.0
      %1672 = vmatprep.subr.mxu0 0.0
      %1673 = vmatpush1.msra.mxu0 0.0
      %1674 = vmatprep.subr.mxu0 0.0
      %1675 = vmatpush1.msra.mxu0 0.0
      %1676 = vmatprep.subr.mxu0 0.0
      %1677 = vmatpush1.msra.mxu0 0.0
      %1678 = vmatprep.subr.mxu0 0.0
      %1679 = vmatpush1.msra.mxu0 0.0
      %1680 = vmatprep.subr.mxu0 0.0
      %1681 = vmatpush1.msra.mxu0 0.0
      %1682 = vmatprep.subr.mxu0 0.0
      %1683 = vmatpush1.msra.mxu0 0.0
      %1684 = vmatprep.subr.mxu0 0.0
      %1685 = vmatpush1.msra.mxu0 0.0
      %1686 = vmatprep.subr.mxu0 0.0
      %1687 = vmatpush1.msra.mxu0 0.0
      %1688 = vmatprep.subr.mxu0 0.0
      %1689 = vmatpush1.msra.mxu0 0.0
      %1690 = vmatprep.subr.mxu0 0.0
      %1691 = vmatpush1.msra.mxu0 0.0
      %1692 = vmatprep.subr.mxu0 0.0
      %1693 = vmatpush1.msra.mxu0 0.0
      %1694 = vmatprep.subr.mxu0 0.0
      %1695 = vmatpush1.msra.mxu0 0.0
      %1696 = vmatprep.subr.mxu0 0.0
      %1697 = vmatpush1.msra.mxu0 0.0
      %1698 = vmatprep.subr.mxu0 0.0
      %1699 = vmatpush1.msra.mxu0 0.0
      %1700 = vmatprep.subr.mxu0 0.0
      %1701 = vmatpush1.msra.mxu0 0.0
      %1702 = vmatprep.subr.mxu0 0.0
      %1703 = vmatpush1.msra.mxu0 0.0
      %1704 = vmatprep.subr.mxu0 0.0
      %1705 = vmatpush1.msra.mxu0 0.0
      %1706 = vmatprep.subr.mxu0 0.0
      %1707 = vmatpush1.msra.mxu0 0.0
      %1708 = vmatprep.subr.mxu0 0.0
      %1709 = vmatpush1.msra.mxu0 0.0
      %1710 = vmatprep.subr.mxu0 0.0
      %1711 = vmatpush1.msra.mxu0 0.0
      %1712 = vmatprep.subr.mxu0 0.0
      %1713 = vmatpush1.msra.mxu0 0.0
      %1714 = vmatprep.subr.mxu0 0.0
      %1715 = vmatpush1.msra.mxu0 0.0
      %1716 = vmatprep.subr.mxu0 0.0
      %1717 = vmatpush1.msra.mxu0 0.0
      %1718 = vmatprep.mubr.f32.mxu0 0.0
      %v1719 = vand.u32 %v1108, 4294901760
      %1720 = vmatmul.mubr.f32.gmra.mrb[0].mxu0 %v1719
      %v1721 = vpop.f32.mrb[0].mxu0
      %v1722 = vadd.f32 %v1592, %v1721
      %v1723 = vpop.f32.mrb[0].mxu0
      %1724 = vmatprep.mubr.f32.mxu0 0.0
      %v1725 = vand.u32 %v1111, 4294901760
      %1726 = vmatmul.mubr.f32.gmra.mrb[0].mxu0 %v1725
      %v1727 = vpop.f32.mrb[0].mxu0
      %v1728 = vadd.f32 %v1600, %v1727
      %v1729 = vpop.f32.mrb[0].mxu0
      %1730 = vmatprep.mubr.f32.mxu0 0.0
      %v1731 = vand.u32 %v1114, 4294901760
      %1732 = vmatmul.mubr.f32.gmra.mrb[0].mxu0 %v1731
      %v1733 = vpop.f32.mrb[0].mxu0
      %v1734 = vadd.f32 %v1608, %v1733
      %v1735 = vpop.f32.mrb[0].mxu0
      %1736 = vmatprep.mubr.f32.mxu0 0.0
      %v1737 = vand.u32 %v1117, 4294901760
      %1738 = vmatmul.mubr.f32.gmra.mrb[0].mxu0 %v1737
      %v1739 = vpop.f32.mrb[0].mxu0
      %v1740 = vadd.f32 %v1616, %v1739
      %v1741 = vpop.f32.mrb[0].mxu0
      %1742 = vmatprep.mubr.f32.mxu0 0.0
      %v1743 = vand.u32 %v1120, 4294901760
      %1744 = vmatmul.mubr.f32.gmra.mrb[0].mxu0 %v1743
      %v1745 = vpop.f32.mrb[0].mxu0
      %v1746 = vadd.f32 %v1624, %v1745
      %v1747 = vpop.f32.mrb[0].mxu0
      %1748 = vmatprep.mubr.f32.mxu0 0.0
      %v1749 = vand.u32 %v1123, 4294901760
      %1750 = vmatmul.mubr.f32.gmra.mrb[0].mxu0 %v1749
      %v1751 = vpop.f32.mrb[0].mxu0
      %v1752 = vadd.f32 %v1632, %v1751
      %v1753 = vpop.f32.mrb[0].mxu0
      %1754 = vmatprep.mubr.f32.mxu0 0.0
      %v1755 = vand.u32 %v1126, 4294901760
      %1756 = vmatmul.mubr.f32.gmra.mrb[0].mxu0 %v1755
      %v1757 = vpop.f32.mrb[0].mxu0
      %v1758 = vadd.f32 %v1640, %v1757
      %v1759 = vpop.f32.mrb[0].mxu0
      %1760 = vmatprep.mubr.f32.mxu0 0.0
      %v1761 = vand.u32 %v1129, 4294901760
      %1762 = vmatmul.mubr.f32.gmra.mrb[0].mxu0 %v1761
      %v1763 = vpop.f32.mrb[0].mxu0
      %v1764 = vadd.f32 %v1648, %v1763
      %v1765 = vpop.f32.mrb[0].mxu0
      %1766 = vdwg.mxu0
      %1767 = vmatprep.subr.mxu0 0.0
      %v1768 = vand.u32 %v1132, 4294901760
      %1769 = vmatpush1.msra.mxu0 %v1768
      %1770 = vmatprep.subr.mxu0 0.0
      %1771 = vmatpush1.msra.mxu0 0.0
      %1772 = vmatprep.subr.mxu0 0.0
      %1773 = vmatpush1.msra.mxu0 0.0
      %1774 = vmatprep.subr.mxu0 0.0
      %1775 = vmatpush1.msra.mxu0 0.0
      %1776 = vmatprep.subr.mxu0 0.0
      %1777 = vmatpush1.msra.mxu0 0.0
      %1778 = vmatprep.subr.mxu0 0.0
      %1779 = vmatpush1.msra.mxu0 0.0
      %1780 = vmatprep.subr.mxu0 0.0
      %1781 = vmatpush1.msra.mxu0 0.0
      %1782 = vmatprep.subr.mxu0 0.0
      %1783 = vmatpush1.msra.mxu0 0.0
      %1784 = vmatprep.subr.mxu0 0.0
      %1785 = vmatpush1.msra.mxu0 0.0
      %1786 = vmatprep.subr.mxu0 0.0
      %1787 = vmatpush1.msra.mxu0 0.0
      %1788 = vmatprep.subr.mxu0 0.0
      %1789 = vmatpush1.msra.mxu0 0.0
      %1790 = vmatprep.subr.mxu0 0.0
      %1791 = vmatpush1.msra.mxu0 0.0
      %1792 = vmatprep.subr.mxu0 0.0
      %1793 = vmatpush1.msra.mxu0 0.0
      %1794 = vmatprep.subr.mxu0 0.0
      %1795 = vmatpush1.msra.mxu0 0.0
      %1796 = vmatprep.subr.mxu0 0.0
      %1797 = vmatpush1.msra.mxu0 0.0
      %1798 = vmatprep.subr.mxu0 0.0
      %1799 = vmatpush1.msra.mxu0 0.0
      %1800 = vmatprep.subr.mxu0 0.0
      %1801 = vmatpush1.msra.mxu0 0.0
      %1802 = vmatprep.subr.mxu0 0.0
      %1803 = vmatpush1.msra.mxu0 0.0
      %1804 = vmatprep.subr.mxu0 0.0
      %1805 = vmatpush1.msra.mxu0 0.0
      %1806 = vmatprep.subr.mxu0 0.0
      %1807 = vmatpush1.msra.mxu0 0.0
      %1808 = vmatprep.subr.mxu0 0.0
      %1809 = vmatpush1.msra.mxu0 0.0
      %1810 = vmatprep.subr.mxu0 0.0
      %1811 = vmatpush1.msra.mxu0 0.0
      %1812 = vmatprep.subr.mxu0 0.0
      %1813 = vmatpush1.msra.mxu0 0.0
      %1814 = vmatprep.subr.mxu0 0.0
      %1815 = vmatpush1.msra.mxu0 0.0
      %1816 = vmatprep.subr.mxu0 0.0
      %1817 = vmatpush1.msra.mxu0 0.0
      %1818 = vmatprep.subr.mxu0 0.0
      %1819 = vmatpush1.msra.mxu0 0.0
      %1820 = vmatprep.subr.mxu0 0.0
      %1821 = vmatpush1.msra.mxu0 0.0
      %1822 = vmatprep.subr.mxu0 0.0
      %1823 = vmatpush1.msra.mxu0 0.0
      %1824 = vmatprep.subr.mxu0 0.0
      %1825 = vmatpush1.msra.mxu0 0.0
      %1826 = vmatprep.subr.mxu0 0.0
      %1827 = vmatpush1.msra.mxu0 0.0
      %1828 = vmatprep.subr.mxu0 0.0
      %1829 = vmatpush1.msra.mxu0 0.0
      %1830 = vmatprep.subr.mxu0 0.0
      %1831 = vmatpush1.msra.mxu0 0.0
      %1832 = vmatprep.mubr.f32.mxu0 0.0
      %v1833 = vand.u32 %v1108, 4294901760
      %1834 = vmatmul.mubr.f32.gmra.mrb[0].mxu0 %v1833
      %v1835 = vpop.f32.mrb[0].mxu0
      %v1836 = vadd.f32 %v1722, %v1835
      %v1837 = vpop.f32.mrb[0].mxu0
      %1838 = vmatprep.mubr.f32.mxu0 0.0
      %v1839 = vand.u32 %v1111, 4294901760
      %1840 = vmatmul.mubr.f32.gmra.mrb[0].mxu0 %v1839
      %v1841 = vpop.f32.mrb[0].mxu0
      %v1842 = vadd.f32 %v1728, %v1841
      %v1843 = vpop.f32.mrb[0].mxu0
      %1844 = vmatprep.mubr.f32.mxu0 0.0
      %v1845 = vand.u32 %v1114, 4294901760
      %1846 = vmatmul.mubr.f32.gmra.mrb[0].mxu0 %v1845
      %v1847 = vpop.f32.mrb[0].mxu0
      %v1848 = vadd.f32 %v1734, %v1847
      %v1849 = vpop.f32.mrb[0].mxu0
      %1850 = vmatprep.mubr.f32.mxu0 0.0
      %v1851 = vand.u32 %v1117, 4294901760
      %1852 = vmatmul.mubr.f32.gmra.mrb[0].mxu0 %v1851
      %v1853 = vpop.f32.mrb[0].mxu0
      %v1854 = vadd.f32 %v1740, %v1853
      %v1855 = vpop.f32.mrb[0].mxu0
      %1856 = vmatprep.mubr.f32.mxu0 0.0
      %v1857 = vand.u32 %v1120, 4294901760
      %1858 = vmatmul.mubr.f32.gmra.mrb[0].mxu0 %v1857
      %v1859 = vpop.f32.mrb[0].mxu0
      %v1860 = vadd.f32 %v1746, %v1859
      %v1861 = vpop.f32.mrb[0].mxu0
      %1862 = vmatprep.mubr.f32.mxu0 0.0
      %v1863 = vand.u32 %v1123, 4294901760
      %1864 = vmatmul.mubr.f32.gmra.mrb[0].mxu0 %v1863
      %v1865 = vpop.f32.mrb[0].mxu0
      %v1866 = vadd.f32 %v1752, %v1865
      %v1867 = vpop.f32.mrb[0].mxu0
      %1868 = vmatprep.mubr.f32.mxu0 0.0
      %v1869 = vand.u32 %v1126, 4294901760
      %1870 = vmatmul.mubr.f32.gmra.mrb[0].mxu0 %v1869
      %v1871 = vpop.f32.mrb[0].mxu0
      %v1872 = vadd.f32 %v1758, %v1871
      %v1873 = vpop.f32.mrb[0].mxu0
      %1874 = vmatprep.mubr.f32.mxu0 0.0
      %v1875 = vand.u32 %v1129, 4294901760
      %1876 = vmatmul.mubr.f32.gmra.mrb[0].mxu0 %v1875
      %v1877 = vpop.f32.mrb[0].mxu0
      %v1878 = vadd.f32 %v1764, %v1877
      %v1879 = vpop.f32.mrb[0].mxu0
      %1880 = vdwg.mxu0
      %v1881 = vld [vmem:[%s291 + $0x1] sm:$0xff]
      %v1882 = vld [vmem:[%s291 + $0x11] sm:$0xff]
      %v1883 = vld [vmem:[%s291 + $0x21] sm:$0xff]
      %v1884 = vld [vmem:[%s291 + $0x31] sm:$0xff]
      %v1885 = vld [vmem:[%s291 + $0x41] sm:$0xff]
      %v1886 = vld [vmem:[%s291 + $0x51] sm:$0xff]
      %v1887 = vld [vmem:[%s291 + $0x61] sm:$0xff]
      %v1888 = vld [vmem:[%s291 + $0x71] sm:$0xff]
      %s1889 = scalar_lea.vmem %s4, 8
      %v1890 = vld [vmem:[%s1889] sm:$0xf]
      %v1892 = vsel %vm331, %v1881, 0
      %v1895 = vsel %vm331, %v1882, 0
      %v1898 = vsel %vm331, %v1883, 0
      %v1901 = vsel %vm331, %v1884, 0
      %v1904 = vsel %vm331, %v1885, 0
      %v1907 = vsel %vm331, %v1886, 0
      %v1910 = vsel %vm331, %v1887, 0
      %v1913 = vsel %vm331, %v1888, 0
      %v1916 = vsel %vm356, %v1890, 0
      %1918 = vmatprep.subr.mxu0 0.0
      %v1919 = vand.u32 %v1916, 4294901760
      %1920 = vmatpush1.msra.mxu0 %v1919
      %1921 = vmatprep.subr.mxu0 0.0
      %1922 = vmatpush1.msra.mxu0 0.0
      %1923 = vmatprep.subr.mxu0 0.0
      %1924 = vmatpush1.msra.mxu0 0.0
      %1925 = vmatprep.subr.mxu0 0.0
      %1926 = vmatpush1.msra.mxu0 0.0
      %1927 = vmatprep.subr.mxu0 0.0
      %1928 = vmatpush1.msra.mxu0 0.0
      %1929 = vmatprep.subr.mxu0 0.0
      %1930 = vmatpush1.msra.mxu0 0.0
      %1931 = vmatprep.subr.mxu0 0.0
      %1932 = vmatpush1.msra.mxu0 0.0
      %1933 = vmatprep.subr.mxu0 0.0
      %1934 = vmatpush1.msra.mxu0 0.0
      %1935 = vmatprep.subr.mxu0 0.0
      %1936 = vmatpush1.msra.mxu0 0.0
      %1937 = vmatprep.subr.mxu0 0.0
      %1938 = vmatpush1.msra.mxu0 0.0
      %1939 = vmatprep.subr.mxu0 0.0
      %1940 = vmatpush1.msra.mxu0 0.0
      %1941 = vmatprep.subr.mxu0 0.0
      %1942 = vmatpush1.msra.mxu0 0.0
      %1943 = vmatprep.subr.mxu0 0.0
      %1944 = vmatpush1.msra.mxu0 0.0
      %1945 = vmatprep.subr.mxu0 0.0
      %1946 = vmatpush1.msra.mxu0 0.0
      %1947 = vmatprep.subr.mxu0 0.0
      %1948 = vmatpush1.msra.mxu0 0.0
      %1949 = vmatprep.subr.mxu0 0.0
      %1950 = vmatpush1.msra.mxu0 0.0
      %1951 = vmatprep.subr.mxu0 0.0
      %1952 = vmatpush1.msra.mxu0 0.0
      %1953 = vmatprep.subr.mxu0 0.0
      %1954 = vmatpush1.msra.mxu0 0.0
      %1955 = vmatprep.subr.mxu0 0.0
      %1956 = vmatpush1.msra.mxu0 0.0
      %1957 = vmatprep.subr.mxu0 0.0
      %1958 = vmatpush1.msra.mxu0 0.0
      %1959 = vmatprep.subr.mxu0 0.0
      %1960 = vmatpush1.msra.mxu0 0.0
      %1961 = vmatprep.subr.mxu0 0.0
      %1962 = vmatpush1.msra.mxu0 0.0
      %1963 = vmatprep.subr.mxu0 0.0
      %1964 = vmatpush1.msra.mxu0 0.0
      %1965 = vmatprep.subr.mxu0 0.0
      %1966 = vmatpush1.msra.mxu0 0.0
      %1967 = vmatprep.subr.mxu0 0.0
      %1968 = vmatpush1.msra.mxu0 0.0
      %1969 = vmatprep.subr.mxu0 0.0
      %1970 = vmatpush1.msra.mxu0 0.0
      %1971 = vmatprep.subr.mxu0 0.0
      %1972 = vmatpush1.msra.mxu0 0.0
      %1973 = vmatprep.subr.mxu0 0.0
      %1974 = vmatpush1.msra.mxu0 0.0
      %1975 = vmatprep.subr.mxu0 0.0
      %1976 = vmatpush1.msra.mxu0 0.0
      %1977 = vmatprep.subr.mxu0 0.0
      %1978 = vmatpush1.msra.mxu0 0.0
      %1979 = vmatprep.subr.mxu0 0.0
      %1980 = vmatpush1.msra.mxu0 0.0
      %1981 = vmatprep.subr.mxu0 0.0
      %1982 = vmatpush1.msra.mxu0 0.0
      %1983 = vmatprep.mubr.f32.mxu0 0.0
      %v1984 = vand.u32 %v1892, 4294901760
      %v1985 = vsub.f32 %v1892, %v1984
      %v1986 = vand.u32 %v1985, 4294901760
      %v1987 = vsub.f32 %v1985, %v1986
      %v1988 = vand.u32 %v1987, 4294901760
      %1989 = vmatmul.mubr.f32.gmra.mrb[0].mxu0 %v1988
      %v1990 = vpop.f32.mrb[0].mxu0
      %v1991 = vadd.f32 0.0, %v1990
      %v1992 = vpop.f32.mrb[0].mxu0
      %1993 = vmatprep.mubr.f32.mxu0 0.0
      %v1994 = vand.u32 %v1895, 4294901760
      %v1995 = vsub.f32 %v1895, %v1994
      %v1996 = vand.u32 %v1995, 4294901760
      %v1997 = vsub.f32 %v1995, %v1996
      %v1998 = vand.u32 %v1997, 4294901760
      %1999 = vmatmul.mubr.f32.gmra.mrb[0].mxu0 %v1998
      %v2000 = vpop.f32.mrb[0].mxu0
      %v2001 = vadd.f32 0.0, %v2000
      %v2002 = vpop.f32.mrb[0].mxu0
      %2003 = vmatprep.mubr.f32.mxu0 0.0
      %v2004 = vand.u32 %v1898, 4294901760
      %v2005 = vsub.f32 %v1898, %v2004
      %v2006 = vand.u32 %v2005, 4294901760
      %v2007 = vsub.f32 %v2005, %v2006
      %v2008 = vand.u32 %v2007, 4294901760
      %2009 = vmatmul.mubr.f32.gmra.mrb[0].mxu0 %v2008
      %v2010 = vpop.f32.mrb[0].mxu0
      %v2011 = vadd.f32 0.0, %v2010
      %v2012 = vpop.f32.mrb[0].mxu0
      %2013 = vmatprep.mubr.f32.mxu0 0.0
      %v2014 = vand.u32 %v1901, 4294901760
      %v2015 = vsub.f32 %v1901, %v2014
      %v2016 = vand.u32 %v2015, 4294901760
      %v2017 = vsub.f32 %v2015, %v2016
      %v2018 = vand.u32 %v2017, 4294901760
      %2019 = vmatmul.mubr.f32.gmra.mrb[0].mxu0 %v2018
      %v2020 = vpop.f32.mrb[0].mxu0
      %v2021 = vadd.f32 0.0, %v2020
      %v2022 = vpop.f32.mrb[0].mxu0
      %2023 = vmatprep.mubr.f32.mxu0 0.0
      %v2024 = vand.u32 %v1904, 4294901760
      %v2025 = vsub.f32 %v1904, %v2024
      %v2026 = vand.u32 %v2025, 4294901760
      %v2027 = vsub.f32 %v2025, %v2026
      %v2028 = vand.u32 %v2027, 4294901760
      %2029 = vmatmul.mubr.f32.gmra.mrb[0].mxu0 %v2028
      %v2030 = vpop.f32.mrb[0].mxu0
      %v2031 = vadd.f32 0.0, %v2030
      %v2032 = vpop.f32.mrb[0].mxu0
      %2033 = vmatprep.mubr.f32.mxu0 0.0
      %v2034 = vand.u32 %v1907, 4294901760
      %v2035 = vsub.f32 %v1907, %v2034
      %v2036 = vand.u32 %v2035, 4294901760
      %v2037 = vsub.f32 %v2035, %v2036
      %v2038 = vand.u32 %v2037, 4294901760
      %2039 = vmatmul.mubr.f32.gmra.mrb[0].mxu0 %v2038
      %v2040 = vpop.f32.mrb[0].mxu0
      %v2041 = vadd.f32 0.0, %v2040
      %v2042 = vpop.f32.mrb[0].mxu0
      %2043 = vmatprep.mubr.f32.mxu0 0.0
      %v2044 = vand.u32 %v1910, 4294901760
      %v2045 = vsub.f32 %v1910, %v2044
      %v2046 = vand.u32 %v2045, 4294901760
      %v2047 = vsub.f32 %v2045, %v2046
      %v2048 = vand.u32 %v2047, 4294901760
      %2049 = vmatmul.mubr.f32.gmra.mrb[0].mxu0 %v2048
      %v2050 = vpop.f32.mrb[0].mxu0
      %v2051 = vadd.f32 0.0, %v2050
      %v2052 = vpop.f32.mrb[0].mxu0
      %2053 = vmatprep.mubr.f32.mxu0 0.0
      %v2054 = vand.u32 %v1913, 4294901760
      %v2055 = vsub.f32 %v1913, %v2054
      %v2056 = vand.u32 %v2055, 4294901760
      %v2057 = vsub.f32 %v2055, %v2056
      %v2058 = vand.u32 %v2057, 4294901760
      %2059 = vmatmul.mubr.f32.gmra.mrb[0].mxu0 %v2058
      %v2060 = vpop.f32.mrb[0].mxu0
      %v2061 = vadd.f32 0.0, %v2060
      %v2062 = vpop.f32.mrb[0].mxu0
      %2063 = vdwg.mxu0
      %2064 = vmatprep.subr.mxu0 0.0
      %v2065 = vand.u32 %v1916, 4294901760
      %v2066 = vsub.f32 %v1916, %v2065
      %v2067 = vand.u32 %v2066, 4294901760
      %v2068 = vsub.f32 %v2066, %v2067
      %v2069 = vand.u32 %v2068, 4294901760
      %2070 = vmatpush1.msra.mxu0 %v2069
      %2071 = vmatprep.subr.mxu0 0.0
      %2072 = vmatpush1.msra.mxu0 0.0
      %2073 = vmatprep.subr.mxu0 0.0
      %2074 = vmatpush1.msra.mxu0 0.0
      %2075 = vmatprep.subr.mxu0 0.0
      %2076 = vmatpush1.msra.mxu0 0.0
      %2077 = vmatprep.subr.mxu0 0.0
      %2078 = vmatpush1.msra.mxu0 0.0
      %2079 = vmatprep.subr.mxu0 0.0
      %2080 = vmatpush1.msra.mxu0 0.0
      %2081 = vmatprep.subr.mxu0 0.0
      %2082 = vmatpush1.msra.mxu0 0.0
      %2083 = vmatprep.subr.mxu0 0.0
      %2084 = vmatpush1.msra.mxu0 0.0
      %2085 = vmatprep.subr.mxu0 0.0
      %2086 = vmatpush1.msra.mxu0 0.0
      %2087 = vmatprep.subr.mxu0 0.0
      %2088 = vmatpush1.msra.mxu0 0.0
      %2089 = vmatprep.subr.mxu0 0.0
      %2090 = vmatpush1.msra.mxu0 0.0
      %2091 = vmatprep.subr.mxu0 0.0
      %2092 = vmatpush1.msra.mxu0 0.0
      %2093 = vmatprep.subr.mxu0 0.0
      %2094 = vmatpush1.msra.mxu0 0.0
      %2095 = vmatprep.subr.mxu0 0.0
      %2096 = vmatpush1.msra.mxu0 0.0
      %2097 = vmatprep.subr.mxu0 0.0
      %2098 = vmatpush1.msra.mxu0 0.0
      %2099 = vmatprep.subr.mxu0 0.0
      %2100 = vmatpush1.msra.mxu0 0.0
      %2101 = vmatprep.subr.mxu0 0.0
      %2102 = vmatpush1.msra.mxu0 0.0
      %2103 = vmatprep.subr.mxu0 0.0
      %2104 = vmatpush1.msra.mxu0 0.0
      %2105 = vmatprep.subr.mxu0 0.0
      %2106 = vmatpush1.msra.mxu0 0.0
      %2107 = vmatprep.subr.mxu0 0.0
      %2108 = vmatpush1.msra.mxu0 0.0
      %2109 = vmatprep.subr.mxu0 0.0
      %2110 = vmatpush1.msra.mxu0 0.0
      %2111 = vmatprep.subr.mxu0 0.0
      %2112 = vmatpush1.msra.mxu0 0.0
      %2113 = vmatprep.subr.mxu0 0.0
      %2114 = vmatpush1.msra.mxu0 0.0
      %2115 = vmatprep.subr.mxu0 0.0
      %2116 = vmatpush1.msra.mxu0 0.0
      %2117 = vmatprep.subr.mxu0 0.0
      %2118 = vmatpush1.msra.mxu0 0.0
      %2119 = vmatprep.subr.mxu0 0.0
      %2120 = vmatpush1.msra.mxu0 0.0
      %2121 = vmatprep.subr.mxu0 0.0
      %2122 = vmatpush1.msra.mxu0 0.0
      %2123 = vmatprep.subr.mxu0 0.0
      %2124 = vmatpush1.msra.mxu0 0.0
      %2125 = vmatprep.subr.mxu0 0.0
      %2126 = vmatpush1.msra.mxu0 0.0
      %2127 = vmatprep.subr.mxu0 0.0
      %2128 = vmatpush1.msra.mxu0 0.0
      %2129 = vmatprep.subr.mxu0 0.0
      %2130 = vmatpush1.msra.mxu0 0.0
      %2131 = vmatprep.subr.mxu0 0.0
      %2132 = vmatpush1.msra.mxu0 0.0
      %2133 = vmatprep.mubr.f32.mxu0 0.0
      %v2134 = vand.u32 %v1892, 4294901760
      %2135 = vmatmul.mubr.f32.gmra.mrb[0].mxu0 %v2134
      %v2136 = vpop.f32.mrb[0].mxu0
      %v2137 = vadd.f32 %v1991, %v2136
      %v2138 = vpop.f32.mrb[0].mxu0
      %2139 = vmatprep.mubr.f32.mxu0 0.0
      %v2140 = vand.u32 %v1895, 4294901760
      %2141 = vmatmul.mubr.f32.gmra.mrb[0].mxu0 %v2140
      %v2142 = vpop.f32.mrb[0].mxu0
      %v2143 = vadd.f32 %v2001, %v2142
      %v2144 = vpop.f32.mrb[0].mxu0
      %2145 = vmatprep.mubr.f32.mxu0 0.0
      %v2146 = vand.u32 %v1898, 4294901760
      %2147 = vmatmul.mubr.f32.gmra.mrb[0].mxu0 %v2146
      %v2148 = vpop.f32.mrb[0].mxu0
      %v2149 = vadd.f32 %v2011, %v2148
      %v2150 = vpop.f32.mrb[0].mxu0
      %2151 = vmatprep.mubr.f32.mxu0 0.0
      %v2152 = vand.u32 %v1901, 4294901760
      %2153 = vmatmul.mubr.f32.gmra.mrb[0].mxu0 %v2152
      %v2154 = vpop.f32.mrb[0].mxu0
      %v2155 = vadd.f32 %v2021, %v2154
      %v2156 = vpop.f32.mrb[0].mxu0
      %2157 = vmatprep.mubr.f32.mxu0 0.0
      %v2158 = vand.u32 %v1904, 4294901760
      %2159 = vmatmul.mubr.f32.gmra.mrb[0].mxu0 %v2158
      %v2160 = vpop.f32.mrb[0].mxu0
      %v2161 = vadd.f32 %v2031, %v2160
      %v2162 = vpop.f32.mrb[0].mxu0
      %2163 = vmatprep.mubr.f32.mxu0 0.0
      %v2164 = vand.u32 %v1907, 4294901760
      %2165 = vmatmul.mubr.f32.gmra.mrb[0].mxu0 %v2164
      %v2166 = vpop.f32.mrb[0].mxu0
      %v2167 = vadd.f32 %v2041, %v2166
      %v2168 = vpop.f32.mrb[0].mxu0
      %2169 = vmatprep.mubr.f32.mxu0 0.0
      %v2170 = vand.u32 %v1910, 4294901760
      %2171 = vmatmul.mubr.f32.gmra.mrb[0].mxu0 %v2170
      %v2172 = vpop.f32.mrb[0].mxu0
      %v2173 = vadd.f32 %v2051, %v2172
      %v2174 = vpop.f32.mrb[0].mxu0
      %2175 = vmatprep.mubr.f32.mxu0 0.0
      %v2176 = vand.u32 %v1913, 4294901760
      %2177 = vmatmul.mubr.f32.gmra.mrb[0].mxu0 %v2176
      %v2178 = vpop.f32.mrb[0].mxu0
      %v2179 = vadd.f32 %v2061, %v2178
      %v2180 = vpop.f32.mrb[0].mxu0
      %2181 = vdwg.mxu0
      %2182 = vmatprep.subr.mxu0 0.0
      %v2183 = vand.u32 %v1916, 4294901760
      %v2184 = vsub.f32 %v1916, %v2183
      %2185 = vmatpush1.msra.mxu0 %v2184
      %2186 = vmatprep.subr.mxu0 0.0
      %2187 = vmatpush1.msra.mxu0 0.0
      %2188 = vmatprep.subr.mxu0 0.0
      %2189 = vmatpush1.msra.mxu0 0.0
      %2190 = vmatprep.subr.mxu0 0.0
      %2191 = vmatpush1.msra.mxu0 0.0
      %2192 = vmatprep.subr.mxu0 0.0
      %2193 = vmatpush1.msra.mxu0 0.0
      %2194 = vmatprep.subr.mxu0 0.0
      %2195 = vmatpush1.msra.mxu0 0.0
      %2196 = vmatprep.subr.mxu0 0.0
      %2197 = vmatpush1.msra.mxu0 0.0
      %2198 = vmatprep.subr.mxu0 0.0
      %2199 = vmatpush1.msra.mxu0 0.0
      %2200 = vmatprep.subr.mxu0 0.0
      %2201 = vmatpush1.msra.mxu0 0.0
      %2202 = vmatprep.subr.mxu0 0.0
      %2203 = vmatpush1.msra.mxu0 0.0
      %2204 = vmatprep.subr.mxu0 0.0
      %2205 = vmatpush1.msra.mxu0 0.0
      %2206 = vmatprep.subr.mxu0 0.0
      %2207 = vmatpush1.msra.mxu0 0.0
      %2208 = vmatprep.subr.mxu0 0.0
      %2209 = vmatpush1.msra.mxu0 0.0
      %2210 = vmatprep.subr.mxu0 0.0
      %2211 = vmatpush1.msra.mxu0 0.0
      %2212 = vmatprep.subr.mxu0 0.0
      %2213 = vmatpush1.msra.mxu0 0.0
      %2214 = vmatprep.subr.mxu0 0.0
      %2215 = vmatpush1.msra.mxu0 0.0
      %2216 = vmatprep.subr.mxu0 0.0
      %2217 = vmatpush1.msra.mxu0 0.0
      %2218 = vmatprep.subr.mxu0 0.0
      %2219 = vmatpush1.msra.mxu0 0.0
      %2220 = vmatprep.subr.mxu0 0.0
      %2221 = vmatpush1.msra.mxu0 0.0
      %2222 = vmatprep.subr.mxu0 0.0
      %2223 = vmatpush1.msra.mxu0 0.0
      %2224 = vmatprep.subr.mxu0 0.0
      %2225 = vmatpush1.msra.mxu0 0.0
      %2226 = vmatprep.subr.mxu0 0.0
      %2227 = vmatpush1.msra.mxu0 0.0
      %2228 = vmatprep.subr.mxu0 0.0
      %2229 = vmatpush1.msra.mxu0 0.0
      %2230 = vmatprep.subr.mxu0 0.0
      %2231 = vmatpush1.msra.mxu0 0.0
      %2232 = vmatprep.subr.mxu0 0.0
      %2233 = vmatpush1.msra.mxu0 0.0
      %2234 = vmatprep.subr.mxu0 0.0
      %2235 = vmatpush1.msra.mxu0 0.0
      %2236 = vmatprep.subr.mxu0 0.0
      %2237 = vmatpush1.msra.mxu0 0.0
      %2238 = vmatprep.subr.mxu0 0.0
      %2239 = vmatpush1.msra.mxu0 0.0
      %2240 = vmatprep.subr.mxu0 0.0
      %2241 = vmatpush1.msra.mxu0 0.0
      %2242 = vmatprep.subr.mxu0 0.0
      %2243 = vmatpush1.msra.mxu0 0.0
      %2244 = vmatprep.subr.mxu0 0.0
      %2245 = vmatpush1.msra.mxu0 0.0
      %2246 = vmatprep.subr.mxu0 0.0
      %2247 = vmatpush1.msra.mxu0 0.0
      %2248 = vmatprep.mubr.f32.mxu0 0.0
      %v2249 = vand.u32 %v1892, 4294901760
      %v2250 = vsub.f32 %v1892, %v2249
      %2251 = vmatmul.mubr.f32.gmra.mrb[0].mxu0 %v2250
      %v2252 = vpop.f32.mrb[0].mxu0
      %v2253 = vadd.f32 %v2137, %v2252
      %v2254 = vpop.f32.mrb[0].mxu0
      %2255 = vmatprep.mubr.f32.mxu0 0.0
      %v2256 = vand.u32 %v1895, 4294901760
      %v2257 = vsub.f32 %v1895, %v2256
      %2258 = vmatmul.mubr.f32.gmra.mrb[0].mxu0 %v2257
      %v2259 = vpop.f32.mrb[0].mxu0
      %v2260 = vadd.f32 %v2143, %v2259
      %v2261 = vpop.f32.mrb[0].mxu0
      %2262 = vmatprep.mubr.f32.mxu0 0.0
      %v2263 = vand.u32 %v1898, 4294901760
      %v2264 = vsub.f32 %v1898, %v2263
      %2265 = vmatmul.mubr.f32.gmra.mrb[0].mxu0 %v2264
      %v2266 = vpop.f32.mrb[0].mxu0
      %v2267 = vadd.f32 %v2149, %v2266
      %v2268 = vpop.f32.mrb[0].mxu0
      %2269 = vmatprep.mubr.f32.mxu0 0.0
      %v2270 = vand.u32 %v1901, 4294901760
      %v2271 = vsub.f32 %v1901, %v2270
      %2272 = vmatmul.mubr.f32.gmra.mrb[0].mxu0 %v2271
      %v2273 = vpop.f32.mrb[0].mxu0
      %v2274 = vadd.f32 %v2155, %v2273
      %v2275 = vpop.f32.mrb[0].mxu0
      %2276 = vmatprep.mubr.f32.mxu0 0.0
      %v2277 = vand.u32 %v1904, 4294901760
      %v2278 = vsub.f32 %v1904, %v2277
      %2279 = vmatmul.mubr.f32.gmra.mrb[0].mxu0 %v2278
      %v2280 = vpop.f32.mrb[0].mxu0
      %v2281 = vadd.f32 %v2161, %v2280
      %v2282 = vpop.f32.mrb[0].mxu0
      %2283 = vmatprep.mubr.f32.mxu0 0.0
      %v2284 = vand.u32 %v1907, 4294901760
      %v2285 = vsub.f32 %v1907, %v2284
      %2286 = vmatmul.mubr.f32.gmra.mrb[0].mxu0 %v2285
      %v2287 = vpop.f32.mrb[0].mxu0
      %v2288 = vadd.f32 %v2167, %v2287
      %v2289 = vpop.f32.mrb[0].mxu0
      %2290 = vmatprep.mubr.f32.mxu0 0.0
      %v2291 = vand.u32 %v1910, 4294901760
      %v2292 = vsub.f32 %v1910, %v2291
      %2293 = vmatmul.mubr.f32.gmra.mrb[0].mxu0 %v2292
      %v2294 = vpop.f32.mrb[0].mxu0
      %v2295 = vadd.f32 %v2173, %v2294
      %v2296 = vpop.f32.mrb[0].mxu0
      %2297 = vmatprep.mubr.f32.mxu0 0.0
      %v2298 = vand.u32 %v1913, 4294901760
      %v2299 = vsub.f32 %v1913, %v2298
      %2300 = vmatmul.mubr.f32.gmra.mrb[0].mxu0 %v2299
      %v2301 = vpop.f32.mrb[0].mxu0
      %v2302 = vadd.f32 %v2179, %v2301
      %v2303 = vpop.f32.mrb[0].mxu0
      %2304 = vdwg.mxu0
      %2305 = vmatprep.subr.mxu0 0.0
      %v2306 = vand.u32 %v1916, 4294901760
      %2307 = vmatpush1.msra.mxu0 %v2306
      %2308 = vmatprep.subr.mxu0 0.0
      %2309 = vmatpush1.msra.mxu0 0.0
      %2310 = vmatprep.subr.mxu0 0.0
      %2311 = vmatpush1.msra.mxu0 0.0
      %2312 = vmatprep.subr.mxu0 0.0
      %2313 = vmatpush1.msra.mxu0 0.0
      %2314 = vmatprep.subr.mxu0 0.0
      %2315 = vmatpush1.msra.mxu0 0.0
      %2316 = vmatprep.subr.mxu0 0.0
      %2317 = vmatpush1.msra.mxu0 0.0
      %2318 = vmatprep.subr.mxu0 0.0
      %2319 = vmatpush1.msra.mxu0 0.0
      %2320 = vmatprep.subr.mxu0 0.0
      %2321 = vmatpush1.msra.mxu0 0.0
      %2322 = vmatprep.subr.mxu0 0.0
      %2323 = vmatpush1.msra.mxu0 0.0
      %2324 = vmatprep.subr.mxu0 0.0
      %2325 = vmatpush1.msra.mxu0 0.0
      %2326 = vmatprep.subr.mxu0 0.0
      %2327 = vmatpush1.msra.mxu0 0.0
      %2328 = vmatprep.subr.mxu0 0.0
      %2329 = vmatpush1.msra.mxu0 0.0
      %2330 = vmatprep.subr.mxu0 0.0
      %2331 = vmatpush1.msra.mxu0 0.0
      %2332 = vmatprep.subr.mxu0 0.0
      %2333 = vmatpush1.msra.mxu0 0.0
      %2334 = vmatprep.subr.mxu0 0.0
      %2335 = vmatpush1.msra.mxu0 0.0
      %2336 = vmatprep.subr.mxu0 0.0
      %2337 = vmatpush1.msra.mxu0 0.0
      %2338 = vmatprep.subr.mxu0 0.0
      %2339 = vmatpush1.msra.mxu0 0.0
      %2340 = vmatprep.subr.mxu0 0.0
      %2341 = vmatpush1.msra.mxu0 0.0
      %2342 = vmatprep.subr.mxu0 0.0
      %2343 = vmatpush1.msra.mxu0 0.0
      %2344 = vmatprep.subr.mxu0 0.0
      %2345 = vmatpush1.msra.mxu0 0.0
      %2346 = vmatprep.subr.mxu0 0.0
      %2347 = vmatpush1.msra.mxu0 0.0
      %2348 = vmatprep.subr.mxu0 0.0
      %2349 = vmatpush1.msra.mxu0 0.0
      %2350 = vmatprep.subr.mxu0 0.0
      %2351 = vmatpush1.msra.mxu0 0.0
      %2352 = vmatprep.subr.mxu0 0.0
      %2353 = vmatpush1.msra.mxu0 0.0
      %2354 = vmatprep.subr.mxu0 0.0
      %2355 = vmatpush1.msra.mxu0 0.0
      %2356 = vmatprep.subr.mxu0 0.0
      %2357 = vmatpush1.msra.mxu0 0.0
      %2358 = vmatprep.subr.mxu0 0.0
      %2359 = vmatpush1.msra.mxu0 0.0
      %2360 = vmatprep.subr.mxu0 0.0
      %2361 = vmatpush1.msra.mxu0 0.0
      %2362 = vmatprep.subr.mxu0 0.0
      %2363 = vmatpush1.msra.mxu0 0.0
      %2364 = vmatprep.subr.mxu0 0.0
      %2365 = vmatpush1.msra.mxu0 0.0
      %2366 = vmatprep.subr.mxu0 0.0
      %2367 = vmatpush1.msra.mxu0 0.0
      %2368 = vmatprep.subr.mxu0 0.0
      %2369 = vmatpush1.msra.mxu0 0.0
      %2370 = vmatprep.mubr.f32.mxu0 0.0
      %v2371 = vand.u32 %v1892, 4294901760
      %v2372 = vsub.f32 %v1892, %v2371
      %v2373 = vand.u32 %v2372, 4294901760
      %2374 = vmatmul.mubr.f32.gmra.mrb[0].mxu0 %v2373
      %v2375 = vpop.f32.mrb[0].mxu0
      %v2376 = vadd.f32 %v2253, %v2375
      %v2377 = vpop.f32.mrb[0].mxu0
      %2378 = vmatprep.mubr.f32.mxu0 0.0
      %v2379 = vand.u32 %v1895, 4294901760
      %v2380 = vsub.f32 %v1895, %v2379
      %v2381 = vand.u32 %v2380, 4294901760
      %2382 = vmatmul.mubr.f32.gmra.mrb[0].mxu0 %v2381
      %v2383 = vpop.f32.mrb[0].mxu0
      %v2384 = vadd.f32 %v2260, %v2383
      %v2385 = vpop.f32.mrb[0].mxu0
      %2386 = vmatprep.mubr.f32.mxu0 0.0
      %v2387 = vand.u32 %v1898, 4294901760
      %v2388 = vsub.f32 %v1898, %v2387
      %v2389 = vand.u32 %v2388, 4294901760
      %2390 = vmatmul.mubr.f32.gmra.mrb[0].mxu0 %v2389
      %v2391 = vpop.f32.mrb[0].mxu0
      %v2392 = vadd.f32 %v2267, %v2391
      %v2393 = vpop.f32.mrb[0].mxu0
      %2394 = vmatprep.mubr.f32.mxu0 0.0
      %v2395 = vand.u32 %v1901, 4294901760
      %v2396 = vsub.f32 %v1901, %v2395
      %v2397 = vand.u32 %v2396, 4294901760
      %2398 = vmatmul.mubr.f32.gmra.mrb[0].mxu0 %v2397
      %v2399 = vpop.f32.mrb[0].mxu0
      %v2400 = vadd.f32 %v2274, %v2399
      %v2401 = vpop.f32.mrb[0].mxu0
      %2402 = vmatprep.mubr.f32.mxu0 0.0
      %v2403 = vand.u32 %v1904, 4294901760
      %v2404 = vsub.f32 %v1904, %v2403
      %v2405 = vand.u32 %v2404, 4294901760
      %2406 = vmatmul.mubr.f32.gmra.mrb[0].mxu0 %v2405
      %v2407 = vpop.f32.mrb[0].mxu0
      %v2408 = vadd.f32 %v2281, %v2407
      %v2409 = vpop.f32.mrb[0].mxu0
      %2410 = vmatprep.mubr.f32.mxu0 0.0
      %v2411 = vand.u32 %v1907, 4294901760
      %v2412 = vsub.f32 %v1907, %v2411
      %v2413 = vand.u32 %v2412, 4294901760
      %2414 = vmatmul.mubr.f32.gmra.mrb[0].mxu0 %v2413
      %v2415 = vpop.f32.mrb[0].mxu0
      %v2416 = vadd.f32 %v2288, %v2415
      %v2417 = vpop.f32.mrb[0].mxu0
      %2418 = vmatprep.mubr.f32.mxu0 0.0
      %v2419 = vand.u32 %v1910, 4294901760
      %v2420 = vsub.f32 %v1910, %v2419
      %v2421 = vand.u32 %v2420, 4294901760
      %2422 = vmatmul.mubr.f32.gmra.mrb[0].mxu0 %v2421
      %v2423 = vpop.f32.mrb[0].mxu0
      %v2424 = vadd.f32 %v2295, %v2423
      %v2425 = vpop.f32.mrb[0].mxu0
      %2426 = vmatprep.mubr.f32.mxu0 0.0
      %v2427 = vand.u32 %v1913, 4294901760
      %v2428 = vsub.f32 %v1913, %v2427
      %v2429 = vand.u32 %v2428, 4294901760
      %2430 = vmatmul.mubr.f32.gmra.mrb[0].mxu0 %v2429
      %v2431 = vpop.f32.mrb[0].mxu0
      %v2432 = vadd.f32 %v2302, %v2431
      %v2433 = vpop.f32.mrb[0].mxu0
      %2434 = vdwg.mxu0
      %2435 = vmatprep.subr.mxu0 0.0
      %v2436 = vand.u32 %v1916, 4294901760
      %v2437 = vsub.f32 %v1916, %v2436
      %v2438 = vand.u32 %v2437, 4294901760
      %2439 = vmatpush1.msra.mxu0 %v2438
      %2440 = vmatprep.subr.mxu0 0.0
      %2441 = vmatpush1.msra.mxu0 0.0
      %2442 = vmatprep.subr.mxu0 0.0
      %2443 = vmatpush1.msra.mxu0 0.0
      %2444 = vmatprep.subr.mxu0 0.0
      %2445 = vmatpush1.msra.mxu0 0.0
      %2446 = vmatprep.subr.mxu0 0.0
      %2447 = vmatpush1.msra.mxu0 0.0
      %2448 = vmatprep.subr.mxu0 0.0
      %2449 = vmatpush1.msra.mxu0 0.0
      %2450 = vmatprep.subr.mxu0 0.0
      %2451 = vmatpush1.msra.mxu0 0.0
      %2452 = vmatprep.subr.mxu0 0.0
      %2453 = vmatpush1.msra.mxu0 0.0
      %2454 = vmatprep.subr.mxu0 0.0
      %2455 = vmatpush1.msra.mxu0 0.0
      %2456 = vmatprep.subr.mxu0 0.0
      %2457 = vmatpush1.msra.mxu0 0.0
      %2458 = vmatprep.subr.mxu0 0.0
      %2459 = vmatpush1.msra.mxu0 0.0
      %2460 = vmatprep.subr.mxu0 0.0
      %2461 = vmatpush1.msra.mxu0 0.0
      %2462 = vmatprep.subr.mxu0 0.0
      %2463 = vmatpush1.msra.mxu0 0.0
      %2464 = vmatprep.subr.mxu0 0.0
      %2465 = vmatpush1.msra.mxu0 0.0
      %2466 = vmatprep.subr.mxu0 0.0
      %2467 = vmatpush1.msra.mxu0 0.0
      %2468 = vmatprep.subr.mxu0 0.0
      %2469 = vmatpush1.msra.mxu0 0.0
      %2470 = vmatprep.subr.mxu0 0.0
      %2471 = vmatpush1.msra.mxu0 0.0
      %2472 = vmatprep.subr.mxu0 0.0
      %2473 = vmatpush1.msra.mxu0 0.0
      %2474 = vmatprep.subr.mxu0 0.0
      %2475 = vmatpush1.msra.mxu0 0.0
      %2476 = vmatprep.subr.mxu0 0.0
      %2477 = vmatpush1.msra.mxu0 0.0
      %2478 = vmatprep.subr.mxu0 0.0
      %2479 = vmatpush1.msra.mxu0 0.0
      %2480 = vmatprep.subr.mxu0 0.0
      %2481 = vmatpush1.msra.mxu0 0.0
      %2482 = vmatprep.subr.mxu0 0.0
      %2483 = vmatpush1.msra.mxu0 0.0
      %2484 = vmatprep.subr.mxu0 0.0
      %2485 = vmatpush1.msra.mxu0 0.0
      %2486 = vmatprep.subr.mxu0 0.0
      %2487 = vmatpush1.msra.mxu0 0.0
      %2488 = vmatprep.subr.mxu0 0.0
      %2489 = vmatpush1.msra.mxu0 0.0
      %2490 = vmatprep.subr.mxu0 0.0
      %2491 = vmatpush1.msra.mxu0 0.0
      %2492 = vmatprep.subr.mxu0 0.0
      %2493 = vmatpush1.msra.mxu0 0.0
      %2494 = vmatprep.subr.mxu0 0.0
      %2495 = vmatpush1.msra.mxu0 0.0
      %2496 = vmatprep.subr.mxu0 0.0
      %2497 = vmatpush1.msra.mxu0 0.0
      %2498 = vmatprep.subr.mxu0 0.0
      %2499 = vmatpush1.msra.mxu0 0.0
      %2500 = vmatprep.subr.mxu0 0.0
      %2501 = vmatpush1.msra.mxu0 0.0
      %2502 = vmatprep.mubr.f32.mxu0 0.0
      %v2503 = vand.u32 %v1892, 4294901760
      %2504 = vmatmul.mubr.f32.gmra.mrb[0].mxu0 %v2503
      %v2505 = vpop.f32.mrb[0].mxu0
      %v2506 = vadd.f32 %v2376, %v2505
      %v2507 = vpop.f32.mrb[0].mxu0
      %2508 = vmatprep.mubr.f32.mxu0 0.0
      %v2509 = vand.u32 %v1895, 4294901760
      %2510 = vmatmul.mubr.f32.gmra.mrb[0].mxu0 %v2509
      %v2511 = vpop.f32.mrb[0].mxu0
      %v2512 = vadd.f32 %v2384, %v2511
      %v2513 = vpop.f32.mrb[0].mxu0
      %2514 = vmatprep.mubr.f32.mxu0 0.0
      %v2515 = vand.u32 %v1898, 4294901760
      %2516 = vmatmul.mubr.f32.gmra.mrb[0].mxu0 %v2515
      %v2517 = vpop.f32.mrb[0].mxu0
      %v2518 = vadd.f32 %v2392, %v2517
      %v2519 = vpop.f32.mrb[0].mxu0
      %2520 = vmatprep.mubr.f32.mxu0 0.0
      %v2521 = vand.u32 %v1901, 4294901760
      %2522 = vmatmul.mubr.f32.gmra.mrb[0].mxu0 %v2521
      %v2523 = vpop.f32.mrb[0].mxu0
      %v2524 = vadd.f32 %v2400, %v2523
      %v2525 = vpop.f32.mrb[0].mxu0
      %2526 = vmatprep.mubr.f32.mxu0 0.0
      %v2527 = vand.u32 %v1904, 4294901760
      %2528 = vmatmul.mubr.f32.gmra.mrb[0].mxu0 %v2527
      %v2529 = vpop.f32.mrb[0].mxu0
      %v2530 = vadd.f32 %v2408, %v2529
      %v2531 = vpop.f32.mrb[0].mxu0
      %2532 = vmatprep.mubr.f32.mxu0 0.0
      %v2533 = vand.u32 %v1907, 4294901760
      %2534 = vmatmul.mubr.f32.gmra.mrb[0].mxu0 %v2533
      %v2535 = vpop.f32.mrb[0].mxu0
      %v2536 = vadd.f32 %v2416, %v2535
      %v2537 = vpop.f32.mrb[0].mxu0
      %2538 = vmatprep.mubr.f32.mxu0 0.0
      %v2539 = vand.u32 %v1910, 4294901760
      %2540 = vmatmul.mubr.f32.gmra.mrb[0].mxu0 %v2539
      %v2541 = vpop.f32.mrb[0].mxu0
      %v2542 = vadd.f32 %v2424, %v2541
      %v2543 = vpop.f32.mrb[0].mxu0
      %2544 = vmatprep.mubr.f32.mxu0 0.0
      %v2545 = vand.u32 %v1913, 4294901760
      %2546 = vmatmul.mubr.f32.gmra.mrb[0].mxu0 %v2545
      %v2547 = vpop.f32.mrb[0].mxu0
      %v2548 = vadd.f32 %v2432, %v2547
      %v2549 = vpop.f32.mrb[0].mxu0
      %2550 = vdwg.mxu0
      %2551 = vmatprep.subr.mxu0 0.0
      %v2552 = vand.u32 %v1916, 4294901760
      %2553 = vmatpush1.msra.mxu0 %v2552
      %2554 = vmatprep.subr.mxu0 0.0
      %2555 = vmatpush1.msra.mxu0 0.0
      %2556 = vmatprep.subr.mxu0 0.0
      %2557 = vmatpush1.msra.mxu0 0.0
      %2558 = vmatprep.subr.mxu0 0.0
      %2559 = vmatpush1.msra.mxu0 0.0
      %2560 = vmatprep.subr.mxu0 0.0
      %2561 = vmatpush1.msra.mxu0 0.0
      %2562 = vmatprep.subr.mxu0 0.0
      %2563 = vmatpush1.msra.mxu0 0.0
      %2564 = vmatprep.subr.mxu0 0.0
      %2565 = vmatpush1.msra.mxu0 0.0
      %2566 = vmatprep.subr.mxu0 0.0
      %2567 = vmatpush1.msra.mxu0 0.0
      %2568 = vmatprep.subr.mxu0 0.0
      %2569 = vmatpush1.msra.mxu0 0.0
      %2570 = vmatprep.subr.mxu0 0.0
      %2571 = vmatpush1.msra.mxu0 0.0
      %2572 = vmatprep.subr.mxu0 0.0
      %2573 = vmatpush1.msra.mxu0 0.0
      %2574 = vmatprep.subr.mxu0 0.0
      %2575 = vmatpush1.msra.mxu0 0.0
      %2576 = vmatprep.subr.mxu0 0.0
      %2577 = vmatpush1.msra.mxu0 0.0
      %2578 = vmatprep.subr.mxu0 0.0
      %2579 = vmatpush1.msra.mxu0 0.0
      %2580 = vmatprep.subr.mxu0 0.0
      %2581 = vmatpush1.msra.mxu0 0.0
      %2582 = vmatprep.subr.mxu0 0.0
      %2583 = vmatpush1.msra.mxu0 0.0
      %2584 = vmatprep.subr.mxu0 0.0
      %2585 = vmatpush1.msra.mxu0 0.0
      %2586 = vmatprep.subr.mxu0 0.0
      %2587 = vmatpush1.msra.mxu0 0.0
      %2588 = vmatprep.subr.mxu0 0.0
      %2589 = vmatpush1.msra.mxu0 0.0
      %2590 = vmatprep.subr.mxu0 0.0
      %2591 = vmatpush1.msra.mxu0 0.0
      %2592 = vmatprep.subr.mxu0 0.0
      %2593 = vmatpush1.msra.mxu0 0.0
      %2594 = vmatprep.subr.mxu0 0.0
      %2595 = vmatpush1.msra.mxu0 0.0
      %2596 = vmatprep.subr.mxu0 0.0
      %2597 = vmatpush1.msra.mxu0 0.0
      %2598 = vmatprep.subr.mxu0 0.0
      %2599 = vmatpush1.msra.mxu0 0.0
      %2600 = vmatprep.subr.mxu0 0.0
      %2601 = vmatpush1.msra.mxu0 0.0
      %2602 = vmatprep.subr.mxu0 0.0
      %2603 = vmatpush1.msra.mxu0 0.0
      %2604 = vmatprep.subr.mxu0 0.0
      %2605 = vmatpush1.msra.mxu0 0.0
      %2606 = vmatprep.subr.mxu0 0.0
      %2607 = vmatpush1.msra.mxu0 0.0
      %2608 = vmatprep.subr.mxu0 0.0
      %2609 = vmatpush1.msra.mxu0 0.0
      %2610 = vmatprep.subr.mxu0 0.0
      %2611 = vmatpush1.msra.mxu0 0.0
      %2612 = vmatprep.subr.mxu0 0.0
      %2613 = vmatpush1.msra.mxu0 0.0
      %2614 = vmatprep.subr.mxu0 0.0
      %2615 = vmatpush1.msra.mxu0 0.0
      %2616 = vmatprep.mubr.f32.mxu0 0.0
      %v2617 = vand.u32 %v1892, 4294901760
      %2618 = vmatmul.mubr.f32.gmra.mrb[0].mxu0 %v2617
      %v2619 = vpop.f32.mrb[0].mxu0
      %v2620 = vadd.f32 %v2506, %v2619
      %v2621 = vpop.f32.mrb[0].mxu0
      %2622 = vmatprep.mubr.f32.mxu0 0.0
      %v2623 = vand.u32 %v1895, 4294901760
      %2624 = vmatmul.mubr.f32.gmra.mrb[0].mxu0 %v2623
      %v2625 = vpop.f32.mrb[0].mxu0
      %v2626 = vadd.f32 %v2512, %v2625
      %v2627 = vpop.f32.mrb[0].mxu0
      %2628 = vmatprep.mubr.f32.mxu0 0.0
      %v2629 = vand.u32 %v1898, 4294901760
      %2630 = vmatmul.mubr.f32.gmra.mrb[0].mxu0 %v2629
      %v2631 = vpop.f32.mrb[0].mxu0
      %v2632 = vadd.f32 %v2518, %v2631
      %v2633 = vpop.f32.mrb[0].mxu0
      %2634 = vmatprep.mubr.f32.mxu0 0.0
      %v2635 = vand.u32 %v1901, 4294901760
      %2636 = vmatmul.mubr.f32.gmra.mrb[0].mxu0 %v2635
      %v2637 = vpop.f32.mrb[0].mxu0
      %v2638 = vadd.f32 %v2524, %v2637
      %v2639 = vpop.f32.mrb[0].mxu0
      %2640 = vmatprep.mubr.f32.mxu0 0.0
      %v2641 = vand.u32 %v1904, 4294901760
      %2642 = vmatmul.mubr.f32.gmra.mrb[0].mxu0 %v2641
      %v2643 = vpop.f32.mrb[0].mxu0
      %v2644 = vadd.f32 %v2530, %v2643
      %v2645 = vpop.f32.mrb[0].mxu0
      %2646 = vmatprep.mubr.f32.mxu0 0.0
      %v2647 = vand.u32 %v1907, 4294901760
      %2648 = vmatmul.mubr.f32.gmra.mrb[0].mxu0 %v2647
      %v2649 = vpop.f32.mrb[0].mxu0
      %v2650 = vadd.f32 %v2536, %v2649
      %v2651 = vpop.f32.mrb[0].mxu0
      %2652 = vmatprep.mubr.f32.mxu0 0.0
      %v2653 = vand.u32 %v1910, 4294901760
      %2654 = vmatmul.mubr.f32.gmra.mrb[0].mxu0 %v2653
      %v2655 = vpop.f32.mrb[0].mxu0
      %v2656 = vadd.f32 %v2542, %v2655
      %v2657 = vpop.f32.mrb[0].mxu0
      %2658 = vmatprep.mubr.f32.mxu0 0.0
      %v2659 = vand.u32 %v1913, 4294901760
      %2660 = vmatmul.mubr.f32.gmra.mrb[0].mxu0 %v2659
      %v2661 = vpop.f32.mrb[0].mxu0
      %v2662 = vadd.f32 %v2548, %v2661
      %v2663 = vpop.f32.mrb[0].mxu0
      %2664 = vdwg.mxu0
      %v2665 = vadd.f32 %v1836, %v2620
      %v2666 = vadd.f32 %v1842, %v2626
      %v2667 = vadd.f32 %v1848, %v2632
      %v2668 = vadd.f32 %v1854, %v2638
      %v2669 = vadd.f32 %v1860, %v2644
      %v2670 = vadd.f32 %v1866, %v2650
      %v2671 = vadd.f32 %v1872, %v2656
      %v2672 = vadd.f32 %v1878, %v2662
      %v2673 = vld [vmem:[%s301] sm:$0xff]
      %v2674 = vld [vmem:[%s301 + $0x10] sm:$0xff]
      %v2675 = vld [vmem:[%s301 + $0x20] sm:$0xff]
      %v2676 = vld [vmem:[%s301 + $0x30] sm:$0xff]
      %v2677 = vld [vmem:[%s301 + $0x40] sm:$0xff]
      %v2678 = vld [vmem:[%s301 + $0x50] sm:$0xff]
      %v2679 = vld [vmem:[%s301 + $0x60] sm:$0xff]
      %v2680 = vld [vmem:[%s301 + $0x70] sm:$0xff]
      %s2681 = scalar_lea.vmem %s4, 12
      %v2682 = vld [vmem:[%s2681] sm:$0xf]
      %v2684 = vsel %vm331, %v2673, 0
      %v2687 = vsel %vm331, %v2674, 0
      %v2690 = vsel %vm331, %v2675, 0
      %v2693 = vsel %vm331, %v2676, 0
      %v2696 = vsel %vm331, %v2677, 0
      %v2699 = vsel %vm331, %v2678, 0
      %v2702 = vsel %vm331, %v2679, 0
      %v2705 = vsel %vm331, %v2680, 0
      %v2708 = vsel %vm356, %v2682, 0
      %2710 = vmatprep.subr.mxu0 0.0
      %v2711 = vand.u32 %v2708, 4294901760
      %2712 = vmatpush1.msra.mxu0 %v2711
      %2713 = vmatprep.subr.mxu0 0.0
      %2714 = vmatpush1.msra.mxu0 0.0
      %2715 = vmatprep.subr.mxu0 0.0
      %2716 = vmatpush1.msra.mxu0 0.0
      %2717 = vmatprep.subr.mxu0 0.0
      %2718 = vmatpush1.msra.mxu0 0.0
      %2719 = vmatprep.subr.mxu0 0.0
      %2720 = vmatpush1.msra.mxu0 0.0
      %2721 = vmatprep.subr.mxu0 0.0
      %2722 = vmatpush1.msra.mxu0 0.0
      %2723 = vmatprep.subr.mxu0 0.0
      %2724 = vmatpush1.msra.mxu0 0.0
      %2725 = vmatprep.subr.mxu0 0.0
      %2726 = vmatpush1.msra.mxu0 0.0
      %2727 = vmatprep.subr.mxu0 0.0
      %2728 = vmatpush1.msra.mxu0 0.0
      %2729 = vmatprep.subr.mxu0 0.0
      %2730 = vmatpush1.msra.mxu0 0.0
      %2731 = vmatprep.subr.mxu0 0.0
      %2732 = vmatpush1.msra.mxu0 0.0
      %2733 = vmatprep.subr.mxu0 0.0
      %2734 = vmatpush1.msra.mxu0 0.0
      %2735 = vmatprep.subr.mxu0 0.0
      %2736 = vmatpush1.msra.mxu0 0.0
      %2737 = vmatprep.subr.mxu0 0.0
      %2738 = vmatpush1.msra.mxu0 0.0
      %2739 = vmatprep.subr.mxu0 0.0
      %2740 = vmatpush1.msra.mxu0 0.0
      %2741 = vmatprep.subr.mxu0 0.0
      %2742 = vmatpush1.msra.mxu0 0.0
      %2743 = vmatprep.subr.mxu0 0.0
      %2744 = vmatpush1.msra.mxu0 0.0
      %2745 = vmatprep.subr.mxu0 0.0
      %2746 = vmatpush1.msra.mxu0 0.0
      %2747 = vmatprep.subr.mxu0 0.0
      %2748 = vmatpush1.msra.mxu0 0.0
      %2749 = vmatprep.subr.mxu0 0.0
      %2750 = vmatpush1.msra.mxu0 0.0
      %2751 = vmatprep.subr.mxu0 0.0
      %2752 = vmatpush1.msra.mxu0 0.0
      %2753 = vmatprep.subr.mxu0 0.0
      %2754 = vmatpush1.msra.mxu0 0.0
      %2755 = vmatprep.subr.mxu0 0.0
      %2756 = vmatpush1.msra.mxu0 0.0
      %2757 = vmatprep.subr.mxu0 0.0
      %2758 = vmatpush1.msra.mxu0 0.0
      %2759 = vmatprep.subr.mxu0 0.0
      %2760 = vmatpush1.msra.mxu0 0.0
      %2761 = vmatprep.subr.mxu0 0.0
      %2762 = vmatpush1.msra.mxu0 0.0
      %2763 = vmatprep.subr.mxu0 0.0
      %2764 = vmatpush1.msra.mxu0 0.0
      %2765 = vmatprep.subr.mxu0 0.0
      %2766 = vmatpush1.msra.mxu0 0.0
      %2767 = vmatprep.subr.mxu0 0.0
      %2768 = vmatpush1.msra.mxu0 0.0
      %2769 = vmatprep.subr.mxu0 0.0
      %2770 = vmatpush1.msra.mxu0 0.0
      %2771 = vmatprep.subr.mxu0 0.0
      %2772 = vmatpush1.msra.mxu0 0.0
      %2773 = vmatprep.subr.mxu0 0.0
      %2774 = vmatpush1.msra.mxu0 0.0
      %2775 = vmatprep.mubr.f32.mxu0 0.0
      %v2776 = vand.u32 %v2684, 4294901760
      %v2777 = vsub.f32 %v2684, %v2776
      %v2778 = vand.u32 %v2777, 4294901760
      %v2779 = vsub.f32 %v2777, %v2778
      %v2780 = vand.u32 %v2779, 4294901760
      %2781 = vmatmul.mubr.f32.gmra.mrb[0].mxu0 %v2780
      %v2782 = vpop.f32.mrb[0].mxu0
      %v2783 = vadd.f32 0.0, %v2782
      %v2784 = vpop.f32.mrb[0].mxu0
      %2785 = vmatprep.mubr.f32.mxu0 0.0
      %v2786 = vand.u32 %v2687, 4294901760
      %v2787 = vsub.f32 %v2687, %v2786
      %v2788 = vand.u32 %v2787, 4294901760
      %v2789 = vsub.f32 %v2787, %v2788
      %v2790 = vand.u32 %v2789, 4294901760
      %2791 = vmatmul.mubr.f32.gmra.mrb[0].mxu0 %v2790
      %v2792 = vpop.f32.mrb[0].mxu0
      %v2793 = vadd.f32 0.0, %v2792
      %v2794 = vpop.f32.mrb[0].mxu0
      %2795 = vmatprep.mubr.f32.mxu0 0.0
      %v2796 = vand.u32 %v2690, 4294901760
      %v2797 = vsub.f32 %v2690, %v2796
      %v2798 = vand.u32 %v2797, 4294901760
      %v2799 = vsub.f32 %v2797, %v2798
      %v2800 = vand.u32 %v2799, 4294901760
      %2801 = vmatmul.mubr.f32.gmra.mrb[0].mxu0 %v2800
      %v2802 = vpop.f32.mrb[0].mxu0
      %v2803 = vadd.f32 0.0, %v2802
      %v2804 = vpop.f32.mrb[0].mxu0
      %2805 = vmatprep.mubr.f32.mxu0 0.0
      %v2806 = vand.u32 %v2693, 4294901760
      %v2807 = vsub.f32 %v2693, %v2806
      %v2808 = vand.u32 %v2807, 4294901760
      %v2809 = vsub.f32 %v2807, %v2808
      %v2810 = vand.u32 %v2809, 4294901760
      %2811 = vmatmul.mubr.f32.gmra.mrb[0].mxu0 %v2810
      %v2812 = vpop.f32.mrb[0].mxu0
      %v2813 = vadd.f32 0.0, %v2812
      %v2814 = vpop.f32.mrb[0].mxu0
      %2815 = vmatprep.mubr.f32.mxu0 0.0
      %v2816 = vand.u32 %v2696, 4294901760
      %v2817 = vsub.f32 %v2696, %v2816
      %v2818 = vand.u32 %v2817, 4294901760
      %v2819 = vsub.f32 %v2817, %v2818
      %v2820 = vand.u32 %v2819, 4294901760
      %2821 = vmatmul.mubr.f32.gmra.mrb[0].mxu0 %v2820
      %v2822 = vpop.f32.mrb[0].mxu0
      %v2823 = vadd.f32 0.0, %v2822
      %v2824 = vpop.f32.mrb[0].mxu0
      %2825 = vmatprep.mubr.f32.mxu0 0.0
      %v2826 = vand.u32 %v2699, 4294901760
      %v2827 = vsub.f32 %v2699, %v2826
      %v2828 = vand.u32 %v2827, 4294901760
      %v2829 = vsub.f32 %v2827, %v2828
      %v2830 = vand.u32 %v2829, 4294901760
      %2831 = vmatmul.mubr.f32.gmra.mrb[0].mxu0 %v2830
      %v2832 = vpop.f32.mrb[0].mxu0
      %v2833 = vadd.f32 0.0, %v2832
      %v2834 = vpop.f32.mrb[0].mxu0
      %2835 = vmatprep.mubr.f32.mxu0 0.0
      %v2836 = vand.u32 %v2702, 4294901760
      %v2837 = vsub.f32 %v2702, %v2836
      %v2838 = vand.u32 %v2837, 4294901760
      %v2839 = vsub.f32 %v2837, %v2838
      %v2840 = vand.u32 %v2839, 4294901760
      %2841 = vmatmul.mubr.f32.gmra.mrb[0].mxu0 %v2840
      %v2842 = vpop.f32.mrb[0].mxu0
      %v2843 = vadd.f32 0.0, %v2842
      %v2844 = vpop.f32.mrb[0].mxu0
      %2845 = vmatprep.mubr.f32.mxu0 0.0
      %v2846 = vand.u32 %v2705, 4294901760
      %v2847 = vsub.f32 %v2705, %v2846
      %v2848 = vand.u32 %v2847, 4294901760
      %v2849 = vsub.f32 %v2847, %v2848
      %v2850 = vand.u32 %v2849, 4294901760
      %2851 = vmatmul.mubr.f32.gmra.mrb[0].mxu0 %v2850
      %v2852 = vpop.f32.mrb[0].mxu0
      %v2853 = vadd.f32 0.0, %v2852
      %v2854 = vpop.f32.mrb[0].mxu0
      %2855 = vdwg.mxu0
      %2856 = vmatprep.subr.mxu0 0.0
      %v2857 = vand.u32 %v2708, 4294901760
      %v2858 = vsub.f32 %v2708, %v2857
      %v2859 = vand.u32 %v2858, 4294901760
      %v2860 = vsub.f32 %v2858, %v2859
      %v2861 = vand.u32 %v2860, 4294901760
      %2862 = vmatpush1.msra.mxu0 %v2861
      %2863 = vmatprep.subr.mxu0 0.0
      %2864 = vmatpush1.msra.mxu0 0.0
      %2865 = vmatprep.subr.mxu0 0.0
      %2866 = vmatpush1.msra.mxu0 0.0
      %2867 = vmatprep.subr.mxu0 0.0
      %2868 = vmatpush1.msra.mxu0 0.0
      %2869 = vmatprep.subr.mxu0 0.0
      %2870 = vmatpush1.msra.mxu0 0.0
      %2871 = vmatprep.subr.mxu0 0.0
      %2872 = vmatpush1.msra.mxu0 0.0
      %2873 = vmatprep.subr.mxu0 0.0
      %2874 = vmatpush1.msra.mxu0 0.0
      %2875 = vmatprep.subr.mxu0 0.0
      %2876 = vmatpush1.msra.mxu0 0.0
      %2877 = vmatprep.subr.mxu0 0.0
      %2878 = vmatpush1.msra.mxu0 0.0
      %2879 = vmatprep.subr.mxu0 0.0
      %2880 = vmatpush1.msra.mxu0 0.0
      %2881 = vmatprep.subr.mxu0 0.0
      %2882 = vmatpush1.msra.mxu0 0.0
      %2883 = vmatprep.subr.mxu0 0.0
      %2884 = vmatpush1.msra.mxu0 0.0
      %2885 = vmatprep.subr.mxu0 0.0
      %2886 = vmatpush1.msra.mxu0 0.0
      %2887 = vmatprep.subr.mxu0 0.0
      %2888 = vmatpush1.msra.mxu0 0.0
      %2889 = vmatprep.subr.mxu0 0.0
      %2890 = vmatpush1.msra.mxu0 0.0
      %2891 = vmatprep.subr.mxu0 0.0
      %2892 = vmatpush1.msra.mxu0 0.0
      %2893 = vmatprep.subr.mxu0 0.0
      %2894 = vmatpush1.msra.mxu0 0.0
      %2895 = vmatprep.subr.mxu0 0.0
      %2896 = vmatpush1.msra.mxu0 0.0
      %2897 = vmatprep.subr.mxu0 0.0
      %2898 = vmatpush1.msra.mxu0 0.0
      %2899 = vmatprep.subr.mxu0 0.0
      %2900 = vmatpush1.msra.mxu0 0.0
      %2901 = vmatprep.subr.mxu0 0.0
      %2902 = vmatpush1.msra.mxu0 0.0
      %2903 = vmatprep.subr.mxu0 0.0
      %2904 = vmatpush1.msra.mxu0 0.0
      %2905 = vmatprep.subr.mxu0 0.0
      %2906 = vmatpush1.msra.mxu0 0.0
      %2907 = vmatprep.subr.mxu0 0.0
      %2908 = vmatpush1.msra.mxu0 0.0
      %2909 = vmatprep.subr.mxu0 0.0
      %2910 = vmatpush1.msra.mxu0 0.0
      %2911 = vmatprep.subr.mxu0 0.0
      %2912 = vmatpush1.msra.mxu0 0.0
      %2913 = vmatprep.subr.mxu0 0.0
      %2914 = vmatpush1.msra.mxu0 0.0
      %2915 = vmatprep.subr.mxu0 0.0
      %2916 = vmatpush1.msra.mxu0 0.0
      %2917 = vmatprep.subr.mxu0 0.0
      %2918 = vmatpush1.msra.mxu0 0.0
      %2919 = vmatprep.subr.mxu0 0.0
      %2920 = vmatpush1.msra.mxu0 0.0
      %2921 = vmatprep.subr.mxu0 0.0
      %2922 = vmatpush1.msra.mxu0 0.0
      %2923 = vmatprep.subr.mxu0 0.0
      %2924 = vmatpush1.msra.mxu0 0.0
      %2925 = vmatprep.mubr.f32.mxu0 0.0
      %v2926 = vand.u32 %v2684, 4294901760
      %2927 = vmatmul.mubr.f32.gmra.mrb[0].mxu0 %v2926
      %v2928 = vpop.f32.mrb[0].mxu0
      %v2929 = vadd.f32 %v2783, %v2928
      %v2930 = vpop.f32.mrb[0].mxu0
      %2931 = vmatprep.mubr.f32.mxu0 0.0
      %v2932 = vand.u32 %v2687, 4294901760
      %2933 = vmatmul.mubr.f32.gmra.mrb[0].mxu0 %v2932
      %v2934 = vpop.f32.mrb[0].mxu0
      %v2935 = vadd.f32 %v2793, %v2934
      %v2936 = vpop.f32.mrb[0].mxu0
      %2937 = vmatprep.mubr.f32.mxu0 0.0
      %v2938 = vand.u32 %v2690, 4294901760
      %2939 = vmatmul.mubr.f32.gmra.mrb[0].mxu0 %v2938
      %v2940 = vpop.f32.mrb[0].mxu0
      %v2941 = vadd.f32 %v2803, %v2940
      %v2942 = vpop.f32.mrb[0].mxu0
      %2943 = vmatprep.mubr.f32.mxu0 0.0
      %v2944 = vand.u32 %v2693, 4294901760
      %2945 = vmatmul.mubr.f32.gmra.mrb[0].mxu0 %v2944
      %v2946 = vpop.f32.mrb[0].mxu0
      %v2947 = vadd.f32 %v2813, %v2946
      %v2948 = vpop.f32.mrb[0].mxu0
      %2949 = vmatprep.mubr.f32.mxu0 0.0
      %v2950 = vand.u32 %v2696, 4294901760
      %2951 = vmatmul.mubr.f32.gmra.mrb[0].mxu0 %v2950
      %v2952 = vpop.f32.mrb[0].mxu0
      %v2953 = vadd.f32 %v2823, %v2952
      %v2954 = vpop.f32.mrb[0].mxu0
      %2955 = vmatprep.mubr.f32.mxu0 0.0
      %v2956 = vand.u32 %v2699, 4294901760
      %2957 = vmatmul.mubr.f32.gmra.mrb[0].mxu0 %v2956
      %v2958 = vpop.f32.mrb[0].mxu0
      %v2959 = vadd.f32 %v2833, %v2958
      %v2960 = vpop.f32.mrb[0].mxu0
      %2961 = vmatprep.mubr.f32.mxu0 0.0
      %v2962 = vand.u32 %v2702, 4294901760
      %2963 = vmatmul.mubr.f32.gmra.mrb[0].mxu0 %v2962
      %v2964 = vpop.f32.mrb[0].mxu0
      %v2965 = vadd.f32 %v2843, %v2964
      %v2966 = vpop.f32.mrb[0].mxu0
      %2967 = vmatprep.mubr.f32.mxu0 0.0
      %v2968 = vand.u32 %v2705, 4294901760
      %2969 = vmatmul.mubr.f32.gmra.mrb[0].mxu0 %v2968
      %v2970 = vpop.f32.mrb[0].mxu0
      %v2971 = vadd.f32 %v2853, %v2970
      %v2972 = vpop.f32.mrb[0].mxu0
      %2973 = vdwg.mxu0
      %2974 = vmatprep.subr.mxu0 0.0
      %v2975 = vand.u32 %v2708, 4294901760
      %v2976 = vsub.f32 %v2708, %v2975
      %2977 = vmatpush1.msra.mxu0 %v2976
      %2978 = vmatprep.subr.mxu0 0.0
      %2979 = vmatpush1.msra.mxu0 0.0
      %2980 = vmatprep.subr.mxu0 0.0
      %2981 = vmatpush1.msra.mxu0 0.0
      %2982 = vmatprep.subr.mxu0 0.0
      %2983 = vmatpush1.msra.mxu0 0.0
      %2984 = vmatprep.subr.mxu0 0.0
      %2985 = vmatpush1.msra.mxu0 0.0
      %2986 = vmatprep.subr.mxu0 0.0
      %2987 = vmatpush1.msra.mxu0 0.0
      %2988 = vmatprep.subr.mxu0 0.0
      %2989 = vmatpush1.msra.mxu0 0.0
      %2990 = vmatprep.subr.mxu0 0.0
      %2991 = vmatpush1.msra.mxu0 0.0
      %2992 = vmatprep.subr.mxu0 0.0
      %2993 = vmatpush1.msra.mxu0 0.0
      %2994 = vmatprep.subr.mxu0 0.0
      %2995 = vmatpush1.msra.mxu0 0.0
      %2996 = vmatprep.subr.mxu0 0.0
      %2997 = vmatpush1.msra.mxu0 0.0
      %2998 = vmatprep.subr.mxu0 0.0
      %2999 = vmatpush1.msra.mxu0 0.0
      %3000 = vmatprep.subr.mxu0 0.0
      %3001 = vmatpush1.msra.mxu0 0.0
      %3002 = vmatprep.subr.mxu0 0.0
      %3003 = vmatpush1.msra.mxu0 0.0
      %3004 = vmatprep.subr.mxu0 0.0
      %3005 = vmatpush1.msra.mxu0 0.0
      %3006 = vmatprep.subr.mxu0 0.0
      %3007 = vmatpush1.msra.mxu0 0.0
      %3008 = vmatprep.subr.mxu0 0.0
      %3009 = vmatpush1.msra.mxu0 0.0
      %3010 = vmatprep.subr.mxu0 0.0
      %3011 = vmatpush1.msra.mxu0 0.0
      %3012 = vmatprep.subr.mxu0 0.0
      %3013 = vmatpush1.msra.mxu0 0.0
      %3014 = vmatprep.subr.mxu0 0.0
      %3015 = vmatpush1.msra.mxu0 0.0
      %3016 = vmatprep.subr.mxu0 0.0
      %3017 = vmatpush1.msra.mxu0 0.0
      %3018 = vmatprep.subr.mxu0 0.0
      %3019 = vmatpush1.msra.mxu0 0.0
      %3020 = vmatprep.subr.mxu0 0.0
      %3021 = vmatpush1.msra.mxu0 0.0
      %3022 = vmatprep.subr.mxu0 0.0
      %3023 = vmatpush1.msra.mxu0 0.0
      %3024 = vmatprep.subr.mxu0 0.0
      %3025 = vmatpush1.msra.mxu0 0.0
      %3026 = vmatprep.subr.mxu0 0.0
      %3027 = vmatpush1.msra.mxu0 0.0
      %3028 = vmatprep.subr.mxu0 0.0
      %3029 = vmatpush1.msra.mxu0 0.0
      %3030 = vmatprep.subr.mxu0 0.0
      %3031 = vmatpush1.msra.mxu0 0.0
      %3032 = vmatprep.subr.mxu0 0.0
      %3033 = vmatpush1.msra.mxu0 0.0
      %3034 = vmatprep.subr.mxu0 0.0
      %3035 = vmatpush1.msra.mxu0 0.0
      %3036 = vmatprep.subr.mxu0 0.0
      %3037 = vmatpush1.msra.mxu0 0.0
      %3038 = vmatprep.subr.mxu0 0.0
      %3039 = vmatpush1.msra.mxu0 0.0
      %3040 = vmatprep.mubr.f32.mxu0 0.0
      %v3041 = vand.u32 %v2684, 4294901760
      %v3042 = vsub.f32 %v2684, %v3041
      %3043 = vmatmul.mubr.f32.gmra.mrb[0].mxu0 %v3042
      %v3044 = vpop.f32.mrb[0].mxu0
      %v3045 = vadd.f32 %v2929, %v3044
      %v3046 = vpop.f32.mrb[0].mxu0
      %3047 = vmatprep.mubr.f32.mxu0 0.0
      %v3048 = vand.u32 %v2687, 4294901760
      %v3049 = vsub.f32 %v2687, %v3048
      %3050 = vmatmul.mubr.f32.gmra.mrb[0].mxu0 %v3049
      %v3051 = vpop.f32.mrb[0].mxu0
      %v3052 = vadd.f32 %v2935, %v3051
      %v3053 = vpop.f32.mrb[0].mxu0
      %3054 = vmatprep.mubr.f32.mxu0 0.0
      %v3055 = vand.u32 %v2690, 4294901760
      %v3056 = vsub.f32 %v2690, %v3055
      %3057 = vmatmul.mubr.f32.gmra.mrb[0].mxu0 %v3056
      %v3058 = vpop.f32.mrb[0].mxu0
      %v3059 = vadd.f32 %v2941, %v3058
      %v3060 = vpop.f32.mrb[0].mxu0
      %3061 = vmatprep.mubr.f32.mxu0 0.0
      %v3062 = vand.u32 %v2693, 4294901760
      %v3063 = vsub.f32 %v2693, %v3062
      %3064 = vmatmul.mubr.f32.gmra.mrb[0].mxu0 %v3063
      %v3065 = vpop.f32.mrb[0].mxu0
      %v3066 = vadd.f32 %v2947, %v3065
      %v3067 = vpop.f32.mrb[0].mxu0
      %3068 = vmatprep.mubr.f32.mxu0 0.0
      %v3069 = vand.u32 %v2696, 4294901760
      %v3070 = vsub.f32 %v2696, %v3069
      %3071 = vmatmul.mubr.f32.gmra.mrb[0].mxu0 %v3070
      %v3072 = vpop.f32.mrb[0].mxu0
      %v3073 = vadd.f32 %v2953, %v3072
      %v3074 = vpop.f32.mrb[0].mxu0
      %3075 = vmatprep.mubr.f32.mxu0 0.0
      %v3076 = vand.u32 %v2699, 4294901760
      %v3077 = vsub.f32 %v2699, %v3076
      %3078 = vmatmul.mubr.f32.gmra.mrb[0].mxu0 %v3077
      %v3079 = vpop.f32.mrb[0].mxu0
      %v3080 = vadd.f32 %v2959, %v3079
      %v3081 = vpop.f32.mrb[0].mxu0
      %3082 = vmatprep.mubr.f32.mxu0 0.0
      %v3083 = vand.u32 %v2702, 4294901760
      %v3084 = vsub.f32 %v2702, %v3083
      %3085 = vmatmul.mubr.f32.gmra.mrb[0].mxu0 %v3084
      %v3086 = vpop.f32.mrb[0].mxu0
      %v3087 = vadd.f32 %v2965, %v3086
      %v3088 = vpop.f32.mrb[0].mxu0
      %3089 = vmatprep.mubr.f32.mxu0 0.0
      %v3090 = vand.u32 %v2705, 4294901760
      %v3091 = vsub.f32 %v2705, %v3090
      %3092 = vmatmul.mubr.f32.gmra.mrb[0].mxu0 %v3091
      %v3093 = vpop.f32.mrb[0].mxu0
      %v3094 = vadd.f32 %v2971, %v3093
      %v3095 = vpop.f32.mrb[0].mxu0
      %3096 = vdwg.mxu0
      %3097 = vmatprep.subr.mxu0 0.0
      %v3098 = vand.u32 %v2708, 4294901760
      %3099 = vmatpush1.msra.mxu0 %v3098
      %3100 = vmatprep.subr.mxu0 0.0
      %3101 = vmatpush1.msra.mxu0 0.0
      %3102 = vmatprep.subr.mxu0 0.0
      %3103 = vmatpush1.msra.mxu0 0.0
      %3104 = vmatprep.subr.mxu0 0.0
      %3105 = vmatpush1.msra.mxu0 0.0
      %3106 = vmatprep.subr.mxu0 0.0
      %3107 = vmatpush1.msra.mxu0 0.0
      %3108 = vmatprep.subr.mxu0 0.0
      %3109 = vmatpush1.msra.mxu0 0.0
      %3110 = vmatprep.subr.mxu0 0.0
      %3111 = vmatpush1.msra.mxu0 0.0
      %3112 = vmatprep.subr.mxu0 0.0
      %3113 = vmatpush1.msra.mxu0 0.0
      %3114 = vmatprep.subr.mxu0 0.0
      %3115 = vmatpush1.msra.mxu0 0.0
      %3116 = vmatprep.subr.mxu0 0.0
      %3117 = vmatpush1.msra.mxu0 0.0
      %3118 = vmatprep.subr.mxu0 0.0
      %3119 = vmatpush1.msra.mxu0 0.0
      %3120 = vmatprep.subr.mxu0 0.0
      %3121 = vmatpush1.msra.mxu0 0.0
      %3122 = vmatprep.subr.mxu0 0.0
      %3123 = vmatpush1.msra.mxu0 0.0
      %3124 = vmatprep.subr.mxu0 0.0
      %3125 = vmatpush1.msra.mxu0 0.0
      %3126 = vmatprep.subr.mxu0 0.0
      %3127 = vmatpush1.msra.mxu0 0.0
      %3128 = vmatprep.subr.mxu0 0.0
      %3129 = vmatpush1.msra.mxu0 0.0
      %3130 = vmatprep.subr.mxu0 0.0
      %3131 = vmatpush1.msra.mxu0 0.0
      %3132 = vmatprep.subr.mxu0 0.0
      %3133 = vmatpush1.msra.mxu0 0.0
      %3134 = vmatprep.subr.mxu0 0.0
      %3135 = vmatpush1.msra.mxu0 0.0
      %3136 = vmatprep.subr.mxu0 0.0
      %3137 = vmatpush1.msra.mxu0 0.0
      %3138 = vmatprep.subr.mxu0 0.0
      %3139 = vmatpush1.msra.mxu0 0.0
      %3140 = vmatprep.subr.mxu0 0.0
      %3141 = vmatpush1.msra.mxu0 0.0
      %3142 = vmatprep.subr.mxu0 0.0
      %3143 = vmatpush1.msra.mxu0 0.0
      %3144 = vmatprep.subr.mxu0 0.0
      %3145 = vmatpush1.msra.mxu0 0.0
      %3146 = vmatprep.subr.mxu0 0.0
      %3147 = vmatpush1.msra.mxu0 0.0
      %3148 = vmatprep.subr.mxu0 0.0
      %3149 = vmatpush1.msra.mxu0 0.0
      %3150 = vmatprep.subr.mxu0 0.0
      %3151 = vmatpush1.msra.mxu0 0.0
      %3152 = vmatprep.subr.mxu0 0.0
      %3153 = vmatpush1.msra.mxu0 0.0
      %3154 = vmatprep.subr.mxu0 0.0
      %3155 = vmatpush1.msra.mxu0 0.0
      %3156 = vmatprep.subr.mxu0 0.0
      %3157 = vmatpush1.msra.mxu0 0.0
      %3158 = vmatprep.subr.mxu0 0.0
      %3159 = vmatpush1.msra.mxu0 0.0
      %3160 = vmatprep.subr.mxu0 0.0
      %3161 = vmatpush1.msra.mxu0 0.0
      %3162 = vmatprep.mubr.f32.mxu0 0.0
      %v3163 = vand.u32 %v2684, 4294901760
      %v3164 = vsub.f32 %v2684, %v3163
      %v3165 = vand.u32 %v3164, 4294901760
      %3166 = vmatmul.mubr.f32.gmra.mrb[0].mxu0 %v3165
      %v3167 = vpop.f32.mrb[0].mxu0
      %v3168 = vadd.f32 %v3045, %v3167
      %v3169 = vpop.f32.mrb[0].mxu0
      %3170 = vmatprep.mubr.f32.mxu0 0.0
      %v3171 = vand.u32 %v2687, 4294901760
      %v3172 = vsub.f32 %v2687, %v3171
      %v3173 = vand.u32 %v3172, 4294901760
      %3174 = vmatmul.mubr.f32.gmra.mrb[0].mxu0 %v3173
      %v3175 = vpop.f32.mrb[0].mxu0
      %v3176 = vadd.f32 %v3052, %v3175
      %v3177 = vpop.f32.mrb[0].mxu0
      %3178 = vmatprep.mubr.f32.mxu0 0.0
      %v3179 = vand.u32 %v2690, 4294901760
      %v3180 = vsub.f32 %v2690, %v3179
      %v3181 = vand.u32 %v3180, 4294901760
      %3182 = vmatmul.mubr.f32.gmra.mrb[0].mxu0 %v3181
      %v3183 = vpop.f32.mrb[0].mxu0
      %v3184 = vadd.f32 %v3059, %v3183
      %v3185 = vpop.f32.mrb[0].mxu0
      %3186 = vmatprep.mubr.f32.mxu0 0.0
      %v3187 = vand.u32 %v2693, 4294901760
      %v3188 = vsub.f32 %v2693, %v3187
      %v3189 = vand.u32 %v3188, 4294901760
      %3190 = vmatmul.mubr.f32.gmra.mrb[0].mxu0 %v3189
      %v3191 = vpop.f32.mrb[0].mxu0
      %v3192 = vadd.f32 %v3066, %v3191
      %v3193 = vpop.f32.mrb[0].mxu0
      %3194 = vmatprep.mubr.f32.mxu0 0.0
      %v3195 = vand.u32 %v2696, 4294901760
      %v3196 = vsub.f32 %v2696, %v3195
      %v3197 = vand.u32 %v3196, 4294901760
      %3198 = vmatmul.mubr.f32.gmra.mrb[0].mxu0 %v3197
      %v3199 = vpop.f32.mrb[0].mxu0
      %v3200 = vadd.f32 %v3073, %v3199
      %v3201 = vpop.f32.mrb[0].mxu0
      %3202 = vmatprep.mubr.f32.mxu0 0.0
      %v3203 = vand.u32 %v2699, 4294901760
      %v3204 = vsub.f32 %v2699, %v3203
      %v3205 = vand.u32 %v3204, 4294901760
      %3206 = vmatmul.mubr.f32.gmra.mrb[0].mxu0 %v3205
      %v3207 = vpop.f32.mrb[0].mxu0
      %v3208 = vadd.f32 %v3080, %v3207
      %v3209 = vpop.f32.mrb[0].mxu0
      %3210 = vmatprep.mubr.f32.mxu0 0.0
      %v3211 = vand.u32 %v2702, 4294901760
      %v3212 = vsub.f32 %v2702, %v3211
      %v3213 = vand.u32 %v3212, 4294901760
      %3214 = vmatmul.mubr.f32.gmra.mrb[0].mxu0 %v3213
      %v3215 = vpop.f32.mrb[0].mxu0
      %v3216 = vadd.f32 %v3087, %v3215
      %v3217 = vpop.f32.mrb[0].mxu0
      %3218 = vmatprep.mubr.f32.mxu0 0.0
      %v3219 = vand.u32 %v2705, 4294901760
      %v3220 = vsub.f32 %v2705, %v3219
      %v3221 = vand.u32 %v3220, 4294901760
      %3222 = vmatmul.mubr.f32.gmra.mrb[0].mxu0 %v3221
      %v3223 = vpop.f32.mrb[0].mxu0
      %v3224 = vadd.f32 %v3094, %v3223
      %v3225 = vpop.f32.mrb[0].mxu0
      %3226 = vdwg.mxu0
      %3227 = vmatprep.subr.mxu0 0.0
      %v3228 = vand.u32 %v2708, 4294901760
      %v3229 = vsub.f32 %v2708, %v3228
      %v3230 = vand.u32 %v3229, 4294901760
      %3231 = vmatpush1.msra.mxu0 %v3230
      %3232 = vmatprep.subr.mxu0 0.0
      %3233 = vmatpush1.msra.mxu0 0.0
      %3234 = vmatprep.subr.mxu0 0.0
      %3235 = vmatpush1.msra.mxu0 0.0
      %3236 = vmatprep.subr.mxu0 0.0
      %3237 = vmatpush1.msra.mxu0 0.0
      %3238 = vmatprep.subr.mxu0 0.0
      %3239 = vmatpush1.msra.mxu0 0.0
      %3240 = vmatprep.subr.mxu0 0.0
      %3241 = vmatpush1.msra.mxu0 0.0
      %3242 = vmatprep.subr.mxu0 0.0
      %3243 = vmatpush1.msra.mxu0 0.0
      %3244 = vmatprep.subr.mxu0 0.0
      %3245 = vmatpush1.msra.mxu0 0.0
      %3246 = vmatprep.subr.mxu0 0.0
      %3247 = vmatpush1.msra.mxu0 0.0
      %3248 = vmatprep.subr.mxu0 0.0
      %3249 = vmatpush1.msra.mxu0 0.0
      %3250 = vmatprep.subr.mxu0 0.0
      %3251 = vmatpush1.msra.mxu0 0.0
      %3252 = vmatprep.subr.mxu0 0.0
      %3253 = vmatpush1.msra.mxu0 0.0
      %3254 = vmatprep.subr.mxu0 0.0
      %3255 = vmatpush1.msra.mxu0 0.0
      %3256 = vmatprep.subr.mxu0 0.0
      %3257 = vmatpush1.msra.mxu0 0.0
      %3258 = vmatprep.subr.mxu0 0.0
      %3259 = vmatpush1.msra.mxu0 0.0
      %3260 = vmatprep.subr.mxu0 0.0
      %3261 = vmatpush1.msra.mxu0 0.0
      %3262 = vmatprep.subr.mxu0 0.0
      %3263 = vmatpush1.msra.mxu0 0.0
      %3264 = vmatprep.subr.mxu0 0.0
      %3265 = vmatpush1.msra.mxu0 0.0
      %3266 = vmatprep.subr.mxu0 0.0
      %3267 = vmatpush1.msra.mxu0 0.0
      %3268 = vmatprep.subr.mxu0 0.0
      %3269 = vmatpush1.msra.mxu0 0.0
      %3270 = vmatprep.subr.mxu0 0.0
      %3271 = vmatpush1.msra.mxu0 0.0
      %3272 = vmatprep.subr.mxu0 0.0
      %3273 = vmatpush1.msra.mxu0 0.0
      %3274 = vmatprep.subr.mxu0 0.0
      %3275 = vmatpush1.msra.mxu0 0.0
      %3276 = vmatprep.subr.mxu0 0.0
      %3277 = vmatpush1.msra.mxu0 0.0
      %3278 = vmatprep.subr.mxu0 0.0
      %3279 = vmatpush1.msra.mxu0 0.0
      %3280 = vmatprep.subr.mxu0 0.0
      %3281 = vmatpush1.msra.mxu0 0.0
      %3282 = vmatprep.subr.mxu0 0.0
      %3283 = vmatpush1.msra.mxu0 0.0
      %3284 = vmatprep.subr.mxu0 0.0
      %3285 = vmatpush1.msra.mxu0 0.0
      %3286 = vmatprep.subr.mxu0 0.0
      %3287 = vmatpush1.msra.mxu0 0.0
      %3288 = vmatprep.subr.mxu0 0.0
      %3289 = vmatpush1.msra.mxu0 0.0
      %3290 = vmatprep.subr.mxu0 0.0
      %3291 = vmatpush1.msra.mxu0 0.0
      %3292 = vmatprep.subr.mxu0 0.0
      %3293 = vmatpush1.msra.mxu0 0.0
      %3294 = vmatprep.mubr.f32.mxu0 0.0
      %v3295 = vand.u32 %v2684, 4294901760
      %3296 = vmatmul.mubr.f32.gmra.mrb[0].mxu0 %v3295
      %v3297 = vpop.f32.mrb[0].mxu0
      %v3298 = vadd.f32 %v3168, %v3297
      %v3299 = vpop.f32.mrb[0].mxu0
      %3300 = vmatprep.mubr.f32.mxu0 0.0
      %v3301 = vand.u32 %v2687, 4294901760
      %3302 = vmatmul.mubr.f32.gmra.mrb[0].mxu0 %v3301
      %v3303 = vpop.f32.mrb[0].mxu0
      %v3304 = vadd.f32 %v3176, %v3303
      %v3305 = vpop.f32.mrb[0].mxu0
      %3306 = vmatprep.mubr.f32.mxu0 0.0
      %v3307 = vand.u32 %v2690, 4294901760
      %3308 = vmatmul.mubr.f32.gmra.mrb[0].mxu0 %v3307
      %v3309 = vpop.f32.mrb[0].mxu0
      %v3310 = vadd.f32 %v3184, %v3309
      %v3311 = vpop.f32.mrb[0].mxu0
      %3312 = vmatprep.mubr.f32.mxu0 0.0
      %v3313 = vand.u32 %v2693, 4294901760
      %3314 = vmatmul.mubr.f32.gmra.mrb[0].mxu0 %v3313
      %v3315 = vpop.f32.mrb[0].mxu0
      %v3316 = vadd.f32 %v3192, %v3315
      %v3317 = vpop.f32.mrb[0].mxu0
      %3318 = vmatprep.mubr.f32.mxu0 0.0
      %v3319 = vand.u32 %v2696, 4294901760
      %3320 = vmatmul.mubr.f32.gmra.mrb[0].mxu0 %v3319
      %v3321 = vpop.f32.mrb[0].mxu0
      %v3322 = vadd.f32 %v3200, %v3321
      %v3323 = vpop.f32.mrb[0].mxu0
      %3324 = vmatprep.mubr.f32.mxu0 0.0
      %v3325 = vand.u32 %v2699, 4294901760
      %3326 = vmatmul.mubr.f32.gmra.mrb[0].mxu0 %v3325
      %v3327 = vpop.f32.mrb[0].mxu0
      %v3328 = vadd.f32 %v3208, %v3327
      %v3329 = vpop.f32.mrb[0].mxu0
      %3330 = vmatprep.mubr.f32.mxu0 0.0
      %v3331 = vand.u32 %v2702, 4294901760
      %3332 = vmatmul.mubr.f32.gmra.mrb[0].mxu0 %v3331
      %v3333 = vpop.f32.mrb[0].mxu0
      %v3334 = vadd.f32 %v3216, %v3333
      %v3335 = vpop.f32.mrb[0].mxu0
      %3336 = vmatprep.mubr.f32.mxu0 0.0
      %v3337 = vand.u32 %v2705, 4294901760
      %3338 = vmatmul.mubr.f32.gmra.mrb[0].mxu0 %v3337
      %v3339 = vpop.f32.mrb[0].mxu0
      %v3340 = vadd.f32 %v3224, %v3339
      %v3341 = vpop.f32.mrb[0].mxu0
      %3342 = vdwg.mxu0
      %3343 = vmatprep.subr.mxu0 0.0
      %v3344 = vand.u32 %v2708, 4294901760
      %3345 = vmatpush1.msra.mxu0 %v3344
      %3346 = vmatprep.subr.mxu0 0.0
      %3347 = vmatpush1.msra.mxu0 0.0
      %3348 = vmatprep.subr.mxu0 0.0
      %3349 = vmatpush1.msra.mxu0 0.0
      %3350 = vmatprep.subr.mxu0 0.0
      %3351 = vmatpush1.msra.mxu0 0.0
      %3352 = vmatprep.subr.mxu0 0.0
      %3353 = vmatpush1.msra.mxu0 0.0
      %3354 = vmatprep.subr.mxu0 0.0
      %3355 = vmatpush1.msra.mxu0 0.0
      %3356 = vmatprep.subr.mxu0 0.0
      %3357 = vmatpush1.msra.mxu0 0.0
      %3358 = vmatprep.subr.mxu0 0.0
      %3359 = vmatpush1.msra.mxu0 0.0
      %3360 = vmatprep.subr.mxu0 0.0
      %3361 = vmatpush1.msra.mxu0 0.0
      %3362 = vmatprep.subr.mxu0 0.0
      %3363 = vmatpush1.msra.mxu0 0.0
      %3364 = vmatprep.subr.mxu0 0.0
      %3365 = vmatpush1.msra.mxu0 0.0
      %3366 = vmatprep.subr.mxu0 0.0
      %3367 = vmatpush1.msra.mxu0 0.0
      %3368 = vmatprep.subr.mxu0 0.0
      %3369 = vmatpush1.msra.mxu0 0.0
      %3370 = vmatprep.subr.mxu0 0.0
      %3371 = vmatpush1.msra.mxu0 0.0
      %3372 = vmatprep.subr.mxu0 0.0
      %3373 = vmatpush1.msra.mxu0 0.0
      %3374 = vmatprep.subr.mxu0 0.0
      %3375 = vmatpush1.msra.mxu0 0.0
      %3376 = vmatprep.subr.mxu0 0.0
      %3377 = vmatpush1.msra.mxu0 0.0
      %3378 = vmatprep.subr.mxu0 0.0
      %3379 = vmatpush1.msra.mxu0 0.0
      %3380 = vmatprep.subr.mxu0 0.0
      %3381 = vmatpush1.msra.mxu0 0.0
      %3382 = vmatprep.subr.mxu0 0.0
      %3383 = vmatpush1.msra.mxu0 0.0
      %3384 = vmatprep.subr.mxu0 0.0
      %3385 = vmatpush1.msra.mxu0 0.0
      %3386 = vmatprep.subr.mxu0 0.0
      %3387 = vmatpush1.msra.mxu0 0.0
      %3388 = vmatprep.subr.mxu0 0.0
      %3389 = vmatpush1.msra.mxu0 0.0
      %3390 = vmatprep.subr.mxu0 0.0
      %3391 = vmatpush1.msra.mxu0 0.0
      %3392 = vmatprep.subr.mxu0 0.0
      %3393 = vmatpush1.msra.mxu0 0.0
      %3394 = vmatprep.subr.mxu0 0.0
      %3395 = vmatpush1.msra.mxu0 0.0
      %3396 = vmatprep.subr.mxu0 0.0
      %3397 = vmatpush1.msra.mxu0 0.0
      %3398 = vmatprep.subr.mxu0 0.0
      %3399 = vmatpush1.msra.mxu0 0.0
      %3400 = vmatprep.subr.mxu0 0.0
      %3401 = vmatpush1.msra.mxu0 0.0
      %3402 = vmatprep.subr.mxu0 0.0
      %3403 = vmatpush1.msra.mxu0 0.0
      %3404 = vmatprep.subr.mxu0 0.0
      %3405 = vmatpush1.msra.mxu0 0.0
      %3406 = vmatprep.subr.mxu0 0.0
      %3407 = vmatpush1.msra.mxu0 0.0
      %3408 = vmatprep.mubr.f32.mxu0 0.0
      %v3409 = vand.u32 %v2684, 4294901760
      %3410 = vmatmul.mubr.f32.gmra.mrb[0].mxu0 %v3409
      %v3411 = vpop.f32.mrb[0].mxu0
      %v3412 = vadd.f32 %v3298, %v3411
      %v3413 = vpop.f32.mrb[0].mxu0
      %3414 = vmatprep.mubr.f32.mxu0 0.0
      %v3415 = vand.u32 %v2687, 4294901760
      %3416 = vmatmul.mubr.f32.gmra.mrb[0].mxu0 %v3415
      %v3417 = vpop.f32.mrb[0].mxu0
      %v3418 = vadd.f32 %v3304, %v3417
      %v3419 = vpop.f32.mrb[0].mxu0
      %3420 = vmatprep.mubr.f32.mxu0 0.0
      %v3421 = vand.u32 %v2690, 4294901760
      %3422 = vmatmul.mubr.f32.gmra.mrb[0].mxu0 %v3421
      %v3423 = vpop.f32.mrb[0].mxu0
      %v3424 = vadd.f32 %v3310, %v3423
      %v3425 = vpop.f32.mrb[0].mxu0
      %3426 = vmatprep.mubr.f32.mxu0 0.0
      %v3427 = vand.u32 %v2693, 4294901760
      %3428 = vmatmul.mubr.f32.gmra.mrb[0].mxu0 %v3427
      %v3429 = vpop.f32.mrb[0].mxu0
      %v3430 = vadd.f32 %v3316, %v3429
      %v3431 = vpop.f32.mrb[0].mxu0
      %3432 = vmatprep.mubr.f32.mxu0 0.0
      %v3433 = vand.u32 %v2696, 4294901760
      %3434 = vmatmul.mubr.f32.gmra.mrb[0].mxu0 %v3433
      %v3435 = vpop.f32.mrb[0].mxu0
      %v3436 = vadd.f32 %v3322, %v3435
      %v3437 = vpop.f32.mrb[0].mxu0
      %3438 = vmatprep.mubr.f32.mxu0 0.0
      %v3439 = vand.u32 %v2699, 4294901760
      %3440 = vmatmul.mubr.f32.gmra.mrb[0].mxu0 %v3439
      %v3441 = vpop.f32.mrb[0].mxu0
      %v3442 = vadd.f32 %v3328, %v3441
      %v3443 = vpop.f32.mrb[0].mxu0
      %3444 = vmatprep.mubr.f32.mxu0 0.0
      %v3445 = vand.u32 %v2702, 4294901760
      %3446 = vmatmul.mubr.f32.gmra.mrb[0].mxu0 %v3445
      %v3447 = vpop.f32.mrb[0].mxu0
      %v3448 = vadd.f32 %v3334, %v3447
      %v3449 = vpop.f32.mrb[0].mxu0
      %3450 = vmatprep.mubr.f32.mxu0 0.0
      %v3451 = vand.u32 %v2705, 4294901760
      %3452 = vmatmul.mubr.f32.gmra.mrb[0].mxu0 %v3451
      %v3453 = vpop.f32.mrb[0].mxu0
      %v3454 = vadd.f32 %v3340, %v3453
      %v3455 = vpop.f32.mrb[0].mxu0
      %3456 = vdwg.mxu0
      %v3457 = vadd.f32 %v2665, %v3412
      %v3458 = vadd.f32 %v2666, %v3418
      %v3459 = vadd.f32 %v2667, %v3424
      %v3460 = vadd.f32 %v2668, %v3430
      %v3461 = vadd.f32 %v2669, %v3436
      %v3462 = vadd.f32 %v2670, %v3442
      %v3463 = vadd.f32 %v2671, %v3448
      %v3464 = vadd.f32 %v2672, %v3454
      %v3465 = vld [vmem:[%s306] sm:$0xff]
      %v3466 = vld [vmem:[%s306 + $0x10] sm:$0xff]
      %v3467 = vld [vmem:[%s306 + $0x20] sm:$0xff]
      %v3468 = vld [vmem:[%s306 + $0x30] sm:$0xff]
      %v3469 = vld [vmem:[%s306 + $0x40] sm:$0xff]
      %v3470 = vld [vmem:[%s306 + $0x50] sm:$0xff]
      %v3471 = vld [vmem:[%s306 + $0x60] sm:$0xff]
      %v3472 = vld [vmem:[%s306 + $0x70] sm:$0xff]
      %s3473 = scalar_lea.vmem %s4, 16
      %v3474 = vld [vmem:[%s3473] sm:$0xf]
      %v3476 = vsel %vm331, %v3465, 0
      %v3479 = vsel %vm331, %v3466, 0
      %v3482 = vsel %vm331, %v3467, 0
      %v3485 = vsel %vm331, %v3468, 0
      %v3488 = vsel %vm331, %v3469, 0
      %v3491 = vsel %vm331, %v3470, 0
      %v3494 = vsel %vm331, %v3471, 0
      %v3497 = vsel %vm331, %v3472, 0
      %v3500 = vsel %vm356, %v3474, 0
      %3502 = vmatprep.subr.mxu0 0.0
      %v3503 = vand.u32 %v3500, 4294901760
      %3504 = vmatpush1.msra.mxu0 %v3503
      %3505 = vmatprep.subr.mxu0 0.0
      %3506 = vmatpush1.msra.mxu0 0.0
      %3507 = vmatprep.subr.mxu0 0.0
      %3508 = vmatpush1.msra.mxu0 0.0
      %3509 = vmatprep.subr.mxu0 0.0
      %3510 = vmatpush1.msra.mxu0 0.0
      %3511 = vmatprep.subr.mxu0 0.0
      %3512 = vmatpush1.msra.mxu0 0.0
      %3513 = vmatprep.subr.mxu0 0.0
      %3514 = vmatpush1.msra.mxu0 0.0
      %3515 = vmatprep.subr.mxu0 0.0
      %3516 = vmatpush1.msra.mxu0 0.0
      %3517 = vmatprep.subr.mxu0 0.0
      %3518 = vmatpush1.msra.mxu0 0.0
      %3519 = vmatprep.subr.mxu0 0.0
      %3520 = vmatpush1.msra.mxu0 0.0
      %3521 = vmatprep.subr.mxu0 0.0
      %3522 = vmatpush1.msra.mxu0 0.0
      %3523 = vmatprep.subr.mxu0 0.0
      %3524 = vmatpush1.msra.mxu0 0.0
      %3525 = vmatprep.subr.mxu0 0.0
      %3526 = vmatpush1.msra.mxu0 0.0
      %3527 = vmatprep.subr.mxu0 0.0
      %3528 = vmatpush1.msra.mxu0 0.0
      %3529 = vmatprep.subr.mxu0 0.0
      %3530 = vmatpush1.msra.mxu0 0.0
      %3531 = vmatprep.subr.mxu0 0.0
      %3532 = vmatpush1.msra.mxu0 0.0
      %3533 = vmatprep.subr.mxu0 0.0
      %3534 = vmatpush1.msra.mxu0 0.0
      %3535 = vmatprep.subr.mxu0 0.0
      %3536 = vmatpush1.msra.mxu0 0.0
      %3537 = vmatprep.subr.mxu0 0.0
      %3538 = vmatpush1.msra.mxu0 0.0
      %3539 = vmatprep.subr.mxu0 0.0
      %3540 = vmatpush1.msra.mxu0 0.0
      %3541 = vmatprep.subr.mxu0 0.0
      %3542 = vmatpush1.msra.mxu0 0.0
      %3543 = vmatprep.subr.mxu0 0.0
      %3544 = vmatpush1.msra.mxu0 0.0
      %3545 = vmatprep.subr.mxu0 0.0
      %3546 = vmatpush1.msra.mxu0 0.0
      %3547 = vmatprep.subr.mxu0 0.0
      %3548 = vmatpush1.msra.mxu0 0.0
      %3549 = vmatprep.subr.mxu0 0.0
      %3550 = vmatpush1.msra.mxu0 0.0
      %3551 = vmatprep.subr.mxu0 0.0
      %3552 = vmatpush1.msra.mxu0 0.0
      %3553 = vmatprep.subr.mxu0 0.0
      %3554 = vmatpush1.msra.mxu0 0.0
      %3555 = vmatprep.subr.mxu0 0.0
      %3556 = vmatpush1.msra.mxu0 0.0
      %3557 = vmatprep.subr.mxu0 0.0
      %3558 = vmatpush1.msra.mxu0 0.0
      %3559 = vmatprep.subr.mxu0 0.0
      %3560 = vmatpush1.msra.mxu0 0.0
      %3561 = vmatprep.subr.mxu0 0.0
      %3562 = vmatpush1.msra.mxu0 0.0
      %3563 = vmatprep.subr.mxu0 0.0
      %3564 = vmatpush1.msra.mxu0 0.0
      %3565 = vmatprep.subr.mxu0 0.0
      %3566 = vmatpush1.msra.mxu0 0.0
      %3567 = vmatprep.mubr.f32.mxu0 0.0
      %v3568 = vand.u32 %v3476, 4294901760
      %v3569 = vsub.f32 %v3476, %v3568
      %v3570 = vand.u32 %v3569, 4294901760
      %v3571 = vsub.f32 %v3569, %v3570
      %v3572 = vand.u32 %v3571, 4294901760
      %3573 = vmatmul.mubr.f32.gmra.mrb[0].mxu0 %v3572
      %v3574 = vpop.f32.mrb[0].mxu0
      %v3575 = vadd.f32 0.0, %v3574
      %v3576 = vpop.f32.mrb[0].mxu0
      %3577 = vmatprep.mubr.f32.mxu0 0.0
      %v3578 = vand.u32 %v3479, 4294901760
      %v3579 = vsub.f32 %v3479, %v3578
      %v3580 = vand.u32 %v3579, 4294901760
      %v3581 = vsub.f32 %v3579, %v3580
      %v3582 = vand.u32 %v3581, 4294901760
      %3583 = vmatmul.mubr.f32.gmra.mrb[0].mxu0 %v3582
      %v3584 = vpop.f32.mrb[0].mxu0
      %v3585 = vadd.f32 0.0, %v3584
      %v3586 = vpop.f32.mrb[0].mxu0
      %3587 = vmatprep.mubr.f32.mxu0 0.0
      %v3588 = vand.u32 %v3482, 4294901760
      %v3589 = vsub.f32 %v3482, %v3588
      %v3590 = vand.u32 %v3589, 4294901760
      %v3591 = vsub.f32 %v3589, %v3590
      %v3592 = vand.u32 %v3591, 4294901760
      %3593 = vmatmul.mubr.f32.gmra.mrb[0].mxu0 %v3592
      %v3594 = vpop.f32.mrb[0].mxu0
      %v3595 = vadd.f32 0.0, %v3594
      %v3596 = vpop.f32.mrb[0].mxu0
      %3597 = vmatprep.mubr.f32.mxu0 0.0
      %v3598 = vand.u32 %v3485, 4294901760
      %v3599 = vsub.f32 %v3485, %v3598
      %v3600 = vand.u32 %v3599, 4294901760
      %v3601 = vsub.f32 %v3599, %v3600
      %v3602 = vand.u32 %v3601, 4294901760
      %3603 = vmatmul.mubr.f32.gmra.mrb[0].mxu0 %v3602
      %v3604 = vpop.f32.mrb[0].mxu0
      %v3605 = vadd.f32 0.0, %v3604
      %v3606 = vpop.f32.mrb[0].mxu0
      %3607 = vmatprep.mubr.f32.mxu0 0.0
      %v3608 = vand.u32 %v3488, 4294901760
      %v3609 = vsub.f32 %v3488, %v3608
      %v3610 = vand.u32 %v3609, 4294901760
      %v3611 = vsub.f32 %v3609, %v3610
      %v3612 = vand.u32 %v3611, 4294901760
      %3613 = vmatmul.mubr.f32.gmra.mrb[0].mxu0 %v3612
      %v3614 = vpop.f32.mrb[0].mxu0
      %v3615 = vadd.f32 0.0, %v3614
      %v3616 = vpop.f32.mrb[0].mxu0
      %3617 = vmatprep.mubr.f32.mxu0 0.0
      %v3618 = vand.u32 %v3491, 4294901760
      %v3619 = vsub.f32 %v3491, %v3618
      %v3620 = vand.u32 %v3619, 4294901760
      %v3621 = vsub.f32 %v3619, %v3620
      %v3622 = vand.u32 %v3621, 4294901760
      %3623 = vmatmul.mubr.f32.gmra.mrb[0].mxu0 %v3622
      %v3624 = vpop.f32.mrb[0].mxu0
      %v3625 = vadd.f32 0.0, %v3624
      %v3626 = vpop.f32.mrb[0].mxu0
      %3627 = vmatprep.mubr.f32.mxu0 0.0
      %v3628 = vand.u32 %v3494, 4294901760
      %v3629 = vsub.f32 %v3494, %v3628
      %v3630 = vand.u32 %v3629, 4294901760
      %v3631 = vsub.f32 %v3629, %v3630
      %v3632 = vand.u32 %v3631, 4294901760
      %3633 = vmatmul.mubr.f32.gmra.mrb[0].mxu0 %v3632
      %v3634 = vpop.f32.mrb[0].mxu0
      %v3635 = vadd.f32 0.0, %v3634
      %v3636 = vpop.f32.mrb[0].mxu0
      %3637 = vmatprep.mubr.f32.mxu0 0.0
      %v3638 = vand.u32 %v3497, 4294901760
      %v3639 = vsub.f32 %v3497, %v3638
      %v3640 = vand.u32 %v3639, 4294901760
      %v3641 = vsub.f32 %v3639, %v3640
      %v3642 = vand.u32 %v3641, 4294901760
      %3643 = vmatmul.mubr.f32.gmra.mrb[0].mxu0 %v3642
      %v3644 = vpop.f32.mrb[0].mxu0
      %v3645 = vadd.f32 0.0, %v3644
      %v3646 = vpop.f32.mrb[0].mxu0
      %3647 = vdwg.mxu0
      %3648 = vmatprep.subr.mxu0 0.0
      %v3649 = vand.u32 %v3500, 4294901760
      %v3650 = vsub.f32 %v3500, %v3649
      %v3651 = vand.u32 %v3650, 4294901760
      %v3652 = vsub.f32 %v3650, %v3651
      %v3653 = vand.u32 %v3652, 4294901760
      %3654 = vmatpush1.msra.mxu0 %v3653
      %3655 = vmatprep.subr.mxu0 0.0
      %3656 = vmatpush1.msra.mxu0 0.0
      %3657 = vmatprep.subr.mxu0 0.0
      %3658 = vmatpush1.msra.mxu0 0.0
      %3659 = vmatprep.subr.mxu0 0.0
      %3660 = vmatpush1.msra.mxu0 0.0
      %3661 = vmatprep.subr.mxu0 0.0
      %3662 = vmatpush1.msra.mxu0 0.0
      %3663 = vmatprep.subr.mxu0 0.0
      %3664 = vmatpush1.msra.mxu0 0.0
      %3665 = vmatprep.subr.mxu0 0.0
      %3666 = vmatpush1.msra.mxu0 0.0
      %3667 = vmatprep.subr.mxu0 0.0
      %3668 = vmatpush1.msra.mxu0 0.0
      %3669 = vmatprep.subr.mxu0 0.0
      %3670 = vmatpush1.msra.mxu0 0.0
      %3671 = vmatprep.subr.mxu0 0.0
      %3672 = vmatpush1.msra.mxu0 0.0
      %3673 = vmatprep.subr.mxu0 0.0
      %3674 = vmatpush1.msra.mxu0 0.0
      %3675 = vmatprep.subr.mxu0 0.0
      %3676 = vmatpush1.msra.mxu0 0.0
      %3677 = vmatprep.subr.mxu0 0.0
      %3678 = vmatpush1.msra.mxu0 0.0
      %3679 = vmatprep.subr.mxu0 0.0
      %3680 = vmatpush1.msra.mxu0 0.0
      %3681 = vmatprep.subr.mxu0 0.0
      %3682 = vmatpush1.msra.mxu0 0.0
      %3683 = vmatprep.subr.mxu0 0.0
      %3684 = vmatpush1.msra.mxu0 0.0
      %3685 = vmatprep.subr.mxu0 0.0
      %3686 = vmatpush1.msra.mxu0 0.0
      %3687 = vmatprep.subr.mxu0 0.0
      %3688 = vmatpush1.msra.mxu0 0.0
      %3689 = vmatprep.subr.mxu0 0.0
      %3690 = vmatpush1.msra.mxu0 0.0
      %3691 = vmatprep.subr.mxu0 0.0
      %3692 = vmatpush1.msra.mxu0 0.0
      %3693 = vmatprep.subr.mxu0 0.0
      %3694 = vmatpush1.msra.mxu0 0.0
      %3695 = vmatprep.subr.mxu0 0.0
      %3696 = vmatpush1.msra.mxu0 0.0
      %3697 = vmatprep.subr.mxu0 0.0
      %3698 = vmatpush1.msra.mxu0 0.0
      %3699 = vmatprep.subr.mxu0 0.0
      %3700 = vmatpush1.msra.mxu0 0.0
      %3701 = vmatprep.subr.mxu0 0.0
      %3702 = vmatpush1.msra.mxu0 0.0
      %3703 = vmatprep.subr.mxu0 0.0
      %3704 = vmatpush1.msra.mxu0 0.0
      %3705 = vmatprep.subr.mxu0 0.0
      %3706 = vmatpush1.msra.mxu0 0.0
      %3707 = vmatprep.subr.mxu0 0.0
      %3708 = vmatpush1.msra.mxu0 0.0
      %3709 = vmatprep.subr.mxu0 0.0
      %3710 = vmatpush1.msra.mxu0 0.0
      %3711 = vmatprep.subr.mxu0 0.0
      %3712 = vmatpush1.msra.mxu0 0.0
      %3713 = vmatprep.subr.mxu0 0.0
      %3714 = vmatpush1.msra.mxu0 0.0
      %3715 = vmatprep.subr.mxu0 0.0
      %3716 = vmatpush1.msra.mxu0 0.0
      %3717 = vmatprep.mubr.f32.mxu0 0.0
      %v3718 = vand.u32 %v3476, 4294901760
      %3719 = vmatmul.mubr.f32.gmra.mrb[0].mxu0 %v3718
      %v3720 = vpop.f32.mrb[0].mxu0
      %v3721 = vadd.f32 %v3575, %v3720
      %v3722 = vpop.f32.mrb[0].mxu0
      %3723 = vmatprep.mubr.f32.mxu0 0.0
      %v3724 = vand.u32 %v3479, 4294901760
      %3725 = vmatmul.mubr.f32.gmra.mrb[0].mxu0 %v3724
      %v3726 = vpop.f32.mrb[0].mxu0
      %v3727 = vadd.f32 %v3585, %v3726
      %v3728 = vpop.f32.mrb[0].mxu0
      %3729 = vmatprep.mubr.f32.mxu0 0.0
      %v3730 = vand.u32 %v3482, 4294901760
      %3731 = vmatmul.mubr.f32.gmra.mrb[0].mxu0 %v3730
      %v3732 = vpop.f32.mrb[0].mxu0
      %v3733 = vadd.f32 %v3595, %v3732
      %v3734 = vpop.f32.mrb[0].mxu0
      %3735 = vmatprep.mubr.f32.mxu0 0.0
      %v3736 = vand.u32 %v3485, 4294901760
      %3737 = vmatmul.mubr.f32.gmra.mrb[0].mxu0 %v3736
      %v3738 = vpop.f32.mrb[0].mxu0
      %v3739 = vadd.f32 %v3605, %v3738
      %v3740 = vpop.f32.mrb[0].mxu0
      %3741 = vmatprep.mubr.f32.mxu0 0.0
      %v3742 = vand.u32 %v3488, 4294901760
      %3743 = vmatmul.mubr.f32.gmra.mrb[0].mxu0 %v3742
      %v3744 = vpop.f32.mrb[0].mxu0
      %v3745 = vadd.f32 %v3615, %v3744
      %v3746 = vpop.f32.mrb[0].mxu0
      %3747 = vmatprep.mubr.f32.mxu0 0.0
      %v3748 = vand.u32 %v3491, 4294901760
      %3749 = vmatmul.mubr.f32.gmra.mrb[0].mxu0 %v3748
      %v3750 = vpop.f32.mrb[0].mxu0
      %v3751 = vadd.f32 %v3625, %v3750
      %v3752 = vpop.f32.mrb[0].mxu0
      %3753 = vmatprep.mubr.f32.mxu0 0.0
      %v3754 = vand.u32 %v3494, 4294901760
      %3755 = vmatmul.mubr.f32.gmra.mrb[0].mxu0 %v3754
      %v3756 = vpop.f32.mrb[0].mxu0
      %v3757 = vadd.f32 %v3635, %v3756
      %v3758 = vpop.f32.mrb[0].mxu0
      %3759 = vmatprep.mubr.f32.mxu0 0.0
      %v3760 = vand.u32 %v3497, 4294901760
      %3761 = vmatmul.mubr.f32.gmra.mrb[0].mxu0 %v3760
      %v3762 = vpop.f32.mrb[0].mxu0
      %v3763 = vadd.f32 %v3645, %v3762
      %v3764 = vpop.f32.mrb[0].mxu0
      %3765 = vdwg.mxu0
      %3766 = vmatprep.subr.mxu0 0.0
      %v3767 = vand.u32 %v3500, 4294901760
      %v3768 = vsub.f32 %v3500, %v3767
      %3769 = vmatpush1.msra.mxu0 %v3768
      %3770 = vmatprep.subr.mxu0 0.0
      %3771 = vmatpush1.msra.mxu0 0.0
      %3772 = vmatprep.subr.mxu0 0.0
      %3773 = vmatpush1.msra.mxu0 0.0
      %3774 = vmatprep.subr.mxu0 0.0
      %3775 = vmatpush1.msra.mxu0 0.0
      %3776 = vmatprep.subr.mxu0 0.0
      %3777 = vmatpush1.msra.mxu0 0.0
      %3778 = vmatprep.subr.mxu0 0.0
      %3779 = vmatpush1.msra.mxu0 0.0
      %3780 = vmatprep.subr.mxu0 0.0
      %3781 = vmatpush1.msra.mxu0 0.0
      %3782 = vmatprep.subr.mxu0 0.0
      %3783 = vmatpush1.msra.mxu0 0.0
      %3784 = vmatprep.subr.mxu0 0.0
      %3785 = vmatpush1.msra.mxu0 0.0
      %3786 = vmatprep.subr.mxu0 0.0
      %3787 = vmatpush1.msra.mxu0 0.0
      %3788 = vmatprep.subr.mxu0 0.0
      %3789 = vmatpush1.msra.mxu0 0.0
      %3790 = vmatprep.subr.mxu0 0.0
      %3791 = vmatpush1.msra.mxu0 0.0
      %3792 = vmatprep.subr.mxu0 0.0
      %3793 = vmatpush1.msra.mxu0 0.0
      %3794 = vmatprep.subr.mxu0 0.0
      %3795 = vmatpush1.msra.mxu0 0.0
      %3796 = vmatprep.subr.mxu0 0.0
      %3797 = vmatpush1.msra.mxu0 0.0
      %3798 = vmatprep.subr.mxu0 0.0
      %3799 = vmatpush1.msra.mxu0 0.0
      %3800 = vmatprep.subr.mxu0 0.0
      %3801 = vmatpush1.msra.mxu0 0.0
      %3802 = vmatprep.subr.mxu0 0.0
      %3803 = vmatpush1.msra.mxu0 0.0
      %3804 = vmatprep.subr.mxu0 0.0
      %3805 = vmatpush1.msra.mxu0 0.0
      %3806 = vmatprep.subr.mxu0 0.0
      %3807 = vmatpush1.msra.mxu0 0.0
      %3808 = vmatprep.subr.mxu0 0.0
      %3809 = vmatpush1.msra.mxu0 0.0
      %3810 = vmatprep.subr.mxu0 0.0
      %3811 = vmatpush1.msra.mxu0 0.0
      %3812 = vmatprep.subr.mxu0 0.0
      %3813 = vmatpush1.msra.mxu0 0.0
      %3814 = vmatprep.subr.mxu0 0.0
      %3815 = vmatpush1.msra.mxu0 0.0
      %3816 = vmatprep.subr.mxu0 0.0
      %3817 = vmatpush1.msra.mxu0 0.0
      %3818 = vmatprep.subr.mxu0 0.0
      %3819 = vmatpush1.msra.mxu0 0.0
      %3820 = vmatprep.subr.mxu0 0.0
      %3821 = vmatpush1.msra.mxu0 0.0
      %3822 = vmatprep.subr.mxu0 0.0
      %3823 = vmatpush1.msra.mxu0 0.0
      %3824 = vmatprep.subr.mxu0 0.0
      %3825 = vmatpush1.msra.mxu0 0.0
      %3826 = vmatprep.subr.mxu0 0.0
      %3827 = vmatpush1.msra.mxu0 0.0
      %3828 = vmatprep.subr.mxu0 0.0
      %3829 = vmatpush1.msra.mxu0 0.0
      %3830 = vmatprep.subr.mxu0 0.0
      %3831 = vmatpush1.msra.mxu0 0.0
      %3832 = vmatprep.mubr.f32.mxu0 0.0
      %v3833 = vand.u32 %v3476, 4294901760
      %v3834 = vsub.f32 %v3476, %v3833
      %3835 = vmatmul.mubr.f32.gmra.mrb[0].mxu0 %v3834
      %v3836 = vpop.f32.mrb[0].mxu0
      %v3837 = vadd.f32 %v3721, %v3836
      %v3838 = vpop.f32.mrb[0].mxu0
      %3839 = vmatprep.mubr.f32.mxu0 0.0
      %v3840 = vand.u32 %v3479, 4294901760
      %v3841 = vsub.f32 %v3479, %v3840
      %3842 = vmatmul.mubr.f32.gmra.mrb[0].mxu0 %v3841
      %v3843 = vpop.f32.mrb[0].mxu0
      %v3844 = vadd.f32 %v3727, %v3843
      %v3845 = vpop.f32.mrb[0].mxu0
      %3846 = vmatprep.mubr.f32.mxu0 0.0
      %v3847 = vand.u32 %v3482, 4294901760
      %v3848 = vsub.f32 %v3482, %v3847
      %3849 = vmatmul.mubr.f32.gmra.mrb[0].mxu0 %v3848
      %v3850 = vpop.f32.mrb[0].mxu0
      %v3851 = vadd.f32 %v3733, %v3850
      %v3852 = vpop.f32.mrb[0].mxu0
      %3853 = vmatprep.mubr.f32.mxu0 0.0
      %v3854 = vand.u32 %v3485, 4294901760
      %v3855 = vsub.f32 %v3485, %v3854
      %3856 = vmatmul.mubr.f32.gmra.mrb[0].mxu0 %v3855
      %v3857 = vpop.f32.mrb[0].mxu0
      %v3858 = vadd.f32 %v3739, %v3857
      %v3859 = vpop.f32.mrb[0].mxu0
      %3860 = vmatprep.mubr.f32.mxu0 0.0
      %v3861 = vand.u32 %v3488, 4294901760
      %v3862 = vsub.f32 %v3488, %v3861
      %3863 = vmatmul.mubr.f32.gmra.mrb[0].mxu0 %v3862
      %v3864 = vpop.f32.mrb[0].mxu0
      %v3865 = vadd.f32 %v3745, %v3864
      %v3866 = vpop.f32.mrb[0].mxu0
      %3867 = vmatprep.mubr.f32.mxu0 0.0
      %v3868 = vand.u32 %v3491, 4294901760
      %v3869 = vsub.f32 %v3491, %v3868
      %3870 = vmatmul.mubr.f32.gmra.mrb[0].mxu0 %v3869
      %v3871 = vpop.f32.mrb[0].mxu0
      %v3872 = vadd.f32 %v3751, %v3871
      %v3873 = vpop.f32.mrb[0].mxu0
      %3874 = vmatprep.mubr.f32.mxu0 0.0
      %v3875 = vand.u32 %v3494, 4294901760
      %v3876 = vsub.f32 %v3494, %v3875
      %3877 = vmatmul.mubr.f32.gmra.mrb[0].mxu0 %v3876
      %v3878 = vpop.f32.mrb[0].mxu0
      %v3879 = vadd.f32 %v3757, %v3878
      %v3880 = vpop.f32.mrb[0].mxu0
      %3881 = vmatprep.mubr.f32.mxu0 0.0
      %v3882 = vand.u32 %v3497, 4294901760
      %v3883 = vsub.f32 %v3497, %v3882
      %3884 = vmatmul.mubr.f32.gmra.mrb[0].mxu0 %v3883
      %v3885 = vpop.f32.mrb[0].mxu0
      %v3886 = vadd.f32 %v3763, %v3885
      %v3887 = vpop.f32.mrb[0].mxu0
      %3888 = vdwg.mxu0
      %3889 = vmatprep.subr.mxu0 0.0
      %v3890 = vand.u32 %v3500, 4294901760
      %3891 = vmatpush1.msra.mxu0 %v3890
      %3892 = vmatprep.subr.mxu0 0.0
      %3893 = vmatpush1.msra.mxu0 0.0
      %3894 = vmatprep.subr.mxu0 0.0
      %3895 = vmatpush1.msra.mxu0 0.0
      %3896 = vmatprep.subr.mxu0 0.0
      %3897 = vmatpush1.msra.mxu0 0.0
      %3898 = vmatprep.subr.mxu0 0.0
      %3899 = vmatpush1.msra.mxu0 0.0
      %3900 = vmatprep.subr.mxu0 0.0
      %3901 = vmatpush1.msra.mxu0 0.0
      %3902 = vmatprep.subr.mxu0 0.0
      %3903 = vmatpush1.msra.mxu0 0.0
      %3904 = vmatprep.subr.mxu0 0.0
      %3905 = vmatpush1.msra.mxu0 0.0
      %3906 = vmatprep.subr.mxu0 0.0
      %3907 = vmatpush1.msra.mxu0 0.0
      %3908 = vmatprep.subr.mxu0 0.0
      %3909 = vmatpush1.msra.mxu0 0.0
      %3910 = vmatprep.subr.mxu0 0.0
      %3911 = vmatpush1.msra.mxu0 0.0
      %3912 = vmatprep.subr.mxu0 0.0
      %3913 = vmatpush1.msra.mxu0 0.0
      %3914 = vmatprep.subr.mxu0 0.0
      %3915 = vmatpush1.msra.mxu0 0.0
      %3916 = vmatprep.subr.mxu0 0.0
      %3917 = vmatpush1.msra.mxu0 0.0
      %3918 = vmatprep.subr.mxu0 0.0
      %3919 = vmatpush1.msra.mxu0 0.0
      %3920 = vmatprep.subr.mxu0 0.0
      %3921 = vmatpush1.msra.mxu0 0.0
      %3922 = vmatprep.subr.mxu0 0.0
      %3923 = vmatpush1.msra.mxu0 0.0
      %3924 = vmatprep.subr.mxu0 0.0
      %3925 = vmatpush1.msra.mxu0 0.0
      %3926 = vmatprep.subr.mxu0 0.0
      %3927 = vmatpush1.msra.mxu0 0.0
      %3928 = vmatprep.subr.mxu0 0.0
      %3929 = vmatpush1.msra.mxu0 0.0
      %3930 = vmatprep.subr.mxu0 0.0
      %3931 = vmatpush1.msra.mxu0 0.0
      %3932 = vmatprep.subr.mxu0 0.0
      %3933 = vmatpush1.msra.mxu0 0.0
      %3934 = vmatprep.subr.mxu0 0.0
      %3935 = vmatpush1.msra.mxu0 0.0
      %3936 = vmatprep.subr.mxu0 0.0
      %3937 = vmatpush1.msra.mxu0 0.0
      %3938 = vmatprep.subr.mxu0 0.0
      %3939 = vmatpush1.msra.mxu0 0.0
      %3940 = vmatprep.subr.mxu0 0.0
      %3941 = vmatpush1.msra.mxu0 0.0
      %3942 = vmatprep.subr.mxu0 0.0
      %3943 = vmatpush1.msra.mxu0 0.0
      %3944 = vmatprep.subr.mxu0 0.0
      %3945 = vmatpush1.msra.mxu0 0.0
      %3946 = vmatprep.subr.mxu0 0.0
      %3947 = vmatpush1.msra.mxu0 0.0
      %3948 = vmatprep.subr.mxu0 0.0
      %3949 = vmatpush1.msra.mxu0 0.0
      %3950 = vmatprep.subr.mxu0 0.0
      %3951 = vmatpush1.msra.mxu0 0.0
      %3952 = vmatprep.subr.mxu0 0.0
      %3953 = vmatpush1.msra.mxu0 0.0
      %3954 = vmatprep.mubr.f32.mxu0 0.0
      %v3955 = vand.u32 %v3476, 4294901760
      %v3956 = vsub.f32 %v3476, %v3955
      %v3957 = vand.u32 %v3956, 4294901760
      %3958 = vmatmul.mubr.f32.gmra.mrb[0].mxu0 %v3957
      %v3959 = vpop.f32.mrb[0].mxu0
      %v3960 = vadd.f32 %v3837, %v3959
      %v3961 = vpop.f32.mrb[0].mxu0
      %3962 = vmatprep.mubr.f32.mxu0 0.0
      %v3963 = vand.u32 %v3479, 4294901760
      %v3964 = vsub.f32 %v3479, %v3963
      %v3965 = vand.u32 %v3964, 4294901760
      %3966 = vmatmul.mubr.f32.gmra.mrb[0].mxu0 %v3965
      %v3967 = vpop.f32.mrb[0].mxu0
      %v3968 = vadd.f32 %v3844, %v3967
      %v3969 = vpop.f32.mrb[0].mxu0
      %3970 = vmatprep.mubr.f32.mxu0 0.0
      %v3971 = vand.u32 %v3482, 4294901760
      %v3972 = vsub.f32 %v3482, %v3971
      %v3973 = vand.u32 %v3972, 4294901760
      %3974 = vmatmul.mubr.f32.gmra.mrb[0].mxu0 %v3973
      %v3975 = vpop.f32.mrb[0].mxu0
      %v3976 = vadd.f32 %v3851, %v3975
      %v3977 = vpop.f32.mrb[0].mxu0
      %3978 = vmatprep.mubr.f32.mxu0 0.0
      %v3979 = vand.u32 %v3485, 4294901760
      %v3980 = vsub.f32 %v3485, %v3979
      %v3981 = vand.u32 %v3980, 4294901760
      %3982 = vmatmul.mubr.f32.gmra.mrb[0].mxu0 %v3981
      %v3983 = vpop.f32.mrb[0].mxu0
      %v3984 = vadd.f32 %v3858, %v3983
      %v3985 = vpop.f32.mrb[0].mxu0
      %3986 = vmatprep.mubr.f32.mxu0 0.0
      %v3987 = vand.u32 %v3488, 4294901760
      %v3988 = vsub.f32 %v3488, %v3987
      %v3989 = vand.u32 %v3988, 4294901760
      %3990 = vmatmul.mubr.f32.gmra.mrb[0].mxu0 %v3989
      %v3991 = vpop.f32.mrb[0].mxu0
      %v3992 = vadd.f32 %v3865, %v3991
      %v3993 = vpop.f32.mrb[0].mxu0
      %3994 = vmatprep.mubr.f32.mxu0 0.0
      %v3995 = vand.u32 %v3491, 4294901760
      %v3996 = vsub.f32 %v3491, %v3995
      %v3997 = vand.u32 %v3996, 4294901760
      %3998 = vmatmul.mubr.f32.gmra.mrb[0].mxu0 %v3997
      %v3999 = vpop.f32.mrb[0].mxu0
      %v4000 = vadd.f32 %v3872, %v3999
      %v4001 = vpop.f32.mrb[0].mxu0
      %4002 = vmatprep.mubr.f32.mxu0 0.0
      %v4003 = vand.u32 %v3494, 4294901760
      %v4004 = vsub.f32 %v3494, %v4003
      %v4005 = vand.u32 %v4004, 4294901760
      %4006 = vmatmul.mubr.f32.gmra.mrb[0].mxu0 %v4005
      %v4007 = vpop.f32.mrb[0].mxu0
      %v4008 = vadd.f32 %v3879, %v4007
      %v4009 = vpop.f32.mrb[0].mxu0
      %4010 = vmatprep.mubr.f32.mxu0 0.0
      %v4011 = vand.u32 %v3497, 4294901760
      %v4012 = vsub.f32 %v3497, %v4011
      %v4013 = vand.u32 %v4012, 4294901760
      %4014 = vmatmul.mubr.f32.gmra.mrb[0].mxu0 %v4013
      %v4015 = vpop.f32.mrb[0].mxu0
      %v4016 = vadd.f32 %v3886, %v4015
      %v4017 = vpop.f32.mrb[0].mxu0
      %4018 = vdwg.mxu0
      %4019 = vmatprep.subr.mxu0 0.0
      %v4020 = vand.u32 %v3500, 4294901760
      %v4021 = vsub.f32 %v3500, %v4020
      %v4022 = vand.u32 %v4021, 4294901760
      %4023 = vmatpush1.msra.mxu0 %v4022
      %4024 = vmatprep.subr.mxu0 0.0
      %4025 = vmatpush1.msra.mxu0 0.0
      %4026 = vmatprep.subr.mxu0 0.0
      %4027 = vmatpush1.msra.mxu0 0.0
      %4028 = vmatprep.subr.mxu0 0.0
      %4029 = vmatpush1.msra.mxu0 0.0
      %4030 = vmatprep.subr.mxu0 0.0
      %4031 = vmatpush1.msra.mxu0 0.0
      %4032 = vmatprep.subr.mxu0 0.0
      %4033 = vmatpush1.msra.mxu0 0.0
      %4034 = vmatprep.subr.mxu0 0.0
      %4035 = vmatpush1.msra.mxu0 0.0
      %4036 = vmatprep.subr.mxu0 0.0
      %4037 = vmatpush1.msra.mxu0 0.0
      %4038 = vmatprep.subr.mxu0 0.0
      %4039 = vmatpush1.msra.mxu0 0.0
      %4040 = vmatprep.subr.mxu0 0.0
      %4041 = vmatpush1.msra.mxu0 0.0
      %4042 = vmatprep.subr.mxu0 0.0
      %4043 = vmatpush1.msra.mxu0 0.0
      %4044 = vmatprep.subr.mxu0 0.0
      %4045 = vmatpush1.msra.mxu0 0.0
      %4046 = vmatprep.subr.mxu0 0.0
      %4047 = vmatpush1.msra.mxu0 0.0
      %4048 = vmatprep.subr.mxu0 0.0
      %4049 = vmatpush1.msra.mxu0 0.0
      %4050 = vmatprep.subr.mxu0 0.0
      %4051 = vmatpush1.msra.mxu0 0.0
      %4052 = vmatprep.subr.mxu0 0.0
      %4053 = vmatpush1.msra.mxu0 0.0
      %4054 = vmatprep.subr.mxu0 0.0
      %4055 = vmatpush1.msra.mxu0 0.0
      %4056 = vmatprep.subr.mxu0 0.0
      %4057 = vmatpush1.msra.mxu0 0.0
      %4058 = vmatprep.subr.mxu0 0.0
      %4059 = vmatpush1.msra.mxu0 0.0
      %4060 = vmatprep.subr.mxu0 0.0
      %4061 = vmatpush1.msra.mxu0 0.0
      %4062 = vmatprep.subr.mxu0 0.0
      %4063 = vmatpush1.msra.mxu0 0.0
      %4064 = vmatprep.subr.mxu0 0.0
      %4065 = vmatpush1.msra.mxu0 0.0
      %4066 = vmatprep.subr.mxu0 0.0
      %4067 = vmatpush1.msra.mxu0 0.0
      %4068 = vmatprep.subr.mxu0 0.0
      %4069 = vmatpush1.msra.mxu0 0.0
      %4070 = vmatprep.subr.mxu0 0.0
      %4071 = vmatpush1.msra.mxu0 0.0
      %4072 = vmatprep.subr.mxu0 0.0
      %4073 = vmatpush1.msra.mxu0 0.0
      %4074 = vmatprep.subr.mxu0 0.0
      %4075 = vmatpush1.msra.mxu0 0.0
      %4076 = vmatprep.subr.mxu0 0.0
      %4077 = vmatpush1.msra.mxu0 0.0
      %4078 = vmatprep.subr.mxu0 0.0
      %4079 = vmatpush1.msra.mxu0 0.0
      %4080 = vmatprep.subr.mxu0 0.0
      %4081 = vmatpush1.msra.mxu0 0.0
      %4082 = vmatprep.subr.mxu0 0.0
      %4083 = vmatpush1.msra.mxu0 0.0
      %4084 = vmatprep.subr.mxu0 0.0
      %4085 = vmatpush1.msra.mxu0 0.0
      %4086 = vmatprep.mubr.f32.mxu0 0.0
      %v4087 = vand.u32 %v3476, 4294901760
      %4088 = vmatmul.mubr.f32.gmra.mrb[0].mxu0 %v4087
      %v4089 = vpop.f32.mrb[0].mxu0
      %v4090 = vadd.f32 %v3960, %v4089
      %v4091 = vpop.f32.mrb[0].mxu0
      %4092 = vmatprep.mubr.f32.mxu0 0.0
      %v4093 = vand.u32 %v3479, 4294901760
      %4094 = vmatmul.mubr.f32.gmra.mrb[0].mxu0 %v4093
      %v4095 = vpop.f32.mrb[0].mxu0
      %v4096 = vadd.f32 %v3968, %v4095
      %v4097 = vpop.f32.mrb[0].mxu0
      %4098 = vmatprep.mubr.f32.mxu0 0.0
      %v4099 = vand.u32 %v3482, 4294901760
      %4100 = vmatmul.mubr.f32.gmra.mrb[0].mxu0 %v4099
      %v4101 = vpop.f32.mrb[0].mxu0
      %v4102 = vadd.f32 %v3976, %v4101
      %v4103 = vpop.f32.mrb[0].mxu0
      %4104 = vmatprep.mubr.f32.mxu0 0.0
      %v4105 = vand.u32 %v3485, 4294901760
      %4106 = vmatmul.mubr.f32.gmra.mrb[0].mxu0 %v4105
      %v4107 = vpop.f32.mrb[0].mxu0
      %v4108 = vadd.f32 %v3984, %v4107
      %v4109 = vpop.f32.mrb[0].mxu0
      %4110 = vmatprep.mubr.f32.mxu0 0.0
      %v4111 = vand.u32 %v3488, 4294901760
      %4112 = vmatmul.mubr.f32.gmra.mrb[0].mxu0 %v4111
      %v4113 = vpop.f32.mrb[0].mxu0
      %v4114 = vadd.f32 %v3992, %v4113
      %v4115 = vpop.f32.mrb[0].mxu0
      %4116 = vmatprep.mubr.f32.mxu0 0.0
      %v4117 = vand.u32 %v3491, 4294901760
      %4118 = vmatmul.mubr.f32.gmra.mrb[0].mxu0 %v4117
      %v4119 = vpop.f32.mrb[0].mxu0
      %v4120 = vadd.f32 %v4000, %v4119
      %v4121 = vpop.f32.mrb[0].mxu0
      %4122 = vmatprep.mubr.f32.mxu0 0.0
      %v4123 = vand.u32 %v3494, 4294901760
      %4124 = vmatmul.mubr.f32.gmra.mrb[0].mxu0 %v4123
      %v4125 = vpop.f32.mrb[0].mxu0
      %v4126 = vadd.f32 %v4008, %v4125
      %v4127 = vpop.f32.mrb[0].mxu0
      %4128 = vmatprep.mubr.f32.mxu0 0.0
      %v4129 = vand.u32 %v3497, 4294901760
      %4130 = vmatmul.mubr.f32.gmra.mrb[0].mxu0 %v4129
      %v4131 = vpop.f32.mrb[0].mxu0
      %v4132 = vadd.f32 %v4016, %v4131
      %v4133 = vpop.f32.mrb[0].mxu0
      %4134 = vdwg.mxu0
      %4135 = vmatprep.subr.mxu0 0.0
      %v4136 = vand.u32 %v3500, 4294901760
      %4137 = vmatpush1.msra.mxu0 %v4136
      %4138 = vmatprep.subr.mxu0 0.0
      %4139 = vmatpush1.msra.mxu0 0.0
      %4140 = vmatprep.subr.mxu0 0.0
      %4141 = vmatpush1.msra.mxu0 0.0
      %4142 = vmatprep.subr.mxu0 0.0
      %4143 = vmatpush1.msra.mxu0 0.0
      %4144 = vmatprep.subr.mxu0 0.0
      %4145 = vmatpush1.msra.mxu0 0.0
      %4146 = vmatprep.subr.mxu0 0.0
      %4147 = vmatpush1.msra.mxu0 0.0
      %4148 = vmatprep.subr.mxu0 0.0
      %4149 = vmatpush1.msra.mxu0 0.0
      %4150 = vmatprep.subr.mxu0 0.0
      %4151 = vmatpush1.msra.mxu0 0.0
      %4152 = vmatprep.subr.mxu0 0.0
      %4153 = vmatpush1.msra.mxu0 0.0
      %4154 = vmatprep.subr.mxu0 0.0
      %4155 = vmatpush1.msra.mxu0 0.0
      %4156 = vmatprep.subr.mxu0 0.0
      %4157 = vmatpush1.msra.mxu0 0.0
      %4158 = vmatprep.subr.mxu0 0.0
      %4159 = vmatpush1.msra.mxu0 0.0
      %4160 = vmatprep.subr.mxu0 0.0
      %4161 = vmatpush1.msra.mxu0 0.0
      %4162 = vmatprep.subr.mxu0 0.0
      %4163 = vmatpush1.msra.mxu0 0.0
      %4164 = vmatprep.subr.mxu0 0.0
      %4165 = vmatpush1.msra.mxu0 0.0
      %4166 = vmatprep.subr.mxu0 0.0
      %4167 = vmatpush1.msra.mxu0 0.0
      %4168 = vmatprep.subr.mxu0 0.0
      %4169 = vmatpush1.msra.mxu0 0.0
      %4170 = vmatprep.subr.mxu0 0.0
      %4171 = vmatpush1.msra.mxu0 0.0
      %4172 = vmatprep.subr.mxu0 0.0
      %4173 = vmatpush1.msra.mxu0 0.0
      %4174 = vmatprep.subr.mxu0 0.0
      %4175 = vmatpush1.msra.mxu0 0.0
      %4176 = vmatprep.subr.mxu0 0.0
      %4177 = vmatpush1.msra.mxu0 0.0
      %4178 = vmatprep.subr.mxu0 0.0
      %4179 = vmatpush1.msra.mxu0 0.0
      %4180 = vmatprep.subr.mxu0 0.0
      %4181 = vmatpush1.msra.mxu0 0.0
      %4182 = vmatprep.subr.mxu0 0.0
      %4183 = vmatpush1.msra.mxu0 0.0
      %4184 = vmatprep.subr.mxu0 0.0
      %4185 = vmatpush1.msra.mxu0 0.0
      %4186 = vmatprep.subr.mxu0 0.0
      %4187 = vmatpush1.msra.mxu0 0.0
      %4188 = vmatprep.subr.mxu0 0.0
      %4189 = vmatpush1.msra.mxu0 0.0
      %4190 = vmatprep.subr.mxu0 0.0
      %4191 = vmatpush1.msra.mxu0 0.0
      %4192 = vmatprep.subr.mxu0 0.0
      %4193 = vmatpush1.msra.mxu0 0.0
      %4194 = vmatprep.subr.mxu0 0.0
      %4195 = vmatpush1.msra.mxu0 0.0
      %4196 = vmatprep.subr.mxu0 0.0
      %4197 = vmatpush1.msra.mxu0 0.0
      %4198 = vmatprep.subr.mxu0 0.0
      %4199 = vmatpush1.msra.mxu0 0.0
      %4200 = vmatprep.mubr.f32.mxu0 0.0
      %v4201 = vand.u32 %v3476, 4294901760
      %4202 = vmatmul.mubr.f32.gmra.mrb[0].mxu0 %v4201
      %v4203 = vpop.f32.mrb[0].mxu0
      %v4204 = vadd.f32 %v4090, %v4203
      %v4205 = vpop.f32.mrb[0].mxu0
      %4206 = vmatprep.mubr.f32.mxu0 0.0
      %v4207 = vand.u32 %v3479, 4294901760
      %4208 = vmatmul.mubr.f32.gmra.mrb[0].mxu0 %v4207
      %v4209 = vpop.f32.mrb[0].mxu0
      %v4210 = vadd.f32 %v4096, %v4209
      %v4211 = vpop.f32.mrb[0].mxu0
      %4212 = vmatprep.mubr.f32.mxu0 0.0
      %v4213 = vand.u32 %v3482, 4294901760
      %4214 = vmatmul.mubr.f32.gmra.mrb[0].mxu0 %v4213
      %v4215 = vpop.f32.mrb[0].mxu0
      %v4216 = vadd.f32 %v4102, %v4215
      %v4217 = vpop.f32.mrb[0].mxu0
      %4218 = vmatprep.mubr.f32.mxu0 0.0
      %v4219 = vand.u32 %v3485, 4294901760
      %4220 = vmatmul.mubr.f32.gmra.mrb[0].mxu0 %v4219
      %v4221 = vpop.f32.mrb[0].mxu0
      %v4222 = vadd.f32 %v4108, %v4221
      %v4223 = vpop.f32.mrb[0].mxu0
      %4224 = vmatprep.mubr.f32.mxu0 0.0
      %v4225 = vand.u32 %v3488, 4294901760
      %4226 = vmatmul.mubr.f32.gmra.mrb[0].mxu0 %v4225
      %v4227 = vpop.f32.mrb[0].mxu0
      %v4228 = vadd.f32 %v4114, %v4227
      %v4229 = vpop.f32.mrb[0].mxu0
      %4230 = vmatprep.mubr.f32.mxu0 0.0
      %v4231 = vand.u32 %v3491, 4294901760
      %4232 = vmatmul.mubr.f32.gmra.mrb[0].mxu0 %v4231
      %v4233 = vpop.f32.mrb[0].mxu0
      %v4234 = vadd.f32 %v4120, %v4233
      %v4235 = vpop.f32.mrb[0].mxu0
      %4236 = vmatprep.mubr.f32.mxu0 0.0
      %v4237 = vand.u32 %v3494, 4294901760
      %4238 = vmatmul.mubr.f32.gmra.mrb[0].mxu0 %v4237
      %v4239 = vpop.f32.mrb[0].mxu0
      %v4240 = vadd.f32 %v4126, %v4239
      %v4241 = vpop.f32.mrb[0].mxu0
      %4242 = vmatprep.mubr.f32.mxu0 0.0
      %v4243 = vand.u32 %v3497, 4294901760
      %4244 = vmatmul.mubr.f32.gmra.mrb[0].mxu0 %v4243
      %v4245 = vpop.f32.mrb[0].mxu0
      %v4246 = vadd.f32 %v4132, %v4245
      %v4247 = vpop.f32.mrb[0].mxu0
      %4248 = vdwg.mxu0
      %v4249 = vadd.f32 %v3457, %v4204
      %v4250 = vadd.f32 %v3458, %v4210
      %v4251 = vadd.f32 %v3459, %v4216
      %v4252 = vadd.f32 %v3460, %v4222
      %v4253 = vadd.f32 %v3461, %v4228
      %v4254 = vadd.f32 %v3462, %v4234
      %v4255 = vadd.f32 %v3463, %v4240
      %v4256 = vadd.f32 %v3464, %v4246
      %v4257 = vld [vmem:[%s301 + $0x1] sm:$0xff]
      %v4258 = vld [vmem:[%s301 + $0x11] sm:$0xff]
      %v4259 = vld [vmem:[%s301 + $0x21] sm:$0xff]
      %v4260 = vld [vmem:[%s301 + $0x31] sm:$0xff]
      %v4261 = vld [vmem:[%s301 + $0x41] sm:$0xff]
      %v4262 = vld [vmem:[%s301 + $0x51] sm:$0xff]
      %v4263 = vld [vmem:[%s301 + $0x61] sm:$0xff]
      %v4264 = vld [vmem:[%s301 + $0x71] sm:$0xff]
      %s4265 = scalar_lea.vmem %s4, 20
      %v4266 = vld [vmem:[%s4265] sm:$0xf]
      %v4268 = vsel %vm331, %v4257, 0
      %v4271 = vsel %vm331, %v4258, 0
      %v4274 = vsel %vm331, %v4259, 0
      %v4277 = vsel %vm331, %v4260, 0
      %v4280 = vsel %vm331, %v4261, 0
      %v4283 = vsel %vm331, %v4262, 0
      %v4286 = vsel %vm331, %v4263, 0
      %v4289 = vsel %vm331, %v4264, 0
      %v4292 = vsel %vm356, %v4266, 0
      %4294 = vmatprep.subr.mxu0 0.0
      %v4295 = vand.u32 %v4292, 4294901760
      %4296 = vmatpush1.msra.mxu0 %v4295
      %4297 = vmatprep.subr.mxu0 0.0
      %4298 = vmatpush1.msra.mxu0 0.0
      %4299 = vmatprep.subr.mxu0 0.0
      %4300 = vmatpush1.msra.mxu0 0.0
      %4301 = vmatprep.subr.mxu0 0.0
      %4302 = vmatpush1.msra.mxu0 0.0
      %4303 = vmatprep.subr.mxu0 0.0
      %4304 = vmatpush1.msra.mxu0 0.0
      %4305 = vmatprep.subr.mxu0 0.0
      %4306 = vmatpush1.msra.mxu0 0.0
      %4307 = vmatprep.subr.mxu0 0.0
      %4308 = vmatpush1.msra.mxu0 0.0
      %4309 = vmatprep.subr.mxu0 0.0
      %4310 = vmatpush1.msra.mxu0 0.0
      %4311 = vmatprep.subr.mxu0 0.0
      %4312 = vmatpush1.msra.mxu0 0.0
      %4313 = vmatprep.subr.mxu0 0.0
      %4314 = vmatpush1.msra.mxu0 0.0
      %4315 = vmatprep.subr.mxu0 0.0
      %4316 = vmatpush1.msra.mxu0 0.0
      %4317 = vmatprep.subr.mxu0 0.0
      %4318 = vmatpush1.msra.mxu0 0.0
      %4319 = vmatprep.subr.mxu0 0.0
      %4320 = vmatpush1.msra.mxu0 0.0
      %4321 = vmatprep.subr.mxu0 0.0
      %4322 = vmatpush1.msra.mxu0 0.0
      %4323 = vmatprep.subr.mxu0 0.0
      %4324 = vmatpush1.msra.mxu0 0.0
      %4325 = vmatprep.subr.mxu0 0.0
      %4326 = vmatpush1.msra.mxu0 0.0
      %4327 = vmatprep.subr.mxu0 0.0
      %4328 = vmatpush1.msra.mxu0 0.0
      %4329 = vmatprep.subr.mxu0 0.0
      %4330 = vmatpush1.msra.mxu0 0.0
      %4331 = vmatprep.subr.mxu0 0.0
      %4332 = vmatpush1.msra.mxu0 0.0
      %4333 = vmatprep.subr.mxu0 0.0
      %4334 = vmatpush1.msra.mxu0 0.0
      %4335 = vmatprep.subr.mxu0 0.0
      %4336 = vmatpush1.msra.mxu0 0.0
      %4337 = vmatprep.subr.mxu0 0.0
      %4338 = vmatpush1.msra.mxu0 0.0
      %4339 = vmatprep.subr.mxu0 0.0
      %4340 = vmatpush1.msra.mxu0 0.0
      %4341 = vmatprep.subr.mxu0 0.0
      %4342 = vmatpush1.msra.mxu0 0.0
      %4343 = vmatprep.subr.mxu0 0.0
      %4344 = vmatpush1.msra.mxu0 0.0
      %4345 = vmatprep.subr.mxu0 0.0
      %4346 = vmatpush1.msra.mxu0 0.0
      %4347 = vmatprep.subr.mxu0 0.0
      %4348 = vmatpush1.msra.mxu0 0.0
      %4349 = vmatprep.subr.mxu0 0.0
      %4350 = vmatpush1.msra.mxu0 0.0
      %4351 = vmatprep.subr.mxu0 0.0
      %4352 = vmatpush1.msra.mxu0 0.0
      %4353 = vmatprep.subr.mxu0 0.0
      %4354 = vmatpush1.msra.mxu0 0.0
      %4355 = vmatprep.subr.mxu0 0.0
      %4356 = vmatpush1.msra.mxu0 0.0
      %4357 = vmatprep.subr.mxu0 0.0
      %4358 = vmatpush1.msra.mxu0 0.0
      %4359 = vmatprep.mubr.f32.mxu0 0.0
      %v4360 = vand.u32 %v4268, 4294901760
      %v4361 = vsub.f32 %v4268, %v4360
      %v4362 = vand.u32 %v4361, 4294901760
      %v4363 = vsub.f32 %v4361, %v4362
      %v4364 = vand.u32 %v4363, 4294901760
      %4365 = vmatmul.mubr.f32.gmra.mrb[0].mxu0 %v4364
      %v4366 = vpop.f32.mrb[0].mxu0
      %v4367 = vadd.f32 0.0, %v4366
      %v4368 = vpop.f32.mrb[0].mxu0
      %4369 = vmatprep.mubr.f32.mxu0 0.0
      %v4370 = vand.u32 %v4271, 4294901760
      %v4371 = vsub.f32 %v4271, %v4370
      %v4372 = vand.u32 %v4371, 4294901760
      %v4373 = vsub.f32 %v4371, %v4372
      %v4374 = vand.u32 %v4373, 4294901760
      %4375 = vmatmul.mubr.f32.gmra.mrb[0].mxu0 %v4374
      %v4376 = vpop.f32.mrb[0].mxu0
      %v4377 = vadd.f32 0.0, %v4376
      %v4378 = vpop.f32.mrb[0].mxu0
      %4379 = vmatprep.mubr.f32.mxu0 0.0
      %v4380 = vand.u32 %v4274, 4294901760
      %v4381 = vsub.f32 %v4274, %v4380
      %v4382 = vand.u32 %v4381, 4294901760
      %v4383 = vsub.f32 %v4381, %v4382
      %v4384 = vand.u32 %v4383, 4294901760
      %4385 = vmatmul.mubr.f32.gmra.mrb[0].mxu0 %v4384
      %v4386 = vpop.f32.mrb[0].mxu0
      %v4387 = vadd.f32 0.0, %v4386
      %v4388 = vpop.f32.mrb[0].mxu0
      %4389 = vmatprep.mubr.f32.mxu0 0.0
      %v4390 = vand.u32 %v4277, 4294901760
      %v4391 = vsub.f32 %v4277, %v4390
      %v4392 = vand.u32 %v4391, 4294901760
      %v4393 = vsub.f32 %v4391, %v4392
      %v4394 = vand.u32 %v4393, 4294901760
      %4395 = vmatmul.mubr.f32.gmra.mrb[0].mxu0 %v4394
      %v4396 = vpop.f32.mrb[0].mxu0
      %v4397 = vadd.f32 0.0, %v4396
      %v4398 = vpop.f32.mrb[0].mxu0
      %4399 = vmatprep.mubr.f32.mxu0 0.0
      %v4400 = vand.u32 %v4280, 4294901760
      %v4401 = vsub.f32 %v4280, %v4400
      %v4402 = vand.u32 %v4401, 4294901760
      %v4403 = vsub.f32 %v4401, %v4402
      %v4404 = vand.u32 %v4403, 4294901760
      %4405 = vmatmul.mubr.f32.gmra.mrb[0].mxu0 %v4404
      %v4406 = vpop.f32.mrb[0].mxu0
      %v4407 = vadd.f32 0.0, %v4406
      %v4408 = vpop.f32.mrb[0].mxu0
      %4409 = vmatprep.mubr.f32.mxu0 0.0
      %v4410 = vand.u32 %v4283, 4294901760
      %v4411 = vsub.f32 %v4283, %v4410
      %v4412 = vand.u32 %v4411, 4294901760
      %v4413 = vsub.f32 %v4411, %v4412
      %v4414 = vand.u32 %v4413, 4294901760
      %4415 = vmatmul.mubr.f32.gmra.mrb[0].mxu0 %v4414
      %v4416 = vpop.f32.mrb[0].mxu0
      %v4417 = vadd.f32 0.0, %v4416
      %v4418 = vpop.f32.mrb[0].mxu0
      %4419 = vmatprep.mubr.f32.mxu0 0.0
      %v4420 = vand.u32 %v4286, 4294901760
      %v4421 = vsub.f32 %v4286, %v4420
      %v4422 = vand.u32 %v4421, 4294901760
      %v4423 = vsub.f32 %v4421, %v4422
      %v4424 = vand.u32 %v4423, 4294901760
      %4425 = vmatmul.mubr.f32.gmra.mrb[0].mxu0 %v4424
      %v4426 = vpop.f32.mrb[0].mxu0
      %v4427 = vadd.f32 0.0, %v4426
      %v4428 = vpop.f32.mrb[0].mxu0
      %4429 = vmatprep.mubr.f32.mxu0 0.0
      %v4430 = vand.u32 %v4289, 4294901760
      %v4431 = vsub.f32 %v4289, %v4430
      %v4432 = vand.u32 %v4431, 4294901760
      %v4433 = vsub.f32 %v4431, %v4432
      %v4434 = vand.u32 %v4433, 4294901760
      %4435 = vmatmul.mubr.f32.gmra.mrb[0].mxu0 %v4434
      %v4436 = vpop.f32.mrb[0].mxu0
      %v4437 = vadd.f32 0.0, %v4436
      %v4438 = vpop.f32.mrb[0].mxu0
      %4439 = vdwg.mxu0
      %4440 = vmatprep.subr.mxu0 0.0
      %v4441 = vand.u32 %v4292, 4294901760
      %v4442 = vsub.f32 %v4292, %v4441
      %v4443 = vand.u32 %v4442, 4294901760
      %v4444 = vsub.f32 %v4442, %v4443
      %v4445 = vand.u32 %v4444, 4294901760
      %4446 = vmatpush1.msra.mxu0 %v4445
      %4447 = vmatprep.subr.mxu0 0.0
      %4448 = vmatpush1.msra.mxu0 0.0
      %4449 = vmatprep.subr.mxu0 0.0
      %4450 = vmatpush1.msra.mxu0 0.0
      %4451 = vmatprep.subr.mxu0 0.0
      %4452 = vmatpush1.msra.mxu0 0.0
      %4453 = vmatprep.subr.mxu0 0.0
      %4454 = vmatpush1.msra.mxu0 0.0
      %4455 = vmatprep.subr.mxu0 0.0
      %4456 = vmatpush1.msra.mxu0 0.0
      %4457 = vmatprep.subr.mxu0 0.0
      %4458 = vmatpush1.msra.mxu0 0.0
      %4459 = vmatprep.subr.mxu0 0.0
      %4460 = vmatpush1.msra.mxu0 0.0
      %4461 = vmatprep.subr.mxu0 0.0
      %4462 = vmatpush1.msra.mxu0 0.0
      %4463 = vmatprep.subr.mxu0 0.0
      %4464 = vmatpush1.msra.mxu0 0.0
      %4465 = vmatprep.subr.mxu0 0.0
      %4466 = vmatpush1.msra.mxu0 0.0
      %4467 = vmatprep.subr.mxu0 0.0
      %4468 = vmatpush1.msra.mxu0 0.0
      %4469 = vmatprep.subr.mxu0 0.0
      %4470 = vmatpush1.msra.mxu0 0.0
      %4471 = vmatprep.subr.mxu0 0.0
      %4472 = vmatpush1.msra.mxu0 0.0
      %4473 = vmatprep.subr.mxu0 0.0
      %4474 = vmatpush1.msra.mxu0 0.0
      %4475 = vmatprep.subr.mxu0 0.0
      %4476 = vmatpush1.msra.mxu0 0.0
      %4477 = vmatprep.subr.mxu0 0.0
      %4478 = vmatpush1.msra.mxu0 0.0
      %4479 = vmatprep.subr.mxu0 0.0
      %4480 = vmatpush1.msra.mxu0 0.0
      %4481 = vmatprep.subr.mxu0 0.0
      %4482 = vmatpush1.msra.mxu0 0.0
      %4483 = vmatprep.subr.mxu0 0.0
      %4484 = vmatpush1.msra.mxu0 0.0
      %4485 = vmatprep.subr.mxu0 0.0
      %4486 = vmatpush1.msra.mxu0 0.0
      %4487 = vmatprep.subr.mxu0 0.0
      %4488 = vmatpush1.msra.mxu0 0.0
      %4489 = vmatprep.subr.mxu0 0.0
      %4490 = vmatpush1.msra.mxu0 0.0
      %4491 = vmatprep.subr.mxu0 0.0
      %4492 = vmatpush1.msra.mxu0 0.0
      %4493 = vmatprep.subr.mxu0 0.0
      %4494 = vmatpush1.msra.mxu0 0.0
      %4495 = vmatprep.subr.mxu0 0.0
      %4496 = vmatpush1.msra.mxu0 0.0
      %4497 = vmatprep.subr.mxu0 0.0
      %4498 = vmatpush1.msra.mxu0 0.0
      %4499 = vmatprep.subr.mxu0 0.0
      %4500 = vmatpush1.msra.mxu0 0.0
      %4501 = vmatprep.subr.mxu0 0.0
      %4502 = vmatpush1.msra.mxu0 0.0
      %4503 = vmatprep.subr.mxu0 0.0
      %4504 = vmatpush1.msra.mxu0 0.0
      %4505 = vmatprep.subr.mxu0 0.0
      %4506 = vmatpush1.msra.mxu0 0.0
      %4507 = vmatprep.subr.mxu0 0.0
      %4508 = vmatpush1.msra.mxu0 0.0
      %4509 = vmatprep.mubr.f32.mxu0 0.0
      %v4510 = vand.u32 %v4268, 4294901760
      %4511 = vmatmul.mubr.f32.gmra.mrb[0].mxu0 %v4510
      %v4512 = vpop.f32.mrb[0].mxu0
      %v4513 = vadd.f32 %v4367, %v4512
      %v4514 = vpop.f32.mrb[0].mxu0
      %4515 = vmatprep.mubr.f32.mxu0 0.0
      %v4516 = vand.u32 %v4271, 4294901760
      %4517 = vmatmul.mubr.f32.gmra.mrb[0].mxu0 %v4516
      %v4518 = vpop.f32.mrb[0].mxu0
      %v4519 = vadd.f32 %v4377, %v4518
      %v4520 = vpop.f32.mrb[0].mxu0
      %4521 = vmatprep.mubr.f32.mxu0 0.0
      %v4522 = vand.u32 %v4274, 4294901760
      %4523 = vmatmul.mubr.f32.gmra.mrb[0].mxu0 %v4522
      %v4524 = vpop.f32.mrb[0].mxu0
      %v4525 = vadd.f32 %v4387, %v4524
      %v4526 = vpop.f32.mrb[0].mxu0
      %4527 = vmatprep.mubr.f32.mxu0 0.0
      %v4528 = vand.u32 %v4277, 4294901760
      %4529 = vmatmul.mubr.f32.gmra.mrb[0].mxu0 %v4528
      %v4530 = vpop.f32.mrb[0].mxu0
      %v4531 = vadd.f32 %v4397, %v4530
      %v4532 = vpop.f32.mrb[0].mxu0
      %4533 = vmatprep.mubr.f32.mxu0 0.0
      %v4534 = vand.u32 %v4280, 4294901760
      %4535 = vmatmul.mubr.f32.gmra.mrb[0].mxu0 %v4534
      %v4536 = vpop.f32.mrb[0].mxu0
      %v4537 = vadd.f32 %v4407, %v4536
      %v4538 = vpop.f32.mrb[0].mxu0
      %4539 = vmatprep.mubr.f32.mxu0 0.0
      %v4540 = vand.u32 %v4283, 4294901760
      %4541 = vmatmul.mubr.f32.gmra.mrb[0].mxu0 %v4540
      %v4542 = vpop.f32.mrb[0].mxu0
      %v4543 = vadd.f32 %v4417, %v4542
      %v4544 = vpop.f32.mrb[0].mxu0
      %4545 = vmatprep.mubr.f32.mxu0 0.0
      %v4546 = vand.u32 %v4286, 4294901760
      %4547 = vmatmul.mubr.f32.gmra.mrb[0].mxu0 %v4546
      %v4548 = vpop.f32.mrb[0].mxu0
      %v4549 = vadd.f32 %v4427, %v4548
      %v4550 = vpop.f32.mrb[0].mxu0
      %4551 = vmatprep.mubr.f32.mxu0 0.0
      %v4552 = vand.u32 %v4289, 4294901760
      %4553 = vmatmul.mubr.f32.gmra.mrb[0].mxu0 %v4552
      %v4554 = vpop.f32.mrb[0].mxu0
      %v4555 = vadd.f32 %v4437, %v4554
      %v4556 = vpop.f32.mrb[0].mxu0
      %4557 = vdwg.mxu0
      %4558 = vmatprep.subr.mxu0 0.0
      %v4559 = vand.u32 %v4292, 4294901760
      %v4560 = vsub.f32 %v4292, %v4559
      %4561 = vmatpush1.msra.mxu0 %v4560
      %4562 = vmatprep.subr.mxu0 0.0
      %4563 = vmatpush1.msra.mxu0 0.0
      %4564 = vmatprep.subr.mxu0 0.0
      %4565 = vmatpush1.msra.mxu0 0.0
      %4566 = vmatprep.subr.mxu0 0.0
      %4567 = vmatpush1.msra.mxu0 0.0
      %4568 = vmatprep.subr.mxu0 0.0
      %4569 = vmatpush1.msra.mxu0 0.0
      %4570 = vmatprep.subr.mxu0 0.0
      %4571 = vmatpush1.msra.mxu0 0.0
      %4572 = vmatprep.subr.mxu0 0.0
      %4573 = vmatpush1.msra.mxu0 0.0
      %4574 = vmatprep.subr.mxu0 0.0
      %4575 = vmatpush1.msra.mxu0 0.0
      %4576 = vmatprep.subr.mxu0 0.0
      %4577 = vmatpush1.msra.mxu0 0.0
      %4578 = vmatprep.subr.mxu0 0.0
      %4579 = vmatpush1.msra.mxu0 0.0
      %4580 = vmatprep.subr.mxu0 0.0
      %4581 = vmatpush1.msra.mxu0 0.0
      %4582 = vmatprep.subr.mxu0 0.0
      %4583 = vmatpush1.msra.mxu0 0.0
      %4584 = vmatprep.subr.mxu0 0.0
      %4585 = vmatpush1.msra.mxu0 0.0
      %4586 = vmatprep.subr.mxu0 0.0
      %4587 = vmatpush1.msra.mxu0 0.0
      %4588 = vmatprep.subr.mxu0 0.0
      %4589 = vmatpush1.msra.mxu0 0.0
      %4590 = vmatprep.subr.mxu0 0.0
      %4591 = vmatpush1.msra.mxu0 0.0
      %4592 = vmatprep.subr.mxu0 0.0
      %4593 = vmatpush1.msra.mxu0 0.0
      %4594 = vmatprep.subr.mxu0 0.0
      %4595 = vmatpush1.msra.mxu0 0.0
      %4596 = vmatprep.subr.mxu0 0.0
      %4597 = vmatpush1.msra.mxu0 0.0
      %4598 = vmatprep.subr.mxu0 0.0
      %4599 = vmatpush1.msra.mxu0 0.0
      %4600 = vmatprep.subr.mxu0 0.0
      %4601 = vmatpush1.msra.mxu0 0.0
      %4602 = vmatprep.subr.mxu0 0.0
      %4603 = vmatpush1.msra.mxu0 0.0
      %4604 = vmatprep.subr.mxu0 0.0
      %4605 = vmatpush1.msra.mxu0 0.0
      %4606 = vmatprep.subr.mxu0 0.0
      %4607 = vmatpush1.msra.mxu0 0.0
      %4608 = vmatprep.subr.mxu0 0.0
      %4609 = vmatpush1.msra.mxu0 0.0
      %4610 = vmatprep.subr.mxu0 0.0
      %4611 = vmatpush1.msra.mxu0 0.0
      %4612 = vmatprep.subr.mxu0 0.0
      %4613 = vmatpush1.msra.mxu0 0.0
      %4614 = vmatprep.subr.mxu0 0.0
      %4615 = vmatpush1.msra.mxu0 0.0
      %4616 = vmatprep.subr.mxu0 0.0
      %4617 = vmatpush1.msra.mxu0 0.0
      %4618 = vmatprep.subr.mxu0 0.0
      %4619 = vmatpush1.msra.mxu0 0.0
      %4620 = vmatprep.subr.mxu0 0.0
      %4621 = vmatpush1.msra.mxu0 0.0
      %4622 = vmatprep.subr.mxu0 0.0
      %4623 = vmatpush1.msra.mxu0 0.0
      %4624 = vmatprep.mubr.f32.mxu0 0.0
      %v4625 = vand.u32 %v4268, 4294901760
      %v4626 = vsub.f32 %v4268, %v4625
      %4627 = vmatmul.mubr.f32.gmra.mrb[0].mxu0 %v4626
      %v4628 = vpop.f32.mrb[0].mxu0
      %v4629 = vadd.f32 %v4513, %v4628
      %v4630 = vpop.f32.mrb[0].mxu0
      %4631 = vmatprep.mubr.f32.mxu0 0.0
      %v4632 = vand.u32 %v4271, 4294901760
      %v4633 = vsub.f32 %v4271, %v4632
      %4634 = vmatmul.mubr.f32.gmra.mrb[0].mxu0 %v4633
      %v4635 = vpop.f32.mrb[0].mxu0
      %v4636 = vadd.f32 %v4519, %v4635
      %v4637 = vpop.f32.mrb[0].mxu0
      %4638 = vmatprep.mubr.f32.mxu0 0.0
      %v4639 = vand.u32 %v4274, 4294901760
      %v4640 = vsub.f32 %v4274, %v4639
      %4641 = vmatmul.mubr.f32.gmra.mrb[0].mxu0 %v4640
      %v4642 = vpop.f32.mrb[0].mxu0
      %v4643 = vadd.f32 %v4525, %v4642
      %v4644 = vpop.f32.mrb[0].mxu0
      %4645 = vmatprep.mubr.f32.mxu0 0.0
      %v4646 = vand.u32 %v4277, 4294901760
      %v4647 = vsub.f32 %v4277, %v4646
      %4648 = vmatmul.mubr.f32.gmra.mrb[0].mxu0 %v4647
      %v4649 = vpop.f32.mrb[0].mxu0
      %v4650 = vadd.f32 %v4531, %v4649
      %v4651 = vpop.f32.mrb[0].mxu0
      %4652 = vmatprep.mubr.f32.mxu0 0.0
      %v4653 = vand.u32 %v4280, 4294901760
      %v4654 = vsub.f32 %v4280, %v4653
      %4655 = vmatmul.mubr.f32.gmra.mrb[0].mxu0 %v4654
      %v4656 = vpop.f32.mrb[0].mxu0
      %v4657 = vadd.f32 %v4537, %v4656
      %v4658 = vpop.f32.mrb[0].mxu0
      %4659 = vmatprep.mubr.f32.mxu0 0.0
      %v4660 = vand.u32 %v4283, 4294901760
      %v4661 = vsub.f32 %v4283, %v4660
      %4662 = vmatmul.mubr.f32.gmra.mrb[0].mxu0 %v4661
      %v4663 = vpop.f32.mrb[0].mxu0
      %v4664 = vadd.f32 %v4543, %v4663
      %v4665 = vpop.f32.mrb[0].mxu0
      %4666 = vmatprep.mubr.f32.mxu0 0.0
      %v4667 = vand.u32 %v4286, 4294901760
      %v4668 = vsub.f32 %v4286, %v4667
      %4669 = vmatmul.mubr.f32.gmra.mrb[0].mxu0 %v4668
      %v4670 = vpop.f32.mrb[0].mxu0
      %v4671 = vadd.f32 %v4549, %v4670
      %v4672 = vpop.f32.mrb[0].mxu0
      %4673 = vmatprep.mubr.f32.mxu0 0.0
      %v4674 = vand.u32 %v4289, 4294901760
      %v4675 = vsub.f32 %v4289, %v4674
      %4676 = vmatmul.mubr.f32.gmra.mrb[0].mxu0 %v4675
      %v4677 = vpop.f32.mrb[0].mxu0
      %v4678 = vadd.f32 %v4555, %v4677
      %v4679 = vpop.f32.mrb[0].mxu0
      %4680 = vdwg.mxu0
      %4681 = vmatprep.subr.mxu0 0.0
      %v4682 = vand.u32 %v4292, 4294901760
      %4683 = vmatpush1.msra.mxu0 %v4682
      %4684 = vmatprep.subr.mxu0 0.0
      %4685 = vmatpush1.msra.mxu0 0.0
      %4686 = vmatprep.subr.mxu0 0.0
      %4687 = vmatpush1.msra.mxu0 0.0
      %4688 = vmatprep.subr.mxu0 0.0
      %4689 = vmatpush1.msra.mxu0 0.0
      %4690 = vmatprep.subr.mxu0 0.0
      %4691 = vmatpush1.msra.mxu0 0.0
      %4692 = vmatprep.subr.mxu0 0.0
      %4693 = vmatpush1.msra.mxu0 0.0
      %4694 = vmatprep.subr.mxu0 0.0
      %4695 = vmatpush1.msra.mxu0 0.0
      %4696 = vmatprep.subr.mxu0 0.0
      %4697 = vmatpush1.msra.mxu0 0.0
      %4698 = vmatprep.subr.mxu0 0.0
      %4699 = vmatpush1.msra.mxu0 0.0
      %4700 = vmatprep.subr.mxu0 0.0
      %4701 = vmatpush1.msra.mxu0 0.0
      %4702 = vmatprep.subr.mxu0 0.0
      %4703 = vmatpush1.msra.mxu0 0.0
      %4704 = vmatprep.subr.mxu0 0.0
      %4705 = vmatpush1.msra.mxu0 0.0
      %4706 = vmatprep.subr.mxu0 0.0
      %4707 = vmatpush1.msra.mxu0 0.0
      %4708 = vmatprep.subr.mxu0 0.0
      %4709 = vmatpush1.msra.mxu0 0.0
      %4710 = vmatprep.subr.mxu0 0.0
      %4711 = vmatpush1.msra.mxu0 0.0
      %4712 = vmatprep.subr.mxu0 0.0
      %4713 = vmatpush1.msra.mxu0 0.0
      %4714 = vmatprep.subr.mxu0 0.0
      %4715 = vmatpush1.msra.mxu0 0.0
      %4716 = vmatprep.subr.mxu0 0.0
      %4717 = vmatpush1.msra.mxu0 0.0
      %4718 = vmatprep.subr.mxu0 0.0
      %4719 = vmatpush1.msra.mxu0 0.0
      %4720 = vmatprep.subr.mxu0 0.0
      %4721 = vmatpush1.msra.mxu0 0.0
      %4722 = vmatprep.subr.mxu0 0.0
      %4723 = vmatpush1.msra.mxu0 0.0
      %4724 = vmatprep.subr.mxu0 0.0
      %4725 = vmatpush1.msra.mxu0 0.0
      %4726 = vmatprep.subr.mxu0 0.0
      %4727 = vmatpush1.msra.mxu0 0.0
      %4728 = vmatprep.subr.mxu0 0.0
      %4729 = vmatpush1.msra.mxu0 0.0
      %4730 = vmatprep.subr.mxu0 0.0
      %4731 = vmatpush1.msra.mxu0 0.0
      %4732 = vmatprep.subr.mxu0 0.0
      %4733 = vmatpush1.msra.mxu0 0.0
      %4734 = vmatprep.subr.mxu0 0.0
      %4735 = vmatpush1.msra.mxu0 0.0
      %4736 = vmatprep.subr.mxu0 0.0
      %4737 = vmatpush1.msra.mxu0 0.0
      %4738 = vmatprep.subr.mxu0 0.0
      %4739 = vmatpush1.msra.mxu0 0.0
      %4740 = vmatprep.subr.mxu0 0.0
      %4741 = vmatpush1.msra.mxu0 0.0
      %4742 = vmatprep.subr.mxu0 0.0
      %4743 = vmatpush1.msra.mxu0 0.0
      %4744 = vmatprep.subr.mxu0 0.0
      %4745 = vmatpush1.msra.mxu0 0.0
      %4746 = vmatprep.mubr.f32.mxu0 0.0
      %v4747 = vand.u32 %v4268, 4294901760
      %v4748 = vsub.f32 %v4268, %v4747
      %v4749 = vand.u32 %v4748, 4294901760
      %4750 = vmatmul.mubr.f32.gmra.mrb[0].mxu0 %v4749
      %v4751 = vpop.f32.mrb[0].mxu0
      %v4752 = vadd.f32 %v4629, %v4751
      %v4753 = vpop.f32.mrb[0].mxu0
      %4754 = vmatprep.mubr.f32.mxu0 0.0
      %v4755 = vand.u32 %v4271, 4294901760
      %v4756 = vsub.f32 %v4271, %v4755
      %v4757 = vand.u32 %v4756, 4294901760
      %4758 = vmatmul.mubr.f32.gmra.mrb[0].mxu0 %v4757
      %v4759 = vpop.f32.mrb[0].mxu0
      %v4760 = vadd.f32 %v4636, %v4759
      %v4761 = vpop.f32.mrb[0].mxu0
      %4762 = vmatprep.mubr.f32.mxu0 0.0
      %v4763 = vand.u32 %v4274, 4294901760
      %v4764 = vsub.f32 %v4274, %v4763
      %v4765 = vand.u32 %v4764, 4294901760
      %4766 = vmatmul.mubr.f32.gmra.mrb[0].mxu0 %v4765
      %v4767 = vpop.f32.mrb[0].mxu0
      %v4768 = vadd.f32 %v4643, %v4767
      %v4769 = vpop.f32.mrb[0].mxu0
      %4770 = vmatprep.mubr.f32.mxu0 0.0
      %v4771 = vand.u32 %v4277, 4294901760
      %v4772 = vsub.f32 %v4277, %v4771
      %v4773 = vand.u32 %v4772, 4294901760
      %4774 = vmatmul.mubr.f32.gmra.mrb[0].mxu0 %v4773
      %v4775 = vpop.f32.mrb[0].mxu0
      %v4776 = vadd.f32 %v4650, %v4775
      %v4777 = vpop.f32.mrb[0].mxu0
      %4778 = vmatprep.mubr.f32.mxu0 0.0
      %v4779 = vand.u32 %v4280, 4294901760
      %v4780 = vsub.f32 %v4280, %v4779
      %v4781 = vand.u32 %v4780, 4294901760
      %4782 = vmatmul.mubr.f32.gmra.mrb[0].mxu0 %v4781
      %v4783 = vpop.f32.mrb[0].mxu0
      %v4784 = vadd.f32 %v4657, %v4783
      %v4785 = vpop.f32.mrb[0].mxu0
      %4786 = vmatprep.mubr.f32.mxu0 0.0
      %v4787 = vand.u32 %v4283, 4294901760
      %v4788 = vsub.f32 %v4283, %v4787
      %v4789 = vand.u32 %v4788, 4294901760
      %4790 = vmatmul.mubr.f32.gmra.mrb[0].mxu0 %v4789
      %v4791 = vpop.f32.mrb[0].mxu0
      %v4792 = vadd.f32 %v4664, %v4791
      %v4793 = vpop.f32.mrb[0].mxu0
      %4794 = vmatprep.mubr.f32.mxu0 0.0
      %v4795 = vand.u32 %v4286, 4294901760
      %v4796 = vsub.f32 %v4286, %v4795
      %v4797 = vand.u32 %v4796, 4294901760
      %4798 = vmatmul.mubr.f32.gmra.mrb[0].mxu0 %v4797
      %v4799 = vpop.f32.mrb[0].mxu0
      %v4800 = vadd.f32 %v4671, %v4799
      %v4801 = vpop.f32.mrb[0].mxu0
      %4802 = vmatprep.mubr.f32.mxu0 0.0
      %v4803 = vand.u32 %v4289, 4294901760
      %v4804 = vsub.f32 %v4289, %v4803
      %v4805 = vand.u32 %v4804, 4294901760
      %4806 = vmatmul.mubr.f32.gmra.mrb[0].mxu0 %v4805
      %v4807 = vpop.f32.mrb[0].mxu0
      %v4808 = vadd.f32 %v4678, %v4807
      %v4809 = vpop.f32.mrb[0].mxu0
      %4810 = vdwg.mxu0
      %4811 = vmatprep.subr.mxu0 0.0
      %v4812 = vand.u32 %v4292, 4294901760
      %v4813 = vsub.f32 %v4292, %v4812
      %v4814 = vand.u32 %v4813, 4294901760
      %4815 = vmatpush1.msra.mxu0 %v4814
      %4816 = vmatprep.subr.mxu0 0.0
      %4817 = vmatpush1.msra.mxu0 0.0
      %4818 = vmatprep.subr.mxu0 0.0
      %4819 = vmatpush1.msra.mxu0 0.0
      %4820 = vmatprep.subr.mxu0 0.0
      %4821 = vmatpush1.msra.mxu0 0.0
      %4822 = vmatprep.subr.mxu0 0.0
      %4823 = vmatpush1.msra.mxu0 0.0
      %4824 = vmatprep.subr.mxu0 0.0
      %4825 = vmatpush1.msra.mxu0 0.0
      %4826 = vmatprep.subr.mxu0 0.0
      %4827 = vmatpush1.msra.mxu0 0.0
      %4828 = vmatprep.subr.mxu0 0.0
      %4829 = vmatpush1.msra.mxu0 0.0
      %4830 = vmatprep.subr.mxu0 0.0
      %4831 = vmatpush1.msra.mxu0 0.0
      %4832 = vmatprep.subr.mxu0 0.0
      %4833 = vmatpush1.msra.mxu0 0.0
      %4834 = vmatprep.subr.mxu0 0.0
      %4835 = vmatpush1.msra.mxu0 0.0
      %4836 = vmatprep.subr.mxu0 0.0
      %4837 = vmatpush1.msra.mxu0 0.0
      %4838 = vmatprep.subr.mxu0 0.0
      %4839 = vmatpush1.msra.mxu0 0.0
      %4840 = vmatprep.subr.mxu0 0.0
      %4841 = vmatpush1.msra.mxu0 0.0
      %4842 = vmatprep.subr.mxu0 0.0
      %4843 = vmatpush1.msra.mxu0 0.0
      %4844 = vmatprep.subr.mxu0 0.0
      %4845 = vmatpush1.msra.mxu0 0.0
      %4846 = vmatprep.subr.mxu0 0.0
      %4847 = vmatpush1.msra.mxu0 0.0
      %4848 = vmatprep.subr.mxu0 0.0
      %4849 = vmatpush1.msra.mxu0 0.0
      %4850 = vmatprep.subr.mxu0 0.0
      %4851 = vmatpush1.msra.mxu0 0.0
      %4852 = vmatprep.subr.mxu0 0.0
      %4853 = vmatpush1.msra.mxu0 0.0
      %4854 = vmatprep.subr.mxu0 0.0
      %4855 = vmatpush1.msra.mxu0 0.0
      %4856 = vmatprep.subr.mxu0 0.0
      %4857 = vmatpush1.msra.mxu0 0.0
      %4858 = vmatprep.subr.mxu0 0.0
      %4859 = vmatpush1.msra.mxu0 0.0
      %4860 = vmatprep.subr.mxu0 0.0
      %4861 = vmatpush1.msra.mxu0 0.0
      %4862 = vmatprep.subr.mxu0 0.0
      %4863 = vmatpush1.msra.mxu0 0.0
      %4864 = vmatprep.subr.mxu0 0.0
      %4865 = vmatpush1.msra.mxu0 0.0
      %4866 = vmatprep.subr.mxu0 0.0
      %4867 = vmatpush1.msra.mxu0 0.0
      %4868 = vmatprep.subr.mxu0 0.0
      %4869 = vmatpush1.msra.mxu0 0.0
      %4870 = vmatprep.subr.mxu0 0.0
      %4871 = vmatpush1.msra.mxu0 0.0
      %4872 = vmatprep.subr.mxu0 0.0
      %4873 = vmatpush1.msra.mxu0 0.0
      %4874 = vmatprep.subr.mxu0 0.0
      %4875 = vmatpush1.msra.mxu0 0.0
      %4876 = vmatprep.subr.mxu0 0.0
      %4877 = vmatpush1.msra.mxu0 0.0
      %4878 = vmatprep.mubr.f32.mxu0 0.0
      %v4879 = vand.u32 %v4268, 4294901760
      %4880 = vmatmul.mubr.f32.gmra.mrb[0].mxu0 %v4879
      %v4881 = vpop.f32.mrb[0].mxu0
      %v4882 = vadd.f32 %v4752, %v4881
      %v4883 = vpop.f32.mrb[0].mxu0
      %4884 = vmatprep.mubr.f32.mxu0 0.0
      %v4885 = vand.u32 %v4271, 4294901760
      %4886 = vmatmul.mubr.f32.gmra.mrb[0].mxu0 %v4885
      %v4887 = vpop.f32.mrb[0].mxu0
      %v4888 = vadd.f32 %v4760, %v4887
      %v4889 = vpop.f32.mrb[0].mxu0
      %4890 = vmatprep.mubr.f32.mxu0 0.0
      %v4891 = vand.u32 %v4274, 4294901760
      %4892 = vmatmul.mubr.f32.gmra.mrb[0].mxu0 %v4891
      %v4893 = vpop.f32.mrb[0].mxu0
      %v4894 = vadd.f32 %v4768, %v4893
      %v4895 = vpop.f32.mrb[0].mxu0
      %4896 = vmatprep.mubr.f32.mxu0 0.0
      %v4897 = vand.u32 %v4277, 4294901760
      %4898 = vmatmul.mubr.f32.gmra.mrb[0].mxu0 %v4897
      %v4899 = vpop.f32.mrb[0].mxu0
      %v4900 = vadd.f32 %v4776, %v4899
      %v4901 = vpop.f32.mrb[0].mxu0
      %4902 = vmatprep.mubr.f32.mxu0 0.0
      %v4903 = vand.u32 %v4280, 4294901760
      %4904 = vmatmul.mubr.f32.gmra.mrb[0].mxu0 %v4903
      %v4905 = vpop.f32.mrb[0].mxu0
      %v4906 = vadd.f32 %v4784, %v4905
      %v4907 = vpop.f32.mrb[0].mxu0
      %4908 = vmatprep.mubr.f32.mxu0 0.0
      %v4909 = vand.u32 %v4283, 4294901760
      %4910 = vmatmul.mubr.f32.gmra.mrb[0].mxu0 %v4909
      %v4911 = vpop.f32.mrb[0].mxu0
      %v4912 = vadd.f32 %v4792, %v4911
      %v4913 = vpop.f32.mrb[0].mxu0
      %4914 = vmatprep.mubr.f32.mxu0 0.0
      %v4915 = vand.u32 %v4286, 4294901760
      %4916 = vmatmul.mubr.f32.gmra.mrb[0].mxu0 %v4915
      %v4917 = vpop.f32.mrb[0].mxu0
      %v4918 = vadd.f32 %v4800, %v4917
      %v4919 = vpop.f32.mrb[0].mxu0
      %4920 = vmatprep.mubr.f32.mxu0 0.0
      %v4921 = vand.u32 %v4289, 4294901760
      %4922 = vmatmul.mubr.f32.gmra.mrb[0].mxu0 %v4921
      %v4923 = vpop.f32.mrb[0].mxu0
      %v4924 = vadd.f32 %v4808, %v4923
      %v4925 = vpop.f32.mrb[0].mxu0
      %4926 = vdwg.mxu0
      %4927 = vmatprep.subr.mxu0 0.0
      %v4928 = vand.u32 %v4292, 4294901760
      %4929 = vmatpush1.msra.mxu0 %v4928
      %4930 = vmatprep.subr.mxu0 0.0
      %4931 = vmatpush1.msra.mxu0 0.0
      %4932 = vmatprep.subr.mxu0 0.0
      %4933 = vmatpush1.msra.mxu0 0.0
      %4934 = vmatprep.subr.mxu0 0.0
      %4935 = vmatpush1.msra.mxu0 0.0
      %4936 = vmatprep.subr.mxu0 0.0
      %4937 = vmatpush1.msra.mxu0 0.0
      %4938 = vmatprep.subr.mxu0 0.0
      %4939 = vmatpush1.msra.mxu0 0.0
      %4940 = vmatprep.subr.mxu0 0.0
      %4941 = vmatpush1.msra.mxu0 0.0
      %4942 = vmatprep.subr.mxu0 0.0
      %4943 = vmatpush1.msra.mxu0 0.0
      %4944 = vmatprep.subr.mxu0 0.0
      %4945 = vmatpush1.msra.mxu0 0.0
      %4946 = vmatprep.subr.mxu0 0.0
      %4947 = vmatpush1.msra.mxu0 0.0
      %4948 = vmatprep.subr.mxu0 0.0
      %4949 = vmatpush1.msra.mxu0 0.0
      %4950 = vmatprep.subr.mxu0 0.0
      %4951 = vmatpush1.msra.mxu0 0.0
      %4952 = vmatprep.subr.mxu0 0.0
      %4953 = vmatpush1.msra.mxu0 0.0
      %4954 = vmatprep.subr.mxu0 0.0
      %4955 = vmatpush1.msra.mxu0 0.0
      %4956 = vmatprep.subr.mxu0 0.0
      %4957 = vmatpush1.msra.mxu0 0.0
      %4958 = vmatprep.subr.mxu0 0.0
      %4959 = vmatpush1.msra.mxu0 0.0
      %4960 = vmatprep.subr.mxu0 0.0
      %4961 = vmatpush1.msra.mxu0 0.0
      %4962 = vmatprep.subr.mxu0 0.0
      %4963 = vmatpush1.msra.mxu0 0.0
      %4964 = vmatprep.subr.mxu0 0.0
      %4965 = vmatpush1.msra.mxu0 0.0
      %4966 = vmatprep.subr.mxu0 0.0
      %4967 = vmatpush1.msra.mxu0 0.0
      %4968 = vmatprep.subr.mxu0 0.0
      %4969 = vmatpush1.msra.mxu0 0.0
      %4970 = vmatprep.subr.mxu0 0.0
      %4971 = vmatpush1.msra.mxu0 0.0
      %4972 = vmatprep.subr.mxu0 0.0
      %4973 = vmatpush1.msra.mxu0 0.0
      %4974 = vmatprep.subr.mxu0 0.0
      %4975 = vmatpush1.msra.mxu0 0.0
      %4976 = vmatprep.subr.mxu0 0.0
      %4977 = vmatpush1.msra.mxu0 0.0
      %4978 = vmatprep.subr.mxu0 0.0
      %4979 = vmatpush1.msra.mxu0 0.0
      %4980 = vmatprep.subr.mxu0 0.0
      %4981 = vmatpush1.msra.mxu0 0.0
      %4982 = vmatprep.subr.mxu0 0.0
      %4983 = vmatpush1.msra.mxu0 0.0
      %4984 = vmatprep.subr.mxu0 0.0
      %4985 = vmatpush1.msra.mxu0 0.0
      %4986 = vmatprep.subr.mxu0 0.0
      %4987 = vmatpush1.msra.mxu0 0.0
      %4988 = vmatprep.subr.mxu0 0.0
      %4989 = vmatpush1.msra.mxu0 0.0
      %4990 = vmatprep.subr.mxu0 0.0
      %4991 = vmatpush1.msra.mxu0 0.0
      %4992 = vmatprep.mubr.f32.mxu0 0.0
      %v4993 = vand.u32 %v4268, 4294901760
      %4994 = vmatmul.mubr.f32.gmra.mrb[0].mxu0 %v4993
      %v4995 = vpop.f32.mrb[0].mxu0
      %v4996 = vadd.f32 %v4882, %v4995
      %v4997 = vpop.f32.mrb[0].mxu0
      %4998 = vmatprep.mubr.f32.mxu0 0.0
      %v4999 = vand.u32 %v4271, 4294901760
      %5000 = vmatmul.mubr.f32.gmra.mrb[0].mxu0 %v4999
      %v5001 = vpop.f32.mrb[0].mxu0
      %v5002 = vadd.f32 %v4888, %v5001
      %v5003 = vpop.f32.mrb[0].mxu0
      %5004 = vmatprep.mubr.f32.mxu0 0.0
      %v5005 = vand.u32 %v4274, 4294901760
      %5006 = vmatmul.mubr.f32.gmra.mrb[0].mxu0 %v5005
      %v5007 = vpop.f32.mrb[0].mxu0
      %v5008 = vadd.f32 %v4894, %v5007
      %v5009 = vpop.f32.mrb[0].mxu0
      %5010 = vmatprep.mubr.f32.mxu0 0.0
      %v5011 = vand.u32 %v4277, 4294901760
      %5012 = vmatmul.mubr.f32.gmra.mrb[0].mxu0 %v5011
      %v5013 = vpop.f32.mrb[0].mxu0
      %v5014 = vadd.f32 %v4900, %v5013
      %v5015 = vpop.f32.mrb[0].mxu0
      %5016 = vmatprep.mubr.f32.mxu0 0.0
      %v5017 = vand.u32 %v4280, 4294901760
      %5018 = vmatmul.mubr.f32.gmra.mrb[0].mxu0 %v5017
      %v5019 = vpop.f32.mrb[0].mxu0
      %v5020 = vadd.f32 %v4906, %v5019
      %v5021 = vpop.f32.mrb[0].mxu0
      %5022 = vmatprep.mubr.f32.mxu0 0.0
      %v5023 = vand.u32 %v4283, 4294901760
      %5024 = vmatmul.mubr.f32.gmra.mrb[0].mxu0 %v5023
      %v5025 = vpop.f32.mrb[0].mxu0
      %v5026 = vadd.f32 %v4912, %v5025
      %v5027 = vpop.f32.mrb[0].mxu0
      %5028 = vmatprep.mubr.f32.mxu0 0.0
      %v5029 = vand.u32 %v4286, 4294901760
      %5030 = vmatmul.mubr.f32.gmra.mrb[0].mxu0 %v5029
      %v5031 = vpop.f32.mrb[0].mxu0
      %v5032 = vadd.f32 %v4918, %v5031
      %v5033 = vpop.f32.mrb[0].mxu0
      %5034 = vmatprep.mubr.f32.mxu0 0.0
      %v5035 = vand.u32 %v4289, 4294901760
      %5036 = vmatmul.mubr.f32.gmra.mrb[0].mxu0 %v5035
      %v5037 = vpop.f32.mrb[0].mxu0
      %v5038 = vadd.f32 %v4924, %v5037
      %v5039 = vpop.f32.mrb[0].mxu0
      %5040 = vdwg.mxu0
      %v5041 = vadd.f32 %v4249, %v4996
      %v5042 = vadd.f32 %v4250, %v5002
      %v5043 = vadd.f32 %v4251, %v5008
      %v5044 = vadd.f32 %v4252, %v5014
      %v5045 = vadd.f32 %v4253, %v5020
      %v5046 = vadd.f32 %v4254, %v5026
      %v5047 = vadd.f32 %v4255, %v5032
      %v5048 = vadd.f32 %v4256, %v5038
      %s5049 = scalar_lea.vmem %s291, 16
      %v5050 = vld [vmem:[%s5049] sm:$0xff]
      %v5051 = vld [vmem:[%s5049 + $0x10] sm:$0xff]
      %v5052 = vld [vmem:[%s5049 + $0x20] sm:$0xff]
      %v5053 = vld [vmem:[%s5049 + $0x30] sm:$0xff]
      %v5054 = vld [vmem:[%s5049 + $0x40] sm:$0xff]
      %v5055 = vld [vmem:[%s5049 + $0x50] sm:$0xff]
      %v5056 = vld [vmem:[%s5049 + $0x60] sm:$0xff]
      %v5057 = vld [vmem:[%s5049 + $0x70] sm:$0xff]
      %s5058 = scalar_lea.vmem %s4, 24
      %v5059 = vld [vmem:[%s5058] sm:$0xf]
      %v5061 = vsel %vm331, %v5050, 0
      %v5064 = vsel %vm331, %v5051, 0
      %v5067 = vsel %vm331, %v5052, 0
      %v5070 = vsel %vm331, %v5053, 0
      %v5073 = vsel %vm331, %v5054, 0
      %v5076 = vsel %vm331, %v5055, 0
      %v5079 = vsel %vm331, %v5056, 0
      %v5082 = vsel %vm331, %v5057, 0
      %v5085 = vsel %vm356, %v5059, 0
      %5087 = vmatprep.subr.mxu0 0.0
      %v5088 = vand.u32 %v5085, 4294901760
      %5089 = vmatpush1.msra.mxu0 %v5088
      %5090 = vmatprep.subr.mxu0 0.0
      %5091 = vmatpush1.msra.mxu0 0.0
      %5092 = vmatprep.subr.mxu0 0.0
      %5093 = vmatpush1.msra.mxu0 0.0
      %5094 = vmatprep.subr.mxu0 0.0
      %5095 = vmatpush1.msra.mxu0 0.0
      %5096 = vmatprep.subr.mxu0 0.0
      %5097 = vmatpush1.msra.mxu0 0.0
      %5098 = vmatprep.subr.mxu0 0.0
      %5099 = vmatpush1.msra.mxu0 0.0
      %5100 = vmatprep.subr.mxu0 0.0
      %5101 = vmatpush1.msra.mxu0 0.0
      %5102 = vmatprep.subr.mxu0 0.0
      %5103 = vmatpush1.msra.mxu0 0.0
      %5104 = vmatprep.subr.mxu0 0.0
      %5105 = vmatpush1.msra.mxu0 0.0
      %5106 = vmatprep.subr.mxu0 0.0
      %5107 = vmatpush1.msra.mxu0 0.0
      %5108 = vmatprep.subr.mxu0 0.0
      %5109 = vmatpush1.msra.mxu0 0.0
      %5110 = vmatprep.subr.mxu0 0.0
      %5111 = vmatpush1.msra.mxu0 0.0
      %5112 = vmatprep.subr.mxu0 0.0
      %5113 = vmatpush1.msra.mxu0 0.0
      %5114 = vmatprep.subr.mxu0 0.0
      %5115 = vmatpush1.msra.mxu0 0.0
      %5116 = vmatprep.subr.mxu0 0.0
      %5117 = vmatpush1.msra.mxu0 0.0
      %5118 = vmatprep.subr.mxu0 0.0
      %5119 = vmatpush1.msra.mxu0 0.0
      %5120 = vmatprep.subr.mxu0 0.0
      %5121 = vmatpush1.msra.mxu0 0.0
      %5122 = vmatprep.subr.mxu0 0.0
      %5123 = vmatpush1.msra.mxu0 0.0
      %5124 = vmatprep.subr.mxu0 0.0
      %5125 = vmatpush1.msra.mxu0 0.0
      %5126 = vmatprep.subr.mxu0 0.0
      %5127 = vmatpush1.msra.mxu0 0.0
      %5128 = vmatprep.subr.mxu0 0.0
      %5129 = vmatpush1.msra.mxu0 0.0
      %5130 = vmatprep.subr.mxu0 0.0
      %5131 = vmatpush1.msra.mxu0 0.0
      %5132 = vmatprep.subr.mxu0 0.0
      %5133 = vmatpush1.msra.mxu0 0.0
      %5134 = vmatprep.subr.mxu0 0.0
      %5135 = vmatpush1.msra.mxu0 0.0
      %5136 = vmatprep.subr.mxu0 0.0
      %5137 = vmatpush1.msra.mxu0 0.0
      %5138 = vmatprep.subr.mxu0 0.0
      %5139 = vmatpush1.msra.mxu0 0.0
      %5140 = vmatprep.subr.mxu0 0.0
      %5141 = vmatpush1.msra.mxu0 0.0
      %5142 = vmatprep.subr.mxu0 0.0
      %5143 = vmatpush1.msra.mxu0 0.0
      %5144 = vmatprep.subr.mxu0 0.0
      %5145 = vmatpush1.msra.mxu0 0.0
      %5146 = vmatprep.subr.mxu0 0.0
      %5147 = vmatpush1.msra.mxu0 0.0
      %5148 = vmatprep.subr.mxu0 0.0
      %5149 = vmatpush1.msra.mxu0 0.0
      %5150 = vmatprep.subr.mxu0 0.0
      %5151 = vmatpush1.msra.mxu0 0.0
      %5152 = vmatprep.mubr.f32.mxu0 0.0
      %v5153 = vand.u32 %v5061, 4294901760
      %v5154 = vsub.f32 %v5061, %v5153
      %v5155 = vand.u32 %v5154, 4294901760
      %v5156 = vsub.f32 %v5154, %v5155
      %v5157 = vand.u32 %v5156, 4294901760
      %5158 = vmatmul.mubr.f32.gmra.mrb[0].mxu0 %v5157
      %v5159 = vpop.f32.mrb[0].mxu0
      %v5160 = vadd.f32 0.0, %v5159
      %v5161 = vpop.f32.mrb[0].mxu0
      %5162 = vmatprep.mubr.f32.mxu0 0.0
      %v5163 = vand.u32 %v5064, 4294901760
      %v5164 = vsub.f32 %v5064, %v5163
      %v5165 = vand.u32 %v5164, 4294901760
      %v5166 = vsub.f32 %v5164, %v5165
      %v5167 = vand.u32 %v5166, 4294901760
      %5168 = vmatmul.mubr.f32.gmra.mrb[0].mxu0 %v5167
      %v5169 = vpop.f32.mrb[0].mxu0
      %v5170 = vadd.f32 0.0, %v5169
      %v5171 = vpop.f32.mrb[0].mxu0
      %5172 = vmatprep.mubr.f32.mxu0 0.0
      %v5173 = vand.u32 %v5067, 4294901760
      %v5174 = vsub.f32 %v5067, %v5173
      %v5175 = vand.u32 %v5174, 4294901760
      %v5176 = vsub.f32 %v5174, %v5175
      %v5177 = vand.u32 %v5176, 4294901760
      %5178 = vmatmul.mubr.f32.gmra.mrb[0].mxu0 %v5177
      %v5179 = vpop.f32.mrb[0].mxu0
      %v5180 = vadd.f32 0.0, %v5179
      %v5181 = vpop.f32.mrb[0].mxu0
      %5182 = vmatprep.mubr.f32.mxu0 0.0
      %v5183 = vand.u32 %v5070, 4294901760
      %v5184 = vsub.f32 %v5070, %v5183
      %v5185 = vand.u32 %v5184, 4294901760
      %v5186 = vsub.f32 %v5184, %v5185
      %v5187 = vand.u32 %v5186, 4294901760
      %5188 = vmatmul.mubr.f32.gmra.mrb[0].mxu0 %v5187
      %v5189 = vpop.f32.mrb[0].mxu0
      %v5190 = vadd.f32 0.0, %v5189
      %v5191 = vpop.f32.mrb[0].mxu0
      %5192 = vmatprep.mubr.f32.mxu0 0.0
      %v5193 = vand.u32 %v5073, 4294901760
      %v5194 = vsub.f32 %v5073, %v5193
      %v5195 = vand.u32 %v5194, 4294901760
      %v5196 = vsub.f32 %v5194, %v5195
      %v5197 = vand.u32 %v5196, 4294901760
      %5198 = vmatmul.mubr.f32.gmra.mrb[0].mxu0 %v5197
      %v5199 = vpop.f32.mrb[0].mxu0
      %v5200 = vadd.f32 0.0, %v5199
      %v5201 = vpop.f32.mrb[0].mxu0
      %5202 = vmatprep.mubr.f32.mxu0 0.0
      %v5203 = vand.u32 %v5076, 4294901760
      %v5204 = vsub.f32 %v5076, %v5203
      %v5205 = vand.u32 %v5204, 4294901760
      %v5206 = vsub.f32 %v5204, %v5205
      %v5207 = vand.u32 %v5206, 4294901760
      %5208 = vmatmul.mubr.f32.gmra.mrb[0].mxu0 %v5207
      %v5209 = vpop.f32.mrb[0].mxu0
      %v5210 = vadd.f32 0.0, %v5209
      %v5211 = vpop.f32.mrb[0].mxu0
      %5212 = vmatprep.mubr.f32.mxu0 0.0
      %v5213 = vand.u32 %v5079, 4294901760
      %v5214 = vsub.f32 %v5079, %v5213
      %v5215 = vand.u32 %v5214, 4294901760
      %v5216 = vsub.f32 %v5214, %v5215
      %v5217 = vand.u32 %v5216, 4294901760
      %5218 = vmatmul.mubr.f32.gmra.mrb[0].mxu0 %v5217
      %v5219 = vpop.f32.mrb[0].mxu0
      %v5220 = vadd.f32 0.0, %v5219
      %v5221 = vpop.f32.mrb[0].mxu0
      %5222 = vmatprep.mubr.f32.mxu0 0.0
      %v5223 = vand.u32 %v5082, 4294901760
      %v5224 = vsub.f32 %v5082, %v5223
      %v5225 = vand.u32 %v5224, 4294901760
      %v5226 = vsub.f32 %v5224, %v5225
      %v5227 = vand.u32 %v5226, 4294901760
      %5228 = vmatmul.mubr.f32.gmra.mrb[0].mxu0 %v5227
      %v5229 = vpop.f32.mrb[0].mxu0
      %v5230 = vadd.f32 0.0, %v5229
      %v5231 = vpop.f32.mrb[0].mxu0
      %5232 = vdwg.mxu0
      %5233 = vmatprep.subr.mxu0 0.0
      %v5234 = vand.u32 %v5085, 4294901760
      %v5235 = vsub.f32 %v5085, %v5234
      %v5236 = vand.u32 %v5235, 4294901760
      %v5237 = vsub.f32 %v5235, %v5236
      %v5238 = vand.u32 %v5237, 4294901760
      %5239 = vmatpush1.msra.mxu0 %v5238
      %5240 = vmatprep.subr.mxu0 0.0
      %5241 = vmatpush1.msra.mxu0 0.0
      %5242 = vmatprep.subr.mxu0 0.0
      %5243 = vmatpush1.msra.mxu0 0.0
      %5244 = vmatprep.subr.mxu0 0.0
      %5245 = vmatpush1.msra.mxu0 0.0
      %5246 = vmatprep.subr.mxu0 0.0
      %5247 = vmatpush1.msra.mxu0 0.0
      %5248 = vmatprep.subr.mxu0 0.0
      %5249 = vmatpush1.msra.mxu0 0.0
      %5250 = vmatprep.subr.mxu0 0.0
      %5251 = vmatpush1.msra.mxu0 0.0
      %5252 = vmatprep.subr.mxu0 0.0
      %5253 = vmatpush1.msra.mxu0 0.0
      %5254 = vmatprep.subr.mxu0 0.0
      %5255 = vmatpush1.msra.mxu0 0.0
      %5256 = vmatprep.subr.mxu0 0.0
      %5257 = vmatpush1.msra.mxu0 0.0
      %5258 = vmatprep.subr.mxu0 0.0
      %5259 = vmatpush1.msra.mxu0 0.0
      %5260 = vmatprep.subr.mxu0 0.0
      %5261 = vmatpush1.msra.mxu0 0.0
      %5262 = vmatprep.subr.mxu0 0.0
      %5263 = vmatpush1.msra.mxu0 0.0
      %5264 = vmatprep.subr.mxu0 0.0
      %5265 = vmatpush1.msra.mxu0 0.0
      %5266 = vmatprep.subr.mxu0 0.0
      %5267 = vmatpush1.msra.mxu0 0.0
      %5268 = vmatprep.subr.mxu0 0.0
      %5269 = vmatpush1.msra.mxu0 0.0
      %5270 = vmatprep.subr.mxu0 0.0
      %5271 = vmatpush1.msra.mxu0 0.0
      %5272 = vmatprep.subr.mxu0 0.0
      %5273 = vmatpush1.msra.mxu0 0.0
      %5274 = vmatprep.subr.mxu0 0.0
      %5275 = vmatpush1.msra.mxu0 0.0
      %5276 = vmatprep.subr.mxu0 0.0
      %5277 = vmatpush1.msra.mxu0 0.0
      %5278 = vmatprep.subr.mxu0 0.0
      %5279 = vmatpush1.msra.mxu0 0.0
      %5280 = vmatprep.subr.mxu0 0.0
      %5281 = vmatpush1.msra.mxu0 0.0
      %5282 = vmatprep.subr.mxu0 0.0
      %5283 = vmatpush1.msra.mxu0 0.0
      %5284 = vmatprep.subr.mxu0 0.0
      %5285 = vmatpush1.msra.mxu0 0.0
      %5286 = vmatprep.subr.mxu0 0.0
      %5287 = vmatpush1.msra.mxu0 0.0
      %5288 = vmatprep.subr.mxu0 0.0
      %5289 = vmatpush1.msra.mxu0 0.0
      %5290 = vmatprep.subr.mxu0 0.0
      %5291 = vmatpush1.msra.mxu0 0.0
      %5292 = vmatprep.subr.mxu0 0.0
      %5293 = vmatpush1.msra.mxu0 0.0
      %5294 = vmatprep.subr.mxu0 0.0
      %5295 = vmatpush1.msra.mxu0 0.0
      %5296 = vmatprep.subr.mxu0 0.0
      %5297 = vmatpush1.msra.mxu0 0.0
      %5298 = vmatprep.subr.mxu0 0.0
      %5299 = vmatpush1.msra.mxu0 0.0
      %5300 = vmatprep.subr.mxu0 0.0
      %5301 = vmatpush1.msra.mxu0 0.0
      %5302 = vmatprep.mubr.f32.mxu0 0.0
      %v5303 = vand.u32 %v5061, 4294901760
      %5304 = vmatmul.mubr.f32.gmra.mrb[0].mxu0 %v5303
      %v5305 = vpop.f32.mrb[0].mxu0
      %v5306 = vadd.f32 %v5160, %v5305
      %v5307 = vpop.f32.mrb[0].mxu0
      %5308 = vmatprep.mubr.f32.mxu0 0.0
      %v5309 = vand.u32 %v5064, 4294901760
      %5310 = vmatmul.mubr.f32.gmra.mrb[0].mxu0 %v5309
      %v5311 = vpop.f32.mrb[0].mxu0
      %v5312 = vadd.f32 %v5170, %v5311
      %v5313 = vpop.f32.mrb[0].mxu0
      %5314 = vmatprep.mubr.f32.mxu0 0.0
      %v5315 = vand.u32 %v5067, 4294901760
      %5316 = vmatmul.mubr.f32.gmra.mrb[0].mxu0 %v5315
      %v5317 = vpop.f32.mrb[0].mxu0
      %v5318 = vadd.f32 %v5180, %v5317
      %v5319 = vpop.f32.mrb[0].mxu0
      %5320 = vmatprep.mubr.f32.mxu0 0.0
      %v5321 = vand.u32 %v5070, 4294901760
      %5322 = vmatmul.mubr.f32.gmra.mrb[0].mxu0 %v5321
      %v5323 = vpop.f32.mrb[0].mxu0
      %v5324 = vadd.f32 %v5190, %v5323
      %v5325 = vpop.f32.mrb[0].mxu0
      %5326 = vmatprep.mubr.f32.mxu0 0.0
      %v5327 = vand.u32 %v5073, 4294901760
      %5328 = vmatmul.mubr.f32.gmra.mrb[0].mxu0 %v5327
      %v5329 = vpop.f32.mrb[0].mxu0
      %v5330 = vadd.f32 %v5200, %v5329
      %v5331 = vpop.f32.mrb[0].mxu0
      %5332 = vmatprep.mubr.f32.mxu0 0.0
      %v5333 = vand.u32 %v5076, 4294901760
      %5334 = vmatmul.mubr.f32.gmra.mrb[0].mxu0 %v5333
      %v5335 = vpop.f32.mrb[0].mxu0
      %v5336 = vadd.f32 %v5210, %v5335
      %v5337 = vpop.f32.mrb[0].mxu0
      %5338 = vmatprep.mubr.f32.mxu0 0.0
      %v5339 = vand.u32 %v5079, 4294901760
      %5340 = vmatmul.mubr.f32.gmra.mrb[0].mxu0 %v5339
      %v5341 = vpop.f32.mrb[0].mxu0
      %v5342 = vadd.f32 %v5220, %v5341
      %v5343 = vpop.f32.mrb[0].mxu0
      %5344 = vmatprep.mubr.f32.mxu0 0.0
      %v5345 = vand.u32 %v5082, 4294901760
      %5346 = vmatmul.mubr.f32.gmra.mrb[0].mxu0 %v5345
      %v5347 = vpop.f32.mrb[0].mxu0
      %v5348 = vadd.f32 %v5230, %v5347
      %v5349 = vpop.f32.mrb[0].mxu0
      %5350 = vdwg.mxu0
      %5351 = vmatprep.subr.mxu0 0.0
      %v5352 = vand.u32 %v5085, 4294901760
      %v5353 = vsub.f32 %v5085, %v5352
      %5354 = vmatpush1.msra.mxu0 %v5353
      %5355 = vmatprep.subr.mxu0 0.0
      %5356 = vmatpush1.msra.mxu0 0.0
      %5357 = vmatprep.subr.mxu0 0.0
      %5358 = vmatpush1.msra.mxu0 0.0
      %5359 = vmatprep.subr.mxu0 0.0
      %5360 = vmatpush1.msra.mxu0 0.0
      %5361 = vmatprep.subr.mxu0 0.0
      %5362 = vmatpush1.msra.mxu0 0.0
      %5363 = vmatprep.subr.mxu0 0.0
      %5364 = vmatpush1.msra.mxu0 0.0
      %5365 = vmatprep.subr.mxu0 0.0
      %5366 = vmatpush1.msra.mxu0 0.0
      %5367 = vmatprep.subr.mxu0 0.0
      %5368 = vmatpush1.msra.mxu0 0.0
      %5369 = vmatprep.subr.mxu0 0.0
      %5370 = vmatpush1.msra.mxu0 0.0
      %5371 = vmatprep.subr.mxu0 0.0
      %5372 = vmatpush1.msra.mxu0 0.0
      %5373 = vmatprep.subr.mxu0 0.0
      %5374 = vmatpush1.msra.mxu0 0.0
      %5375 = vmatprep.subr.mxu0 0.0
      %5376 = vmatpush1.msra.mxu0 0.0
      %5377 = vmatprep.subr.mxu0 0.0
      %5378 = vmatpush1.msra.mxu0 0.0
      %5379 = vmatprep.subr.mxu0 0.0
      %5380 = vmatpush1.msra.mxu0 0.0
      %5381 = vmatprep.subr.mxu0 0.0
      %5382 = vmatpush1.msra.mxu0 0.0
      %5383 = vmatprep.subr.mxu0 0.0
      %5384 = vmatpush1.msra.mxu0 0.0
      %5385 = vmatprep.subr.mxu0 0.0
      %5386 = vmatpush1.msra.mxu0 0.0
      %5387 = vmatprep.subr.mxu0 0.0
      %5388 = vmatpush1.msra.mxu0 0.0
      %5389 = vmatprep.subr.mxu0 0.0
      %5390 = vmatpush1.msra.mxu0 0.0
      %5391 = vmatprep.subr.mxu0 0.0
      %5392 = vmatpush1.msra.mxu0 0.0
      %5393 = vmatprep.subr.mxu0 0.0
      %5394 = vmatpush1.msra.mxu0 0.0
      %5395 = vmatprep.subr.mxu0 0.0
      %5396 = vmatpush1.msra.mxu0 0.0
      %5397 = vmatprep.subr.mxu0 0.0
      %5398 = vmatpush1.msra.mxu0 0.0
      %5399 = vmatprep.subr.mxu0 0.0
      %5400 = vmatpush1.msra.mxu0 0.0
      %5401 = vmatprep.subr.mxu0 0.0
      %5402 = vmatpush1.msra.mxu0 0.0
      %5403 = vmatprep.subr.mxu0 0.0
      %5404 = vmatpush1.msra.mxu0 0.0
      %5405 = vmatprep.subr.mxu0 0.0
      %5406 = vmatpush1.msra.mxu0 0.0
      %5407 = vmatprep.subr.mxu0 0.0
      %5408 = vmatpush1.msra.mxu0 0.0
      %5409 = vmatprep.subr.mxu0 0.0
      %5410 = vmatpush1.msra.mxu0 0.0
      %5411 = vmatprep.subr.mxu0 0.0
      %5412 = vmatpush1.msra.mxu0 0.0
      %5413 = vmatprep.subr.mxu0 0.0
      %5414 = vmatpush1.msra.mxu0 0.0
      %5415 = vmatprep.subr.mxu0 0.0
      %5416 = vmatpush1.msra.mxu0 0.0
      %5417 = vmatprep.mubr.f32.mxu0 0.0
      %v5418 = vand.u32 %v5061, 4294901760
      %v5419 = vsub.f32 %v5061, %v5418
      %5420 = vmatmul.mubr.f32.gmra.mrb[0].mxu0 %v5419
      %v5421 = vpop.f32.mrb[0].mxu0
      %v5422 = vadd.f32 %v5306, %v5421
      %v5423 = vpop.f32.mrb[0].mxu0
      %5424 = vmatprep.mubr.f32.mxu0 0.0
      %v5425 = vand.u32 %v5064, 4294901760
      %v5426 = vsub.f32 %v5064, %v5425
      %5427 = vmatmul.mubr.f32.gmra.mrb[0].mxu0 %v5426
      %v5428 = vpop.f32.mrb[0].mxu0
      %v5429 = vadd.f32 %v5312, %v5428
      %v5430 = vpop.f32.mrb[0].mxu0
      %5431 = vmatprep.mubr.f32.mxu0 0.0
      %v5432 = vand.u32 %v5067, 4294901760
      %v5433 = vsub.f32 %v5067, %v5432
      %5434 = vmatmul.mubr.f32.gmra.mrb[0].mxu0 %v5433
      %v5435 = vpop.f32.mrb[0].mxu0
      %v5436 = vadd.f32 %v5318, %v5435
      %v5437 = vpop.f32.mrb[0].mxu0
      %5438 = vmatprep.mubr.f32.mxu0 0.0
      %v5439 = vand.u32 %v5070, 4294901760
      %v5440 = vsub.f32 %v5070, %v5439
      %5441 = vmatmul.mubr.f32.gmra.mrb[0].mxu0 %v5440
      %v5442 = vpop.f32.mrb[0].mxu0
      %v5443 = vadd.f32 %v5324, %v5442
      %v5444 = vpop.f32.mrb[0].mxu0
      %5445 = vmatprep.mubr.f32.mxu0 0.0
      %v5446 = vand.u32 %v5073, 4294901760
      %v5447 = vsub.f32 %v5073, %v5446
      %5448 = vmatmul.mubr.f32.gmra.mrb[0].mxu0 %v5447
      %v5449 = vpop.f32.mrb[0].mxu0
      %v5450 = vadd.f32 %v5330, %v5449
      %v5451 = vpop.f32.mrb[0].mxu0
      %5452 = vmatprep.mubr.f32.mxu0 0.0
      %v5453 = vand.u32 %v5076, 4294901760
      %v5454 = vsub.f32 %v5076, %v5453
      %5455 = vmatmul.mubr.f32.gmra.mrb[0].mxu0 %v5454
      %v5456 = vpop.f32.mrb[0].mxu0
      %v5457 = vadd.f32 %v5336, %v5456
      %v5458 = vpop.f32.mrb[0].mxu0
      %5459 = vmatprep.mubr.f32.mxu0 0.0
      %v5460 = vand.u32 %v5079, 4294901760
      %v5461 = vsub.f32 %v5079, %v5460
      %5462 = vmatmul.mubr.f32.gmra.mrb[0].mxu0 %v5461
      %v5463 = vpop.f32.mrb[0].mxu0
      %v5464 = vadd.f32 %v5342, %v5463
      %v5465 = vpop.f32.mrb[0].mxu0
      %5466 = vmatprep.mubr.f32.mxu0 0.0
      %v5467 = vand.u32 %v5082, 4294901760
      %v5468 = vsub.f32 %v5082, %v5467
      %5469 = vmatmul.mubr.f32.gmra.mrb[0].mxu0 %v5468
      %v5470 = vpop.f32.mrb[0].mxu0
      %v5471 = vadd.f32 %v5348, %v5470
      %v5472 = vpop.f32.mrb[0].mxu0
      %5473 = vdwg.mxu0
      %5474 = vmatprep.subr.mxu0 0.0
      %v5475 = vand.u32 %v5085, 4294901760
      %5476 = vmatpush1.msra.mxu0 %v5475
      %5477 = vmatprep.subr.mxu0 0.0
      %5478 = vmatpush1.msra.mxu0 0.0
      %5479 = vmatprep.subr.mxu0 0.0
      %5480 = vmatpush1.msra.mxu0 0.0
      %5481 = vmatprep.subr.mxu0 0.0
      %5482 = vmatpush1.msra.mxu0 0.0
      %5483 = vmatprep.subr.mxu0 0.0
      %5484 = vmatpush1.msra.mxu0 0.0
      %5485 = vmatprep.subr.mxu0 0.0
      %5486 = vmatpush1.msra.mxu0 0.0
      %5487 = vmatprep.subr.mxu0 0.0
      %5488 = vmatpush1.msra.mxu0 0.0
      %5489 = vmatprep.subr.mxu0 0.0
      %5490 = vmatpush1.msra.mxu0 0.0
      %5491 = vmatprep.subr.mxu0 0.0
      %5492 = vmatpush1.msra.mxu0 0.0
      %5493 = vmatprep.subr.mxu0 0.0
      %5494 = vmatpush1.msra.mxu0 0.0
      %5495 = vmatprep.subr.mxu0 0.0
      %5496 = vmatpush1.msra.mxu0 0.0
      %5497 = vmatprep.subr.mxu0 0.0
      %5498 = vmatpush1.msra.mxu0 0.0
      %5499 = vmatprep.subr.mxu0 0.0
      %5500 = vmatpush1.msra.mxu0 0.0
      %5501 = vmatprep.subr.mxu0 0.0
      %5502 = vmatpush1.msra.mxu0 0.0
      %5503 = vmatprep.subr.mxu0 0.0
      %5504 = vmatpush1.msra.mxu0 0.0
      %5505 = vmatprep.subr.mxu0 0.0
      %5506 = vmatpush1.msra.mxu0 0.0
      %5507 = vmatprep.subr.mxu0 0.0
      %5508 = vmatpush1.msra.mxu0 0.0
      %5509 = vmatprep.subr.mxu0 0.0
      %5510 = vmatpush1.msra.mxu0 0.0
      %5511 = vmatprep.subr.mxu0 0.0
      %5512 = vmatpush1.msra.mxu0 0.0
      %5513 = vmatprep.subr.mxu0 0.0
      %5514 = vmatpush1.msra.mxu0 0.0
      %5515 = vmatprep.subr.mxu0 0.0
      %5516 = vmatpush1.msra.mxu0 0.0
      %5517 = vmatprep.subr.mxu0 0.0
      %5518 = vmatpush1.msra.mxu0 0.0
      %5519 = vmatprep.subr.mxu0 0.0
      %5520 = vmatpush1.msra.mxu0 0.0
      %5521 = vmatprep.subr.mxu0 0.0
      %5522 = vmatpush1.msra.mxu0 0.0
      %5523 = vmatprep.subr.mxu0 0.0
      %5524 = vmatpush1.msra.mxu0 0.0
      %5525 = vmatprep.subr.mxu0 0.0
      %5526 = vmatpush1.msra.mxu0 0.0
      %5527 = vmatprep.subr.mxu0 0.0
      %5528 = vmatpush1.msra.mxu0 0.0
      %5529 = vmatprep.subr.mxu0 0.0
      %5530 = vmatpush1.msra.mxu0 0.0
      %5531 = vmatprep.subr.mxu0 0.0
      %5532 = vmatpush1.msra.mxu0 0.0
      %5533 = vmatprep.subr.mxu0 0.0
      %5534 = vmatpush1.msra.mxu0 0.0
      %5535 = vmatprep.subr.mxu0 0.0
      %5536 = vmatpush1.msra.mxu0 0.0
      %5537 = vmatprep.subr.mxu0 0.0
      %5538 = vmatpush1.msra.mxu0 0.0
      %5539 = vmatprep.mubr.f32.mxu0 0.0
      %v5540 = vand.u32 %v5061, 4294901760
      %v5541 = vsub.f32 %v5061, %v5540
      %v5542 = vand.u32 %v5541, 4294901760
      %5543 = vmatmul.mubr.f32.gmra.mrb[0].mxu0 %v5542
      %v5544 = vpop.f32.mrb[0].mxu0
      %v5545 = vadd.f32 %v5422, %v5544
      %v5546 = vpop.f32.mrb[0].mxu0
      %5547 = vmatprep.mubr.f32.mxu0 0.0
      %v5548 = vand.u32 %v5064, 4294901760
      %v5549 = vsub.f32 %v5064, %v5548
      %v5550 = vand.u32 %v5549, 4294901760
      %5551 = vmatmul.mubr.f32.gmra.mrb[0].mxu0 %v5550
      %v5552 = vpop.f32.mrb[0].mxu0
      %v5553 = vadd.f32 %v5429, %v5552
      %v5554 = vpop.f32.mrb[0].mxu0
      %5555 = vmatprep.mubr.f32.mxu0 0.0
      %v5556 = vand.u32 %v5067, 4294901760
      %v5557 = vsub.f32 %v5067, %v5556
      %v5558 = vand.u32 %v5557, 4294901760
      %5559 = vmatmul.mubr.f32.gmra.mrb[0].mxu0 %v5558
      %v5560 = vpop.f32.mrb[0].mxu0
      %v5561 = vadd.f32 %v5436, %v5560
      %v5562 = vpop.f32.mrb[0].mxu0
      %5563 = vmatprep.mubr.f32.mxu0 0.0
      %v5564 = vand.u32 %v5070, 4294901760
      %v5565 = vsub.f32 %v5070, %v5564
      %v5566 = vand.u32 %v5565, 4294901760
      %5567 = vmatmul.mubr.f32.gmra.mrb[0].mxu0 %v5566
      %v5568 = vpop.f32.mrb[0].mxu0
      %v5569 = vadd.f32 %v5443, %v5568
      %v5570 = vpop.f32.mrb[0].mxu0
      %5571 = vmatprep.mubr.f32.mxu0 0.0
      %v5572 = vand.u32 %v5073, 4294901760
      %v5573 = vsub.f32 %v5073, %v5572
      %v5574 = vand.u32 %v5573, 4294901760
      %5575 = vmatmul.mubr.f32.gmra.mrb[0].mxu0 %v5574
      %v5576 = vpop.f32.mrb[0].mxu0
      %v5577 = vadd.f32 %v5450, %v5576
      %v5578 = vpop.f32.mrb[0].mxu0
      %5579 = vmatprep.mubr.f32.mxu0 0.0
      %v5580 = vand.u32 %v5076, 4294901760
      %v5581 = vsub.f32 %v5076, %v5580
      %v5582 = vand.u32 %v5581, 4294901760
      %5583 = vmatmul.mubr.f32.gmra.mrb[0].mxu0 %v5582
      %v5584 = vpop.f32.mrb[0].mxu0
      %v5585 = vadd.f32 %v5457, %v5584
      %v5586 = vpop.f32.mrb[0].mxu0
      %5587 = vmatprep.mubr.f32.mxu0 0.0
      %v5588 = vand.u32 %v5079, 4294901760
      %v5589 = vsub.f32 %v5079, %v5588
      %v5590 = vand.u32 %v5589, 4294901760
      %5591 = vmatmul.mubr.f32.gmra.mrb[0].mxu0 %v5590
      %v5592 = vpop.f32.mrb[0].mxu0
      %v5593 = vadd.f32 %v5464, %v5592
      %v5594 = vpop.f32.mrb[0].mxu0
      %5595 = vmatprep.mubr.f32.mxu0 0.0
      %v5596 = vand.u32 %v5082, 4294901760
      %v5597 = vsub.f32 %v5082, %v5596
      %v5598 = vand.u32 %v5597, 4294901760
      %5599 = vmatmul.mubr.f32.gmra.mrb[0].mxu0 %v5598
      %v5600 = vpop.f32.mrb[0].mxu0
      %v5601 = vadd.f32 %v5471, %v5600
      %v5602 = vpop.f32.mrb[0].mxu0
      %5603 = vdwg.mxu0
      %5604 = vmatprep.subr.mxu0 0.0
      %v5605 = vand.u32 %v5085, 4294901760
      %v5606 = vsub.f32 %v5085, %v5605
      %v5607 = vand.u32 %v5606, 4294901760
      %5608 = vmatpush1.msra.mxu0 %v5607
      %5609 = vmatprep.subr.mxu0 0.0
      %5610 = vmatpush1.msra.mxu0 0.0
      %5611 = vmatprep.subr.mxu0 0.0
      %5612 = vmatpush1.msra.mxu0 0.0
      %5613 = vmatprep.subr.mxu0 0.0
      %5614 = vmatpush1.msra.mxu0 0.0
      %5615 = vmatprep.subr.mxu0 0.0
      %5616 = vmatpush1.msra.mxu0 0.0
      %5617 = vmatprep.subr.mxu0 0.0
      %5618 = vmatpush1.msra.mxu0 0.0
      %5619 = vmatprep.subr.mxu0 0.0
      %5620 = vmatpush1.msra.mxu0 0.0
      %5621 = vmatprep.subr.mxu0 0.0
      %5622 = vmatpush1.msra.mxu0 0.0
      %5623 = vmatprep.subr.mxu0 0.0
      %5624 = vmatpush1.msra.mxu0 0.0
      %5625 = vmatprep.subr.mxu0 0.0
      %5626 = vmatpush1.msra.mxu0 0.0
      %5627 = vmatprep.subr.mxu0 0.0
      %5628 = vmatpush1.msra.mxu0 0.0
      %5629 = vmatprep.subr.mxu0 0.0
      %5630 = vmatpush1.msra.mxu0 0.0
      %5631 = vmatprep.subr.mxu0 0.0
      %5632 = vmatpush1.msra.mxu0 0.0
      %5633 = vmatprep.subr.mxu0 0.0
      %5634 = vmatpush1.msra.mxu0 0.0
      %5635 = vmatprep.subr.mxu0 0.0
      %5636 = vmatpush1.msra.mxu0 0.0
      %5637 = vmatprep.subr.mxu0 0.0
      %5638 = vmatpush1.msra.mxu0 0.0
      %5639 = vmatprep.subr.mxu0 0.0
      %5640 = vmatpush1.msra.mxu0 0.0
      %5641 = vmatprep.subr.mxu0 0.0
      %5642 = vmatpush1.msra.mxu0 0.0
      %5643 = vmatprep.subr.mxu0 0.0
      %5644 = vmatpush1.msra.mxu0 0.0
      %5645 = vmatprep.subr.mxu0 0.0
      %5646 = vmatpush1.msra.mxu0 0.0
      %5647 = vmatprep.subr.mxu0 0.0
      %5648 = vmatpush1.msra.mxu0 0.0
      %5649 = vmatprep.subr.mxu0 0.0
      %5650 = vmatpush1.msra.mxu0 0.0
      %5651 = vmatprep.subr.mxu0 0.0
      %5652 = vmatpush1.msra.mxu0 0.0
      %5653 = vmatprep.subr.mxu0 0.0
      %5654 = vmatpush1.msra.mxu0 0.0
      %5655 = vmatprep.subr.mxu0 0.0
      %5656 = vmatpush1.msra.mxu0 0.0
      %5657 = vmatprep.subr.mxu0 0.0
      %5658 = vmatpush1.msra.mxu0 0.0
      %5659 = vmatprep.subr.mxu0 0.0
      %5660 = vmatpush1.msra.mxu0 0.0
      %5661 = vmatprep.subr.mxu0 0.0
      %5662 = vmatpush1.msra.mxu0 0.0
      %5663 = vmatprep.subr.mxu0 0.0
      %5664 = vmatpush1.msra.mxu0 0.0
      %5665 = vmatprep.subr.mxu0 0.0
      %5666 = vmatpush1.msra.mxu0 0.0
      %5667 = vmatprep.subr.mxu0 0.0
      %5668 = vmatpush1.msra.mxu0 0.0
      %5669 = vmatprep.subr.mxu0 0.0
      %5670 = vmatpush1.msra.mxu0 0.0
      %5671 = vmatprep.mubr.f32.mxu0 0.0
      %v5672 = vand.u32 %v5061, 4294901760
      %5673 = vmatmul.mubr.f32.gmra.mrb[0].mxu0 %v5672
      %v5674 = vpop.f32.mrb[0].mxu0
      %v5675 = vadd.f32 %v5545, %v5674
      %v5676 = vpop.f32.mrb[0].mxu0
      %5677 = vmatprep.mubr.f32.mxu0 0.0
      %v5678 = vand.u32 %v5064, 4294901760
      %5679 = vmatmul.mubr.f32.gmra.mrb[0].mxu0 %v5678
      %v5680 = vpop.f32.mrb[0].mxu0
      %v5681 = vadd.f32 %v5553, %v5680
      %v5682 = vpop.f32.mrb[0].mxu0
      %5683 = vmatprep.mubr.f32.mxu0 0.0
      %v5684 = vand.u32 %v5067, 4294901760
      %5685 = vmatmul.mubr.f32.gmra.mrb[0].mxu0 %v5684
      %v5686 = vpop.f32.mrb[0].mxu0
      %v5687 = vadd.f32 %v5561, %v5686
      %v5688 = vpop.f32.mrb[0].mxu0
      %5689 = vmatprep.mubr.f32.mxu0 0.0
      %v5690 = vand.u32 %v5070, 4294901760
      %5691 = vmatmul.mubr.f32.gmra.mrb[0].mxu0 %v5690
      %v5692 = vpop.f32.mrb[0].mxu0
      %v5693 = vadd.f32 %v5569, %v5692
      %v5694 = vpop.f32.mrb[0].mxu0
      %5695 = vmatprep.mubr.f32.mxu0 0.0
      %v5696 = vand.u32 %v5073, 4294901760
      %5697 = vmatmul.mubr.f32.gmra.mrb[0].mxu0 %v5696
      %v5698 = vpop.f32.mrb[0].mxu0
      %v5699 = vadd.f32 %v5577, %v5698
      %v5700 = vpop.f32.mrb[0].mxu0
      %5701 = vmatprep.mubr.f32.mxu0 0.0
      %v5702 = vand.u32 %v5076, 4294901760
      %5703 = vmatmul.mubr.f32.gmra.mrb[0].mxu0 %v5702
      %v5704 = vpop.f32.mrb[0].mxu0
      %v5705 = vadd.f32 %v5585, %v5704
      %v5706 = vpop.f32.mrb[0].mxu0
      %5707 = vmatprep.mubr.f32.mxu0 0.0
      %v5708 = vand.u32 %v5079, 4294901760
      %5709 = vmatmul.mubr.f32.gmra.mrb[0].mxu0 %v5708
      %v5710 = vpop.f32.mrb[0].mxu0
      %v5711 = vadd.f32 %v5593, %v5710
      %v5712 = vpop.f32.mrb[0].mxu0
      %5713 = vmatprep.mubr.f32.mxu0 0.0
      %v5714 = vand.u32 %v5082, 4294901760
      %5715 = vmatmul.mubr.f32.gmra.mrb[0].mxu0 %v5714
      %v5716 = vpop.f32.mrb[0].mxu0
      %v5717 = vadd.f32 %v5601, %v5716
      %v5718 = vpop.f32.mrb[0].mxu0
      %5719 = vdwg.mxu0
      %5720 = vmatprep.subr.mxu0 0.0
      %v5721 = vand.u32 %v5085, 4294901760
      %5722 = vmatpush1.msra.mxu0 %v5721
      %5723 = vmatprep.subr.mxu0 0.0
      %5724 = vmatpush1.msra.mxu0 0.0
      %5725 = vmatprep.subr.mxu0 0.0
      %5726 = vmatpush1.msra.mxu0 0.0
      %5727 = vmatprep.subr.mxu0 0.0
      %5728 = vmatpush1.msra.mxu0 0.0
      %5729 = vmatprep.subr.mxu0 0.0
      %5730 = vmatpush1.msra.mxu0 0.0
      %5731 = vmatprep.subr.mxu0 0.0
      %5732 = vmatpush1.msra.mxu0 0.0
      %5733 = vmatprep.subr.mxu0 0.0
      %5734 = vmatpush1.msra.mxu0 0.0
      %5735 = vmatprep.subr.mxu0 0.0
      %5736 = vmatpush1.msra.mxu0 0.0
      %5737 = vmatprep.subr.mxu0 0.0
      %5738 = vmatpush1.msra.mxu0 0.0
      %5739 = vmatprep.subr.mxu0 0.0
      %5740 = vmatpush1.msra.mxu0 0.0
      %5741 = vmatprep.subr.mxu0 0.0
      %5742 = vmatpush1.msra.mxu0 0.0
      %5743 = vmatprep.subr.mxu0 0.0
      %5744 = vmatpush1.msra.mxu0 0.0
      %5745 = vmatprep.subr.mxu0 0.0
      %5746 = vmatpush1.msra.mxu0 0.0
      %5747 = vmatprep.subr.mxu0 0.0
      %5748 = vmatpush1.msra.mxu0 0.0
      %5749 = vmatprep.subr.mxu0 0.0
      %5750 = vmatpush1.msra.mxu0 0.0
      %5751 = vmatprep.subr.mxu0 0.0
      %5752 = vmatpush1.msra.mxu0 0.0
      %5753 = vmatprep.subr.mxu0 0.0
      %5754 = vmatpush1.msra.mxu0 0.0
      %5755 = vmatprep.subr.mxu0 0.0
      %5756 = vmatpush1.msra.mxu0 0.0
      %5757 = vmatprep.subr.mxu0 0.0
      %5758 = vmatpush1.msra.mxu0 0.0
      %5759 = vmatprep.subr.mxu0 0.0
      %5760 = vmatpush1.msra.mxu0 0.0
      %5761 = vmatprep.subr.mxu0 0.0
      %5762 = vmatpush1.msra.mxu0 0.0
      %5763 = vmatprep.subr.mxu0 0.0
      %5764 = vmatpush1.msra.mxu0 0.0
      %5765 = vmatprep.subr.mxu0 0.0
      %5766 = vmatpush1.msra.mxu0 0.0
      %5767 = vmatprep.subr.mxu0 0.0
      %5768 = vmatpush1.msra.mxu0 0.0
      %5769 = vmatprep.subr.mxu0 0.0
      %5770 = vmatpush1.msra.mxu0 0.0
      %5771 = vmatprep.subr.mxu0 0.0
      %5772 = vmatpush1.msra.mxu0 0.0
      %5773 = vmatprep.subr.mxu0 0.0
      %5774 = vmatpush1.msra.mxu0 0.0
      %5775 = vmatprep.subr.mxu0 0.0
      %5776 = vmatpush1.msra.mxu0 0.0
      %5777 = vmatprep.subr.mxu0 0.0
      %5778 = vmatpush1.msra.mxu0 0.0
      %5779 = vmatprep.subr.mxu0 0.0
      %5780 = vmatpush1.msra.mxu0 0.0
      %5781 = vmatprep.subr.mxu0 0.0
      %5782 = vmatpush1.msra.mxu0 0.0
      %5783 = vmatprep.subr.mxu0 0.0
      %5784 = vmatpush1.msra.mxu0 0.0
      %5785 = vmatprep.mubr.f32.mxu0 0.0
      %v5786 = vand.u32 %v5061, 4294901760
      %5787 = vmatmul.mubr.f32.gmra.mrb[0].mxu0 %v5786
      %v5788 = vpop.f32.mrb[0].mxu0
      %v5789 = vadd.f32 %v5675, %v5788
      %v5790 = vpop.f32.mrb[0].mxu0
      %5791 = vmatprep.mubr.f32.mxu0 0.0
      %v5792 = vand.u32 %v5064, 4294901760
      %5793 = vmatmul.mubr.f32.gmra.mrb[0].mxu0 %v5792
      %v5794 = vpop.f32.mrb[0].mxu0
      %v5795 = vadd.f32 %v5681, %v5794
      %v5796 = vpop.f32.mrb[0].mxu0
      %5797 = vmatprep.mubr.f32.mxu0 0.0
      %v5798 = vand.u32 %v5067, 4294901760
      %5799 = vmatmul.mubr.f32.gmra.mrb[0].mxu0 %v5798
      %v5800 = vpop.f32.mrb[0].mxu0
      %v5801 = vadd.f32 %v5687, %v5800
      %v5802 = vpop.f32.mrb[0].mxu0
      %5803 = vmatprep.mubr.f32.mxu0 0.0
      %v5804 = vand.u32 %v5070, 4294901760
      %5805 = vmatmul.mubr.f32.gmra.mrb[0].mxu0 %v5804
      %v5806 = vpop.f32.mrb[0].mxu0
      %v5807 = vadd.f32 %v5693, %v5806
      %v5808 = vpop.f32.mrb[0].mxu0
      %5809 = vmatprep.mubr.f32.mxu0 0.0
      %v5810 = vand.u32 %v5073, 4294901760
      %5811 = vmatmul.mubr.f32.gmra.mrb[0].mxu0 %v5810
      %v5812 = vpop.f32.mrb[0].mxu0
      %v5813 = vadd.f32 %v5699, %v5812
      %v5814 = vpop.f32.mrb[0].mxu0
      %5815 = vmatprep.mubr.f32.mxu0 0.0
      %v5816 = vand.u32 %v5076, 4294901760
      %5817 = vmatmul.mubr.f32.gmra.mrb[0].mxu0 %v5816
      %v5818 = vpop.f32.mrb[0].mxu0
      %v5819 = vadd.f32 %v5705, %v5818
      %v5820 = vpop.f32.mrb[0].mxu0
      %5821 = vmatprep.mubr.f32.mxu0 0.0
      %v5822 = vand.u32 %v5079, 4294901760
      %5823 = vmatmul.mubr.f32.gmra.mrb[0].mxu0 %v5822
      %v5824 = vpop.f32.mrb[0].mxu0
      %v5825 = vadd.f32 %v5711, %v5824
      %v5826 = vpop.f32.mrb[0].mxu0
      %5827 = vmatprep.mubr.f32.mxu0 0.0
      %v5828 = vand.u32 %v5082, 4294901760
      %5829 = vmatmul.mubr.f32.gmra.mrb[0].mxu0 %v5828
      %v5830 = vpop.f32.mrb[0].mxu0
      %v5831 = vadd.f32 %v5717, %v5830
      %v5832 = vpop.f32.mrb[0].mxu0
      %5833 = vdwg.mxu0
      %v5834 = vadd.f32 %v5041, %v5789
      %v5835 = vadd.f32 %v5042, %v5795
      %v5836 = vadd.f32 %v5043, %v5801
      %v5837 = vadd.f32 %v5044, %v5807
      %v5838 = vadd.f32 %v5045, %v5813
      %v5839 = vadd.f32 %v5046, %v5819
      %v5840 = vadd.f32 %v5047, %v5825
      %v5841 = vadd.f32 %v5048, %v5831
      %s5842 = scalar_lea.vmem %s296, 16
      %v5843 = vld [vmem:[%s5842] sm:$0xff]
      %v5844 = vld [vmem:[%s5842 + $0x10] sm:$0xff]
      %v5845 = vld [vmem:[%s5842 + $0x20] sm:$0xff]
      %v5846 = vld [vmem:[%s5842 + $0x30] sm:$0xff]
      %v5847 = vld [vmem:[%s5842 + $0x40] sm:$0xff]
      %v5848 = vld [vmem:[%s5842 + $0x50] sm:$0xff]
      %v5849 = vld [vmem:[%s5842 + $0x60] sm:$0xff]
      %v5850 = vld [vmem:[%s5842 + $0x70] sm:$0xff]
      %s5851 = scalar_lea.vmem %s4, 28
      %v5852 = vld [vmem:[%s5851] sm:$0xf]
      %v5854 = vsel %vm331, %v5843, 0
      %v5857 = vsel %vm331, %v5844, 0
      %v5860 = vsel %vm331, %v5845, 0
      %v5863 = vsel %vm331, %v5846, 0
      %v5866 = vsel %vm331, %v5847, 0
      %v5869 = vsel %vm331, %v5848, 0
      %v5872 = vsel %vm331, %v5849, 0
      %v5875 = vsel %vm331, %v5850, 0
      %v5878 = vsel %vm356, %v5852, 0
      %5880 = vmatprep.subr.mxu0 0.0
      %v5881 = vand.u32 %v5878, 4294901760
      %5882 = vmatpush1.msra.mxu0 %v5881
      %5883 = vmatprep.subr.mxu0 0.0
      %5884 = vmatpush1.msra.mxu0 0.0
      %5885 = vmatprep.subr.mxu0 0.0
      %5886 = vmatpush1.msra.mxu0 0.0
      %5887 = vmatprep.subr.mxu0 0.0
      %5888 = vmatpush1.msra.mxu0 0.0
      %5889 = vmatprep.subr.mxu0 0.0
      %5890 = vmatpush1.msra.mxu0 0.0
      %5891 = vmatprep.subr.mxu0 0.0
      %5892 = vmatpush1.msra.mxu0 0.0
      %5893 = vmatprep.subr.mxu0 0.0
      %5894 = vmatpush1.msra.mxu0 0.0
      %5895 = vmatprep.subr.mxu0 0.0
      %5896 = vmatpush1.msra.mxu0 0.0
      %5897 = vmatprep.subr.mxu0 0.0
      %5898 = vmatpush1.msra.mxu0 0.0
      %5899 = vmatprep.subr.mxu0 0.0
      %5900 = vmatpush1.msra.mxu0 0.0
      %5901 = vmatprep.subr.mxu0 0.0
      %5902 = vmatpush1.msra.mxu0 0.0
      %5903 = vmatprep.subr.mxu0 0.0
      %5904 = vmatpush1.msra.mxu0 0.0
      %5905 = vmatprep.subr.mxu0 0.0
      %5906 = vmatpush1.msra.mxu0 0.0
      %5907 = vmatprep.subr.mxu0 0.0
      %5908 = vmatpush1.msra.mxu0 0.0
      %5909 = vmatprep.subr.mxu0 0.0
      %5910 = vmatpush1.msra.mxu0 0.0
      %5911 = vmatprep.subr.mxu0 0.0
      %5912 = vmatpush1.msra.mxu0 0.0
      %5913 = vmatprep.subr.mxu0 0.0
      %5914 = vmatpush1.msra.mxu0 0.0
      %5915 = vmatprep.subr.mxu0 0.0
      %5916 = vmatpush1.msra.mxu0 0.0
      %5917 = vmatprep.subr.mxu0 0.0
      %5918 = vmatpush1.msra.mxu0 0.0
      %5919 = vmatprep.subr.mxu0 0.0
      %5920 = vmatpush1.msra.mxu0 0.0
      %5921 = vmatprep.subr.mxu0 0.0
      %5922 = vmatpush1.msra.mxu0 0.0
      %5923 = vmatprep.subr.mxu0 0.0
      %5924 = vmatpush1.msra.mxu0 0.0
      %5925 = vmatprep.subr.mxu0 0.0
      %5926 = vmatpush1.msra.mxu0 0.0
      %5927 = vmatprep.subr.mxu0 0.0
      %5928 = vmatpush1.msra.mxu0 0.0
      %5929 = vmatprep.subr.mxu0 0.0
      %5930 = vmatpush1.msra.mxu0 0.0
      %5931 = vmatprep.subr.mxu0 0.0
      %5932 = vmatpush1.msra.mxu0 0.0
      %5933 = vmatprep.subr.mxu0 0.0
      %5934 = vmatpush1.msra.mxu0 0.0
      %5935 = vmatprep.subr.mxu0 0.0
      %5936 = vmatpush1.msra.mxu0 0.0
      %5937 = vmatprep.subr.mxu0 0.0
      %5938 = vmatpush1.msra.mxu0 0.0
      %5939 = vmatprep.subr.mxu0 0.0
      %5940 = vmatpush1.msra.mxu0 0.0
      %5941 = vmatprep.subr.mxu0 0.0
      %5942 = vmatpush1.msra.mxu0 0.0
      %5943 = vmatprep.subr.mxu0 0.0
      %5944 = vmatpush1.msra.mxu0 0.0
      %5945 = vmatprep.mubr.f32.mxu0 0.0
      %v5946 = vand.u32 %v5854, 4294901760
      %v5947 = vsub.f32 %v5854, %v5946
      %v5948 = vand.u32 %v5947, 4294901760
      %v5949 = vsub.f32 %v5947, %v5948
      %v5950 = vand.u32 %v5949, 4294901760
      %5951 = vmatmul.mubr.f32.gmra.mrb[0].mxu0 %v5950
      %v5952 = vpop.f32.mrb[0].mxu0
      %v5953 = vadd.f32 0.0, %v5952
      %v5954 = vpop.f32.mrb[0].mxu0
      %5955 = vmatprep.mubr.f32.mxu0 0.0
      %v5956 = vand.u32 %v5857, 4294901760
      %v5957 = vsub.f32 %v5857, %v5956
      %v5958 = vand.u32 %v5957, 4294901760
      %v5959 = vsub.f32 %v5957, %v5958
      %v5960 = vand.u32 %v5959, 4294901760
      %5961 = vmatmul.mubr.f32.gmra.mrb[0].mxu0 %v5960
      %v5962 = vpop.f32.mrb[0].mxu0
      %v5963 = vadd.f32 0.0, %v5962
      %v5964 = vpop.f32.mrb[0].mxu0
      %5965 = vmatprep.mubr.f32.mxu0 0.0
      %v5966 = vand.u32 %v5860, 4294901760
      %v5967 = vsub.f32 %v5860, %v5966
      %v5968 = vand.u32 %v5967, 4294901760
      %v5969 = vsub.f32 %v5967, %v5968
      %v5970 = vand.u32 %v5969, 4294901760
      %5971 = vmatmul.mubr.f32.gmra.mrb[0].mxu0 %v5970
      %v5972 = vpop.f32.mrb[0].mxu0
      %v5973 = vadd.f32 0.0, %v5972
      %v5974 = vpop.f32.mrb[0].mxu0
      %5975 = vmatprep.mubr.f32.mxu0 0.0
      %v5976 = vand.u32 %v5863, 4294901760
      %v5977 = vsub.f32 %v5863, %v5976
      %v5978 = vand.u32 %v5977, 4294901760
      %v5979 = vsub.f32 %v5977, %v5978
      %v5980 = vand.u32 %v5979, 4294901760
      %5981 = vmatmul.mubr.f32.gmra.mrb[0].mxu0 %v5980
      %v5982 = vpop.f32.mrb[0].mxu0
      %v5983 = vadd.f32 0.0, %v5982
      %v5984 = vpop.f32.mrb[0].mxu0
      %5985 = vmatprep.mubr.f32.mxu0 0.0
      %v5986 = vand.u32 %v5866, 4294901760
      %v5987 = vsub.f32 %v5866, %v5986
      %v5988 = vand.u32 %v5987, 4294901760
      %v5989 = vsub.f32 %v5987, %v5988
      %v5990 = vand.u32 %v5989, 4294901760
      %5991 = vmatmul.mubr.f32.gmra.mrb[0].mxu0 %v5990
      %v5992 = vpop.f32.mrb[0].mxu0
      %v5993 = vadd.f32 0.0, %v5992
      %v5994 = vpop.f32.mrb[0].mxu0
      %5995 = vmatprep.mubr.f32.mxu0 0.0
      %v5996 = vand.u32 %v5869, 4294901760
      %v5997 = vsub.f32 %v5869, %v5996
      %v5998 = vand.u32 %v5997, 4294901760
      %v5999 = vsub.f32 %v5997, %v5998
      %v6000 = vand.u32 %v5999, 4294901760
      %6001 = vmatmul.mubr.f32.gmra.mrb[0].mxu0 %v6000
      %v6002 = vpop.f32.mrb[0].mxu0
      %v6003 = vadd.f32 0.0, %v6002
      %v6004 = vpop.f32.mrb[0].mxu0
      %6005 = vmatprep.mubr.f32.mxu0 0.0
      %v6006 = vand.u32 %v5872, 4294901760
      %v6007 = vsub.f32 %v5872, %v6006
      %v6008 = vand.u32 %v6007, 4294901760
      %v6009 = vsub.f32 %v6007, %v6008
      %v6010 = vand.u32 %v6009, 4294901760
      %6011 = vmatmul.mubr.f32.gmra.mrb[0].mxu0 %v6010
      %v6012 = vpop.f32.mrb[0].mxu0
      %v6013 = vadd.f32 0.0, %v6012
      %v6014 = vpop.f32.mrb[0].mxu0
      %6015 = vmatprep.mubr.f32.mxu0 0.0
      %v6016 = vand.u32 %v5875, 4294901760
      %v6017 = vsub.f32 %v5875, %v6016
      %v6018 = vand.u32 %v6017, 4294901760
      %v6019 = vsub.f32 %v6017, %v6018
      %v6020 = vand.u32 %v6019, 4294901760
      %6021 = vmatmul.mubr.f32.gmra.mrb[0].mxu0 %v6020
      %v6022 = vpop.f32.mrb[0].mxu0
      %v6023 = vadd.f32 0.0, %v6022
      %v6024 = vpop.f32.mrb[0].mxu0
      %6025 = vdwg.mxu0
      %6026 = vmatprep.subr.mxu0 0.0
      %v6027 = vand.u32 %v5878, 4294901760
      %v6028 = vsub.f32 %v5878, %v6027
      %v6029 = vand.u32 %v6028, 4294901760
      %v6030 = vsub.f32 %v6028, %v6029
      %v6031 = vand.u32 %v6030, 4294901760
      %6032 = vmatpush1.msra.mxu0 %v6031
      %6033 = vmatprep.subr.mxu0 0.0
      %6034 = vmatpush1.msra.mxu0 0.0
      %6035 = vmatprep.subr.mxu0 0.0
      %6036 = vmatpush1.msra.mxu0 0.0
      %6037 = vmatprep.subr.mxu0 0.0
      %6038 = vmatpush1.msra.mxu0 0.0
      %6039 = vmatprep.subr.mxu0 0.0
      %6040 = vmatpush1.msra.mxu0 0.0
      %6041 = vmatprep.subr.mxu0 0.0
      %6042 = vmatpush1.msra.mxu0 0.0
      %6043 = vmatprep.subr.mxu0 0.0
      %6044 = vmatpush1.msra.mxu0 0.0
      %6045 = vmatprep.subr.mxu0 0.0
      %6046 = vmatpush1.msra.mxu0 0.0
      %6047 = vmatprep.subr.mxu0 0.0
      %6048 = vmatpush1.msra.mxu0 0.0
      %6049 = vmatprep.subr.mxu0 0.0
      %6050 = vmatpush1.msra.mxu0 0.0
      %6051 = vmatprep.subr.mxu0 0.0
      %6052 = vmatpush1.msra.mxu0 0.0
      %6053 = vmatprep.subr.mxu0 0.0
      %6054 = vmatpush1.msra.mxu0 0.0
      %6055 = vmatprep.subr.mxu0 0.0
      %6056 = vmatpush1.msra.mxu0 0.0
      %6057 = vmatprep.subr.mxu0 0.0
      %6058 = vmatpush1.msra.mxu0 0.0
      %6059 = vmatprep.subr.mxu0 0.0
      %6060 = vmatpush1.msra.mxu0 0.0
      %6061 = vmatprep.subr.mxu0 0.0
      %6062 = vmatpush1.msra.mxu0 0.0
      %6063 = vmatprep.subr.mxu0 0.0
      %6064 = vmatpush1.msra.mxu0 0.0
      %6065 = vmatprep.subr.mxu0 0.0
      %6066 = vmatpush1.msra.mxu0 0.0
      %6067 = vmatprep.subr.mxu0 0.0
      %6068 = vmatpush1.msra.mxu0 0.0
      %6069 = vmatprep.subr.mxu0 0.0
      %6070 = vmatpush1.msra.mxu0 0.0
      %6071 = vmatprep.subr.mxu0 0.0
      %6072 = vmatpush1.msra.mxu0 0.0
      %6073 = vmatprep.subr.mxu0 0.0
      %6074 = vmatpush1.msra.mxu0 0.0
      %6075 = vmatprep.subr.mxu0 0.0
      %6076 = vmatpush1.msra.mxu0 0.0
      %6077 = vmatprep.subr.mxu0 0.0
      %6078 = vmatpush1.msra.mxu0 0.0
      %6079 = vmatprep.subr.mxu0 0.0
      %6080 = vmatpush1.msra.mxu0 0.0
      %6081 = vmatprep.subr.mxu0 0.0
      %6082 = vmatpush1.msra.mxu0 0.0
      %6083 = vmatprep.subr.mxu0 0.0
      %6084 = vmatpush1.msra.mxu0 0.0
      %6085 = vmatprep.subr.mxu0 0.0
      %6086 = vmatpush1.msra.mxu0 0.0
      %6087 = vmatprep.subr.mxu0 0.0
      %6088 = vmatpush1.msra.mxu0 0.0
      %6089 = vmatprep.subr.mxu0 0.0
      %6090 = vmatpush1.msra.mxu0 0.0
      %6091 = vmatprep.subr.mxu0 0.0
      %6092 = vmatpush1.msra.mxu0 0.0
      %6093 = vmatprep.subr.mxu0 0.0
      %6094 = vmatpush1.msra.mxu0 0.0
      %6095 = vmatprep.mubr.f32.mxu0 0.0
      %v6096 = vand.u32 %v5854, 4294901760
      %6097 = vmatmul.mubr.f32.gmra.mrb[0].mxu0 %v6096
      %v6098 = vpop.f32.mrb[0].mxu0
      %v6099 = vadd.f32 %v5953, %v6098
      %v6100 = vpop.f32.mrb[0].mxu0
      %6101 = vmatprep.mubr.f32.mxu0 0.0
      %v6102 = vand.u32 %v5857, 4294901760
      %6103 = vmatmul.mubr.f32.gmra.mrb[0].mxu0 %v6102
      %v6104 = vpop.f32.mrb[0].mxu0
      %v6105 = vadd.f32 %v5963, %v6104
      %v6106 = vpop.f32.mrb[0].mxu0
      %6107 = vmatprep.mubr.f32.mxu0 0.0
      %v6108 = vand.u32 %v5860, 4294901760
      %6109 = vmatmul.mubr.f32.gmra.mrb[0].mxu0 %v6108
      %v6110 = vpop.f32.mrb[0].mxu0
      %v6111 = vadd.f32 %v5973, %v6110
      %v6112 = vpop.f32.mrb[0].mxu0
      %6113 = vmatprep.mubr.f32.mxu0 0.0
      %v6114 = vand.u32 %v5863, 4294901760
      %6115 = vmatmul.mubr.f32.gmra.mrb[0].mxu0 %v6114
      %v6116 = vpop.f32.mrb[0].mxu0
      %v6117 = vadd.f32 %v5983, %v6116
      %v6118 = vpop.f32.mrb[0].mxu0
      %6119 = vmatprep.mubr.f32.mxu0 0.0
      %v6120 = vand.u32 %v5866, 4294901760
      %6121 = vmatmul.mubr.f32.gmra.mrb[0].mxu0 %v6120
      %v6122 = vpop.f32.mrb[0].mxu0
      %v6123 = vadd.f32 %v5993, %v6122
      %v6124 = vpop.f32.mrb[0].mxu0
      %6125 = vmatprep.mubr.f32.mxu0 0.0
      %v6126 = vand.u32 %v5869, 4294901760
      %6127 = vmatmul.mubr.f32.gmra.mrb[0].mxu0 %v6126
      %v6128 = vpop.f32.mrb[0].mxu0
      %v6129 = vadd.f32 %v6003, %v6128
      %v6130 = vpop.f32.mrb[0].mxu0
      %6131 = vmatprep.mubr.f32.mxu0 0.0
      %v6132 = vand.u32 %v5872, 4294901760
      %6133 = vmatmul.mubr.f32.gmra.mrb[0].mxu0 %v6132
      %v6134 = vpop.f32.mrb[0].mxu0
      %v6135 = vadd.f32 %v6013, %v6134
      %v6136 = vpop.f32.mrb[0].mxu0
      %6137 = vmatprep.mubr.f32.mxu0 0.0
      %v6138 = vand.u32 %v5875, 4294901760
      %6139 = vmatmul.mubr.f32.gmra.mrb[0].mxu0 %v6138
      %v6140 = vpop.f32.mrb[0].mxu0
      %v6141 = vadd.f32 %v6023, %v6140
      %v6142 = vpop.f32.mrb[0].mxu0
      %6143 = vdwg.mxu0
      %6144 = vmatprep.subr.mxu0 0.0
      %v6145 = vand.u32 %v5878, 4294901760
      %v6146 = vsub.f32 %v5878, %v6145
      %6147 = vmatpush1.msra.mxu0 %v6146
      %6148 = vmatprep.subr.mxu0 0.0
      %6149 = vmatpush1.msra.mxu0 0.0
      %6150 = vmatprep.subr.mxu0 0.0
      %6151 = vmatpush1.msra.mxu0 0.0
      %6152 = vmatprep.subr.mxu0 0.0
      %6153 = vmatpush1.msra.mxu0 0.0
      %6154 = vmatprep.subr.mxu0 0.0
      %6155 = vmatpush1.msra.mxu0 0.0
      %6156 = vmatprep.subr.mxu0 0.0
      %6157 = vmatpush1.msra.mxu0 0.0
      %6158 = vmatprep.subr.mxu0 0.0
      %6159 = vmatpush1.msra.mxu0 0.0
      %6160 = vmatprep.subr.mxu0 0.0
      %6161 = vmatpush1.msra.mxu0 0.0
      %6162 = vmatprep.subr.mxu0 0.0
      %6163 = vmatpush1.msra.mxu0 0.0
      %6164 = vmatprep.subr.mxu0 0.0
      %6165 = vmatpush1.msra.mxu0 0.0
      %6166 = vmatprep.subr.mxu0 0.0
      %6167 = vmatpush1.msra.mxu0 0.0
      %6168 = vmatprep.subr.mxu0 0.0
      %6169 = vmatpush1.msra.mxu0 0.0
      %6170 = vmatprep.subr.mxu0 0.0
      %6171 = vmatpush1.msra.mxu0 0.0
      %6172 = vmatprep.subr.mxu0 0.0
      %6173 = vmatpush1.msra.mxu0 0.0
      %6174 = vmatprep.subr.mxu0 0.0
      %6175 = vmatpush1.msra.mxu0 0.0
      %6176 = vmatprep.subr.mxu0 0.0
      %6177 = vmatpush1.msra.mxu0 0.0
      %6178 = vmatprep.subr.mxu0 0.0
      %6179 = vmatpush1.msra.mxu0 0.0
      %6180 = vmatprep.subr.mxu0 0.0
      %6181 = vmatpush1.msra.mxu0 0.0
      %6182 = vmatprep.subr.mxu0 0.0
      %6183 = vmatpush1.msra.mxu0 0.0
      %6184 = vmatprep.subr.mxu0 0.0
      %6185 = vmatpush1.msra.mxu0 0.0
      %6186 = vmatprep.subr.mxu0 0.0
      %6187 = vmatpush1.msra.mxu0 0.0
      %6188 = vmatprep.subr.mxu0 0.0
      %6189 = vmatpush1.msra.mxu0 0.0
      %6190 = vmatprep.subr.mxu0 0.0
      %6191 = vmatpush1.msra.mxu0 0.0
      %6192 = vmatprep.subr.mxu0 0.0
      %6193 = vmatpush1.msra.mxu0 0.0
      %6194 = vmatprep.subr.mxu0 0.0
      %6195 = vmatpush1.msra.mxu0 0.0
      %6196 = vmatprep.subr.mxu0 0.0
      %6197 = vmatpush1.msra.mxu0 0.0
      %6198 = vmatprep.subr.mxu0 0.0
      %6199 = vmatpush1.msra.mxu0 0.0
      %6200 = vmatprep.subr.mxu0 0.0
      %6201 = vmatpush1.msra.mxu0 0.0
      %6202 = vmatprep.subr.mxu0 0.0
      %6203 = vmatpush1.msra.mxu0 0.0
      %6204 = vmatprep.subr.mxu0 0.0
      %6205 = vmatpush1.msra.mxu0 0.0
      %6206 = vmatprep.subr.mxu0 0.0
      %6207 = vmatpush1.msra.mxu0 0.0
      %6208 = vmatprep.subr.mxu0 0.0
      %6209 = vmatpush1.msra.mxu0 0.0
      %6210 = vmatprep.mubr.f32.mxu0 0.0
      %v6211 = vand.u32 %v5854, 4294901760
      %v6212 = vsub.f32 %v5854, %v6211
      %6213 = vmatmul.mubr.f32.gmra.mrb[0].mxu0 %v6212
      %v6214 = vpop.f32.mrb[0].mxu0
      %v6215 = vadd.f32 %v6099, %v6214
      %v6216 = vpop.f32.mrb[0].mxu0
      %6217 = vmatprep.mubr.f32.mxu0 0.0
      %v6218 = vand.u32 %v5857, 4294901760
      %v6219 = vsub.f32 %v5857, %v6218
      %6220 = vmatmul.mubr.f32.gmra.mrb[0].mxu0 %v6219
      %v6221 = vpop.f32.mrb[0].mxu0
      %v6222 = vadd.f32 %v6105, %v6221
      %v6223 = vpop.f32.mrb[0].mxu0
      %6224 = vmatprep.mubr.f32.mxu0 0.0
      %v6225 = vand.u32 %v5860, 4294901760
      %v6226 = vsub.f32 %v5860, %v6225
      %6227 = vmatmul.mubr.f32.gmra.mrb[0].mxu0 %v6226
      %v6228 = vpop.f32.mrb[0].mxu0
      %v6229 = vadd.f32 %v6111, %v6228
      %v6230 = vpop.f32.mrb[0].mxu0
      %6231 = vmatprep.mubr.f32.mxu0 0.0
      %v6232 = vand.u32 %v5863, 4294901760
      %v6233 = vsub.f32 %v5863, %v6232
      %6234 = vmatmul.mubr.f32.gmra.mrb[0].mxu0 %v6233
      %v6235 = vpop.f32.mrb[0].mxu0
      %v6236 = vadd.f32 %v6117, %v6235
      %v6237 = vpop.f32.mrb[0].mxu0
      %6238 = vmatprep.mubr.f32.mxu0 0.0
      %v6239 = vand.u32 %v5866, 4294901760
      %v6240 = vsub.f32 %v5866, %v6239
      %6241 = vmatmul.mubr.f32.gmra.mrb[0].mxu0 %v6240
      %v6242 = vpop.f32.mrb[0].mxu0
      %v6243 = vadd.f32 %v6123, %v6242
      %v6244 = vpop.f32.mrb[0].mxu0
      %6245 = vmatprep.mubr.f32.mxu0 0.0
      %v6246 = vand.u32 %v5869, 4294901760
      %v6247 = vsub.f32 %v5869, %v6246
      %6248 = vmatmul.mubr.f32.gmra.mrb[0].mxu0 %v6247
      %v6249 = vpop.f32.mrb[0].mxu0
      %v6250 = vadd.f32 %v6129, %v6249
      %v6251 = vpop.f32.mrb[0].mxu0
      %6252 = vmatprep.mubr.f32.mxu0 0.0
      %v6253 = vand.u32 %v5872, 4294901760
      %v6254 = vsub.f32 %v5872, %v6253
      %6255 = vmatmul.mubr.f32.gmra.mrb[0].mxu0 %v6254
      %v6256 = vpop.f32.mrb[0].mxu0
      %v6257 = vadd.f32 %v6135, %v6256
      %v6258 = vpop.f32.mrb[0].mxu0
      %6259 = vmatprep.mubr.f32.mxu0 0.0
      %v6260 = vand.u32 %v5875, 4294901760
      %v6261 = vsub.f32 %v5875, %v6260
      %6262 = vmatmul.mubr.f32.gmra.mrb[0].mxu0 %v6261
      %v6263 = vpop.f32.mrb[0].mxu0
      %v6264 = vadd.f32 %v6141, %v6263
      %v6265 = vpop.f32.mrb[0].mxu0
      %6266 = vdwg.mxu0
      %6267 = vmatprep.subr.mxu0 0.0
      %v6268 = vand.u32 %v5878, 4294901760
      %6269 = vmatpush1.msra.mxu0 %v6268
      %6270 = vmatprep.subr.mxu0 0.0
      %6271 = vmatpush1.msra.mxu0 0.0
      %6272 = vmatprep.subr.mxu0 0.0
      %6273 = vmatpush1.msra.mxu0 0.0
      %6274 = vmatprep.subr.mxu0 0.0
      %6275 = vmatpush1.msra.mxu0 0.0
      %6276 = vmatprep.subr.mxu0 0.0
      %6277 = vmatpush1.msra.mxu0 0.0
      %6278 = vmatprep.subr.mxu0 0.0
      %6279 = vmatpush1.msra.mxu0 0.0
      %6280 = vmatprep.subr.mxu0 0.0
      %6281 = vmatpush1.msra.mxu0 0.0
      %6282 = vmatprep.subr.mxu0 0.0
      %6283 = vmatpush1.msra.mxu0 0.0
      %6284 = vmatprep.subr.mxu0 0.0
      %6285 = vmatpush1.msra.mxu0 0.0
      %6286 = vmatprep.subr.mxu0 0.0
      %6287 = vmatpush1.msra.mxu0 0.0
      %6288 = vmatprep.subr.mxu0 0.0
      %6289 = vmatpush1.msra.mxu0 0.0
      %6290 = vmatprep.subr.mxu0 0.0
      %6291 = vmatpush1.msra.mxu0 0.0
      %6292 = vmatprep.subr.mxu0 0.0
      %6293 = vmatpush1.msra.mxu0 0.0
      %6294 = vmatprep.subr.mxu0 0.0
      %6295 = vmatpush1.msra.mxu0 0.0
      %6296 = vmatprep.subr.mxu0 0.0
      %6297 = vmatpush1.msra.mxu0 0.0
      %6298 = vmatprep.subr.mxu0 0.0
      %6299 = vmatpush1.msra.mxu0 0.0
      %6300 = vmatprep.subr.mxu0 0.0
      %6301 = vmatpush1.msra.mxu0 0.0
      %6302 = vmatprep.subr.mxu0 0.0
      %6303 = vmatpush1.msra.mxu0 0.0
      %6304 = vmatprep.subr.mxu0 0.0
      %6305 = vmatpush1.msra.mxu0 0.0
      %6306 = vmatprep.subr.mxu0 0.0
      %6307 = vmatpush1.msra.mxu0 0.0
      %6308 = vmatprep.subr.mxu0 0.0
      %6309 = vmatpush1.msra.mxu0 0.0
      %6310 = vmatprep.subr.mxu0 0.0
      %6311 = vmatpush1.msra.mxu0 0.0
      %6312 = vmatprep.subr.mxu0 0.0
      %6313 = vmatpush1.msra.mxu0 0.0
      %6314 = vmatprep.subr.mxu0 0.0
      %6315 = vmatpush1.msra.mxu0 0.0
      %6316 = vmatprep.subr.mxu0 0.0
      %6317 = vmatpush1.msra.mxu0 0.0
      %6318 = vmatprep.subr.mxu0 0.0
      %6319 = vmatpush1.msra.mxu0 0.0
      %6320 = vmatprep.subr.mxu0 0.0
      %6321 = vmatpush1.msra.mxu0 0.0
      %6322 = vmatprep.subr.mxu0 0.0
      %6323 = vmatpush1.msra.mxu0 0.0
      %6324 = vmatprep.subr.mxu0 0.0
      %6325 = vmatpush1.msra.mxu0 0.0
      %6326 = vmatprep.subr.mxu0 0.0
      %6327 = vmatpush1.msra.mxu0 0.0
      %6328 = vmatprep.subr.mxu0 0.0
      %6329 = vmatpush1.msra.mxu0 0.0
      %6330 = vmatprep.subr.mxu0 0.0
      %6331 = vmatpush1.msra.mxu0 0.0
      %6332 = vmatprep.mubr.f32.mxu0 0.0
      %v6333 = vand.u32 %v5854, 4294901760
      %v6334 = vsub.f32 %v5854, %v6333
      %v6335 = vand.u32 %v6334, 4294901760
      %6336 = vmatmul.mubr.f32.gmra.mrb[0].mxu0 %v6335
      %v6337 = vpop.f32.mrb[0].mxu0
      %v6338 = vadd.f32 %v6215, %v6337
      %v6339 = vpop.f32.mrb[0].mxu0
      %6340 = vmatprep.mubr.f32.mxu0 0.0
      %v6341 = vand.u32 %v5857, 4294901760
      %v6342 = vsub.f32 %v5857, %v6341
      %v6343 = vand.u32 %v6342, 4294901760
      %6344 = vmatmul.mubr.f32.gmra.mrb[0].mxu0 %v6343
      %v6345 = vpop.f32.mrb[0].mxu0
      %v6346 = vadd.f32 %v6222, %v6345
      %v6347 = vpop.f32.mrb[0].mxu0
      %6348 = vmatprep.mubr.f32.mxu0 0.0
      %v6349 = vand.u32 %v5860, 4294901760
      %v6350 = vsub.f32 %v5860, %v6349
      %v6351 = vand.u32 %v6350, 4294901760
      %6352 = vmatmul.mubr.f32.gmra.mrb[0].mxu0 %v6351
      %v6353 = vpop.f32.mrb[0].mxu0
      %v6354 = vadd.f32 %v6229, %v6353
      %v6355 = vpop.f32.mrb[0].mxu0
      %6356 = vmatprep.mubr.f32.mxu0 0.0
      %v6357 = vand.u32 %v5863, 4294901760
      %v6358 = vsub.f32 %v5863, %v6357
      %v6359 = vand.u32 %v6358, 4294901760
      %6360 = vmatmul.mubr.f32.gmra.mrb[0].mxu0 %v6359
      %v6361 = vpop.f32.mrb[0].mxu0
      %v6362 = vadd.f32 %v6236, %v6361
      %v6363 = vpop.f32.mrb[0].mxu0
      %6364 = vmatprep.mubr.f32.mxu0 0.0
      %v6365 = vand.u32 %v5866, 4294901760
      %v6366 = vsub.f32 %v5866, %v6365
      %v6367 = vand.u32 %v6366, 4294901760
      %6368 = vmatmul.mubr.f32.gmra.mrb[0].mxu0 %v6367
      %v6369 = vpop.f32.mrb[0].mxu0
      %v6370 = vadd.f32 %v6243, %v6369
      %v6371 = vpop.f32.mrb[0].mxu0
      %6372 = vmatprep.mubr.f32.mxu0 0.0
      %v6373 = vand.u32 %v5869, 4294901760
      %v6374 = vsub.f32 %v5869, %v6373
      %v6375 = vand.u32 %v6374, 4294901760
      %6376 = vmatmul.mubr.f32.gmra.mrb[0].mxu0 %v6375
      %v6377 = vpop.f32.mrb[0].mxu0
      %v6378 = vadd.f32 %v6250, %v6377
      %v6379 = vpop.f32.mrb[0].mxu0
      %6380 = vmatprep.mubr.f32.mxu0 0.0
      %v6381 = vand.u32 %v5872, 4294901760
      %v6382 = vsub.f32 %v5872, %v6381
      %v6383 = vand.u32 %v6382, 4294901760
      %6384 = vmatmul.mubr.f32.gmra.mrb[0].mxu0 %v6383
      %v6385 = vpop.f32.mrb[0].mxu0
      %v6386 = vadd.f32 %v6257, %v6385
      %v6387 = vpop.f32.mrb[0].mxu0
      %6388 = vmatprep.mubr.f32.mxu0 0.0
      %v6389 = vand.u32 %v5875, 4294901760
      %v6390 = vsub.f32 %v5875, %v6389
      %v6391 = vand.u32 %v6390, 4294901760
      %6392 = vmatmul.mubr.f32.gmra.mrb[0].mxu0 %v6391
      %v6393 = vpop.f32.mrb[0].mxu0
      %v6394 = vadd.f32 %v6264, %v6393
      %v6395 = vpop.f32.mrb[0].mxu0
      %6396 = vdwg.mxu0
      %6397 = vmatprep.subr.mxu0 0.0
      %v6398 = vand.u32 %v5878, 4294901760
      %v6399 = vsub.f32 %v5878, %v6398
      %v6400 = vand.u32 %v6399, 4294901760
      %6401 = vmatpush1.msra.mxu0 %v6400
      %6402 = vmatprep.subr.mxu0 0.0
      %6403 = vmatpush1.msra.mxu0 0.0
      %6404 = vmatprep.subr.mxu0 0.0
      %6405 = vmatpush1.msra.mxu0 0.0
      %6406 = vmatprep.subr.mxu0 0.0
      %6407 = vmatpush1.msra.mxu0 0.0
      %6408 = vmatprep.subr.mxu0 0.0
      %6409 = vmatpush1.msra.mxu0 0.0
      %6410 = vmatprep.subr.mxu0 0.0
      %6411 = vmatpush1.msra.mxu0 0.0
      %6412 = vmatprep.subr.mxu0 0.0
      %6413 = vmatpush1.msra.mxu0 0.0
      %6414 = vmatprep.subr.mxu0 0.0
      %6415 = vmatpush1.msra.mxu0 0.0
      %6416 = vmatprep.subr.mxu0 0.0
      %6417 = vmatpush1.msra.mxu0 0.0
      %6418 = vmatprep.subr.mxu0 0.0
      %6419 = vmatpush1.msra.mxu0 0.0
      %6420 = vmatprep.subr.mxu0 0.0
      %6421 = vmatpush1.msra.mxu0 0.0
      %6422 = vmatprep.subr.mxu0 0.0
      %6423 = vmatpush1.msra.mxu0 0.0
      %6424 = vmatprep.subr.mxu0 0.0
      %6425 = vmatpush1.msra.mxu0 0.0
      %6426 = vmatprep.subr.mxu0 0.0
      %6427 = vmatpush1.msra.mxu0 0.0
      %6428 = vmatprep.subr.mxu0 0.0
      %6429 = vmatpush1.msra.mxu0 0.0
      %6430 = vmatprep.subr.mxu0 0.0
      %6431 = vmatpush1.msra.mxu0 0.0
      %6432 = vmatprep.subr.mxu0 0.0
      %6433 = vmatpush1.msra.mxu0 0.0
      %6434 = vmatprep.subr.mxu0 0.0
      %6435 = vmatpush1.msra.mxu0 0.0
      %6436 = vmatprep.subr.mxu0 0.0
      %6437 = vmatpush1.msra.mxu0 0.0
      %6438 = vmatprep.subr.mxu0 0.0
      %6439 = vmatpush1.msra.mxu0 0.0
      %6440 = vmatprep.subr.mxu0 0.0
      %6441 = vmatpush1.msra.mxu0 0.0
      %6442 = vmatprep.subr.mxu0 0.0
      %6443 = vmatpush1.msra.mxu0 0.0
      %6444 = vmatprep.subr.mxu0 0.0
      %6445 = vmatpush1.msra.mxu0 0.0
      %6446 = vmatprep.subr.mxu0 0.0
      %6447 = vmatpush1.msra.mxu0 0.0
      %6448 = vmatprep.subr.mxu0 0.0
      %6449 = vmatpush1.msra.mxu0 0.0
      %6450 = vmatprep.subr.mxu0 0.0
      %6451 = vmatpush1.msra.mxu0 0.0
      %6452 = vmatprep.subr.mxu0 0.0
      %6453 = vmatpush1.msra.mxu0 0.0
      %6454 = vmatprep.subr.mxu0 0.0
      %6455 = vmatpush1.msra.mxu0 0.0
      %6456 = vmatprep.subr.mxu0 0.0
      %6457 = vmatpush1.msra.mxu0 0.0
      %6458 = vmatprep.subr.mxu0 0.0
      %6459 = vmatpush1.msra.mxu0 0.0
      %6460 = vmatprep.subr.mxu0 0.0
      %6461 = vmatpush1.msra.mxu0 0.0
      %6462 = vmatprep.subr.mxu0 0.0
      %6463 = vmatpush1.msra.mxu0 0.0
      %6464 = vmatprep.mubr.f32.mxu0 0.0
      %v6465 = vand.u32 %v5854, 4294901760
      %6466 = vmatmul.mubr.f32.gmra.mrb[0].mxu0 %v6465
      %v6467 = vpop.f32.mrb[0].mxu0
      %v6468 = vadd.f32 %v6338, %v6467
      %v6469 = vpop.f32.mrb[0].mxu0
      %6470 = vmatprep.mubr.f32.mxu0 0.0
      %v6471 = vand.u32 %v5857, 4294901760
      %6472 = vmatmul.mubr.f32.gmra.mrb[0].mxu0 %v6471
      %v6473 = vpop.f32.mrb[0].mxu0
      %v6474 = vadd.f32 %v6346, %v6473
      %v6475 = vpop.f32.mrb[0].mxu0
      %6476 = vmatprep.mubr.f32.mxu0 0.0
      %v6477 = vand.u32 %v5860, 4294901760
      %6478 = vmatmul.mubr.f32.gmra.mrb[0].mxu0 %v6477
      %v6479 = vpop.f32.mrb[0].mxu0
      %v6480 = vadd.f32 %v6354, %v6479
      %v6481 = vpop.f32.mrb[0].mxu0
      %6482 = vmatprep.mubr.f32.mxu0 0.0
      %v6483 = vand.u32 %v5863, 4294901760
      %6484 = vmatmul.mubr.f32.gmra.mrb[0].mxu0 %v6483
      %v6485 = vpop.f32.mrb[0].mxu0
      %v6486 = vadd.f32 %v6362, %v6485
      %v6487 = vpop.f32.mrb[0].mxu0
      %6488 = vmatprep.mubr.f32.mxu0 0.0
      %v6489 = vand.u32 %v5866, 4294901760
      %6490 = vmatmul.mubr.f32.gmra.mrb[0].mxu0 %v6489
      %v6491 = vpop.f32.mrb[0].mxu0
      %v6492 = vadd.f32 %v6370, %v6491
      %v6493 = vpop.f32.mrb[0].mxu0
      %6494 = vmatprep.mubr.f32.mxu0 0.0
      %v6495 = vand.u32 %v5869, 4294901760
      %6496 = vmatmul.mubr.f32.gmra.mrb[0].mxu0 %v6495
      %v6497 = vpop.f32.mrb[0].mxu0
      %v6498 = vadd.f32 %v6378, %v6497
      %v6499 = vpop.f32.mrb[0].mxu0
      %6500 = vmatprep.mubr.f32.mxu0 0.0
      %v6501 = vand.u32 %v5872, 4294901760
      %6502 = vmatmul.mubr.f32.gmra.mrb[0].mxu0 %v6501
      %v6503 = vpop.f32.mrb[0].mxu0
      %v6504 = vadd.f32 %v6386, %v6503
      %v6505 = vpop.f32.mrb[0].mxu0
      %6506 = vmatprep.mubr.f32.mxu0 0.0
      %v6507 = vand.u32 %v5875, 4294901760
      %6508 = vmatmul.mubr.f32.gmra.mrb[0].mxu0 %v6507
      %v6509 = vpop.f32.mrb[0].mxu0
      %v6510 = vadd.f32 %v6394, %v6509
      %v6511 = vpop.f32.mrb[0].mxu0
      %6512 = vdwg.mxu0
      %6513 = vmatprep.subr.mxu0 0.0
      %v6514 = vand.u32 %v5878, 4294901760
      %6515 = vmatpush1.msra.mxu0 %v6514
      %6516 = vmatprep.subr.mxu0 0.0
      %6517 = vmatpush1.msra.mxu0 0.0
      %6518 = vmatprep.subr.mxu0 0.0
      %6519 = vmatpush1.msra.mxu0 0.0
      %6520 = vmatprep.subr.mxu0 0.0
      %6521 = vmatpush1.msra.mxu0 0.0
      %6522 = vmatprep.subr.mxu0 0.0
      %6523 = vmatpush1.msra.mxu0 0.0
      %6524 = vmatprep.subr.mxu0 0.0
      %6525 = vmatpush1.msra.mxu0 0.0
      %6526 = vmatprep.subr.mxu0 0.0
      %6527 = vmatpush1.msra.mxu0 0.0
      %6528 = vmatprep.subr.mxu0 0.0
      %6529 = vmatpush1.msra.mxu0 0.0
      %6530 = vmatprep.subr.mxu0 0.0
      %6531 = vmatpush1.msra.mxu0 0.0
      %6532 = vmatprep.subr.mxu0 0.0
      %6533 = vmatpush1.msra.mxu0 0.0
      %6534 = vmatprep.subr.mxu0 0.0
      %6535 = vmatpush1.msra.mxu0 0.0
      %6536 = vmatprep.subr.mxu0 0.0
      %6537 = vmatpush1.msra.mxu0 0.0
      %6538 = vmatprep.subr.mxu0 0.0
      %6539 = vmatpush1.msra.mxu0 0.0
      %6540 = vmatprep.subr.mxu0 0.0
      %6541 = vmatpush1.msra.mxu0 0.0
      %6542 = vmatprep.subr.mxu0 0.0
      %6543 = vmatpush1.msra.mxu0 0.0
      %6544 = vmatprep.subr.mxu0 0.0
      %6545 = vmatpush1.msra.mxu0 0.0
      %6546 = vmatprep.subr.mxu0 0.0
      %6547 = vmatpush1.msra.mxu0 0.0
      %6548 = vmatprep.subr.mxu0 0.0
      %6549 = vmatpush1.msra.mxu0 0.0
      %6550 = vmatprep.subr.mxu0 0.0
      %6551 = vmatpush1.msra.mxu0 0.0
      %6552 = vmatprep.subr.mxu0 0.0
      %6553 = vmatpush1.msra.mxu0 0.0
      %6554 = vmatprep.subr.mxu0 0.0
      %6555 = vmatpush1.msra.mxu0 0.0
      %6556 = vmatprep.subr.mxu0 0.0
      %6557 = vmatpush1.msra.mxu0 0.0
      %6558 = vmatprep.subr.mxu0 0.0
      %6559 = vmatpush1.msra.mxu0 0.0
      %6560 = vmatprep.subr.mxu0 0.0
      %6561 = vmatpush1.msra.mxu0 0.0
      %6562 = vmatprep.subr.mxu0 0.0
      %6563 = vmatpush1.msra.mxu0 0.0
      %6564 = vmatprep.subr.mxu0 0.0
      %6565 = vmatpush1.msra.mxu0 0.0
      %6566 = vmatprep.subr.mxu0 0.0
      %6567 = vmatpush1.msra.mxu0 0.0
      %6568 = vmatprep.subr.mxu0 0.0
      %6569 = vmatpush1.msra.mxu0 0.0
      %6570 = vmatprep.subr.mxu0 0.0
      %6571 = vmatpush1.msra.mxu0 0.0
      %6572 = vmatprep.subr.mxu0 0.0
      %6573 = vmatpush1.msra.mxu0 0.0
      %6574 = vmatprep.subr.mxu0 0.0
      %6575 = vmatpush1.msra.mxu0 0.0
      %6576 = vmatprep.subr.mxu0 0.0
      %6577 = vmatpush1.msra.mxu0 0.0
      %6578 = vmatprep.mubr.f32.mxu0 0.0
      %v6579 = vand.u32 %v5854, 4294901760
      %6580 = vmatmul.mubr.f32.gmra.mrb[0].mxu0 %v6579
      %v6581 = vpop.f32.mrb[0].mxu0
      %v6582 = vadd.f32 %v6468, %v6581
      %v6583 = vpop.f32.mrb[0].mxu0
      %6584 = vmatprep.mubr.f32.mxu0 0.0
      %v6585 = vand.u32 %v5857, 4294901760
      %6586 = vmatmul.mubr.f32.gmra.mrb[0].mxu0 %v6585
      %v6587 = vpop.f32.mrb[0].mxu0
      %v6588 = vadd.f32 %v6474, %v6587
      %v6589 = vpop.f32.mrb[0].mxu0
      %6590 = vmatprep.mubr.f32.mxu0 0.0
      %v6591 = vand.u32 %v5860, 4294901760
      %6592 = vmatmul.mubr.f32.gmra.mrb[0].mxu0 %v6591
      %v6593 = vpop.f32.mrb[0].mxu0
      %v6594 = vadd.f32 %v6480, %v6593
      %v6595 = vpop.f32.mrb[0].mxu0
      %6596 = vmatprep.mubr.f32.mxu0 0.0
      %v6597 = vand.u32 %v5863, 4294901760
      %6598 = vmatmul.mubr.f32.gmra.mrb[0].mxu0 %v6597
      %v6599 = vpop.f32.mrb[0].mxu0
      %v6600 = vadd.f32 %v6486, %v6599
      %v6601 = vpop.f32.mrb[0].mxu0
      %6602 = vmatprep.mubr.f32.mxu0 0.0
      %v6603 = vand.u32 %v5866, 4294901760
      %6604 = vmatmul.mubr.f32.gmra.mrb[0].mxu0 %v6603
      %v6605 = vpop.f32.mrb[0].mxu0
      %v6606 = vadd.f32 %v6492, %v6605
      %v6607 = vpop.f32.mrb[0].mxu0
      %6608 = vmatprep.mubr.f32.mxu0 0.0
      %v6609 = vand.u32 %v5869, 4294901760
      %6610 = vmatmul.mubr.f32.gmra.mrb[0].mxu0 %v6609
      %v6611 = vpop.f32.mrb[0].mxu0
      %v6612 = vadd.f32 %v6498, %v6611
      %v6613 = vpop.f32.mrb[0].mxu0
      %6614 = vmatprep.mubr.f32.mxu0 0.0
      %v6615 = vand.u32 %v5872, 4294901760
      %6616 = vmatmul.mubr.f32.gmra.mrb[0].mxu0 %v6615
      %v6617 = vpop.f32.mrb[0].mxu0
      %v6618 = vadd.f32 %v6504, %v6617
      %v6619 = vpop.f32.mrb[0].mxu0
      %6620 = vmatprep.mubr.f32.mxu0 0.0
      %v6621 = vand.u32 %v5875, 4294901760
      %6622 = vmatmul.mubr.f32.gmra.mrb[0].mxu0 %v6621
      %v6623 = vpop.f32.mrb[0].mxu0
      %v6624 = vadd.f32 %v6510, %v6623
      %v6625 = vpop.f32.mrb[0].mxu0
      %6626 = vdwg.mxu0
      %v6627 = vadd.f32 %v5834, %v6582
      %v6628 = vadd.f32 %v5835, %v6588
      %v6629 = vadd.f32 %v5836, %v6594
      %v6630 = vadd.f32 %v5837, %v6600
      %v6631 = vadd.f32 %v5838, %v6606
      %v6632 = vadd.f32 %v5839, %v6612
      %v6633 = vadd.f32 %v5840, %v6618
      %v6634 = vadd.f32 %v5841, %v6624
      %v6635 = vld [vmem:[%s5049 + $0x1] sm:$0xff]
      %v6636 = vld [vmem:[%s5049 + $0x11] sm:$0xff]
      %v6637 = vld [vmem:[%s5049 + $0x21] sm:$0xff]
      %v6638 = vld [vmem:[%s5049 + $0x31] sm:$0xff]
      %v6639 = vld [vmem:[%s5049 + $0x41] sm:$0xff]
      %v6640 = vld [vmem:[%s5049 + $0x51] sm:$0xff]
      %v6641 = vld [vmem:[%s5049 + $0x61] sm:$0xff]
      %v6642 = vld [vmem:[%s5049 + $0x71] sm:$0xff]
      %s6643 = scalar_lea.vmem %s4, 32
      %v6644 = vld [vmem:[%s6643] sm:$0xf]
      %v6646 = vsel %vm331, %v6635, 0
      %v6649 = vsel %vm331, %v6636, 0
      %v6652 = vsel %vm331, %v6637, 0
      %v6655 = vsel %vm331, %v6638, 0
      %v6658 = vsel %vm331, %v6639, 0
      %v6661 = vsel %vm331, %v6640, 0
      %v6664 = vsel %vm331, %v6641, 0
      %v6667 = vsel %vm331, %v6642, 0
      %v6670 = vsel %vm356, %v6644, 0
      %6672 = vmatprep.subr.mxu0 0.0
      %v6673 = vand.u32 %v6670, 4294901760
      %6674 = vmatpush1.msra.mxu0 %v6673
      %6675 = vmatprep.subr.mxu0 0.0
      %6676 = vmatpush1.msra.mxu0 0.0
      %6677 = vmatprep.subr.mxu0 0.0
      %6678 = vmatpush1.msra.mxu0 0.0
      %6679 = vmatprep.subr.mxu0 0.0
      %6680 = vmatpush1.msra.mxu0 0.0
      %6681 = vmatprep.subr.mxu0 0.0
      %6682 = vmatpush1.msra.mxu0 0.0
      %6683 = vmatprep.subr.mxu0 0.0
      %6684 = vmatpush1.msra.mxu0 0.0
      %6685 = vmatprep.subr.mxu0 0.0
      %6686 = vmatpush1.msra.mxu0 0.0
      %6687 = vmatprep.subr.mxu0 0.0
      %6688 = vmatpush1.msra.mxu0 0.0
      %6689 = vmatprep.subr.mxu0 0.0
      %6690 = vmatpush1.msra.mxu0 0.0
      %6691 = vmatprep.subr.mxu0 0.0
      %6692 = vmatpush1.msra.mxu0 0.0
      %6693 = vmatprep.subr.mxu0 0.0
      %6694 = vmatpush1.msra.mxu0 0.0
      %6695 = vmatprep.subr.mxu0 0.0
      %6696 = vmatpush1.msra.mxu0 0.0
      %6697 = vmatprep.subr.mxu0 0.0
      %6698 = vmatpush1.msra.mxu0 0.0
      %6699 = vmatprep.subr.mxu0 0.0
      %6700 = vmatpush1.msra.mxu0 0.0
      %6701 = vmatprep.subr.mxu0 0.0
      %6702 = vmatpush1.msra.mxu0 0.0
      %6703 = vmatprep.subr.mxu0 0.0
      %6704 = vmatpush1.msra.mxu0 0.0
      %6705 = vmatprep.subr.mxu0 0.0
      %6706 = vmatpush1.msra.mxu0 0.0
      %6707 = vmatprep.subr.mxu0 0.0
      %6708 = vmatpush1.msra.mxu0 0.0
      %6709 = vmatprep.subr.mxu0 0.0
      %6710 = vmatpush1.msra.mxu0 0.0
      %6711 = vmatprep.subr.mxu0 0.0
      %6712 = vmatpush1.msra.mxu0 0.0
      %6713 = vmatprep.subr.mxu0 0.0
      %6714 = vmatpush1.msra.mxu0 0.0
      %6715 = vmatprep.subr.mxu0 0.0
      %6716 = vmatpush1.msra.mxu0 0.0
      %6717 = vmatprep.subr.mxu0 0.0
      %6718 = vmatpush1.msra.mxu0 0.0
      %6719 = vmatprep.subr.mxu0 0.0
      %6720 = vmatpush1.msra.mxu0 0.0
      %6721 = vmatprep.subr.mxu0 0.0
      %6722 = vmatpush1.msra.mxu0 0.0
      %6723 = vmatprep.subr.mxu0 0.0
      %6724 = vmatpush1.msra.mxu0 0.0
      %6725 = vmatprep.subr.mxu0 0.0
      %6726 = vmatpush1.msra.mxu0 0.0
      %6727 = vmatprep.subr.mxu0 0.0
      %6728 = vmatpush1.msra.mxu0 0.0
      %6729 = vmatprep.subr.mxu0 0.0
      %6730 = vmatpush1.msra.mxu0 0.0
      %6731 = vmatprep.subr.mxu0 0.0
      %6732 = vmatpush1.msra.mxu0 0.0
      %6733 = vmatprep.subr.mxu0 0.0
      %6734 = vmatpush1.msra.mxu0 0.0
      %6735 = vmatprep.subr.mxu0 0.0
      %6736 = vmatpush1.msra.mxu0 0.0
      %6737 = vmatprep.mubr.f32.mxu0 0.0
      %v6738 = vand.u32 %v6646, 4294901760
      %v6739 = vsub.f32 %v6646, %v6738
      %v6740 = vand.u32 %v6739, 4294901760
      %v6741 = vsub.f32 %v6739, %v6740
      %v6742 = vand.u32 %v6741, 4294901760
      %6743 = vmatmul.mubr.f32.gmra.mrb[0].mxu0 %v6742
      %v6744 = vpop.f32.mrb[0].mxu0
      %v6745 = vadd.f32 0.0, %v6744
      %v6746 = vpop.f32.mrb[0].mxu0
      %6747 = vmatprep.mubr.f32.mxu0 0.0
      %v6748 = vand.u32 %v6649, 4294901760
      %v6749 = vsub.f32 %v6649, %v6748
      %v6750 = vand.u32 %v6749, 4294901760
      %v6751 = vsub.f32 %v6749, %v6750
      %v6752 = vand.u32 %v6751, 4294901760
      %6753 = vmatmul.mubr.f32.gmra.mrb[0].mxu0 %v6752
      %v6754 = vpop.f32.mrb[0].mxu0
      %v6755 = vadd.f32 0.0, %v6754
      %v6756 = vpop.f32.mrb[0].mxu0
      %6757 = vmatprep.mubr.f32.mxu0 0.0
      %v6758 = vand.u32 %v6652, 4294901760
      %v6759 = vsub.f32 %v6652, %v6758
      %v6760 = vand.u32 %v6759, 4294901760
      %v6761 = vsub.f32 %v6759, %v6760
      %v6762 = vand.u32 %v6761, 4294901760
      %6763 = vmatmul.mubr.f32.gmra.mrb[0].mxu0 %v6762
      %v6764 = vpop.f32.mrb[0].mxu0
      %v6765 = vadd.f32 0.0, %v6764
      %v6766 = vpop.f32.mrb[0].mxu0
      %6767 = vmatprep.mubr.f32.mxu0 0.0
      %v6768 = vand.u32 %v6655, 4294901760
      %v6769 = vsub.f32 %v6655, %v6768
      %v6770 = vand.u32 %v6769, 4294901760
      %v6771 = vsub.f32 %v6769, %v6770
      %v6772 = vand.u32 %v6771, 4294901760
      %6773 = vmatmul.mubr.f32.gmra.mrb[0].mxu0 %v6772
      %v6774 = vpop.f32.mrb[0].mxu0
      %v6775 = vadd.f32 0.0, %v6774
      %v6776 = vpop.f32.mrb[0].mxu0
      %6777 = vmatprep.mubr.f32.mxu0 0.0
      %v6778 = vand.u32 %v6658, 4294901760
      %v6779 = vsub.f32 %v6658, %v6778
      %v6780 = vand.u32 %v6779, 4294901760
      %v6781 = vsub.f32 %v6779, %v6780
      %v6782 = vand.u32 %v6781, 4294901760
      %6783 = vmatmul.mubr.f32.gmra.mrb[0].mxu0 %v6782
      %v6784 = vpop.f32.mrb[0].mxu0
      %v6785 = vadd.f32 0.0, %v6784
      %v6786 = vpop.f32.mrb[0].mxu0
      %6787 = vmatprep.mubr.f32.mxu0 0.0
      %v6788 = vand.u32 %v6661, 4294901760
      %v6789 = vsub.f32 %v6661, %v6788
      %v6790 = vand.u32 %v6789, 4294901760
      %v6791 = vsub.f32 %v6789, %v6790
      %v6792 = vand.u32 %v6791, 4294901760
      %6793 = vmatmul.mubr.f32.gmra.mrb[0].mxu0 %v6792
      %v6794 = vpop.f32.mrb[0].mxu0
      %v6795 = vadd.f32 0.0, %v6794
      %v6796 = vpop.f32.mrb[0].mxu0
      %6797 = vmatprep.mubr.f32.mxu0 0.0
      %v6798 = vand.u32 %v6664, 4294901760
      %v6799 = vsub.f32 %v6664, %v6798
      %v6800 = vand.u32 %v6799, 4294901760
      %v6801 = vsub.f32 %v6799, %v6800
      %v6802 = vand.u32 %v6801, 4294901760
      %6803 = vmatmul.mubr.f32.gmra.mrb[0].mxu0 %v6802
      %v6804 = vpop.f32.mrb[0].mxu0
      %v6805 = vadd.f32 0.0, %v6804
      %v6806 = vpop.f32.mrb[0].mxu0
      %6807 = vmatprep.mubr.f32.mxu0 0.0
      %v6808 = vand.u32 %v6667, 4294901760
      %v6809 = vsub.f32 %v6667, %v6808
      %v6810 = vand.u32 %v6809, 4294901760
      %v6811 = vsub.f32 %v6809, %v6810
      %v6812 = vand.u32 %v6811, 4294901760
      %6813 = vmatmul.mubr.f32.gmra.mrb[0].mxu0 %v6812
      %v6814 = vpop.f32.mrb[0].mxu0
      %v6815 = vadd.f32 0.0, %v6814
      %v6816 = vpop.f32.mrb[0].mxu0
      %6817 = vdwg.mxu0
      %6818 = vmatprep.subr.mxu0 0.0
      %v6819 = vand.u32 %v6670, 4294901760
      %v6820 = vsub.f32 %v6670, %v6819
      %v6821 = vand.u32 %v6820, 4294901760
      %v6822 = vsub.f32 %v6820, %v6821
      %v6823 = vand.u32 %v6822, 4294901760
      %6824 = vmatpush1.msra.mxu0 %v6823
      %6825 = vmatprep.subr.mxu0 0.0
      %6826 = vmatpush1.msra.mxu0 0.0
      %6827 = vmatprep.subr.mxu0 0.0
      %6828 = vmatpush1.msra.mxu0 0.0
      %6829 = vmatprep.subr.mxu0 0.0
      %6830 = vmatpush1.msra.mxu0 0.0
      %6831 = vmatprep.subr.mxu0 0.0
      %6832 = vmatpush1.msra.mxu0 0.0
      %6833 = vmatprep.subr.mxu0 0.0
      %6834 = vmatpush1.msra.mxu0 0.0
      %6835 = vmatprep.subr.mxu0 0.0
      %6836 = vmatpush1.msra.mxu0 0.0
      %6837 = vmatprep.subr.mxu0 0.0
      %6838 = vmatpush1.msra.mxu0 0.0
      %6839 = vmatprep.subr.mxu0 0.0
      %6840 = vmatpush1.msra.mxu0 0.0
      %6841 = vmatprep.subr.mxu0 0.0
      %6842 = vmatpush1.msra.mxu0 0.0
      %6843 = vmatprep.subr.mxu0 0.0
      %6844 = vmatpush1.msra.mxu0 0.0
      %6845 = vmatprep.subr.mxu0 0.0
      %6846 = vmatpush1.msra.mxu0 0.0
      %6847 = vmatprep.subr.mxu0 0.0
      %6848 = vmatpush1.msra.mxu0 0.0
      %6849 = vmatprep.subr.mxu0 0.0
      %6850 = vmatpush1.msra.mxu0 0.0
      %6851 = vmatprep.subr.mxu0 0.0
      %6852 = vmatpush1.msra.mxu0 0.0
      %6853 = vmatprep.subr.mxu0 0.0
      %6854 = vmatpush1.msra.mxu0 0.0
      %6855 = vmatprep.subr.mxu0 0.0
      %6856 = vmatpush1.msra.mxu0 0.0
      %6857 = vmatprep.subr.mxu0 0.0
      %6858 = vmatpush1.msra.mxu0 0.0
      %6859 = vmatprep.subr.mxu0 0.0
      %6860 = vmatpush1.msra.mxu0 0.0
      %6861 = vmatprep.subr.mxu0 0.0
      %6862 = vmatpush1.msra.mxu0 0.0
      %6863 = vmatprep.subr.mxu0 0.0
      %6864 = vmatpush1.msra.mxu0 0.0
      %6865 = vmatprep.subr.mxu0 0.0
      %6866 = vmatpush1.msra.mxu0 0.0
      %6867 = vmatprep.subr.mxu0 0.0
      %6868 = vmatpush1.msra.mxu0 0.0
      %6869 = vmatprep.subr.mxu0 0.0
      %6870 = vmatpush1.msra.mxu0 0.0
      %6871 = vmatprep.subr.mxu0 0.0
      %6872 = vmatpush1.msra.mxu0 0.0
      %6873 = vmatprep.subr.mxu0 0.0
      %6874 = vmatpush1.msra.mxu0 0.0
      %6875 = vmatprep.subr.mxu0 0.0
      %6876 = vmatpush1.msra.mxu0 0.0
      %6877 = vmatprep.subr.mxu0 0.0
      %6878 = vmatpush1.msra.mxu0 0.0
      %6879 = vmatprep.subr.mxu0 0.0
      %6880 = vmatpush1.msra.mxu0 0.0
      %6881 = vmatprep.subr.mxu0 0.0
      %6882 = vmatpush1.msra.mxu0 0.0
      %6883 = vmatprep.subr.mxu0 0.0
      %6884 = vmatpush1.msra.mxu0 0.0
      %6885 = vmatprep.subr.mxu0 0.0
      %6886 = vmatpush1.msra.mxu0 0.0
      %6887 = vmatprep.mubr.f32.mxu0 0.0
      %v6888 = vand.u32 %v6646, 4294901760
      %6889 = vmatmul.mubr.f32.gmra.mrb[0].mxu0 %v6888
      %v6890 = vpop.f32.mrb[0].mxu0
      %v6891 = vadd.f32 %v6745, %v6890
      %v6892 = vpop.f32.mrb[0].mxu0
      %6893 = vmatprep.mubr.f32.mxu0 0.0
      %v6894 = vand.u32 %v6649, 4294901760
      %6895 = vmatmul.mubr.f32.gmra.mrb[0].mxu0 %v6894
      %v6896 = vpop.f32.mrb[0].mxu0
      %v6897 = vadd.f32 %v6755, %v6896
      %v6898 = vpop.f32.mrb[0].mxu0
      %6899 = vmatprep.mubr.f32.mxu0 0.0
      %v6900 = vand.u32 %v6652, 4294901760
      %6901 = vmatmul.mubr.f32.gmra.mrb[0].mxu0 %v6900
      %v6902 = vpop.f32.mrb[0].mxu0
      %v6903 = vadd.f32 %v6765, %v6902
      %v6904 = vpop.f32.mrb[0].mxu0
      %6905 = vmatprep.mubr.f32.mxu0 0.0
      %v6906 = vand.u32 %v6655, 4294901760
      %6907 = vmatmul.mubr.f32.gmra.mrb[0].mxu0 %v6906
      %v6908 = vpop.f32.mrb[0].mxu0
      %v6909 = vadd.f32 %v6775, %v6908
      %v6910 = vpop.f32.mrb[0].mxu0
      %6911 = vmatprep.mubr.f32.mxu0 0.0
      %v6912 = vand.u32 %v6658, 4294901760
      %6913 = vmatmul.mubr.f32.gmra.mrb[0].mxu0 %v6912
      %v6914 = vpop.f32.mrb[0].mxu0
      %v6915 = vadd.f32 %v6785, %v6914
      %v6916 = vpop.f32.mrb[0].mxu0
      %6917 = vmatprep.mubr.f32.mxu0 0.0
      %v6918 = vand.u32 %v6661, 4294901760
      %6919 = vmatmul.mubr.f32.gmra.mrb[0].mxu0 %v6918
      %v6920 = vpop.f32.mrb[0].mxu0
      %v6921 = vadd.f32 %v6795, %v6920
      %v6922 = vpop.f32.mrb[0].mxu0
      %6923 = vmatprep.mubr.f32.mxu0 0.0
      %v6924 = vand.u32 %v6664, 4294901760
      %6925 = vmatmul.mubr.f32.gmra.mrb[0].mxu0 %v6924
      %v6926 = vpop.f32.mrb[0].mxu0
      %v6927 = vadd.f32 %v6805, %v6926
      %v6928 = vpop.f32.mrb[0].mxu0
      %6929 = vmatprep.mubr.f32.mxu0 0.0
      %v6930 = vand.u32 %v6667, 4294901760
      %6931 = vmatmul.mubr.f32.gmra.mrb[0].mxu0 %v6930
      %v6932 = vpop.f32.mrb[0].mxu0
      %v6933 = vadd.f32 %v6815, %v6932
      %v6934 = vpop.f32.mrb[0].mxu0
      %6935 = vdwg.mxu0
      %6936 = vmatprep.subr.mxu0 0.0
      %v6937 = vand.u32 %v6670, 4294901760
      %v6938 = vsub.f32 %v6670, %v6937
      %6939 = vmatpush1.msra.mxu0 %v6938
      %6940 = vmatprep.subr.mxu0 0.0
      %6941 = vmatpush1.msra.mxu0 0.0
      %6942 = vmatprep.subr.mxu0 0.0
      %6943 = vmatpush1.msra.mxu0 0.0
      %6944 = vmatprep.subr.mxu0 0.0
      %6945 = vmatpush1.msra.mxu0 0.0
      %6946 = vmatprep.subr.mxu0 0.0
      %6947 = vmatpush1.msra.mxu0 0.0
      %6948 = vmatprep.subr.mxu0 0.0
      %6949 = vmatpush1.msra.mxu0 0.0
      %6950 = vmatprep.subr.mxu0 0.0
      %6951 = vmatpush1.msra.mxu0 0.0
      %6952 = vmatprep.subr.mxu0 0.0
      %6953 = vmatpush1.msra.mxu0 0.0
      %6954 = vmatprep.subr.mxu0 0.0
      %6955 = vmatpush1.msra.mxu0 0.0
      %6956 = vmatprep.subr.mxu0 0.0
      %6957 = vmatpush1.msra.mxu0 0.0
      %6958 = vmatprep.subr.mxu0 0.0
      %6959 = vmatpush1.msra.mxu0 0.0
      %6960 = vmatprep.subr.mxu0 0.0
      %6961 = vmatpush1.msra.mxu0 0.0
      %6962 = vmatprep.subr.mxu0 0.0
      %6963 = vmatpush1.msra.mxu0 0.0
      %6964 = vmatprep.subr.mxu0 0.0
      %6965 = vmatpush1.msra.mxu0 0.0
      %6966 = vmatprep.subr.mxu0 0.0
      %6967 = vmatpush1.msra.mxu0 0.0
      %6968 = vmatprep.subr.mxu0 0.0
      %6969 = vmatpush1.msra.mxu0 0.0
      %6970 = vmatprep.subr.mxu0 0.0
      %6971 = vmatpush1.msra.mxu0 0.0
      %6972 = vmatprep.subr.mxu0 0.0
      %6973 = vmatpush1.msra.mxu0 0.0
      %6974 = vmatprep.subr.mxu0 0.0
      %6975 = vmatpush1.msra.mxu0 0.0
      %6976 = vmatprep.subr.mxu0 0.0
      %6977 = vmatpush1.msra.mxu0 0.0
      %6978 = vmatprep.subr.mxu0 0.0
      %6979 = vmatpush1.msra.mxu0 0.0
      %6980 = vmatprep.subr.mxu0 0.0
      %6981 = vmatpush1.msra.mxu0 0.0
      %6982 = vmatprep.subr.mxu0 0.0
      %6983 = vmatpush1.msra.mxu0 0.0
      %6984 = vmatprep.subr.mxu0 0.0
      %6985 = vmatpush1.msra.mxu0 0.0
      %6986 = vmatprep.subr.mxu0 0.0
      %6987 = vmatpush1.msra.mxu0 0.0
      %6988 = vmatprep.subr.mxu0 0.0
      %6989 = vmatpush1.msra.mxu0 0.0
      %6990 = vmatprep.subr.mxu0 0.0
      %6991 = vmatpush1.msra.mxu0 0.0
      %6992 = vmatprep.subr.mxu0 0.0
      %6993 = vmatpush1.msra.mxu0 0.0
      %6994 = vmatprep.subr.mxu0 0.0
      %6995 = vmatpush1.msra.mxu0 0.0
      %6996 = vmatprep.subr.mxu0 0.0
      %6997 = vmatpush1.msra.mxu0 0.0
      %6998 = vmatprep.subr.mxu0 0.0
      %6999 = vmatpush1.msra.mxu0 0.0
      %7000 = vmatprep.subr.mxu0 0.0
      %7001 = vmatpush1.msra.mxu0 0.0
      %7002 = vmatprep.mubr.f32.mxu0 0.0
      %v7003 = vand.u32 %v6646, 4294901760
      %v7004 = vsub.f32 %v6646, %v7003
      %7005 = vmatmul.mubr.f32.gmra.mrb[0].mxu0 %v7004
      %v7006 = vpop.f32.mrb[0].mxu0
      %v7007 = vadd.f32 %v6891, %v7006
      %v7008 = vpop.f32.mrb[0].mxu0
      %7009 = vmatprep.mubr.f32.mxu0 0.0
      %v7010 = vand.u32 %v6649, 4294901760
      %v7011 = vsub.f32 %v6649, %v7010
      %7012 = vmatmul.mubr.f32.gmra.mrb[0].mxu0 %v7011
      %v7013 = vpop.f32.mrb[0].mxu0
      %v7014 = vadd.f32 %v6897, %v7013
      %v7015 = vpop.f32.mrb[0].mxu0
      %7016 = vmatprep.mubr.f32.mxu0 0.0
      %v7017 = vand.u32 %v6652, 4294901760
      %v7018 = vsub.f32 %v6652, %v7017
      %7019 = vmatmul.mubr.f32.gmra.mrb[0].mxu0 %v7018
      %v7020 = vpop.f32.mrb[0].mxu0
      %v7021 = vadd.f32 %v6903, %v7020
      %v7022 = vpop.f32.mrb[0].mxu0
      %7023 = vmatprep.mubr.f32.mxu0 0.0
      %v7024 = vand.u32 %v6655, 4294901760
      %v7025 = vsub.f32 %v6655, %v7024
      %7026 = vmatmul.mubr.f32.gmra.mrb[0].mxu0 %v7025
      %v7027 = vpop.f32.mrb[0].mxu0
      %v7028 = vadd.f32 %v6909, %v7027
      %v7029 = vpop.f32.mrb[0].mxu0
      %7030 = vmatprep.mubr.f32.mxu0 0.0
      %v7031 = vand.u32 %v6658, 4294901760
      %v7032 = vsub.f32 %v6658, %v7031
      %7033 = vmatmul.mubr.f32.gmra.mrb[0].mxu0 %v7032
      %v7034 = vpop.f32.mrb[0].mxu0
      %v7035 = vadd.f32 %v6915, %v7034
      %v7036 = vpop.f32.mrb[0].mxu0
      %7037 = vmatprep.mubr.f32.mxu0 0.0
      %v7038 = vand.u32 %v6661, 4294901760
      %v7039 = vsub.f32 %v6661, %v7038
      %7040 = vmatmul.mubr.f32.gmra.mrb[0].mxu0 %v7039
      %v7041 = vpop.f32.mrb[0].mxu0
      %v7042 = vadd.f32 %v6921, %v7041
      %v7043 = vpop.f32.mrb[0].mxu0
      %7044 = vmatprep.mubr.f32.mxu0 0.0
      %v7045 = vand.u32 %v6664, 4294901760
      %v7046 = vsub.f32 %v6664, %v7045
      %7047 = vmatmul.mubr.f32.gmra.mrb[0].mxu0 %v7046
      %v7048 = vpop.f32.mrb[0].mxu0
      %v7049 = vadd.f32 %v6927, %v7048
      %v7050 = vpop.f32.mrb[0].mxu0
      %7051 = vmatprep.mubr.f32.mxu0 0.0
      %v7052 = vand.u32 %v6667, 4294901760
      %v7053 = vsub.f32 %v6667, %v7052
      %7054 = vmatmul.mubr.f32.gmra.mrb[0].mxu0 %v7053
      %v7055 = vpop.f32.mrb[0].mxu0
      %v7056 = vadd.f32 %v6933, %v7055
      %v7057 = vpop.f32.mrb[0].mxu0
      %7058 = vdwg.mxu0
      %7059 = vmatprep.subr.mxu0 0.0
      %v7060 = vand.u32 %v6670, 4294901760
      %7061 = vmatpush1.msra.mxu0 %v7060
      %7062 = vmatprep.subr.mxu0 0.0
      %7063 = vmatpush1.msra.mxu0 0.0
      %7064 = vmatprep.subr.mxu0 0.0
      %7065 = vmatpush1.msra.mxu0 0.0
      %7066 = vmatprep.subr.mxu0 0.0
      %7067 = vmatpush1.msra.mxu0 0.0
      %7068 = vmatprep.subr.mxu0 0.0
      %7069 = vmatpush1.msra.mxu0 0.0
      %7070 = vmatprep.subr.mxu0 0.0
      %7071 = vmatpush1.msra.mxu0 0.0
      %7072 = vmatprep.subr.mxu0 0.0
      %7073 = vmatpush1.msra.mxu0 0.0
      %7074 = vmatprep.subr.mxu0 0.0
      %7075 = vmatpush1.msra.mxu0 0.0
      %7076 = vmatprep.subr.mxu0 0.0
      %7077 = vmatpush1.msra.mxu0 0.0
      %7078 = vmatprep.subr.mxu0 0.0
      %7079 = vmatpush1.msra.mxu0 0.0
      %7080 = vmatprep.subr.mxu0 0.0
      %7081 = vmatpush1.msra.mxu0 0.0
      %7082 = vmatprep.subr.mxu0 0.0
      %7083 = vmatpush1.msra.mxu0 0.0
      %7084 = vmatprep.subr.mxu0 0.0
      %7085 = vmatpush1.msra.mxu0 0.0
      %7086 = vmatprep.subr.mxu0 0.0
      %7087 = vmatpush1.msra.mxu0 0.0
      %7088 = vmatprep.subr.mxu0 0.0
      %7089 = vmatpush1.msra.mxu0 0.0
      %7090 = vmatprep.subr.mxu0 0.0
      %7091 = vmatpush1.msra.mxu0 0.0
      %7092 = vmatprep.subr.mxu0 0.0
      %7093 = vmatpush1.msra.mxu0 0.0
      %7094 = vmatprep.subr.mxu0 0.0
      %7095 = vmatpush1.msra.mxu0 0.0
      %7096 = vmatprep.subr.mxu0 0.0
      %7097 = vmatpush1.msra.mxu0 0.0
      %7098 = vmatprep.subr.mxu0 0.0
      %7099 = vmatpush1.msra.mxu0 0.0
      %7100 = vmatprep.subr.mxu0 0.0
      %7101 = vmatpush1.msra.mxu0 0.0
      %7102 = vmatprep.subr.mxu0 0.0
      %7103 = vmatpush1.msra.mxu0 0.0
      %7104 = vmatprep.subr.mxu0 0.0
      %7105 = vmatpush1.msra.mxu0 0.0
      %7106 = vmatprep.subr.mxu0 0.0
      %7107 = vmatpush1.msra.mxu0 0.0
      %7108 = vmatprep.subr.mxu0 0.0
      %7109 = vmatpush1.msra.mxu0 0.0
      %7110 = vmatprep.subr.mxu0 0.0
      %7111 = vmatpush1.msra.mxu0 0.0
      %7112 = vmatprep.subr.mxu0 0.0
      %7113 = vmatpush1.msra.mxu0 0.0
      %7114 = vmatprep.subr.mxu0 0.0
      %7115 = vmatpush1.msra.mxu0 0.0
      %7116 = vmatprep.subr.mxu0 0.0
      %7117 = vmatpush1.msra.mxu0 0.0
      %7118 = vmatprep.subr.mxu0 0.0
      %7119 = vmatpush1.msra.mxu0 0.0
      %7120 = vmatprep.subr.mxu0 0.0
      %7121 = vmatpush1.msra.mxu0 0.0
      %7122 = vmatprep.subr.mxu0 0.0
      %7123 = vmatpush1.msra.mxu0 0.0
      %7124 = vmatprep.mubr.f32.mxu0 0.0
      %v7125 = vand.u32 %v6646, 4294901760
      %v7126 = vsub.f32 %v6646, %v7125
      %v7127 = vand.u32 %v7126, 4294901760
      %7128 = vmatmul.mubr.f32.gmra.mrb[0].mxu0 %v7127
      %v7129 = vpop.f32.mrb[0].mxu0
      %v7130 = vadd.f32 %v7007, %v7129
      %v7131 = vpop.f32.mrb[0].mxu0
      %7132 = vmatprep.mubr.f32.mxu0 0.0
      %v7133 = vand.u32 %v6649, 4294901760
      %v7134 = vsub.f32 %v6649, %v7133
      %v7135 = vand.u32 %v7134, 4294901760
      %7136 = vmatmul.mubr.f32.gmra.mrb[0].mxu0 %v7135
      %v7137 = vpop.f32.mrb[0].mxu0
      %v7138 = vadd.f32 %v7014, %v7137
      %v7139 = vpop.f32.mrb[0].mxu0
      %7140 = vmatprep.mubr.f32.mxu0 0.0
      %v7141 = vand.u32 %v6652, 4294901760
      %v7142 = vsub.f32 %v6652, %v7141
      %v7143 = vand.u32 %v7142, 4294901760
      %7144 = vmatmul.mubr.f32.gmra.mrb[0].mxu0 %v7143
      %v7145 = vpop.f32.mrb[0].mxu0
      %v7146 = vadd.f32 %v7021, %v7145
      %v7147 = vpop.f32.mrb[0].mxu0
      %7148 = vmatprep.mubr.f32.mxu0 0.0
      %v7149 = vand.u32 %v6655, 4294901760
      %v7150 = vsub.f32 %v6655, %v7149
      %v7151 = vand.u32 %v7150, 4294901760
      %7152 = vmatmul.mubr.f32.gmra.mrb[0].mxu0 %v7151
      %v7153 = vpop.f32.mrb[0].mxu0
      %v7154 = vadd.f32 %v7028, %v7153
      %v7155 = vpop.f32.mrb[0].mxu0
      %7156 = vmatprep.mubr.f32.mxu0 0.0
      %v7157 = vand.u32 %v6658, 4294901760
      %v7158 = vsub.f32 %v6658, %v7157
      %v7159 = vand.u32 %v7158, 4294901760
      %7160 = vmatmul.mubr.f32.gmra.mrb[0].mxu0 %v7159
      %v7161 = vpop.f32.mrb[0].mxu0
      %v7162 = vadd.f32 %v7035, %v7161
      %v7163 = vpop.f32.mrb[0].mxu0
      %7164 = vmatprep.mubr.f32.mxu0 0.0
      %v7165 = vand.u32 %v6661, 4294901760
      %v7166 = vsub.f32 %v6661, %v7165
      %v7167 = vand.u32 %v7166, 4294901760
      %7168 = vmatmul.mubr.f32.gmra.mrb[0].mxu0 %v7167
      %v7169 = vpop.f32.mrb[0].mxu0
      %v7170 = vadd.f32 %v7042, %v7169
      %v7171 = vpop.f32.mrb[0].mxu0
      %7172 = vmatprep.mubr.f32.mxu0 0.0
      %v7173 = vand.u32 %v6664, 4294901760
      %v7174 = vsub.f32 %v6664, %v7173
      %v7175 = vand.u32 %v7174, 4294901760
      %7176 = vmatmul.mubr.f32.gmra.mrb[0].mxu0 %v7175
      %v7177 = vpop.f32.mrb[0].mxu0
      %v7178 = vadd.f32 %v7049, %v7177
      %v7179 = vpop.f32.mrb[0].mxu0
      %7180 = vmatprep.mubr.f32.mxu0 0.0
      %v7181 = vand.u32 %v6667, 4294901760
      %v7182 = vsub.f32 %v6667, %v7181
      %v7183 = vand.u32 %v7182, 4294901760
      %7184 = vmatmul.mubr.f32.gmra.mrb[0].mxu0 %v7183
      %v7185 = vpop.f32.mrb[0].mxu0
      %v7186 = vadd.f32 %v7056, %v7185
      %v7187 = vpop.f32.mrb[0].mxu0
      %7188 = vdwg.mxu0
      %7189 = vmatprep.subr.mxu0 0.0
      %v7190 = vand.u32 %v6670, 4294901760
      %v7191 = vsub.f32 %v6670, %v7190
      %v7192 = vand.u32 %v7191, 4294901760
      %7193 = vmatpush1.msra.mxu0 %v7192
      %7194 = vmatprep.subr.mxu0 0.0
      %7195 = vmatpush1.msra.mxu0 0.0
      %7196 = vmatprep.subr.mxu0 0.0
      %7197 = vmatpush1.msra.mxu0 0.0
      %7198 = vmatprep.subr.mxu0 0.0
      %7199 = vmatpush1.msra.mxu0 0.0
      %7200 = vmatprep.subr.mxu0 0.0
      %7201 = vmatpush1.msra.mxu0 0.0
      %7202 = vmatprep.subr.mxu0 0.0
      %7203 = vmatpush1.msra.mxu0 0.0
      %7204 = vmatprep.subr.mxu0 0.0
      %7205 = vmatpush1.msra.mxu0 0.0
      %7206 = vmatprep.subr.mxu0 0.0
      %7207 = vmatpush1.msra.mxu0 0.0
      %7208 = vmatprep.subr.mxu0 0.0
      %7209 = vmatpush1.msra.mxu0 0.0
      %7210 = vmatprep.subr.mxu0 0.0
      %7211 = vmatpush1.msra.mxu0 0.0
      %7212 = vmatprep.subr.mxu0 0.0
      %7213 = vmatpush1.msra.mxu0 0.0
      %7214 = vmatprep.subr.mxu0 0.0
      %7215 = vmatpush1.msra.mxu0 0.0
      %7216 = vmatprep.subr.mxu0 0.0
      %7217 = vmatpush1.msra.mxu0 0.0
      %7218 = vmatprep.subr.mxu0 0.0
      %7219 = vmatpush1.msra.mxu0 0.0
      %7220 = vmatprep.subr.mxu0 0.0
      %7221 = vmatpush1.msra.mxu0 0.0
      %7222 = vmatprep.subr.mxu0 0.0
      %7223 = vmatpush1.msra.mxu0 0.0
      %7224 = vmatprep.subr.mxu0 0.0
      %7225 = vmatpush1.msra.mxu0 0.0
      %7226 = vmatprep.subr.mxu0 0.0
      %7227 = vmatpush1.msra.mxu0 0.0
      %7228 = vmatprep.subr.mxu0 0.0
      %7229 = vmatpush1.msra.mxu0 0.0
      %7230 = vmatprep.subr.mxu0 0.0
      %7231 = vmatpush1.msra.mxu0 0.0
      %7232 = vmatprep.subr.mxu0 0.0
      %7233 = vmatpush1.msra.mxu0 0.0
      %7234 = vmatprep.subr.mxu0 0.0
      %7235 = vmatpush1.msra.mxu0 0.0
      %7236 = vmatprep.subr.mxu0 0.0
      %7237 = vmatpush1.msra.mxu0 0.0
      %7238 = vmatprep.subr.mxu0 0.0
      %7239 = vmatpush1.msra.mxu0 0.0
      %7240 = vmatprep.subr.mxu0 0.0
      %7241 = vmatpush1.msra.mxu0 0.0
      %7242 = vmatprep.subr.mxu0 0.0
      %7243 = vmatpush1.msra.mxu0 0.0
      %7244 = vmatprep.subr.mxu0 0.0
      %7245 = vmatpush1.msra.mxu0 0.0
      %7246 = vmatprep.subr.mxu0 0.0
      %7247 = vmatpush1.msra.mxu0 0.0
      %7248 = vmatprep.subr.mxu0 0.0
      %7249 = vmatpush1.msra.mxu0 0.0
      %7250 = vmatprep.subr.mxu0 0.0
      %7251 = vmatpush1.msra.mxu0 0.0
      %7252 = vmatprep.subr.mxu0 0.0
      %7253 = vmatpush1.msra.mxu0 0.0
      %7254 = vmatprep.subr.mxu0 0.0
      %7255 = vmatpush1.msra.mxu0 0.0
      %7256 = vmatprep.mubr.f32.mxu0 0.0
      %v7257 = vand.u32 %v6646, 4294901760
      %7258 = vmatmul.mubr.f32.gmra.mrb[0].mxu0 %v7257
      %v7259 = vpop.f32.mrb[0].mxu0
      %v7260 = vadd.f32 %v7130, %v7259
      %v7261 = vpop.f32.mrb[0].mxu0
      %7262 = vmatprep.mubr.f32.mxu0 0.0
      %v7263 = vand.u32 %v6649, 4294901760
      %7264 = vmatmul.mubr.f32.gmra.mrb[0].mxu0 %v7263
      %v7265 = vpop.f32.mrb[0].mxu0
      %v7266 = vadd.f32 %v7138, %v7265
      %v7267 = vpop.f32.mrb[0].mxu0
      %7268 = vmatprep.mubr.f32.mxu0 0.0
      %v7269 = vand.u32 %v6652, 4294901760
      %7270 = vmatmul.mubr.f32.gmra.mrb[0].mxu0 %v7269
      %v7271 = vpop.f32.mrb[0].mxu0
      %v7272 = vadd.f32 %v7146, %v7271
      %v7273 = vpop.f32.mrb[0].mxu0
      %7274 = vmatprep.mubr.f32.mxu0 0.0
      %v7275 = vand.u32 %v6655, 4294901760
      %7276 = vmatmul.mubr.f32.gmra.mrb[0].mxu0 %v7275
      %v7277 = vpop.f32.mrb[0].mxu0
      %v7278 = vadd.f32 %v7154, %v7277
      %v7279 = vpop.f32.mrb[0].mxu0
      %7280 = vmatprep.mubr.f32.mxu0 0.0
      %v7281 = vand.u32 %v6658, 4294901760
      %7282 = vmatmul.mubr.f32.gmra.mrb[0].mxu0 %v7281
      %v7283 = vpop.f32.mrb[0].mxu0
      %v7284 = vadd.f32 %v7162, %v7283
      %v7285 = vpop.f32.mrb[0].mxu0
      %7286 = vmatprep.mubr.f32.mxu0 0.0
      %v7287 = vand.u32 %v6661, 4294901760
      %7288 = vmatmul.mubr.f32.gmra.mrb[0].mxu0 %v7287
      %v7289 = vpop.f32.mrb[0].mxu0
      %v7290 = vadd.f32 %v7170, %v7289
      %v7291 = vpop.f32.mrb[0].mxu0
      %7292 = vmatprep.mubr.f32.mxu0 0.0
      %v7293 = vand.u32 %v6664, 4294901760
      %7294 = vmatmul.mubr.f32.gmra.mrb[0].mxu0 %v7293
      %v7295 = vpop.f32.mrb[0].mxu0
      %v7296 = vadd.f32 %v7178, %v7295
      %v7297 = vpop.f32.mrb[0].mxu0
      %7298 = vmatprep.mubr.f32.mxu0 0.0
      %v7299 = vand.u32 %v6667, 4294901760
      %7300 = vmatmul.mubr.f32.gmra.mrb[0].mxu0 %v7299
      %v7301 = vpop.f32.mrb[0].mxu0
      %v7302 = vadd.f32 %v7186, %v7301
      %v7303 = vpop.f32.mrb[0].mxu0
      %7304 = vdwg.mxu0
      %7305 = vmatprep.subr.mxu0 0.0
      %v7306 = vand.u32 %v6670, 4294901760
      %7307 = vmatpush1.msra.mxu0 %v7306
      %7308 = vmatprep.subr.mxu0 0.0
      %7309 = vmatpush1.msra.mxu0 0.0
      %7310 = vmatprep.subr.mxu0 0.0
      %7311 = vmatpush1.msra.mxu0 0.0
      %7312 = vmatprep.subr.mxu0 0.0
      %7313 = vmatpush1.msra.mxu0 0.0
      %7314 = vmatprep.subr.mxu0 0.0
      %7315 = vmatpush1.msra.mxu0 0.0
      %7316 = vmatprep.subr.mxu0 0.0
      %7317 = vmatpush1.msra.mxu0 0.0
      %7318 = vmatprep.subr.mxu0 0.0
      %7319 = vmatpush1.msra.mxu0 0.0
      %7320 = vmatprep.subr.mxu0 0.0
      %7321 = vmatpush1.msra.mxu0 0.0
      %7322 = vmatprep.subr.mxu0 0.0
      %7323 = vmatpush1.msra.mxu0 0.0
      %7324 = vmatprep.subr.mxu0 0.0
      %7325 = vmatpush1.msra.mxu0 0.0
      %7326 = vmatprep.subr.mxu0 0.0
      %7327 = vmatpush1.msra.mxu0 0.0
      %7328 = vmatprep.subr.mxu0 0.0
      %7329 = vmatpush1.msra.mxu0 0.0
      %7330 = vmatprep.subr.mxu0 0.0
      %7331 = vmatpush1.msra.mxu0 0.0
      %7332 = vmatprep.subr.mxu0 0.0
      %7333 = vmatpush1.msra.mxu0 0.0
      %7334 = vmatprep.subr.mxu0 0.0
      %7335 = vmatpush1.msra.mxu0 0.0
      %7336 = vmatprep.subr.mxu0 0.0
      %7337 = vmatpush1.msra.mxu0 0.0
      %7338 = vmatprep.subr.mxu0 0.0
      %7339 = vmatpush1.msra.mxu0 0.0
      %7340 = vmatprep.subr.mxu0 0.0
      %7341 = vmatpush1.msra.mxu0 0.0
      %7342 = vmatprep.subr.mxu0 0.0
      %7343 = vmatpush1.msra.mxu0 0.0
      %7344 = vmatprep.subr.mxu0 0.0
      %7345 = vmatpush1.msra.mxu0 0.0
      %7346 = vmatprep.subr.mxu0 0.0
      %7347 = vmatpush1.msra.mxu0 0.0
      %7348 = vmatprep.subr.mxu0 0.0
      %7349 = vmatpush1.msra.mxu0 0.0
      %7350 = vmatprep.subr.mxu0 0.0
      %7351 = vmatpush1.msra.mxu0 0.0
      %7352 = vmatprep.subr.mxu0 0.0
      %7353 = vmatpush1.msra.mxu0 0.0
      %7354 = vmatprep.subr.mxu0 0.0
      %7355 = vmatpush1.msra.mxu0 0.0
      %7356 = vmatprep.subr.mxu0 0.0
      %7357 = vmatpush1.msra.mxu0 0.0
      %7358 = vmatprep.subr.mxu0 0.0
      %7359 = vmatpush1.msra.mxu0 0.0
      %7360 = vmatprep.subr.mxu0 0.0
      %7361 = vmatpush1.msra.mxu0 0.0
      %7362 = vmatprep.subr.mxu0 0.0
      %7363 = vmatpush1.msra.mxu0 0.0
      %7364 = vmatprep.subr.mxu0 0.0
      %7365 = vmatpush1.msra.mxu0 0.0
      %7366 = vmatprep.subr.mxu0 0.0
      %7367 = vmatpush1.msra.mxu0 0.0
      %7368 = vmatprep.subr.mxu0 0.0
      %7369 = vmatpush1.msra.mxu0 0.0
      %7370 = vmatprep.mubr.f32.mxu0 0.0
      %v7371 = vand.u32 %v6646, 4294901760
      %7372 = vmatmul.mubr.f32.gmra.mrb[0].mxu0 %v7371
      %v7373 = vpop.f32.mrb[0].mxu0
      %v7374 = vadd.f32 %v7260, %v7373
      %v7375 = vpop.f32.mrb[0].mxu0
      %7376 = vmatprep.mubr.f32.mxu0 0.0
      %v7377 = vand.u32 %v6649, 4294901760
      %7378 = vmatmul.mubr.f32.gmra.mrb[0].mxu0 %v7377
      %v7379 = vpop.f32.mrb[0].mxu0
      %v7380 = vadd.f32 %v7266, %v7379
      %v7381 = vpop.f32.mrb[0].mxu0
      %7382 = vmatprep.mubr.f32.mxu0 0.0
      %v7383 = vand.u32 %v6652, 4294901760
      %7384 = vmatmul.mubr.f32.gmra.mrb[0].mxu0 %v7383
      %v7385 = vpop.f32.mrb[0].mxu0
      %v7386 = vadd.f32 %v7272, %v7385
      %v7387 = vpop.f32.mrb[0].mxu0
      %7388 = vmatprep.mubr.f32.mxu0 0.0
      %v7389 = vand.u32 %v6655, 4294901760
      %7390 = vmatmul.mubr.f32.gmra.mrb[0].mxu0 %v7389
      %v7391 = vpop.f32.mrb[0].mxu0
      %v7392 = vadd.f32 %v7278, %v7391
      %v7393 = vpop.f32.mrb[0].mxu0
      %7394 = vmatprep.mubr.f32.mxu0 0.0
      %v7395 = vand.u32 %v6658, 4294901760
      %7396 = vmatmul.mubr.f32.gmra.mrb[0].mxu0 %v7395
      %v7397 = vpop.f32.mrb[0].mxu0
      %v7398 = vadd.f32 %v7284, %v7397
      %v7399 = vpop.f32.mrb[0].mxu0
      %7400 = vmatprep.mubr.f32.mxu0 0.0
      %v7401 = vand.u32 %v6661, 4294901760
      %7402 = vmatmul.mubr.f32.gmra.mrb[0].mxu0 %v7401
      %v7403 = vpop.f32.mrb[0].mxu0
      %v7404 = vadd.f32 %v7290, %v7403
      %v7405 = vpop.f32.mrb[0].mxu0
      %7406 = vmatprep.mubr.f32.mxu0 0.0
      %v7407 = vand.u32 %v6664, 4294901760
      %7408 = vmatmul.mubr.f32.gmra.mrb[0].mxu0 %v7407
      %v7409 = vpop.f32.mrb[0].mxu0
      %v7410 = vadd.f32 %v7296, %v7409
      %v7411 = vpop.f32.mrb[0].mxu0
      %7412 = vmatprep.mubr.f32.mxu0 0.0
      %v7413 = vand.u32 %v6667, 4294901760
      %7414 = vmatmul.mubr.f32.gmra.mrb[0].mxu0 %v7413
      %v7415 = vpop.f32.mrb[0].mxu0
      %v7416 = vadd.f32 %v7302, %v7415
      %v7417 = vpop.f32.mrb[0].mxu0
      %7418 = vdwg.mxu0
      %v7419 = vadd.f32 %v6627, %v7374
      %v7420 = vadd.f32 %v6628, %v7380
      %v7421 = vadd.f32 %v6629, %v7386
      %v7422 = vadd.f32 %v6630, %v7392
      %v7423 = vadd.f32 %v6631, %v7398
      %v7424 = vadd.f32 %v6632, %v7404
      %v7425 = vadd.f32 %v6633, %v7410
      %v7426 = vadd.f32 %v6634, %v7416
      %v7427 = vld [vmem:[%s5] sm:$0x1]
      %v7429 = vlaneseq
      %v7430 = vshrl.u32 %v7429, 7
      %v7431 = vsub.s32 0, %v7430
      %v7432 = vrot.slane %v7427, %v7431
      %v7434 = vadd.f32 %v7419, %v7432
      %v7435 = vadd.f32 %v7420, %v7432
      %v7436 = vadd.f32 %v7421, %v7432
      %v7437 = vadd.f32 %v7422, %v7432
      %v7438 = vadd.f32 %v7423, %v7432
      %v7439 = vadd.f32 %v7424, %v7432
      %v7440 = vadd.f32 %v7425, %v7432
      %v7441 = vadd.f32 %v7426, %v7432
      %7442 = vst.msk [vmem:[%s311] sm:$0xff] %vm331, %v7434
      %7443 = vst.msk [vmem:[%s311 + $0x8] sm:$0xff] %vm331, %v7435
      %7444 = vst.msk [vmem:[%s311 + $0x10] sm:$0xff] %vm331, %v7436
      %7445 = vst.msk [vmem:[%s311 + $0x18] sm:$0xff] %vm331, %v7437
      %7446 = vst.msk [vmem:[%s311 + $0x20] sm:$0xff] %vm331, %v7438
      %7447 = vst.msk [vmem:[%s311 + $0x28] sm:$0xff] %vm331, %v7439
      %7448 = vst.msk [vmem:[%s311 + $0x30] sm:$0xff] %vm331, %v7440
      %7449 = vst.msk [vmem:[%s311 + $0x38] sm:$0xff] %vm331, %v7441
      %p7450 = scmp.lt.s32.totalorder %s17, 1
      %s7451 = scalar_select %p7450, %s17, 1
      %s7452 = smul.addr %s7451, 8
      %s7453 = smul.addr %s7452, 8
      %s7454 = scalar_lea.vmem %s6, %s7453
      // Predicated region
      $region45: #{tpu_custom_call.1} parent=43 // pred_check
        %p7455 = pneg %p181
      $region46: #{tpu_custom_call.1} parent=43 // pred_check_branch
        %7457 = sbr.rel (%p7455) target = $region48
      $region47: #{tpu_custom_call.1} parent=43 // pred_region
        _
      $region48: #{tpu_custom_call.1} parent=43 // pred_fallthru
        _
    $region44: #{tpu_custom_call.1} parent=5 // pred_fallthru
      _
    %p7458 = scmp.le.s32.totalorder 2, %s12
    // Predicated region
    $region49: #{tpu_custom_call.1} parent=5 // pred_check
      %p7459 = pneg %p7458
    $region50: #{tpu_custom_call.1} parent=5 // pred_check_branch
      %7461 = sbr.rel (%p7459) target = $region52
    $region51: #{tpu_custom_call.1} parent=5 // pred_region
      %s7462 = ssub.s32 %s12, 2
      // Predicated region
      $region53: #{tpu_custom_call.1} parent=51 // pred_check
        %p7463 = pneg %p187
      $region54: #{tpu_custom_call.1} parent=51 // pred_check_branch
        %7465 = sbr.rel (%p7463) target = $region56
      $region55: #{tpu_custom_call.1} parent=51 // pred_region
        %p7466 = scmp.lt.s32.totalorder %s18, 1
        %s7467 = scalar_select %p7466, %s18, 1
        %s7468 = smul.addr %s7467, 8
        %s7469 = smul.addr %s7468, 8
        %s7470 = scalar_lea.vmem %s6, %s7469
      $region56: #{tpu_custom_call.1} parent=51 // pred_fallthru
        _
    $region52: #{tpu_custom_call.1} parent=5 // pred_fallthru
      _
  $region6: #{tpu_custom_call.1} parent=0 // loop_footer
    %s16 = sadd.s32 1, %s12
  $region7: #{tpu_custom_call.1} parent=0 // loop_footer_branch
    %11 = sbr.rel target = $region3
  $region8: #{tpu_custom_call.1} parent=0 // loop_exit
    _

</llo_original>
